<compile_context>
chip_gen: v6e
topology: v6e:2x2x1
jax: 0.10.0
libtpu: 0.0.40
codegen_flags: <defaults>
</compile_context>

<pallas_src>
import jax
import jax.numpy as jnp
from jax.experimental import pallas as pl
from jax.experimental.pallas import tpu as pltpu

BN_EPS = 1e-5
H_LSTM = 256


# ----------------------------------------------------------------------------
# Pallas kernels
# ----------------------------------------------------------------------------
def conv_bn_relu_kernel(p_ref, w_ref, g_ref, b_ref, o_ref):
    """im2col-matmul conv + BatchNorm(batch stats) + ReLU, fused.

    p_ref: (rows, 9*Cin) patches  (rows = N*OH*OW, column order (kh, kw, cin))
    w_ref: (9*Cin, Cout) bf16 weight (rows permuted to match patch columns)
    g_ref, b_ref: (1, Cout) BatchNorm gamma / beta (f32)
    Conv bias is omitted: it cancels exactly through the batch-mean subtraction.
    """
    y = jnp.dot(p_ref[...], w_ref[...].astype(jnp.float32),
                preferred_element_type=jnp.float32)
    inv_rows = 1.0 / y.shape[0]
    # Single pass over y for both moments, then one FMA + ReLU pass.
    s1 = jnp.sum(y, axis=0, keepdims=True)
    s2 = jnp.sum(y * y, axis=0, keepdims=True)
    mean = s1 * inv_rows
    var = jnp.maximum(s2 * inv_rows - mean * mean, 0.0)   # biased variance
    scale = g_ref[...] * jax.lax.rsqrt(var + BN_EPS)
    shift = b_ref[...] - mean * scale
    o_ref[...] = jnp.maximum(y * scale + shift, 0.0)


def gdan_head_kernel(
        x_ref, idx_ref, hx_ref, cx_ref,
        fcw_ref, fcb_ref, d1w_ref, d1b_ref, d2w_ref, d2b_ref,
        emb_ref, taw_ref, tab_ref,
        wihf_ref, wiha_ref, bih_ref, whh_ref, bhh_ref,
        lqw_ref, lqb_ref, lkw_ref, lkb_ref,
        baf_ref, bah_ref, bab_ref,
        atv_ref, ath_ref, atb_ref,
        p1w_ref, p1b_ref, p2w_ref, p2b_ref, phw_ref, phb_ref,
        v1w_ref, v1b_ref, v2w_ref, v2b_ref, vhw_ref, vhb_ref,
        preds_ref, value_ref, policy_ref, hx_out_ref, cx_out_ref):
    """Feature_Extractor.fc + Goal_discriminator + whole Actor_Critic, fused."""
    f32 = jnp.float32

    def mm(a, w_ref_):
        return jnp.dot(a, w_ref_[...].astype(f32), preferred_element_type=f32)

    # ---- Feature_Extractor.fc ----
    img = jnp.maximum(mm(x_ref[...], fcw_ref) + fcb_ref[...], 0.0)

    # ---- Goal_discriminator ----
    query = jnp.maximum(mm(img, d1w_ref) + d1b_ref[...], 0.0)
    preds_ref[...] = mm(query, d2w_ref) + d2b_ref[...]

    # ---- Actor_Critic ----
    # Embedding lookup as one-hot @ embedding (no gather leaves VMEM).
    ids = idx_ref[...]                                             # (N, 1) int32
    onehot = (jax.lax.broadcasted_iota(jnp.int32, (ids.shape[0], 4), 1)
              == ids).astype(f32)                                  # (N, 4)
    word = mm(mm(onehot, emb_ref), taw_ref) + tab_ref[...]         # (N, 256)
    gated_att = jax.nn.sigmoid(word)
    gated_fusion = img * gated_att

    # LSTMCell (PyTorch gate order i, f, g, o); concat avoided by splitting W_ih rows.
    gates = (mm(gated_fusion, wihf_ref) + mm(gated_att, wiha_ref) + bih_ref[...]
             + mm(hx_ref[...], whh_ref) + bhh_ref[...])
    i = jax.nn.sigmoid(gates[:, 0 * H_LSTM:1 * H_LSTM])
    f = jax.nn.sigmoid(gates[:, 1 * H_LSTM:2 * H_LSTM])
    g = jnp.tanh(gates[:, 2 * H_LSTM:3 * H_LSTM])
    o = jax.nn.sigmoid(gates[:, 3 * H_LSTM:4 * H_LSTM])
    cx = f * cx_ref[...] + i * g
    hx = o * jnp.tanh(cx)

    # Attention block (before_attn / attn weights pre-split instead of concatenating).
    mlp_attn = jnp.maximum(mm(gated_fusion, baf_ref) + mm(hx, bah_ref) + bab_ref[...],
                           0.0)
    key = mlp_attn[:, :H_LSTM]
    val = mlp_attn[:, H_LSTM:]
    w_q = jnp.maximum(mm(query, lqw_ref) + lqb_ref[...], 0.0)
    w_k = jnp.maximum(mm(key, lkw_ref) + lkb_ref[...], 0.0)
    u_t = jnp.tanh(w_q + w_k)
    attention_vector = u_t * val
    attn_weight = jnp.maximum(mm(attention_vector, atv_ref) + mm(hx, ath_ref)
                              + atb_ref[...], 0.0)

    # Heads.
    pol = jnp.maximum(mm(attn_weight, p1w_ref) + p1b_ref[...], 0.0)
    pol = jnp.maximum(mm(pol, p2w_ref) + p2b_ref[...], 0.0)
    vl = jnp.maximum(mm(attn_weight, v1w_ref) + v1b_ref[...], 0.0)
    vl = jnp.maximum(mm(vl, v2w_ref) + v2b_ref[...], 0.0)

    value_ref[...] = mm(vl, vhw_ref) + vhb_ref[...]
    policy_ref[...] = mm(pol, phw_ref) + phb_ref[...]
    hx_out_ref[...] = hx
    cx_out_ref[...] = cx


# ----------------------------------------------------------------------------
# Wrappers (glue)
# ----------------------------------------------------------------------------
def _vspec():
    return pl.BlockSpec(memory_space=pltpu.MemorySpace.VMEM)


def im2col_nhwc(x, k=3, stride=2, pad=1):
    """x: (N, H, W, C) -> patches (N*OH*OW, k*k*C), column order (kh, kw, c).

    No data transpose: the (kh, kw) ordering is absorbed into the (tiny) weight
    matrix permutation done once in prepare_params().
    """
    N, H, W, C = x.shape
    xp = jnp.pad(x, ((0, 0), (pad, pad), (pad, pad), (0, 0)))
    OH = (H + 2 * pad - k) // stride + 1
    OW = (W + 2 * pad - k) // stride + 1
    cols = []
    for kh in range(k):
        for kw in range(k):
            cols.append(xp[:, kh:kh + stride * (OH - 1) + 1:stride,
                           kw:kw + stride * (OW - 1) + 1:stride, :])
    patches = jnp.stack(cols, axis=3)                 # (N, OH, OW, 9, C)
    return patches.reshape(N * OH * OW, k * k * C), OH, OW


def conv_bn_relu(x_nhwc, w2d, gamma, beta):
    # x_nhwc: (N, H, W, Cin), w2d: (9*Cin, Cout) -> (N, OH, OW, Cout)
    N = x_nhwc.shape[0]
    Cout = w2d.shape[1]
    patches, OH, OW = im2col_nhwc(x_nhwc)
    y = pl.pallas_call(
        conv_bn_relu_kernel,
        out_shape=jax.ShapeDtypeStruct((N * OH * OW, Cout), jnp.float32),
        in_specs=[_vspec()] * 4,
        out_specs=_vspec(),
    )(patches, w2d, gamma, beta)
    return y.reshape(N, OH, OW, Cout)


def gdan_head(x_flat, instruction, hx0, cx0, p):
    N = x_flat.shape[0]
    args = (x_flat, instruction, hx0, cx0,
            p["fc_w"], p["fc_b"], p["d1_w"], p["d1_b"], p["d2_w"], p["d2_b"],
            p["emb"], p["ta_w"], p["ta_b"],
            p["wih_f"], p["wih_a"], p["bih"], p["whh"], p["bhh"],
            p["lq_w"], p["lq_b"], p["lk_w"], p["lk_b"],
            p["ba_f"], p["ba_h"], p["ba_b"],
            p["at_v"], p["at_h"], p["at_b"],
            p["p1_w"], p["p1_b"], p["p2_w"], p["p2_b"], p["ph_w"], p["ph_b"],
            p["v1_w"], p["v1_b"], p["v2_w"], p["v2_b"], p["vh_w"], p["vh_b"])
    return pl.pallas_call(
        gdan_head_kernel,
        out_shape=(jax.ShapeDtypeStruct((N, 4), jnp.float32),     # preds
                   jax.ShapeDtypeStruct((N, 1), jnp.float32),     # value
                   jax.ShapeDtypeStruct((N, 3), jnp.float32),     # policy
                   jax.ShapeDtypeStruct((N, 256), jnp.float32),   # hx
                   jax.ShapeDtypeStruct((N, 256), jnp.float32)),  # cx
        in_specs=[_vspec()] * len(args),
        out_specs=tuple(_vspec() for _ in range(5)),
    )(*args)


# ----------------------------------------------------------------------------
# Parameters: synthetic PyTorch-layout params + one-time conversion to kernel layout
# ----------------------------------------------------------------------------
def init_params_torch(key):
    """Deterministic synthetic parameters in PyTorch layouts."""
    def nxt():
        nonlocal key
        key, sub = jax.random.split(key)
        return sub

    def w(shape, scale=0.05):
        return (scale * jax.random.normal(nxt(), shape)).astype(jnp.float32)

    tp = {}
    conv_dims = [(16, 32), (32, 32), (32, 64), (64, 64)]
    for i, (cin, cout) in enumerate(conv_dims, start=1):
        tp[f"conv{i}_w"] = w((cout, cin, 3, 3))            # torch Conv2d weight
        tp[f"conv{i}_b"] = w((cout,), 0.02)                # cancelled by BatchNorm
        tp[f"bn{i}_g"] = jnp.ones((cout,), jnp.float32)
        tp[f"bn{i}_b"] = jnp.zeros((cout,), jnp.float32)
    # torch Linear weights are (out, in)
    tp["fc_w"], tp["fc_b"] = w((256, 576)), w((256,), 0.02)
    tp["d1_w"], tp["d1_b"] = w((256, 256)), w((256,), 0.02)
    tp["d2_w"], tp["d2_b"] = w((4, 256)), w((4,), 0.02)
    tp["embedding"] = w((4, 25), 0.2)
    tp["ta_w"], tp["ta_b"] = w((256, 25)), w((256,), 0.02)
    tp["lstm_wih"], tp["lstm_bih"] = w((1024, 512)), w((1024,), 0.02)
    tp["lstm_whh"], tp["lstm_bhh"] = w((1024, 256)), w((1024,), 0.02)
    tp["lq_w"], tp["lq_b"] = w((256, 256)), w((256,), 0.02)
    tp["lk_w"], tp["lk_b"] = w((256, 256)), w((256,), 0.02)
    tp["ba_w"], tp["ba_b"] = w((512, 512)), w((512,), 0.02)
    tp["at_w"], tp["at_b"] = w((256, 512)), w((256,), 0.02)
    tp["p1_w"], tp["p1_b"] = w((128, 256)), w((128,), 0.02)
    tp["p2_w"], tp["p2_b"] = w((64, 128)), w((64,), 0.02)
    tp["ph_w"], tp["ph_b"] = w((3, 64)), w((3,), 0.02)
    tp["v1_w"], tp["v1_b"] = w((64, 256)), w((64,), 0.02)
    tp["v2_w"], tp["v2_b"] = w((32, 64)), w((32,), 0.02)
    tp["vh_w"], tp["vh_b"] = w((1, 32)), w((1,), 0.02)
    return tp


def prepare_params(tp):
    """One-time (outside jit) conversion of PyTorch-layout params to kernel layout.

    All layout adaptation (im2col column order, NCHW flatten before fc, concat
    removal via row-splits) lives here so the runtime graph has zero data shuffles.
    Large matrices are stored bf16 (weight-DMA bound at small batch); biases and
    BatchNorm affine params stay f32.
    """
    f32, bf16 = jnp.float32, jnp.bfloat16
    p = {}

    # Convs: (Cout, Cin, 3, 3) -> (9*Cin, Cout), row order (kh, kw, cin) matching
    # the im2col patch columns.  Conv bias dropped: BN batch-mean cancels it exactly.
    for i in range(1, 5):
        w = tp[f"conv{i}_w"]
        cout, cin = w.shape[0], w.shape[1]
        p[f"conv{i}_w"] = w.transpose(2, 3, 1, 0).reshape(9 * cin, cout).astype(bf16)
        p[f"bn{i}_g"] = tp[f"bn{i}_g"].reshape(1, -1).astype(f32)
        p[f"bn{i}_b"] = tp[f"bn{i}_b"].reshape(1, -1).astype(f32)

    # fc: torch flattens NCHW (c, h, w); our activations flatten as (h, w, c).
    # Permute the weight ROWS once instead of transposing the activation per step.
    fw = tp["fc_w"].T.reshape(64, 3, 3, 256).transpose(1, 2, 0, 3).reshape(576, 256)
    p["fc_w"] = fw.astype(bf16)
    p["fc_b"] = tp["fc_b"].reshape(1, -1).astype(f32)

    # Plain Linear layers: (out, in) -> (in, out), bias -> (1, out).
    for name in ("d1", "d2", "ta", "lq", "lk", "p1", "p2", "ph", "v1", "v2", "vh"):
        p[f"{name}_w"] = tp[f"{name}_w"].T.astype(bf16)
        p[f"{name}_b"] = tp[f"{name}_b"].reshape(1, -1).astype(f32)

    p["emb"] = tp["embedding"].astype(bf16)                      # (4, 25)

    # LSTMCell: split W_ih rows so lstm_input = cat([gated_fusion, gated_att]) becomes
    # a sum of two matmuls (no in-kernel concatenate).
    wih = tp["lstm_wih"].T                                       # (512, 1024), cols (i,f,g,o)
    p["wih_f"] = wih[:256].astype(bf16)
    p["wih_a"] = wih[256:].astype(bf16)
    p["bih"] = tp["lstm_bih"].reshape(1, -1).astype(f32)
    p["whh"] = tp["lstm_whh"].T.astype(bf16)                     # (256, 1024)
    p["bhh"] = tp["lstm_bhh"].reshape(1, -1).astype(f32)

    # before_attn: mlp_input = cat([gated_fusion, hx]) -> split rows.
    ba = tp["ba_w"].T                                            # (512, 512)
    p["ba_f"], p["ba_h"] = ba[:256].astype(bf16), ba[256:].astype(bf16)
    p["ba_b"] = tp["ba_b"].reshape(1, -1).astype(f32)

    # attn: attn_weight = cat([attention_vector, hx]) -> split rows.
    at = tp["at_w"].T                                            # (512, 256)
    p["at_v"], p["at_h"] = at[:256].astype(bf16), at[256:].astype(bf16)
    p["at_b"] = tp["at_b"].reshape(1, -1).astype(f32)
    return p


# ----------------------------------------------------------------------------
# Full GDAN forward
# ----------------------------------------------------------------------------
@jax.jit
def gdan_forward(params, state, instruction, hx0, cx0):
    # ---- Feature_Extractor convs ----
    x = jnp.transpose(state, (0, 2, 3, 1))          # NCHW -> NHWC (only data transpose)
    for i in range(1, 5):
        x = conv_bn_relu(x, params[f"conv{i}_w"],
                         params[f"bn{i}_g"], params[f"bn{i}_b"])
    N = x.shape[0]
    x_flat = x.reshape(N, -1)   # (N, H*W*C); fc_w rows pre-permuted to match torch .view

    # ---- fc + Goal_discriminator + Actor_Critic (single fused kernel) ----
    preds, value, policy, hx, cx = gdan_head(x_flat, instruction, hx0, cx0, params)
    return preds, value, policy, hx, cx


if __name__ == "__main__":
    key = jax.random.PRNGKey(0)
    k_param, k_state, k_instr, k_hx, k_cx = jax.random.split(key, 5)

    params = prepare_params(init_params_torch(k_param))

    N = 2
    # spatial 48 is required so that 4 stride-2 convs yield 3x3 (fc expects 64*3*3)
    state = jax.random.normal(k_state, (N, 16, 48, 48), dtype=jnp.float32)
    instruction = jax.random.randint(k_instr, (N, 1), 0, 4, dtype=jnp.int32)
    hx0 = jax.random.normal(k_hx, (N, 256), dtype=jnp.float32)
    cx0 = jax.random.normal(k_cx, (N, 256), dtype=jnp.float32)

    preds, value, policy, hx, cx = gdan_forward(params, state, instruction, hx0, cx0)
    jax.block_until_ready((preds, value, policy, hx, cx))

    assert preds.shape == (N, 4)
    assert value.shape == (N, 1)
    assert policy.shape == (N, 3)
    assert hx.shape == (N, 256) and cx.shape == (N, 256)
    print("KERNEL_OK")
</pallas_src>

<mosaic_0001>
module attributes {stable_mosaic.version = 11 : i64} {
  func.func @conv_bn_relu_kernel(%arg0: memref<1152x144xf32, #tpu.memory_space<vmem>>, %arg1: memref<144x32xbf16, #tpu.memory_space<vmem>>, %arg2: memref<1x32xf32, #tpu.memory_space<vmem>>, %arg3: memref<1x32xf32, #tpu.memory_space<vmem>>, %arg4: memref<1152x32xf32, #tpu.memory_space<vmem>>) attributes {dimension_semantics = [], scalar_prefetch = 0 : i64, scratch_operands = 0 : i64, tpu.core_type = #tpu.core_type<tc>} {
    %c0 = arith.constant 0 : index
    %c0_0 = arith.constant 0 : index
    %0 = vector.load %arg0[%c0, %c0_0] : memref<1152x144xf32, #tpu.memory_space<vmem>>, vector<1152x144xf32>
    %c0_1 = arith.constant 0 : index
    %c0_2 = arith.constant 0 : index
    %1 = vector.load %arg1[%c0_1, %c0_2] : memref<144x32xbf16, #tpu.memory_space<vmem>>, vector<144x32xbf16>
    %2 = arith.extf %1 : vector<144x32xbf16> to vector<144x32xf32>
    %cst = arith.constant dense<0.000000e+00> : vector<1152x32xf32>
    %3 = tpu.matmul %0, %2, %cst {dimension_numbers = #tpu.dot_dimension_numbers<[1], [0], [0], [1], [0, 0, 1, 1], [], []>} : vector<1152x144xf32>, vector<144x32xf32>, vector<1152x32xf32> -> vector<1152x32xf32>
    %cst_3 = arith.constant dense<0.000000e+00> : vector<32xf32>
    %4 = vector.multi_reduction <add>, %3, %cst_3 [0] : vector<1152x32xf32> to vector<32xf32>
    %5 = vector.shape_cast %4 : vector<32xf32> to vector<1x32xf32>
    %6 = arith.mulf %3, %3 : vector<1152x32xf32>
    %cst_4 = arith.constant dense<0.000000e+00> : vector<32xf32>
    %7 = vector.multi_reduction <add>, %6, %cst_4 [0] : vector<1152x32xf32> to vector<32xf32>
    %8 = vector.shape_cast %7 : vector<32xf32> to vector<1x32xf32>
    %cst_5 = arith.constant 8.68055562E-4 : f32
    %9 = vector.broadcast %cst_5 : f32 to vector<1x32xf32>
    %10 = arith.mulf %5, %9 : vector<1x32xf32>
    %cst_6 = arith.constant 8.68055562E-4 : f32
    %11 = vector.broadcast %cst_6 : f32 to vector<1x32xf32>
    %12 = arith.mulf %8, %11 : vector<1x32xf32>
    %13 = arith.mulf %10, %10 : vector<1x32xf32>
    %14 = arith.subf %12, %13 : vector<1x32xf32>
    %cst_7 = arith.constant 0.000000e+00 : f32
    %15 = vector.broadcast %cst_7 : f32 to vector<1x32xf32>
    %16 = arith.maximumf %14, %15 : vector<1x32xf32>
    %c0_8 = arith.constant 0 : index
    %c0_9 = arith.constant 0 : index
    %17 = vector.load %arg2[%c0_8, %c0_9] : memref<1x32xf32, #tpu.memory_space<vmem>>, vector<1x32xf32>
    %cst_10 = arith.constant 9.99999974E-6 : f32
    %18 = vector.broadcast %cst_10 : f32 to vector<1x32xf32>
    %19 = arith.addf %16, %18 : vector<1x32xf32>
    %20 = math.rsqrt %19 : vector<1x32xf32>
    %21 = arith.mulf %17, %20 : vector<1x32xf32>
    %c0_11 = arith.constant 0 : index
    %c0_12 = arith.constant 0 : index
    %22 = vector.load %arg3[%c0_11, %c0_12] : memref<1x32xf32, #tpu.memory_space<vmem>>, vector<1x32xf32>
    %23 = arith.mulf %10, %21 : vector<1x32xf32>
    %24 = arith.subf %22, %23 : vector<1x32xf32>
    %25 = vector.broadcast %21 : vector<1x32xf32> to vector<1152x32xf32>
    %26 = arith.mulf %3, %25 : vector<1152x32xf32>
    %27 = vector.broadcast %24 : vector<1x32xf32> to vector<1152x32xf32>
    %28 = arith.addf %26, %27 : vector<1152x32xf32>
    %cst_13 = arith.constant 0.000000e+00 : f32
    %29 = vector.broadcast %cst_13 : f32 to vector<1152x32xf32>
    %30 = arith.maximumf %28, %29 : vector<1152x32xf32>
    %c0_14 = arith.constant 0 : index
    %c0_15 = arith.constant 0 : index
    %31 = vector.load %arg4[%c0_14, %c0_15] : memref<1152x32xf32, #tpu.memory_space<vmem>>, vector<1152x32xf32>
    tpu.vector_store %arg4[%c0_14, %c0_15], %30 {strides = array<i32>} : memref<1152x32xf32, #tpu.memory_space<vmem>>, vector<1152x32xf32>,
    return
  }
}

module attributes {stable_mosaic.version = 11 : i64} {
  func.func @conv_bn_relu_kernel(%arg0: memref<288x288xf32, #tpu.memory_space<vmem>>, %arg1: memref<288x32xbf16, #tpu.memory_space<vmem>>, %arg2: memref<1x32xf32, #tpu.memory_space<vmem>>, %arg3: memref<1x32xf32, #tpu.memory_space<vmem>>, %arg4: memref<288x32xf32, #tpu.memory_space<vmem>>) attributes {dimension_semantics = [], scalar_prefetch = 0 : i64, scratch_operands = 0 : i64, tpu.core_type = #tpu.core_type<tc>} {
    %c0 = arith.constant 0 : index
    %c0_0 = arith.constant 0 : index
    %0 = vector.load %arg0[%c0, %c0_0] : memref<288x288xf32, #tpu.memory_space<vmem>>, vector<288x288xf32>
    %c0_1 = arith.constant 0 : index
    %c0_2 = arith.constant 0 : index
    %1 = vector.load %arg1[%c0_1, %c0_2] : memref<288x32xbf16, #tpu.memory_space<vmem>>, vector<288x32xbf16>
    %2 = arith.extf %1 : vector<288x32xbf16> to vector<288x32xf32>
    %cst = arith.constant dense<0.000000e+00> : vector<288x32xf32>
    %3 = tpu.matmul %0, %2, %cst {dimension_numbers = #tpu.dot_dimension_numbers<[1], [0], [0], [1], [0, 0, 1, 1], [], []>} : vector<288x288xf32>, vector<288x32xf32>, vector<288x32xf32> -> vector<288x32xf32>
    %cst_3 = arith.constant dense<0.000000e+00> : vector<32xf32>
    %4 = vector.multi_reduction <add>, %3, %cst_3 [0] : vector<288x32xf32> to vector<32xf32>
    %5 = vector.shape_cast %4 : vector<32xf32> to vector<1x32xf32>
    %6 = arith.mulf %3, %3 : vector<288x32xf32>
    %cst_4 = arith.constant dense<0.000000e+00> : vector<32xf32>
    %7 = vector.multi_reduction <add>, %6, %cst_4 [0] : vector<288x32xf32> to vector<32xf32>
    %8 = vector.shape_cast %7 : vector<32xf32> to vector<1x32xf32>
    %cst_5 = arith.constant 0.00347222225 : f32
    %9 = vector.broadcast %cst_5 : f32 to vector<1x32xf32>
    %10 = arith.mulf %5, %9 : vector<1x32xf32>
    %cst_6 = arith.constant 0.00347222225 : f32
    %11 = vector.broadcast %cst_6 : f32 to vector<1x32xf32>
    %12 = arith.mulf %8, %11 : vector<1x32xf32>
    %13 = arith.mulf %10, %10 : vector<1x32xf32>
    %14 = arith.subf %12, %13 : vector<1x32xf32>
    %cst_7 = arith.constant 0.000000e+00 : f32
    %15 = vector.broadcast %cst_7 : f32 to vector<1x32xf32>
    %16 = arith.maximumf %14, %15 : vector<1x32xf32>
    %c0_8 = arith.constant 0 : index
    %c0_9 = arith.constant 0 : index
    %17 = vector.load %arg2[%c0_8, %c0_9] : memref<1x32xf32, #tpu.memory_space<vmem>>, vector<1x32xf32>
    %cst_10 = arith.constant 9.99999974E-6 : f32
    %18 = vector.broadcast %cst_10 : f32 to vector<1x32xf32>
    %19 = arith.addf %16, %18 : vector<1x32xf32>
    %20 = math.rsqrt %19 : vector<1x32xf32>
    %21 = arith.mulf %17, %20 : vector<1x32xf32>
    %c0_11 = arith.constant 0 : index
    %c0_12 = arith.constant 0 : index
    %22 = vector.load %arg3[%c0_11, %c0_12] : memref<1x32xf32, #tpu.memory_space<vmem>>, vector<1x32xf32>
    %23 = arith.mulf %10, %21 : vector<1x32xf32>
    %24 = arith.subf %22, %23 : vector<1x32xf32>
    %25 = vector.broadcast %21 : vector<1x32xf32> to vector<288x32xf32>
    %26 = arith.mulf %3, %25 : vector<288x32xf32>
    %27 = vector.broadcast %24 : vector<1x32xf32> to vector<288x32xf32>
    %28 = arith.addf %26, %27 : vector<288x32xf32>
    %cst_13 = arith.constant 0.000000e+00 : f32
    %29 = vector.broadcast %cst_13 : f32 to vector<288x32xf32>
    %30 = arith.maximumf %28, %29 : vector<288x32xf32>
    %c0_14 = arith.constant 0 : index
    %c0_15 = arith.constant 0 : index
    %31 = vector.load %arg4[%c0_14, %c0_15] : memref<288x32xf32, #tpu.memory_space<vmem>>, vector<288x32xf32>
    tpu.vector_store %arg4[%c0_14, %c0_15], %30 {strides = array<i32>} : memref<288x32xf32, #tpu.memory_space<vmem>>, vector<288x32xf32>,
    return
  }
}

module attributes {stable_mosaic.version = 11 : i64} {
  func.func @conv_bn_relu_kernel(%arg0: memref<72x288xf32, #tpu.memory_space<vmem>>, %arg1: memref<288x64xbf16, #tpu.memory_space<vmem>>, %arg2: memref<1x64xf32, #tpu.memory_space<vmem>>, %arg3: memref<1x64xf32, #tpu.memory_space<vmem>>, %arg4: memref<72x64xf32, #tpu.memory_space<vmem>>) attributes {dimension_semantics = [], scalar_prefetch = 0 : i64, scratch_operands = 0 : i64, tpu.core_type = #tpu.core_type<tc>} {
    %c0 = arith.constant 0 : index
    %c0_0 = arith.constant 0 : index
    %0 = vector.load %arg0[%c0, %c0_0] : memref<72x288xf32, #tpu.memory_space<vmem>>, vector<72x288xf32>
    %c0_1 = arith.constant 0 : index
    %c0_2 = arith.constant 0 : index
    %1 = vector.load %arg1[%c0_1, %c0_2] : memref<288x64xbf16, #tpu.memory_space<vmem>>, vector<288x64xbf16>
    %2 = arith.extf %1 : vector<288x64xbf16> to vector<288x64xf32>
    %cst = arith.constant dense<0.000000e+00> : vector<72x64xf32>
    %3 = tpu.matmul %0, %2, %cst {dimension_numbers = #tpu.dot_dimension_numbers<[1], [0], [0], [1], [0, 0, 1, 1], [], []>} : vector<72x288xf32>, vector<288x64xf32>, vector<72x64xf32> -> vector<72x64xf32>
    %cst_3 = arith.constant dense<0.000000e+00> : vector<64xf32>
    %4 = vector.multi_reduction <add>, %3, %cst_3 [0] : vector<72x64xf32> to vector<64xf32>
    %5 = vector.shape_cast %4 : vector<64xf32> to vector<1x64xf32>
    %6 = arith.mulf %3, %3 : vector<72x64xf32>
    %cst_4 = arith.constant dense<0.000000e+00> : vector<64xf32>
    %7 = vector.multi_reduction <add>, %6, %cst_4 [0] : vector<72x64xf32> to vector<64xf32>
    %8 = vector.shape_cast %7 : vector<64xf32> to vector<1x64xf32>
    %cst_5 = arith.constant 0.013888889 : f32
    %9 = vector.broadcast %cst_5 : f32 to vector<1x64xf32>
    %10 = arith.mulf %5, %9 : vector<1x64xf32>
    %cst_6 = arith.constant 0.013888889 : f32
    %11 = vector.broadcast %cst_6 : f32 to vector<1x64xf32>
    %12 = arith.mulf %8, %11 : vector<1x64xf32>
    %13 = arith.mulf %10, %10 : vector<1x64xf32>
    %14 = arith.subf %12, %13 : vector<1x64xf32>
    %cst_7 = arith.constant 0.000000e+00 : f32
    %15 = vector.broadcast %cst_7 : f32 to vector<1x64xf32>
    %16 = arith.maximumf %14, %15 : vector<1x64xf32>
    %c0_8 = arith.constant 0 : index
    %c0_9 = arith.constant 0 : index
    %17 = vector.load %arg2[%c0_8, %c0_9] : memref<1x64xf32, #tpu.memory_space<vmem>>, vector<1x64xf32>
    %cst_10 = arith.constant 9.99999974E-6 : f32
    %18 = vector.broadcast %cst_10 : f32 to vector<1x64xf32>
    %19 = arith.addf %16, %18 : vector<1x64xf32>
    %20 = math.rsqrt %19 : vector<1x64xf32>
    %21 = arith.mulf %17, %20 : vector<1x64xf32>
    %c0_11 = arith.constant 0 : index
    %c0_12 = arith.constant 0 : index
    %22 = vector.load %arg3[%c0_11, %c0_12] : memref<1x64xf32, #tpu.memory_space<vmem>>, vector<1x64xf32>
    %23 = arith.mulf %10, %21 : vector<1x64xf32>
    %24 = arith.subf %22, %23 : vector<1x64xf32>
    %25 = vector.broadcast %21 : vector<1x64xf32> to vector<72x64xf32>
    %26 = arith.mulf %3, %25 : vector<72x64xf32>
    %27 = vector.broadcast %24 : vector<1x64xf32> to vector<72x64xf32>
    %28 = arith.addf %26, %27 : vector<72x64xf32>
    %cst_13 = arith.constant 0.000000e+00 : f32
    %29 = vector.broadcast %cst_13 : f32 to vector<72x64xf32>
    %30 = arith.maximumf %28, %29 : vector<72x64xf32>
    %c0_14 = arith.constant 0 : index
    %c0_15 = arith.constant 0 : index
    %31 = vector.load %arg4[%c0_14, %c0_15] : memref<72x64xf32, #tpu.memory_space<vmem>>, vector<72x64xf32>
    tpu.vector_store %arg4[%c0_14, %c0_15], %30 {strides = array<i32>} : memref<72x64xf32, #tpu.memory_space<vmem>>, vector<72x64xf32>,
    return
  }
}

module attributes {stable_mosaic.version = 11 : i64} {
  func.func @conv_bn_relu_kernel(%arg0: memref<18x576xf32, #tpu.memory_space<vmem>>, %arg1: memref<576x64xbf16, #tpu.memory_space<vmem>>, %arg2: memref<1x64xf32, #tpu.memory_space<vmem>>, %arg3: memref<1x64xf32, #tpu.memory_space<vmem>>, %arg4: memref<18x64xf32, #tpu.memory_space<vmem>>) attributes {dimension_semantics = [], scalar_prefetch = 0 : i64, scratch_operands = 0 : i64, tpu.core_type = #tpu.core_type<tc>} {
    %c0 = arith.constant 0 : index
    %c0_0 = arith.constant 0 : index
    %0 = vector.load %arg0[%c0, %c0_0] : memref<18x576xf32, #tpu.memory_space<vmem>>, vector<18x576xf32>
    %c0_1 = arith.constant 0 : index
    %c0_2 = arith.constant 0 : index
    %1 = vector.load %arg1[%c0_1, %c0_2] : memref<576x64xbf16, #tpu.memory_space<vmem>>, vector<576x64xbf16>
    %2 = arith.extf %1 : vector<576x64xbf16> to vector<576x64xf32>
    %cst = arith.constant dense<0.000000e+00> : vector<18x64xf32>
    %3 = tpu.matmul %0, %2, %cst {dimension_numbers = #tpu.dot_dimension_numbers<[1], [0], [0], [1], [0, 0, 1, 1], [], []>} : vector<18x576xf32>, vector<576x64xf32>, vector<18x64xf32> -> vector<18x64xf32>
    %cst_3 = arith.constant dense<0.000000e+00> : vector<64xf32>
    %4 = vector.multi_reduction <add>, %3, %cst_3 [0] : vector<18x64xf32> to vector<64xf32>
    %5 = vector.shape_cast %4 : vector<64xf32> to vector<1x64xf32>
    %6 = arith.mulf %3, %3 : vector<18x64xf32>
    %cst_4 = arith.constant dense<0.000000e+00> : vector<64xf32>
    %7 = vector.multi_reduction <add>, %6, %cst_4 [0] : vector<18x64xf32> to vector<64xf32>
    %8 = vector.shape_cast %7 : vector<64xf32> to vector<1x64xf32>
    %cst_5 = arith.constant 0.055555556 : f32
    %9 = vector.broadcast %cst_5 : f32 to vector<1x64xf32>
    %10 = arith.mulf %5, %9 : vector<1x64xf32>
    %cst_6 = arith.constant 0.055555556 : f32
    %11 = vector.broadcast %cst_6 : f32 to vector<1x64xf32>
    %12 = arith.mulf %8, %11 : vector<1x64xf32>
    %13 = arith.mulf %10, %10 : vector<1x64xf32>
    %14 = arith.subf %12, %13 : vector<1x64xf32>
    %cst_7 = arith.constant 0.000000e+00 : f32
    %15 = vector.broadcast %cst_7 : f32 to vector<1x64xf32>
    %16 = arith.maximumf %14, %15 : vector<1x64xf32>
    %c0_8 = arith.constant 0 : index
    %c0_9 = arith.constant 0 : index
    %17 = vector.load %arg2[%c0_8, %c0_9] : memref<1x64xf32, #tpu.memory_space<vmem>>, vector<1x64xf32>
    %cst_10 = arith.constant 9.99999974E-6 : f32
    %18 = vector.broadcast %cst_10 : f32 to vector<1x64xf32>
    %19 = arith.addf %16, %18 : vector<1x64xf32>
    %20 = math.rsqrt %19 : vector<1x64xf32>
    %21 = arith.mulf %17, %20 : vector<1x64xf32>
    %c0_11 = arith.constant 0 : index
    %c0_12 = arith.constant 0 : index
    %22 = vector.load %arg3[%c0_11, %c0_12] : memref<1x64xf32, #tpu.memory_space<vmem>>, vector<1x64xf32>
    %23 = arith.mulf %10, %21 : vector<1x64xf32>
    %24 = arith.subf %22, %23 : vector<1x64xf32>
    %25 = vector.broadcast %21 : vector<1x64xf32> to vector<18x64xf32>
    %26 = arith.mulf %3, %25 : vector<18x64xf32>
    %27 = vector.broadcast %24 : vector<1x64xf32> to vector<18x64xf32>
    %28 = arith.addf %26, %27 : vector<18x64xf32>
    %cst_13 = arith.constant 0.000000e+00 : f32
    %29 = vector.broadcast %cst_13 : f32 to vector<18x64xf32>
    %30 = arith.maximumf %28, %29 : vector<18x64xf32>
    %c0_14 = arith.constant 0 : index
    %c0_15 = arith.constant 0 : index
    %31 = vector.load %arg4[%c0_14, %c0_15] : memref<18x64xf32, #tpu.memory_space<vmem>>, vector<18x64xf32>
    tpu.vector_store %arg4[%c0_14, %c0_15], %30 {strides = array<i32>} : memref<18x64xf32, #tpu.memory_space<vmem>>, vector<18x64xf32>,
    return
  }
}

module attributes {stable_mosaic.version = 11 : i64} {
  func.func @gdan_head_kernel(%arg0: memref<2x576xf32, #tpu.memory_space<vmem>>, %arg1: memref<2x1xi32, #tpu.memory_space<vmem>>, %arg2: memref<2x256xf32, #tpu.memory_space<vmem>>, %arg3: memref<2x256xf32, #tpu.memory_space<vmem>>, %arg4: memref<576x256xbf16, #tpu.memory_space<vmem>>, %arg5: memref<1x256xf32, #tpu.memory_space<vmem>>, %arg6: memref<256x256xbf16, #tpu.memory_space<vmem>>, %arg7: memref<1x256xf32, #tpu.memory_space<vmem>>, %arg8: memref<256x4xbf16, #tpu.memory_space<vmem>>, %arg9: memref<1x4xf32, #tpu.memory_space<vmem>>, %arg10: memref<4x25xbf16, #tpu.memory_space<vmem>>, %arg11: memref<25x256xbf16, #tpu.memory_space<vmem>>, %arg12: memref<1x256xf32, #tpu.memory_space<vmem>>, %arg13: memref<256x1024xbf16, #tpu.memory_space<vmem>>, %arg14: memref<256x1024xbf16, #tpu.memory_space<vmem>>, %arg15: memref<1x1024xf32, #tpu.memory_space<vmem>>, %arg16: memref<256x1024xbf16, #tpu.memory_space<vmem>>, %arg17: memref<1x1024xf32, #tpu.memory_space<vmem>>, %arg18: memref<256x256xbf16, #tpu.memory_space<vmem>>, %arg19: memref<1x256xf32, #tpu.memory_space<vmem>>, %arg20: memref<256x256xbf16, #tpu.memory_space<vmem>>, %arg21: memref<1x256xf32, #tpu.memory_space<vmem>>, %arg22: memref<256x512xbf16, #tpu.memory_space<vmem>>, %arg23: memref<256x512xbf16, #tpu.memory_space<vmem>>, %arg24: memref<1x512xf32, #tpu.memory_space<vmem>>, %arg25: memref<256x256xbf16, #tpu.memory_space<vmem>>, %arg26: memref<256x256xbf16, #tpu.memory_space<vmem>>, %arg27: memref<1x256xf32, #tpu.memory_space<vmem>>, %arg28: memref<256x128xbf16, #tpu.memory_space<vmem>>, %arg29: memref<1x128xf32, #tpu.memory_space<vmem>>, %arg30: memref<128x64xbf16, #tpu.memory_space<vmem>>, %arg31: memref<1x64xf32, #tpu.memory_space<vmem>>, %arg32: memref<64x3xbf16, #tpu.memory_space<vmem>>, %arg33: memref<1x3xf32, #tpu.memory_space<vmem>>, %arg34: memref<256x64xbf16, #tpu.memory_space<vmem>>, %arg35: memref<1x64xf32, #tpu.memory_space<vmem>>, %arg36: memref<64x32xbf16, #tpu.memory_space<vmem>>, %arg37: memref<1x32xf32, #tpu.memory_space<vmem>>, %arg38: memref<32x1xbf16, #tpu.memory_space<vmem>>, %arg39: memref<1x1xf32, #tpu.memory_space<vmem>>, %arg40: memref<2x4xf32, #tpu.memory_space<vmem>>, %arg41: memref<2x1xf32, #tpu.memory_space<vmem>>, %arg42: memref<2x3xf32, #tpu.memory_space<vmem>>, %arg43: memref<2x256xf32, #tpu.memory_space<vmem>>, %arg44: memref<2x256xf32, #tpu.memory_space<vmem>>) attributes {dimension_semantics = [], scalar_prefetch = 0 : i64, scratch_operands = 0 : i64, tpu.core_type = #tpu.core_type<tc>} {
    %c0 = arith.constant 0 : index
    %c0_0 = arith.constant 0 : index
    %0 = vector.load %arg0[%c0, %c0_0] : memref<2x576xf32, #tpu.memory_space<vmem>>, vector<2x576xf32>
    %c0_1 = arith.constant 0 : index
    %c0_2 = arith.constant 0 : index
    %1 = vector.load %arg4[%c0_1, %c0_2] : memref<576x256xbf16, #tpu.memory_space<vmem>>, vector<576x256xbf16>
    %2 = arith.extf %1 : vector<576x256xbf16> to vector<576x256xf32>
    %cst = arith.constant dense<0.000000e+00> : vector<2x256xf32>
    %3 = tpu.matmul %0, %2, %cst {dimension_numbers = #tpu.dot_dimension_numbers<[1], [0], [0], [1], [0, 0, 1, 1], [], []>} : vector<2x576xf32>, vector<576x256xf32>, vector<2x256xf32> -> vector<2x256xf32>
    %c0_3 = arith.constant 0 : index
    %c0_4 = arith.constant 0 : index
    %4 = vector.load %arg5[%c0_3, %c0_4] : memref<1x256xf32, #tpu.memory_space<vmem>>, vector<1x256xf32>
    %5 = vector.broadcast %4 : vector<1x256xf32> to vector<2x256xf32>
    %6 = arith.addf %3, %5 : vector<2x256xf32>
    %cst_5 = arith.constant 0.000000e+00 : f32
    %7 = vector.broadcast %cst_5 : f32 to vector<2x256xf32>
    %8 = arith.maximumf %6, %7 : vector<2x256xf32>
    %c0_6 = arith.constant 0 : index
    %c0_7 = arith.constant 0 : index
    %9 = vector.load %arg6[%c0_6, %c0_7] : memref<256x256xbf16, #tpu.memory_space<vmem>>, vector<256x256xbf16>
    %10 = arith.extf %9 : vector<256x256xbf16> to vector<256x256xf32>
    %cst_8 = arith.constant dense<0.000000e+00> : vector<2x256xf32>
    %11 = tpu.matmul %8, %10, %cst_8 {dimension_numbers = #tpu.dot_dimension_numbers<[1], [0], [0], [1], [0, 0, 1, 1], [], []>} : vector<2x256xf32>, vector<256x256xf32>, vector<2x256xf32> -> vector<2x256xf32>
    %c0_9 = arith.constant 0 : index
    %c0_10 = arith.constant 0 : index
    %12 = vector.load %arg7[%c0_9, %c0_10] : memref<1x256xf32, #tpu.memory_space<vmem>>, vector<1x256xf32>
    %13 = vector.broadcast %12 : vector<1x256xf32> to vector<2x256xf32>
    %14 = arith.addf %11, %13 : vector<2x256xf32>
    %cst_11 = arith.constant 0.000000e+00 : f32
    %15 = vector.broadcast %cst_11 : f32 to vector<2x256xf32>
    %16 = arith.maximumf %14, %15 : vector<2x256xf32>
    %c0_12 = arith.constant 0 : index
    %c0_13 = arith.constant 0 : index
    %17 = vector.load %arg8[%c0_12, %c0_13] : memref<256x4xbf16, #tpu.memory_space<vmem>>, vector<256x4xbf16>
    %18 = arith.extf %17 : vector<256x4xbf16> to vector<256x4xf32>
    %cst_14 = arith.constant dense<0.000000e+00> : vector<2x4xf32>
    %19 = tpu.matmul %16, %18, %cst_14 {dimension_numbers = #tpu.dot_dimension_numbers<[1], [0], [0], [1], [0, 0, 1, 1], [], []>} : vector<2x256xf32>, vector<256x4xf32>, vector<2x4xf32> -> vector<2x4xf32>
    %c0_15 = arith.constant 0 : index
    %c0_16 = arith.constant 0 : index
    %20 = vector.load %arg9[%c0_15, %c0_16] : memref<1x4xf32, #tpu.memory_space<vmem>>, vector<1x4xf32>
    %21 = vector.broadcast %20 : vector<1x4xf32> to vector<2x4xf32>
    %22 = arith.addf %19, %21 : vector<2x4xf32>
    %c0_17 = arith.constant 0 : index
    %c0_18 = arith.constant 0 : index
    %23 = vector.load %arg40[%c0_17, %c0_18] : memref<2x4xf32, #tpu.memory_space<vmem>>, vector<2x4xf32>
    tpu.vector_store %arg40[%c0_17, %c0_18], %22 {strides = array<i32>} : memref<2x4xf32, #tpu.memory_space<vmem>>, vector<2x4xf32>,
    %c0_19 = arith.constant 0 : index
    %c0_20 = arith.constant 0 : index
    %24 = vector.load %arg1[%c0_19, %c0_20] : memref<2x1xi32, #tpu.memory_space<vmem>>, vector<2x1xi32>
    %25 = tpu.iota {dimensions = array<i32: 1>} : vector<2x4xi32>
    %26 = vector.broadcast %24 : vector<2x1xi32> to vector<2x4xi32>
    %27 = arith.cmpi eq, %25, %26 : vector<2x4xi32>
    %28 = arith.extui %27 : vector<2x4xi1> to vector<2x4xi32>
    %29 = arith.sitofp %28 : vector<2x4xi32> to vector<2x4xf32>
    %c0_21 = arith.constant 0 : index
    %c0_22 = arith.constant 0 : index
    %30 = vector.load %arg10[%c0_21, %c0_22] : memref<4x25xbf16, #tpu.memory_space<vmem>>, vector<4x25xbf16>
    %31 = arith.extf %30 : vector<4x25xbf16> to vector<4x25xf32>
    %cst_23 = arith.constant dense<0.000000e+00> : vector<2x25xf32>
    %32 = tpu.matmul %29, %31, %cst_23 {dimension_numbers = #tpu.dot_dimension_numbers<[1], [0], [0], [1], [0, 0, 1, 1], [], []>} : vector<2x4xf32>, vector<4x25xf32>, vector<2x25xf32> -> vector<2x25xf32>
    %c0_24 = arith.constant 0 : index
    %c0_25 = arith.constant 0 : index
    %33 = vector.load %arg11[%c0_24, %c0_25] : memref<25x256xbf16, #tpu.memory_space<vmem>>, vector<25x256xbf16>
    %34 = arith.extf %33 : vector<25x256xbf16> to vector<25x256xf32>
    %cst_26 = arith.constant dense<0.000000e+00> : vector<2x256xf32>
    %35 = tpu.matmul %32, %34, %cst_26 {dimension_numbers = #tpu.dot_dimension_numbers<[1], [0], [0], [1], [0, 0, 1, 1], [], []>} : vector<2x25xf32>, vector<25x256xf32>, vector<2x256xf32> -> vector<2x256xf32>
    %c0_27 = arith.constant 0 : index
    %c0_28 = arith.constant 0 : index
    %36 = vector.load %arg12[%c0_27, %c0_28] : memref<1x256xf32, #tpu.memory_space<vmem>>, vector<1x256xf32>
    %37 = vector.broadcast %36 : vector<1x256xf32> to vector<2x256xf32>
    %38 = arith.addf %35, %37 : vector<2x256xf32>
    %39 = arith.negf %38 : vector<2x256xf32>
    %40 = math.exp %39 : vector<2x256xf32>
    %cst_29 = arith.constant 1.000000e+00 : f32
    %41 = vector.broadcast %cst_29 : f32 to vector<2x256xf32>
    %42 = arith.addf %41, %40 : vector<2x256xf32>
    %43 = arith.divf %41, %42 : vector<2x256xf32>
    %44 = arith.mulf %8, %43 : vector<2x256xf32>
    %c0_30 = arith.constant 0 : index
    %c0_31 = arith.constant 0 : index
    %45 = vector.load %arg13[%c0_30, %c0_31] : memref<256x1024xbf16, #tpu.memory_space<vmem>>, vector<256x1024xbf16>
    %46 = arith.extf %45 : vector<256x1024xbf16> to vector<256x1024xf32>
    %cst_32 = arith.constant dense<0.000000e+00> : vector<2x1024xf32>
    %47 = tpu.matmul %44, %46, %cst_32 {dimension_numbers = #tpu.dot_dimension_numbers<[1], [0], [0], [1], [0, 0, 1, 1], [], []>} : vector<2x256xf32>, vector<256x1024xf32>, vector<2x1024xf32> -> vector<2x1024xf32>
    %c0_33 = arith.constant 0 : index
    %c0_34 = arith.constant 0 : index
    %48 = vector.load %arg14[%c0_33, %c0_34] : memref<256x1024xbf16, #tpu.memory_space<vmem>>, vector<256x1024xbf16>
    %49 = arith.extf %48 : vector<256x1024xbf16> to vector<256x1024xf32>
    %cst_35 = arith.constant dense<0.000000e+00> : vector<2x1024xf32>
    %50 = tpu.matmul %43, %49, %cst_35 {dimension_numbers = #tpu.dot_dimension_numbers<[1], [0], [0], [1], [0, 0, 1, 1], [], []>} : vector<2x256xf32>, vector<256x1024xf32>, vector<2x1024xf32> -> vector<2x1024xf32>
    %51 = arith.addf %47, %50 : vector<2x1024xf32>
    %c0_36 = arith.constant 0 : index
    %c0_37 = arith.constant 0 : index
    %52 = vector.load %arg15[%c0_36, %c0_37] : memref<1x1024xf32, #tpu.memory_space<vmem>>, vector<1x1024xf32>
    %53 = vector.broadcast %52 : vector<1x1024xf32> to vector<2x1024xf32>
    %54 = arith.addf %51, %53 : vector<2x1024xf32>
    %c0_38 = arith.constant 0 : index
    %c0_39 = arith.constant 0 : index
    %55 = vector.load %arg2[%c0_38, %c0_39] : memref<2x256xf32, #tpu.memory_space<vmem>>, vector<2x256xf32>
    %c0_40 = arith.constant 0 : index
    %c0_41 = arith.constant 0 : index
    %56 = vector.load %arg16[%c0_40, %c0_41] : memref<256x1024xbf16, #tpu.memory_space<vmem>>, vector<256x1024xbf16>
    %57 = arith.extf %56 : vector<256x1024xbf16> to vector<256x1024xf32>
    %cst_42 = arith.constant dense<0.000000e+00> : vector<2x1024xf32>
    %58 = tpu.matmul %55, %57, %cst_42 {dimension_numbers = #tpu.dot_dimension_numbers<[1], [0], [0], [1], [0, 0, 1, 1], [], []>} : vector<2x256xf32>, vector<256x1024xf32>, vector<2x1024xf32> -> vector<2x1024xf32>
    %59 = arith.addf %54, %58 : vector<2x1024xf32>
    %c0_43 = arith.constant 0 : index
    %c0_44 = arith.constant 0 : index
    %60 = vector.load %arg17[%c0_43, %c0_44] : memref<1x1024xf32, #tpu.memory_space<vmem>>, vector<1x1024xf32>
    %61 = vector.broadcast %60 : vector<1x1024xf32> to vector<2x1024xf32>
    %62 = arith.addf %59, %61 : vector<2x1024xf32>
    %63 = vector.extract_strided_slice %62 {offsets = [0, 0], sizes = [2, 256], strides = [1, 1]} : vector<2x1024xf32> to vector<2x256xf32>
    %64 = arith.negf %63 : vector<2x256xf32>
    %65 = math.exp %64 : vector<2x256xf32>
    %cst_45 = arith.constant 1.000000e+00 : f32
    %66 = vector.broadcast %cst_45 : f32 to vector<2x256xf32>
    %67 = arith.addf %66, %65 : vector<2x256xf32>
    %68 = arith.divf %66, %67 : vector<2x256xf32>
    %69 = vector.extract_strided_slice %62 {offsets = [0, 256], sizes = [2, 256], strides = [1, 1]} : vector<2x1024xf32> to vector<2x256xf32>
    %70 = arith.negf %69 : vector<2x256xf32>
    %71 = math.exp %70 : vector<2x256xf32>
    %cst_46 = arith.constant 1.000000e+00 : f32
    %72 = vector.broadcast %cst_46 : f32 to vector<2x256xf32>
    %73 = arith.addf %72, %71 : vector<2x256xf32>
    %74 = arith.divf %72, %73 : vector<2x256xf32>
    %75 = vector.extract_strided_slice %62 {offsets = [0, 512], sizes = [2, 256], strides = [1, 1]} : vector<2x1024xf32> to vector<2x256xf32>
    %76 = math.tanh %75 : vector<2x256xf32>
    %77 = vector.extract_strided_slice %62 {offsets = [0, 768], sizes = [2, 256], strides = [1, 1]} : vector<2x1024xf32> to vector<2x256xf32>
    %78 = arith.negf %77 : vector<2x256xf32>
    %79 = math.exp %78 : vector<2x256xf32>
    %cst_47 = arith.constant 1.000000e+00 : f32
    %80 = vector.broadcast %cst_47 : f32 to vector<2x256xf32>
    %81 = arith.addf %80, %79 : vector<2x256xf32>
    %82 = arith.divf %80, %81 : vector<2x256xf32>
    %c0_48 = arith.constant 0 : index
    %c0_49 = arith.constant 0 : index
    %83 = vector.load %arg3[%c0_48, %c0_49] : memref<2x256xf32, #tpu.memory_space<vmem>>, vector<2x256xf32>
    %84 = arith.mulf %74, %83 : vector<2x256xf32>
    %85 = arith.mulf %68, %76 : vector<2x256xf32>
    %86 = arith.addf %84, %85 : vector<2x256xf32>
    %87 = math.tanh %86 : vector<2x256xf32>
    %88 = arith.mulf %82, %87 : vector<2x256xf32>
    %c0_50 = arith.constant 0 : index
    %c0_51 = arith.constant 0 : index
    %89 = vector.load %arg22[%c0_50, %c0_51] : memref<256x512xbf16, #tpu.memory_space<vmem>>, vector<256x512xbf16>
    %90 = arith.extf %89 : vector<256x512xbf16> to vector<256x512xf32>
    %cst_52 = arith.constant dense<0.000000e+00> : vector<2x512xf32>
    %91 = tpu.matmul %44, %90, %cst_52 {dimension_numbers = #tpu.dot_dimension_numbers<[1], [0], [0], [1], [0, 0, 1, 1], [], []>} : vector<2x256xf32>, vector<256x512xf32>, vector<2x512xf32> -> vector<2x512xf32>
    %c0_53 = arith.constant 0 : index
    %c0_54 = arith.constant 0 : index
    %92 = vector.load %arg23[%c0_53, %c0_54] : memref<256x512xbf16, #tpu.memory_space<vmem>>, vector<256x512xbf16>
    %93 = arith.extf %92 : vector<256x512xbf16> to vector<256x512xf32>
    %cst_55 = arith.constant dense<0.000000e+00> : vector<2x512xf32>
    %94 = tpu.matmul %88, %93, %cst_55 {dimension_numbers = #tpu.dot_dimension_numbers<[1], [0], [0], [1], [0, 0, 1, 1], [], []>} : vector<2x256xf32>, vector<256x512xf32>, vector<2x512xf32> -> vector<2x512xf32>
    %95 = arith.addf %91, %94 : vector<2x512xf32>
    %c0_56 = arith.constant 0 : index
    %c0_57 = arith.constant 0 : index
    %96 = vector.load %arg24[%c0_56, %c0_57] : memref<1x512xf32, #tpu.memory_space<vmem>>, vector<1x512xf32>
    %97 = vector.broadcast %96 : vector<1x512xf32> to vector<2x512xf32>
    %98 = arith.addf %95, %97 : vector<2x512xf32>
    %cst_58 = arith.constant 0.000000e+00 : f32
    %99 = vector.broadcast %cst_58 : f32 to vector<2x512xf32>
    %100 = arith.maximumf %98, %99 : vector<2x512xf32>
    %101 = vector.extract_strided_slice %100 {offsets = [0, 0], sizes = [2, 256], strides = [1, 1]} : vector<2x512xf32> to vector<2x256xf32>
    %102 = vector.extract_strided_slice %100 {offsets = [0, 256], sizes = [2, 256], strides = [1, 1]} : vector<2x512xf32> to vector<2x256xf32>
    %c0_59 = arith.constant 0 : index
    %c0_60 = arith.constant 0 : index
    %103 = vector.load %arg18[%c0_59, %c0_60] : memref<256x256xbf16, #tpu.memory_space<vmem>>, vector<256x256xbf16>
    %104 = arith.extf %103 : vector<256x256xbf16> to vector<256x256xf32>
    %cst_61 = arith.constant dense<0.000000e+00> : vector<2x256xf32>
    %105 = tpu.matmul %16, %104, %cst_61 {dimension_numbers = #tpu.dot_dimension_numbers<[1], [0], [0], [1], [0, 0, 1, 1], [], []>} : vector<2x256xf32>, vector<256x256xf32>, vector<2x256xf32> -> vector<2x256xf32>
    %c0_62 = arith.constant 0 : index
    %c0_63 = arith.constant 0 : index
    %106 = vector.load %arg19[%c0_62, %c0_63] : memref<1x256xf32, #tpu.memory_space<vmem>>, vector<1x256xf32>
    %107 = vector.broadcast %106 : vector<1x256xf32> to vector<2x256xf32>
    %108 = arith.addf %105, %107 : vector<2x256xf32>
    %cst_64 = arith.constant 0.000000e+00 : f32
    %109 = vector.broadcast %cst_64 : f32 to vector<2x256xf32>
    %110 = arith.maximumf %108, %109 : vector<2x256xf32>
    %c0_65 = arith.constant 0 : index
    %c0_66 = arith.constant 0 : index
    %111 = vector.load %arg20[%c0_65, %c0_66] : memref<256x256xbf16, #tpu.memory_space<vmem>>, vector<256x256xbf16>
    %112 = arith.extf %111 : vector<256x256xbf16> to vector<256x256xf32>
    %cst_67 = arith.constant dense<0.000000e+00> : vector<2x256xf32>
    %113 = tpu.matmul %101, %112, %cst_67 {dimension_numbers = #tpu.dot_dimension_numbers<[1], [0], [0], [1], [0, 0, 1, 1], [], []>} : vector<2x256xf32>, vector<256x256xf32>, vector<2x256xf32> -> vector<2x256xf32>
    %c0_68 = arith.constant 0 : index
    %c0_69 = arith.constant 0 : index
    %114 = vector.load %arg21[%c0_68, %c0_69] : memref<1x256xf32, #tpu.memory_space<vmem>>, vector<1x256xf32>
    %115 = vector.broadcast %114 : vector<1x256xf32> to vector<2x256xf32>
    %116 = arith.addf %113, %115 : vector<2x256xf32>
    %cst_70 = arith.constant 0.000000e+00 : f32
    %117 = vector.broadcast %cst_70 : f32 to vector<2x256xf32>
    %118 = arith.maximumf %116, %117 : vector<2x256xf32>
    %119 = arith.addf %110, %118 : vector<2x256xf32>
    %120 = math.tanh %119 : vector<2x256xf32>
    %121 = arith.mulf %120, %102 : vector<2x256xf32>
    %c0_71 = arith.constant 0 : index
    %c0_72 = arith.constant 0 : index
    %122 = vector.load %arg25[%c0_71, %c0_72] : memref<256x256xbf16, #tpu.memory_space<vmem>>, vector<256x256xbf16>
    %123 = arith.extf %122 : vector<256x256xbf16> to vector<256x256xf32>
    %cst_73 = arith.constant dense<0.000000e+00> : vector<2x256xf32>
    %124 = tpu.matmul %121, %123, %cst_73 {dimension_numbers = #tpu.dot_dimension_numbers<[1], [0], [0], [1], [0, 0, 1, 1], [], []>} : vector<2x256xf32>, vector<256x256xf32>, vector<2x256xf32> -> vector<2x256xf32>
    %c0_74 = arith.constant 0 : index
    %c0_75 = arith.constant 0 : index
    %125 = vector.load %arg26[%c0_74, %c0_75] : memref<256x256xbf16, #tpu.memory_space<vmem>>, vector<256x256xbf16>
    %126 = arith.extf %125 : vector<256x256xbf16> to vector<256x256xf32>
    %cst_76 = arith.constant dense<0.000000e+00> : vector<2x256xf32>
    %127 = tpu.matmul %88, %126, %cst_76 {dimension_numbers = #tpu.dot_dimension_numbers<[1], [0], [0], [1], [0, 0, 1, 1], [], []>} : vector<2x256xf32>, vector<256x256xf32>, vector<2x256xf32> -> vector<2x256xf32>
    %128 = arith.addf %124, %127 : vector<2x256xf32>
    %c0_77 = arith.constant 0 : index
    %c0_78 = arith.constant 0 : index
    %129 = vector.load %arg27[%c0_77, %c0_78] : memref<1x256xf32, #tpu.memory_space<vmem>>, vector<1x256xf32>
    %130 = vector.broadcast %129 : vector<1x256xf32> to vector<2x256xf32>
    %131 = arith.addf %128, %130 : vector<2x256xf32>
    %cst_79 = arith.constant 0.000000e+00 : f32
    %132 = vector.broadcast %cst_79 : f32 to vector<2x256xf32>
    %133 = arith.maximumf %131, %132 : vector<2x256xf32>
    %c0_80 = arith.constant 0 : index
    %c0_81 = arith.constant 0 : index
    %134 = vector.load %arg28[%c0_80, %c0_81] : memref<256x128xbf16, #tpu.memory_space<vmem>>, vector<256x128xbf16>
    %135 = arith.extf %134 : vector<256x128xbf16> to vector<256x128xf32>
    %cst_82 = arith.constant dense<0.000000e+00> : vector<2x128xf32>
    %136 = tpu.matmul %133, %135, %cst_82 {dimension_numbers = #tpu.dot_dimension_numbers<[1], [0], [0], [1], [0, 0, 1, 1], [], []>} : vector<2x256xf32>, vector<256x128xf32>, vector<2x128xf32> -> vector<2x128xf32>
    %c0_83 = arith.constant 0 : index
    %c0_84 = arith.constant 0 : index
    %137 = vector.load %arg29[%c0_83, %c0_84] : memref<1x128xf32, #tpu.memory_space<vmem>>, vector<1x128xf32>
    %138 = vector.broadcast %137 : vector<1x128xf32> to vector<2x128xf32>
    %139 = arith.addf %136, %138 : vector<2x128xf32>
    %cst_85 = arith.constant 0.000000e+00 : f32
    %140 = vector.broadcast %cst_85 : f32 to vector<2x128xf32>
    %141 = arith.maximumf %139, %140 : vector<2x128xf32>
    %c0_86 = arith.constant 0 : index
    %c0_87 = arith.constant 0 : index
    %142 = vector.load %arg30[%c0_86, %c0_87] : memref<128x64xbf16, #tpu.memory_space<vmem>>, vector<128x64xbf16>
    %143 = arith.extf %142 : vector<128x64xbf16> to vector<128x64xf32>
    %cst_88 = arith.constant dense<0.000000e+00> : vector<2x64xf32>
    %144 = tpu.matmul %141, %143, %cst_88 {dimension_numbers = #tpu.dot_dimension_numbers<[1], [0], [0], [1], [0, 0, 1, 1], [], []>} : vector<2x128xf32>, vector<128x64xf32>, vector<2x64xf32> -> vector<2x64xf32>
    %c0_89 = arith.constant 0 : index
    %c0_90 = arith.constant 0 : index
    %145 = vector.load %arg31[%c0_89, %c0_90] : memref<1x64xf32, #tpu.memory_space<vmem>>, vector<1x64xf32>
    %146 = vector.broadcast %145 : vector<1x64xf32> to vector<2x64xf32>
    %147 = arith.addf %144, %146 : vector<2x64xf32>
    %cst_91 = arith.constant 0.000000e+00 : f32
    %148 = vector.broadcast %cst_91 : f32 to vector<2x64xf32>
    %149 = arith.maximumf %147, %148 : vector<2x64xf32>
    %c0_92 = arith.constant 0 : index
    %c0_93 = arith.constant 0 : index
    %150 = vector.load %arg34[%c0_92, %c0_93] : memref<256x64xbf16, #tpu.memory_space<vmem>>, vector<256x64xbf16>
    %151 = arith.extf %150 : vector<256x64xbf16> to vector<256x64xf32>
    %cst_94 = arith.constant dense<0.000000e+00> : vector<2x64xf32>
    %152 = tpu.matmul %133, %151, %cst_94 {dimension_numbers = #tpu.dot_dimension_numbers<[1], [0], [0], [1], [0, 0, 1, 1], [], []>} : vector<2x256xf32>, vector<256x64xf32>, vector<2x64xf32> -> vector<2x64xf32>
    %c0_95 = arith.constant 0 : index
    %c0_96 = arith.constant 0 : index
    %153 = vector.load %arg35[%c0_95, %c0_96] : memref<1x64xf32, #tpu.memory_space<vmem>>, vector<1x64xf32>
    %154 = vector.broadcast %153 : vector<1x64xf32> to vector<2x64xf32>
    %155 = arith.addf %152, %154 : vector<2x64xf32>
    %cst_97 = arith.constant 0.000000e+00 : f32
    %156 = vector.broadcast %cst_97 : f32 to vector<2x64xf32>
    %157 = arith.maximumf %155, %156 : vector<2x64xf32>
    %c0_98 = arith.constant 0 : index
    %c0_99 = arith.constant 0 : index
    %158 = vector.load %arg36[%c0_98, %c0_99] : memref<64x32xbf16, #tpu.memory_space<vmem>>, vector<64x32xbf16>
    %159 = arith.extf %158 : vector<64x32xbf16> to vector<64x32xf32>
    %cst_100 = arith.constant dense<0.000000e+00> : vector<2x32xf32>
    %160 = tpu.matmul %157, %159, %cst_100 {dimension_numbers = #tpu.dot_dimension_numbers<[1], [0], [0], [1], [0, 0, 1, 1], [], []>} : vector<2x64xf32>, vector<64x32xf32>, vector<2x32xf32> -> vector<2x32xf32>
    %c0_101 = arith.constant 0 : index
    %c0_102 = arith.constant 0 : index
    %161 = vector.load %arg37[%c0_101, %c0_102] : memref<1x32xf32, #tpu.memory_space<vmem>>, vector<1x32xf32>
    %162 = vector.broadcast %161 : vector<1x32xf32> to vector<2x32xf32>
    %163 = arith.addf %160, %162 : vector<2x32xf32>
    %cst_103 = arith.constant 0.000000e+00 : f32
    %164 = vector.broadcast %cst_103 : f32 to vector<2x32xf32>
    %165 = arith.maximumf %163, %164 : vector<2x32xf32>
    %c0_104 = arith.constant 0 : index
    %c0_105 = arith.constant 0 : index
    %166 = vector.load %arg38[%c0_104, %c0_105] : memref<32x1xbf16, #tpu.memory_space<vmem>>, vector<32x1xbf16>
    %167 = arith.extf %166 : vector<32x1xbf16> to vector<32x1xf32>
    %cst_106 = arith.constant dense<0.000000e+00> : vector<2x1xf32>
    %168 = tpu.matmul %165, %167, %cst_106 {dimension_numbers = #tpu.dot_dimension_numbers<[1], [0], [0], [1], [0, 0, 1, 1], [], []>} : vector<2x32xf32>, vector<32x1xf32>, vector<2x1xf32> -> vector<2x1xf32>
    %c0_107 = arith.constant 0 : index
    %c0_108 = arith.constant 0 : index
    %169 = vector.load %arg39[%c0_107, %c0_108] : memref<1x1xf32, #tpu.memory_space<vmem>>, vector<1x1xf32>
    %170 = vector.broadcast %169 : vector<1x1xf32> to vector<2x1xf32>
    %171 = arith.addf %168, %170 : vector<2x1xf32>
    %c0_109 = arith.constant 0 : index
    %c0_110 = arith.constant 0 : index
    %172 = vector.load %arg41[%c0_109, %c0_110] : memref<2x1xf32, #tpu.memory_space<vmem>>, vector<2x1xf32>
    tpu.vector_store %arg41[%c0_109, %c0_110], %171 {strides = array<i32>} : memref<2x1xf32, #tpu.memory_space<vmem>>, vector<2x1xf32>,
    %c0_111 = arith.constant 0 : index
    %c0_112 = arith.constant 0 : index
    %173 = vector.load %arg32[%c0_111, %c0_112] : memref<64x3xbf16, #tpu.memory_space<vmem>>, vector<64x3xbf16>
    %174 = arith.extf %173 : vector<64x3xbf16> to vector<64x3xf32>
    %cst_113 = arith.constant dense<0.000000e+00> : vector<2x3xf32>
    %175 = tpu.matmul %149, %174, %cst_113 {dimension_numbers = #tpu.dot_dimension_numbers<[1], [0], [0], [1], [0, 0, 1, 1], [], []>} : vector<2x64xf32>, vector<64x3xf32>, vector<2x3xf32> -> vector<2x3xf32>
    %c0_114 = arith.constant 0 : index
    %c0_115 = arith.constant 0 : index
    %176 = vector.load %arg33[%c0_114, %c0_115] : memref<1x3xf32, #tpu.memory_space<vmem>>, vector<1x3xf32>
    %177 = vector.broadcast %176 : vector<1x3xf32> to vector<2x3xf32>
    %178 = arith.addf %175, %177 : vector<2x3xf32>
    %c0_116 = arith.constant 0 : index
    %c0_117 = arith.constant 0 : index
    %179 = vector.load %arg42[%c0_116, %c0_117] : memref<2x3xf32, #tpu.memory_space<vmem>>, vector<2x3xf32>
    tpu.vector_store %arg42[%c0_116, %c0_117], %178 {strides = array<i32>} : memref<2x3xf32, #tpu.memory_space<vmem>>, vector<2x3xf32>,
    %c0_118 = arith.constant 0 : index
    %c0_119 = arith.constant 0 : index
    %180 = vector.load %arg43[%c0_118, %c0_119] : memref<2x256xf32, #tpu.memory_space<vmem>>, vector<2x256xf32>
    tpu.vector_store %arg43[%c0_118, %c0_119], %88 {strides = array<i32>} : memref<2x256xf32, #tpu.memory_space<vmem>>, vector<2x256xf32>,
    %c0_120 = arith.constant 0 : index
    %c0_121 = arith.constant 0 : index
    %181 = vector.load %arg44[%c0_120, %c0_121] : memref<2x256xf32, #tpu.memory_space<vmem>>, vector<2x256xf32>
    tpu.vector_store %arg44[%c0_120, %c0_121], %86 {strides = array<i32>} : memref<2x256xf32, #tpu.memory_space<vmem>>, vector<2x256xf32>,
    return
  }
}

</mosaic_0001>

<llo_original>
// kernel: gdan_forward.5
$region0: #{gdan_forward.5}
  #allocation0 [shape = 'u32[]', space=smem, size = 0x4, offset = 0x4, fixed_abs, tag = 'smem constant byte address 0x4 - core index']
  #allocation1 [shape = 'u32[144,128]{1,0:T(1,128)}', space=vmem, size = 0x12000, scoped, tag = 'internal scratch']
  %s0 = inlined_call_operand.vmem [shape: f32[1152,144], index: 0, kind: input, shape index: {}]
  %s1 = inlined_call_operand.vmem [shape: bf16[144,32], index: 1, kind: input, shape index: {}]
  %s2 = inlined_call_operand.vmem [shape: f32[1,32], index: 2, kind: input, shape index: {}]
  %s3 = inlined_call_operand.vmem [shape: f32[1,32], index: 3, kind: input, shape index: {}]
  %s4 = inlined_call_operand.vmem [shape: f32[1152,32], index: 4, kind: output, shape index: {}]
  %s5 = sld [smem:[#allocation0]]
  $region26: #{gdan_forward.5} parent=0
    _
  %s7 = ssub.s32 1, %s5
  %s8 = scalar_select 0, %s7, %s5
  // Predicated region
  $region2: #{gdan_forward.5} parent=0 // pred_check
    _
  $region3: #{gdan_forward.5} parent=0 // pred_check_branch
    %10 = sbr.rel (0) target = $region5
  $region4: #{gdan_forward.5} parent=0 // pred_region
    _
  $region5: #{gdan_forward.5} parent=0 // pred_fallthru
    _
  // Predicated region
  $region6: #{gdan_forward.5} parent=0 // pred_check
    _
  $region7: #{gdan_forward.5} parent=0 // pred_check_branch
    %12 = sbr.rel (0) target = $region9
  $region8: #{gdan_forward.5} parent=0 // pred_region
    _
  $region9: #{gdan_forward.5} parent=0 // pred_fallthru
    _
  // Predicated region
  $region10: #{gdan_forward.5} parent=0 // pred_check
    _
  $region11: #{gdan_forward.5} parent=0 // pred_check_branch
    %14 = sbr.rel (0) target = $region13
  $region12: #{gdan_forward.5} parent=0 // pred_region
    _
  $region13: #{gdan_forward.5} parent=0 // pred_fallthru
    _
  // Predicated region
  $region14: #{gdan_forward.5} parent=0 // pred_check
    _
  $region15: #{gdan_forward.5} parent=0 // pred_check_branch
    %16 = sbr.rel (0) target = $region17
  $region16: #{gdan_forward.5} parent=0 // pred_region
    _
  $region17: #{gdan_forward.5} parent=0 // pred_fallthru
    _
  %v17 = vld [vmem:[%s0] sm:$0xff]
  %v18 = vld [vmem:[%s0 + $0x8] sm:$0xff]
  %v19 = vld [vmem:[%s0 + $0x10] sm:$0xff]
  %v20 = vld [vmem:[%s0 + $0x18] sm:$0xff]
  %v21 = vld [vmem:[%s0 + $0x20] sm:$0xff]
  %v22 = vld [vmem:[%s0 + $0x28] sm:$0xff]
  %v23 = vld [vmem:[%s0 + $0x30] sm:$0xff]
  %v24 = vld [vmem:[%s0 + $0x38] sm:$0xff]
  %v25 = vld [vmem:[%s0 + $0x40] sm:$0xff]
  %v26 = vld [vmem:[%s0 + $0x48] sm:$0xff]
  %v27 = vld [vmem:[%s0 + $0x50] sm:$0xff]
  %v28 = vld [vmem:[%s0 + $0x58] sm:$0xff]
  %v29 = vld [vmem:[%s0 + $0x60] sm:$0xff]
  %v30 = vld [vmem:[%s0 + $0x68] sm:$0xff]
  %v31 = vld [vmem:[%s0 + $0x70] sm:$0xff]
  %v32 = vld [vmem:[%s0 + $0x78] sm:$0xff]
  %v33 = vld [vmem:[%s0 + $0x80] sm:$0xff]
  %v34 = vld [vmem:[%s0 + $0x88] sm:$0xff]
  %v35 = vld [vmem:[%s0 + $0x90] sm:$0xff]
  %v36 = vld [vmem:[%s0 + $0x98] sm:$0xff]
  %v37 = vld [vmem:[%s0 + $0xa0] sm:$0xff]
  %v38 = vld [vmem:[%s0 + $0xa8] sm:$0xff]
  %v39 = vld [vmem:[%s0 + $0xb0] sm:$0xff]
  %v40 = vld [vmem:[%s0 + $0xb8] sm:$0xff]
  %v41 = vld [vmem:[%s0 + $0xc0] sm:$0xff]
  %v42 = vld [vmem:[%s0 + $0xc8] sm:$0xff]
  %v43 = vld [vmem:[%s0 + $0xd0] sm:$0xff]
  %v44 = vld [vmem:[%s0 + $0xd8] sm:$0xff]
  %v45 = vld [vmem:[%s0 + $0xe0] sm:$0xff]
  %v46 = vld [vmem:[%s0 + $0xe8] sm:$0xff]
  %v47 = vld [vmem:[%s0 + $0xf0] sm:$0xff]
  %v48 = vld [vmem:[%s0 + $0xf8] sm:$0xff]
  %v49 = vld [vmem:[%s0 + $0x100] sm:$0xff]
  %v50 = vld [vmem:[%s0 + $0x108] sm:$0xff]
  %v51 = vld [vmem:[%s0 + $0x110] sm:$0xff]
  %v52 = vld [vmem:[%s0 + $0x118] sm:$0xff]
  %v53 = vld [vmem:[%s0 + $0x120] sm:$0xff]
  %v54 = vld [vmem:[%s0 + $0x128] sm:$0xff]
  %v55 = vld [vmem:[%s0 + $0x130] sm:$0xff]
  %v56 = vld [vmem:[%s0 + $0x138] sm:$0xff]
  %v57 = vld [vmem:[%s0 + $0x140] sm:$0xff]
  %v58 = vld [vmem:[%s0 + $0x148] sm:$0xff]
  %v59 = vld [vmem:[%s0 + $0x150] sm:$0xff]
  %v60 = vld [vmem:[%s0 + $0x158] sm:$0xff]
  %v61 = vld [vmem:[%s0 + $0x160] sm:$0xff]
  %v62 = vld [vmem:[%s0 + $0x168] sm:$0xff]
  %v63 = vld [vmem:[%s0 + $0x170] sm:$0xff]
  %v64 = vld [vmem:[%s0 + $0x178] sm:$0xff]
  %v65 = vld [vmem:[%s0 + $0x180] sm:$0xff]
  %v66 = vld [vmem:[%s0 + $0x188] sm:$0xff]
  %v67 = vld [vmem:[%s0 + $0x190] sm:$0xff]
  %v68 = vld [vmem:[%s0 + $0x198] sm:$0xff]
  %v69 = vld [vmem:[%s0 + $0x1a0] sm:$0xff]
  %v70 = vld [vmem:[%s0 + $0x1a8] sm:$0xff]
  %v71 = vld [vmem:[%s0 + $0x1b0] sm:$0xff]
  %v72 = vld [vmem:[%s0 + $0x1b8] sm:$0xff]
  %v73 = vld [vmem:[%s0 + $0x1c0] sm:$0xff]
  %v74 = vld [vmem:[%s0 + $0x1c8] sm:$0xff]
  %v75 = vld [vmem:[%s0 + $0x1d0] sm:$0xff]
  %v76 = vld [vmem:[%s0 + $0x1d8] sm:$0xff]
  %v77 = vld [vmem:[%s0 + $0x1e0] sm:$0xff]
  %v78 = vld [vmem:[%s0 + $0x1e8] sm:$0xff]
  %v79 = vld [vmem:[%s0 + $0x1f0] sm:$0xff]
  %v80 = vld [vmem:[%s0 + $0x1f8] sm:$0xff]
  %v81 = vld [vmem:[%s0 + $0x200] sm:$0xff]
  %v82 = vld [vmem:[%s0 + $0x208] sm:$0xff]
  %v83 = vld [vmem:[%s0 + $0x210] sm:$0xff]
  %v84 = vld [vmem:[%s0 + $0x218] sm:$0xff]
  %v85 = vld [vmem:[%s0 + $0x220] sm:$0xff]
  %v86 = vld [vmem:[%s0 + $0x228] sm:$0xff]
  %v87 = vld [vmem:[%s0 + $0x230] sm:$0xff]
  %v88 = vld [vmem:[%s0 + $0x238] sm:$0xff]
  %v89 = vld [vmem:[%s0 + $0x240] sm:$0xff]
  %v90 = vld [vmem:[%s0 + $0x248] sm:$0xff]
  %v91 = vld [vmem:[%s0 + $0x250] sm:$0xff]
  %v92 = vld [vmem:[%s0 + $0x258] sm:$0xff]
  %v93 = vld [vmem:[%s0 + $0x260] sm:$0xff]
  %v94 = vld [vmem:[%s0 + $0x268] sm:$0xff]
  %v95 = vld [vmem:[%s0 + $0x270] sm:$0xff]
  %v96 = vld [vmem:[%s0 + $0x278] sm:$0xff]
  %v97 = vld [vmem:[%s0 + $0x280] sm:$0xff]
  %v98 = vld [vmem:[%s0 + $0x288] sm:$0xff]
  %v99 = vld [vmem:[%s0 + $0x290] sm:$0xff]
  %v100 = vld [vmem:[%s0 + $0x298] sm:$0xff]
  %v101 = vld [vmem:[%s0 + $0x2a0] sm:$0xff]
  %v102 = vld [vmem:[%s0 + $0x2a8] sm:$0xff]
  %v103 = vld [vmem:[%s0 + $0x2b0] sm:$0xff]
  %v104 = vld [vmem:[%s0 + $0x2b8] sm:$0xff]
  %v105 = vld [vmem:[%s0 + $0x2c0] sm:$0xff]
  %v106 = vld [vmem:[%s0 + $0x2c8] sm:$0xff]
  %v107 = vld [vmem:[%s0 + $0x2d0] sm:$0xff]
  %v108 = vld [vmem:[%s0 + $0x2d8] sm:$0xff]
  %v109 = vld [vmem:[%s0 + $0x2e0] sm:$0xff]
  %v110 = vld [vmem:[%s0 + $0x2e8] sm:$0xff]
  %v111 = vld [vmem:[%s0 + $0x2f0] sm:$0xff]
  %v112 = vld [vmem:[%s0 + $0x2f8] sm:$0xff]
  %v113 = vld [vmem:[%s0 + $0x300] sm:$0xff]
  %v114 = vld [vmem:[%s0 + $0x308] sm:$0xff]
  %v115 = vld [vmem:[%s0 + $0x310] sm:$0xff]
  %v116 = vld [vmem:[%s0 + $0x318] sm:$0xff]
  %v117 = vld [vmem:[%s0 + $0x320] sm:$0xff]
  %v118 = vld [vmem:[%s0 + $0x328] sm:$0xff]
  %v119 = vld [vmem:[%s0 + $0x330] sm:$0xff]
  %v120 = vld [vmem:[%s0 + $0x338] sm:$0xff]
  %v121 = vld [vmem:[%s0 + $0x340] sm:$0xff]
  %v122 = vld [vmem:[%s0 + $0x348] sm:$0xff]
  %v123 = vld [vmem:[%s0 + $0x350] sm:$0xff]
  %v124 = vld [vmem:[%s0 + $0x358] sm:$0xff]
  %v125 = vld [vmem:[%s0 + $0x360] sm:$0xff]
  %v126 = vld [vmem:[%s0 + $0x368] sm:$0xff]
  %v127 = vld [vmem:[%s0 + $0x370] sm:$0xff]
  %v128 = vld [vmem:[%s0 + $0x378] sm:$0xff]
  %v129 = vld [vmem:[%s0 + $0x380] sm:$0xff]
  %v130 = vld [vmem:[%s0 + $0x388] sm:$0xff]
  %v131 = vld [vmem:[%s0 + $0x390] sm:$0xff]
  %v132 = vld [vmem:[%s0 + $0x398] sm:$0xff]
  %v133 = vld [vmem:[%s0 + $0x3a0] sm:$0xff]
  %v134 = vld [vmem:[%s0 + $0x3a8] sm:$0xff]
  %v135 = vld [vmem:[%s0 + $0x3b0] sm:$0xff]
  %v136 = vld [vmem:[%s0 + $0x3b8] sm:$0xff]
  %v137 = vld [vmem:[%s0 + $0x3c0] sm:$0xff]
  %v138 = vld [vmem:[%s0 + $0x3c8] sm:$0xff]
  %v139 = vld [vmem:[%s0 + $0x3d0] sm:$0xff]
  %v140 = vld [vmem:[%s0 + $0x3d8] sm:$0xff]
  %v141 = vld [vmem:[%s0 + $0x3e0] sm:$0xff]
  %v142 = vld [vmem:[%s0 + $0x3e8] sm:$0xff]
  %v143 = vld [vmem:[%s0 + $0x3f0] sm:$0xff]
  %v144 = vld [vmem:[%s0 + $0x3f8] sm:$0xff]
  %v145 = vld [vmem:[%s0 + $0x400] sm:$0xff]
  %v146 = vld [vmem:[%s0 + $0x408] sm:$0xff]
  %v147 = vld [vmem:[%s0 + $0x410] sm:$0xff]
  %v148 = vld [vmem:[%s0 + $0x418] sm:$0xff]
  %v149 = vld [vmem:[%s0 + $0x420] sm:$0xff]
  %v150 = vld [vmem:[%s0 + $0x428] sm:$0xff]
  %v151 = vld [vmem:[%s0 + $0x430] sm:$0xff]
  %v152 = vld [vmem:[%s0 + $0x438] sm:$0xff]
  %v153 = vld [vmem:[%s0 + $0x440] sm:$0xff]
  %v154 = vld [vmem:[%s0 + $0x448] sm:$0xff]
  %v155 = vld [vmem:[%s0 + $0x450] sm:$0xff]
  %v156 = vld [vmem:[%s0 + $0x458] sm:$0xff]
  %v157 = vld [vmem:[%s0 + $0x460] sm:$0xff]
  %v158 = vld [vmem:[%s0 + $0x468] sm:$0xff]
  %v159 = vld [vmem:[%s0 + $0x470] sm:$0xff]
  %v160 = vld [vmem:[%s0 + $0x478] sm:$0xff]
  %v161 = vld [vmem:[%s0 + $0x480] sm:$0xff]
  %v162 = vld [vmem:[%s0 + $0x488] sm:$0xff]
  %v163 = vld [vmem:[%s0 + $0x490] sm:$0xff]
  %v164 = vld [vmem:[%s0 + $0x498] sm:$0xff]
  %v165 = vld [vmem:[%s0 + $0x4a0] sm:$0xff]
  %v166 = vld [vmem:[%s0 + $0x4a8] sm:$0xff]
  %v167 = vld [vmem:[%s0 + $0x4b0] sm:$0xff]
  %v168 = vld [vmem:[%s0 + $0x4b8] sm:$0xff]
  %v169 = vld [vmem:[%s0 + $0x4c0] sm:$0xff]
  %v170 = vld [vmem:[%s0 + $0x4c8] sm:$0xff]
  %v171 = vld [vmem:[%s0 + $0x4d0] sm:$0xff]
  %v172 = vld [vmem:[%s0 + $0x4d8] sm:$0xff]
  %v173 = vld [vmem:[%s0 + $0x4e0] sm:$0xff]
  %v174 = vld [vmem:[%s0 + $0x4e8] sm:$0xff]
  %v175 = vld [vmem:[%s0 + $0x4f0] sm:$0xff]
  %v176 = vld [vmem:[%s0 + $0x4f8] sm:$0xff]
  %v177 = vld [vmem:[%s0 + $0x500] sm:$0xff]
  %v178 = vld [vmem:[%s0 + $0x508] sm:$0xff]
  %v179 = vld [vmem:[%s0 + $0x510] sm:$0xff]
  %v180 = vld [vmem:[%s0 + $0x518] sm:$0xff]
  %v181 = vld [vmem:[%s0 + $0x520] sm:$0xff]
  %v182 = vld [vmem:[%s0 + $0x528] sm:$0xff]
  %v183 = vld [vmem:[%s0 + $0x530] sm:$0xff]
  %v184 = vld [vmem:[%s0 + $0x538] sm:$0xff]
  %v185 = vld [vmem:[%s0 + $0x540] sm:$0xff]
  %v186 = vld [vmem:[%s0 + $0x548] sm:$0xff]
  %v187 = vld [vmem:[%s0 + $0x550] sm:$0xff]
  %v188 = vld [vmem:[%s0 + $0x558] sm:$0xff]
  %v189 = vld [vmem:[%s0 + $0x560] sm:$0xff]
  %v190 = vld [vmem:[%s0 + $0x568] sm:$0xff]
  %v191 = vld [vmem:[%s0 + $0x570] sm:$0xff]
  %v192 = vld [vmem:[%s0 + $0x578] sm:$0xff]
  %v193 = vld [vmem:[%s0 + $0x580] sm:$0xff]
  %v194 = vld [vmem:[%s0 + $0x588] sm:$0xff]
  %v195 = vld [vmem:[%s0 + $0x590] sm:$0xff]
  %v196 = vld [vmem:[%s0 + $0x598] sm:$0xff]
  %v197 = vld [vmem:[%s0 + $0x5a0] sm:$0xff]
  %v198 = vld [vmem:[%s0 + $0x5a8] sm:$0xff]
  %v199 = vld [vmem:[%s0 + $0x5b0] sm:$0xff]
  %v200 = vld [vmem:[%s0 + $0x5b8] sm:$0xff]
  %v201 = vld [vmem:[%s0 + $0x5c0] sm:$0xff]
  %v202 = vld [vmem:[%s0 + $0x5c8] sm:$0xff]
  %v203 = vld [vmem:[%s0 + $0x5d0] sm:$0xff]
  %v204 = vld [vmem:[%s0 + $0x5d8] sm:$0xff]
  %v205 = vld [vmem:[%s0 + $0x5e0] sm:$0xff]
  %v206 = vld [vmem:[%s0 + $0x5e8] sm:$0xff]
  %v207 = vld [vmem:[%s0 + $0x5f0] sm:$0xff]
  %v208 = vld [vmem:[%s0 + $0x5f8] sm:$0xff]
  %v209 = vld [vmem:[%s0 + $0x600] sm:$0xff]
  %v210 = vld [vmem:[%s0 + $0x608] sm:$0xff]
  %v211 = vld [vmem:[%s0 + $0x610] sm:$0xff]
  %v212 = vld [vmem:[%s0 + $0x618] sm:$0xff]
  %v213 = vld [vmem:[%s0 + $0x620] sm:$0xff]
  %v214 = vld [vmem:[%s0 + $0x628] sm:$0xff]
  %v215 = vld [vmem:[%s0 + $0x630] sm:$0xff]
  %v216 = vld [vmem:[%s0 + $0x638] sm:$0xff]
  %v217 = vld [vmem:[%s0 + $0x640] sm:$0xff]
  %v218 = vld [vmem:[%s0 + $0x648] sm:$0xff]
  %v219 = vld [vmem:[%s0 + $0x650] sm:$0xff]
  %v220 = vld [vmem:[%s0 + $0x658] sm:$0xff]
  %v221 = vld [vmem:[%s0 + $0x660] sm:$0xff]
  %v222 = vld [vmem:[%s0 + $0x668] sm:$0xff]
  %v223 = vld [vmem:[%s0 + $0x670] sm:$0xff]
  %v224 = vld [vmem:[%s0 + $0x678] sm:$0xff]
  %v225 = vld [vmem:[%s0 + $0x680] sm:$0xff]
  %v226 = vld [vmem:[%s0 + $0x688] sm:$0xff]
  %v227 = vld [vmem:[%s0 + $0x690] sm:$0xff]
  %v228 = vld [vmem:[%s0 + $0x698] sm:$0xff]
  %v229 = vld [vmem:[%s0 + $0x6a0] sm:$0xff]
  %v230 = vld [vmem:[%s0 + $0x6a8] sm:$0xff]
  %v231 = vld [vmem:[%s0 + $0x6b0] sm:$0xff]
  %v232 = vld [vmem:[%s0 + $0x6b8] sm:$0xff]
  %v233 = vld [vmem:[%s0 + $0x6c0] sm:$0xff]
  %v234 = vld [vmem:[%s0 + $0x6c8] sm:$0xff]
  %v235 = vld [vmem:[%s0 + $0x6d0] sm:$0xff]
  %v236 = vld [vmem:[%s0 + $0x6d8] sm:$0xff]
  %v237 = vld [vmem:[%s0 + $0x6e0] sm:$0xff]
  %v238 = vld [vmem:[%s0 + $0x6e8] sm:$0xff]
  %v239 = vld [vmem:[%s0 + $0x6f0] sm:$0xff]
  %v240 = vld [vmem:[%s0 + $0x6f8] sm:$0xff]
  %v241 = vld [vmem:[%s0 + $0x700] sm:$0xff]
  %v242 = vld [vmem:[%s0 + $0x708] sm:$0xff]
  %v243 = vld [vmem:[%s0 + $0x710] sm:$0xff]
  %v244 = vld [vmem:[%s0 + $0x718] sm:$0xff]
  %v245 = vld [vmem:[%s0 + $0x720] sm:$0xff]
  %v246 = vld [vmem:[%s0 + $0x728] sm:$0xff]
  %v247 = vld [vmem:[%s0 + $0x730] sm:$0xff]
  %v248 = vld [vmem:[%s0 + $0x738] sm:$0xff]
  %v249 = vld [vmem:[%s0 + $0x740] sm:$0xff]
  %v250 = vld [vmem:[%s0 + $0x748] sm:$0xff]
  %v251 = vld [vmem:[%s0 + $0x750] sm:$0xff]
  %v252 = vld [vmem:[%s0 + $0x758] sm:$0xff]
  %v253 = vld [vmem:[%s0 + $0x760] sm:$0xff]
  %v254 = vld [vmem:[%s0 + $0x768] sm:$0xff]
  %v255 = vld [vmem:[%s0 + $0x770] sm:$0xff]
  %v256 = vld [vmem:[%s0 + $0x778] sm:$0xff]
  %v257 = vld [vmem:[%s0 + $0x780] sm:$0xff]
  %v258 = vld [vmem:[%s0 + $0x788] sm:$0xff]
  %v259 = vld [vmem:[%s0 + $0x790] sm:$0xff]
  %v260 = vld [vmem:[%s0 + $0x798] sm:$0xff]
  %v261 = vld [vmem:[%s0 + $0x7a0] sm:$0xff]
  %v262 = vld [vmem:[%s0 + $0x7a8] sm:$0xff]
  %v263 = vld [vmem:[%s0 + $0x7b0] sm:$0xff]
  %v264 = vld [vmem:[%s0 + $0x7b8] sm:$0xff]
  %v265 = vld [vmem:[%s0 + $0x7c0] sm:$0xff]
  %v266 = vld [vmem:[%s0 + $0x7c8] sm:$0xff]
  %v267 = vld [vmem:[%s0 + $0x7d0] sm:$0xff]
  %v268 = vld [vmem:[%s0 + $0x7d8] sm:$0xff]
  %v269 = vld [vmem:[%s0 + $0x7e0] sm:$0xff]
  %v270 = vld [vmem:[%s0 + $0x7e8] sm:$0xff]
  %v271 = vld [vmem:[%s0 + $0x7f0] sm:$0xff]
  %v272 = vld [vmem:[%s0 + $0x7f8] sm:$0xff]
  %v273 = vld [vmem:[%s0 + $0x800] sm:$0xff]
  %v274 = vld [vmem:[%s0 + $0x808] sm:$0xff]
  %v275 = vld [vmem:[%s0 + $0x810] sm:$0xff]
  %v276 = vld [vmem:[%s0 + $0x818] sm:$0xff]
  %v277 = vld [vmem:[%s0 + $0x820] sm:$0xff]
  %v278 = vld [vmem:[%s0 + $0x828] sm:$0xff]
  %v279 = vld [vmem:[%s0 + $0x830] sm:$0xff]
  %v280 = vld [vmem:[%s0 + $0x838] sm:$0xff]
  %v281 = vld [vmem:[%s0 + $0x840] sm:$0xff]
  %v282 = vld [vmem:[%s0 + $0x848] sm:$0xff]
  %v283 = vld [vmem:[%s0 + $0x850] sm:$0xff]
  %v284 = vld [vmem:[%s0 + $0x858] sm:$0xff]
  %v285 = vld [vmem:[%s0 + $0x860] sm:$0xff]
  %v286 = vld [vmem:[%s0 + $0x868] sm:$0xff]
  %v287 = vld [vmem:[%s0 + $0x870] sm:$0xff]
  %v288 = vld [vmem:[%s0 + $0x878] sm:$0xff]
  %v289 = vld [vmem:[%s0 + $0x880] sm:$0xff]
  %v290 = vld [vmem:[%s0 + $0x888] sm:$0xff]
  %v291 = vld [vmem:[%s0 + $0x890] sm:$0xff]
  %v292 = vld [vmem:[%s0 + $0x898] sm:$0xff]
  %v293 = vld [vmem:[%s0 + $0x8a0] sm:$0xff]
  %v294 = vld [vmem:[%s0 + $0x8a8] sm:$0xff]
  %v295 = vld [vmem:[%s0 + $0x8b0] sm:$0xff]
  %v296 = vld [vmem:[%s0 + $0x8b8] sm:$0xff]
  %v297 = vld [vmem:[%s0 + $0x8c0] sm:$0xff]
  %v298 = vld [vmem:[%s0 + $0x8c8] sm:$0xff]
  %v299 = vld [vmem:[%s0 + $0x8d0] sm:$0xff]
  %v300 = vld [vmem:[%s0 + $0x8d8] sm:$0xff]
  %v301 = vld [vmem:[%s0 + $0x8e0] sm:$0xff]
  %v302 = vld [vmem:[%s0 + $0x8e8] sm:$0xff]
  %v303 = vld [vmem:[%s0 + $0x8f0] sm:$0xff]
  %v304 = vld [vmem:[%s0 + $0x8f8] sm:$0xff]
  %v305 = vld [vmem:[%s1] sm:$0xf]
  %v306 = vld [vmem:[%s1 + $0x4] sm:$0xf]
  %v307 = vld [vmem:[%s1 + $0x8] sm:$0xf]
  %v308 = vld [vmem:[%s1 + $0xc] sm:$0xf]
  %v309 = vld [vmem:[%s1 + $0x10] sm:$0xf]
  %v310 = vld [vmem:[%s1 + $0x14] sm:$0xf]
  %v311 = vld [vmem:[%s1 + $0x18] sm:$0xf]
  %v312 = vld [vmem:[%s1 + $0x1c] sm:$0xf]
  %v313 = vld [vmem:[%s1 + $0x20] sm:$0xf]
  %v314 = vld [vmem:[%s1 + $0x24] sm:$0xf]
  %v315 = vld [vmem:[%s1 + $0x28] sm:$0xf]
  %v316 = vld [vmem:[%s1 + $0x2c] sm:$0xf]
  %v317 = vld [vmem:[%s1 + $0x30] sm:$0xf]
  %v318 = vld [vmem:[%s1 + $0x34] sm:$0xf]
  %v319 = vld [vmem:[%s1 + $0x38] sm:$0xf]
  %v320 = vld [vmem:[%s1 + $0x3c] sm:$0xf]
  %v321 = vld [vmem:[%s1 + $0x40] sm:$0xf]
  %v322 = vld [vmem:[%s1 + $0x44] sm:$0xf]
  %v323 = vunpack.c.l.bf16 %v305
  %v324 = vunpack.c.l.bf16 %v306
  %v325 = vunpack.c.l.bf16 %v307
  %v326 = vunpack.c.l.bf16 %v308
  %v327 = vunpack.c.l.bf16 %v309
  %v328 = vunpack.c.l.bf16 %v310
  %v329 = vunpack.c.l.bf16 %v311
  %v330 = vunpack.c.l.bf16 %v312
  %v331 = vunpack.c.l.bf16 %v313
  %v332 = vunpack.c.l.bf16 %v314
  %v333 = vunpack.c.l.bf16 %v315
  %v334 = vunpack.c.l.bf16 %v316
  %v335 = vunpack.c.l.bf16 %v317
  %v336 = vunpack.c.l.bf16 %v318
  %v337 = vunpack.c.l.bf16 %v319
  %v338 = vunpack.c.l.bf16 %v320
  %v339 = vunpack.c.l.bf16 %v321
  %v340 = vunpack.c.l.bf16 %v322
  %vm341 = vcmask 130048
  %v343 = vsel %vm341, %v18, 0
  %v346 = vsel %vm341, %v20, 0
  %v349 = vsel %vm341, %v22, 0
  %v352 = vsel %vm341, %v24, 0
  %v355 = vsel %vm341, %v26, 0
  %v358 = vsel %vm341, %v28, 0
  %v361 = vsel %vm341, %v30, 0
  %v364 = vsel %vm341, %v32, 0
  %v367 = vsel %vm341, %v34, 0
  %v370 = vsel %vm341, %v36, 0
  %v373 = vsel %vm341, %v38, 0
  %v376 = vsel %vm341, %v40, 0
  %v379 = vsel %vm341, %v42, 0
  %v382 = vsel %vm341, %v44, 0
  %v385 = vsel %vm341, %v46, 0
  %v388 = vsel %vm341, %v48, 0
  %v391 = vsel %vm341, %v50, 0
  %v394 = vsel %vm341, %v52, 0
  %v397 = vsel %vm341, %v54, 0
  %v400 = vsel %vm341, %v56, 0
  %v403 = vsel %vm341, %v58, 0
  %v406 = vsel %vm341, %v60, 0
  %v409 = vsel %vm341, %v62, 0
  %v412 = vsel %vm341, %v64, 0
  %v415 = vsel %vm341, %v66, 0
  %v418 = vsel %vm341, %v68, 0
  %v421 = vsel %vm341, %v70, 0
  %v424 = vsel %vm341, %v72, 0
  %v427 = vsel %vm341, %v74, 0
  %v430 = vsel %vm341, %v76, 0
  %v433 = vsel %vm341, %v78, 0
  %v436 = vsel %vm341, %v80, 0
  %v439 = vsel %vm341, %v82, 0
  %v442 = vsel %vm341, %v84, 0
  %v445 = vsel %vm341, %v86, 0
  %v448 = vsel %vm341, %v88, 0
  %v451 = vsel %vm341, %v90, 0
  %v454 = vsel %vm341, %v92, 0
  %v457 = vsel %vm341, %v94, 0
  %v460 = vsel %vm341, %v96, 0
  %v463 = vsel %vm341, %v98, 0
  %v466 = vsel %vm341, %v100, 0
  %v469 = vsel %vm341, %v102, 0
  %v472 = vsel %vm341, %v104, 0
  %v475 = vsel %vm341, %v106, 0
  %v478 = vsel %vm341, %v108, 0
  %v481 = vsel %vm341, %v110, 0
  %v484 = vsel %vm341, %v112, 0
  %v487 = vsel %vm341, %v114, 0
  %v490 = vsel %vm341, %v116, 0
  %v493 = vsel %vm341, %v118, 0
  %v496 = vsel %vm341, %v120, 0
  %v499 = vsel %vm341, %v122, 0
  %v502 = vsel %vm341, %v124, 0
  %v505 = vsel %vm341, %v126, 0
  %v508 = vsel %vm341, %v128, 0
  %v511 = vsel %vm341, %v130, 0
  %v514 = vsel %vm341, %v132, 0
  %v517 = vsel %vm341, %v134, 0
  %v520 = vsel %vm341, %v136, 0
  %v523 = vsel %vm341, %v138, 0
  %v526 = vsel %vm341, %v140, 0
  %v529 = vsel %vm341, %v142, 0
  %v532 = vsel %vm341, %v144, 0
  %v535 = vsel %vm341, %v146, 0
  %v538 = vsel %vm341, %v148, 0
  %v541 = vsel %vm341, %v150, 0
  %v544 = vsel %vm341, %v152, 0
  %v547 = vsel %vm341, %v154, 0
  %v550 = vsel %vm341, %v156, 0
  %v553 = vsel %vm341, %v158, 0
  %v556 = vsel %vm341, %v160, 0
  %v559 = vsel %vm341, %v162, 0
  %v562 = vsel %vm341, %v164, 0
  %v565 = vsel %vm341, %v166, 0
  %v568 = vsel %vm341, %v168, 0
  %v571 = vsel %vm341, %v170, 0
  %v574 = vsel %vm341, %v172, 0
  %v577 = vsel %vm341, %v174, 0
  %v580 = vsel %vm341, %v176, 0
  %v583 = vsel %vm341, %v178, 0
  %v586 = vsel %vm341, %v180, 0
  %v589 = vsel %vm341, %v182, 0
  %v592 = vsel %vm341, %v184, 0
  %v595 = vsel %vm341, %v186, 0
  %v598 = vsel %vm341, %v188, 0
  %v601 = vsel %vm341, %v190, 0
  %v604 = vsel %vm341, %v192, 0
  %v607 = vsel %vm341, %v194, 0
  %v610 = vsel %vm341, %v196, 0
  %v613 = vsel %vm341, %v198, 0
  %v616 = vsel %vm341, %v200, 0
  %v619 = vsel %vm341, %v202, 0
  %v622 = vsel %vm341, %v204, 0
  %v625 = vsel %vm341, %v206, 0
  %v628 = vsel %vm341, %v208, 0
  %v631 = vsel %vm341, %v210, 0
  %v634 = vsel %vm341, %v212, 0
  %v637 = vsel %vm341, %v214, 0
  %v640 = vsel %vm341, %v216, 0
  %v643 = vsel %vm341, %v218, 0
  %v646 = vsel %vm341, %v220, 0
  %v649 = vsel %vm341, %v222, 0
  %v652 = vsel %vm341, %v224, 0
  %v655 = vsel %vm341, %v226, 0
  %v658 = vsel %vm341, %v228, 0
  %v661 = vsel %vm341, %v230, 0
  %v664 = vsel %vm341, %v232, 0
  %v667 = vsel %vm341, %v234, 0
  %v670 = vsel %vm341, %v236, 0
  %v673 = vsel %vm341, %v238, 0
  %v676 = vsel %vm341, %v240, 0
  %v679 = vsel %vm341, %v242, 0
  %v682 = vsel %vm341, %v244, 0
  %v685 = vsel %vm341, %v246, 0
  %v688 = vsel %vm341, %v248, 0
  %v691 = vsel %vm341, %v250, 0
  %v694 = vsel %vm341, %v252, 0
  %v697 = vsel %vm341, %v254, 0
  %v700 = vsel %vm341, %v256, 0
  %v703 = vsel %vm341, %v258, 0
  %v706 = vsel %vm341, %v260, 0
  %v709 = vsel %vm341, %v262, 0
  %v712 = vsel %vm341, %v264, 0
  %v715 = vsel %vm341, %v266, 0
  %v718 = vsel %vm341, %v268, 0
  %v721 = vsel %vm341, %v270, 0
  %v724 = vsel %vm341, %v272, 0
  %v727 = vsel %vm341, %v274, 0
  %v730 = vsel %vm341, %v276, 0
  %v733 = vsel %vm341, %v278, 0
  %v736 = vsel %vm341, %v280, 0
  %v739 = vsel %vm341, %v282, 0
  %v742 = vsel %vm341, %v284, 0
  %v745 = vsel %vm341, %v286, 0
  %v748 = vsel %vm341, %v288, 0
  %v751 = vsel %vm341, %v290, 0
  %v754 = vsel %vm341, %v292, 0
  %v757 = vsel %vm341, %v294, 0
  %v760 = vsel %vm341, %v296, 0
  %v763 = vsel %vm341, %v298, 0
  %v766 = vsel %vm341, %v300, 0
  %v769 = vsel %vm341, %v302, 0
  %v772 = vsel %vm341, %v304, 0
  %774 = vmatprep.subr.mxu0 0.0
  %775 = vmatpush1.msra.mxu0 %v338
  %776 = vmatprep.subr.mxu0 0.0
  %777 = vmatpush1.msra.mxu0 %v337
  %778 = vmatprep.subr.mxu0 0.0
  %779 = vmatpush1.msra.mxu0 %v336
  %780 = vmatprep.subr.mxu0 0.0
  %781 = vmatpush1.msra.mxu0 %v335
  %782 = vmatprep.subr.mxu0 0.0
  %783 = vmatpush1.msra.mxu0 %v334
  %784 = vmatprep.subr.mxu0 0.0
  %785 = vmatpush1.msra.mxu0 %v333
  %786 = vmatprep.subr.mxu0 0.0
  %787 = vmatpush1.msra.mxu0 %v332
  %788 = vmatprep.subr.mxu0 0.0
  %789 = vmatpush1.msra.mxu0 %v331
  %790 = vmatprep.subr.mxu0 0.0
  %791 = vmatpush1.msra.mxu0 %v330
  %792 = vmatprep.subr.mxu0 0.0
  %793 = vmatpush1.msra.mxu0 %v329
  %794 = vmatprep.subr.mxu0 0.0
  %795 = vmatpush1.msra.mxu0 %v328
  %796 = vmatprep.subr.mxu0 0.0
  %797 = vmatpush1.msra.mxu0 %v327
  %798 = vmatprep.subr.mxu0 0.0
  %799 = vmatpush1.msra.mxu0 %v326
  %800 = vmatprep.subr.mxu0 0.0
  %801 = vmatpush1.msra.mxu0 %v325
  %802 = vmatprep.subr.mxu0 0.0
  %803 = vmatpush1.msra.mxu0 %v324
  %804 = vmatprep.subr.mxu0 0.0
  %805 = vmatpush1.msra.mxu0 %v323
  %806 = vmatprep.subr.mxu0 0.0
  %807 = vmatpush2.msra.mxu0 0.0
  %808 = vmatprep.subr.mxu0 0.0
  %809 = vmatpush2.msra.mxu0 0.0
  %810 = vmatprep.subr.mxu0 0.0
  %811 = vmatpush2.msra.mxu0 0.0
  %812 = vmatprep.subr.mxu0 0.0
  %813 = vmatpush2.msra.mxu0 0.0
  %814 = vmatprep.subr.mxu0 0.0
  %815 = vmatpush2.msra.mxu0 0.0
  %816 = vmatprep.subr.mxu0 0.0
  %817 = vmatpush2.msra.mxu0 0.0
  %818 = vmatprep.subr.mxu0 0.0
  %819 = vmatpush2.msra.mxu0 0.0
  %820 = vmatprep.subr.mxu0 0.0
  %821 = vmatpush2.msra.mxu0 0.0
  %822 = vmatprep.subr.mxu0 0.0
  %823 = vmatpush2.msra.mxu0 0.0
  %824 = vmatprep.subr.mxu0 0.0
  %825 = vmatpush2.msra.mxu0 0.0
  %826 = vmatprep.subr.mxu0 0.0
  %827 = vmatpush2.msra.mxu0 0.0
  %828 = vmatprep.subr.mxu0 0.0
  %829 = vmatpush2.msra.mxu0 0.0
  %830 = vmatprep.subr.mxu0 0.0
  %831 = vmatpush2.msra.mxu0 0.0
  %832 = vmatprep.subr.mxu0 0.0
  %833 = vmatpush2.msra.mxu0 0.0
  %834 = vmatprep.subr.mxu0 0.0
  %835 = vmatpush2.msra.mxu0 %v340
  %836 = vmatprep.subr.mxu0 0.0
  %837 = vmatpush2.msra.mxu0 %v339
  %838 = vmatprep.mubr.f32.mxu0 %v343
  %839 = vmatmul.mubr.f32.gmra.mxu0 %v17
  %v840 = vpop.f32.mrf.mxu0
  %v841 = vadd.f32 0.0, %v840
  %v842 = vpop.f32.mrf.mxu0
  %843 = vmatprep.mubr.f32.mxu0 %v346
  %844 = vmatmul.mubr.f32.gmra.mxu0 %v19
  %v845 = vpop.f32.mrf.mxu0
  %v846 = vadd.f32 0.0, %v845
  %v847 = vpop.f32.mrf.mxu0
  %848 = vmatprep.mubr.f32.mxu0 %v349
  %849 = vmatmul.mubr.f32.gmra.mxu0 %v21
  %v850 = vpop.f32.mrf.mxu0
  %v851 = vadd.f32 0.0, %v850
  %v852 = vpop.f32.mrf.mxu0
  %853 = vmatprep.mubr.f32.mxu0 %v352
  %854 = vmatmul.mubr.f32.gmra.mxu0 %v23
  %v855 = vpop.f32.mrf.mxu0
  %v856 = vadd.f32 0.0, %v855
  %v857 = vpop.f32.mrf.mxu0
  %858 = vmatprep.mubr.f32.mxu0 %v355
  %859 = vmatmul.mubr.f32.gmra.mxu0 %v25
  %v860 = vpop.f32.mrf.mxu0
  %v861 = vadd.f32 0.0, %v860
  %v862 = vpop.f32.mrf.mxu0
  %863 = vmatprep.mubr.f32.mxu0 %v358
  %864 = vmatmul.mubr.f32.gmra.mxu0 %v27
  %v865 = vpop.f32.mrf.mxu0
  %v866 = vadd.f32 0.0, %v865
  %v867 = vpop.f32.mrf.mxu0
  %868 = vmatprep.mubr.f32.mxu0 %v361
  %869 = vmatmul.mubr.f32.gmra.mxu0 %v29
  %v870 = vpop.f32.mrf.mxu0
  %v871 = vadd.f32 0.0, %v870
  %v872 = vpop.f32.mrf.mxu0
  %873 = vmatprep.mubr.f32.mxu0 %v364
  %874 = vmatmul.mubr.f32.gmra.mxu0 %v31
  %v875 = vpop.f32.mrf.mxu0
  %v876 = vadd.f32 0.0, %v875
  %v877 = vpop.f32.mrf.mxu0
  %878 = vmatprep.mubr.f32.mxu0 %v367
  %879 = vmatmul.mubr.f32.gmra.mxu0 %v33
  %v880 = vpop.f32.mrf.mxu0
  %v881 = vadd.f32 0.0, %v880
  %v882 = vpop.f32.mrf.mxu0
  %883 = vmatprep.mubr.f32.mxu0 %v370
  %884 = vmatmul.mubr.f32.gmra.mxu0 %v35
  %v885 = vpop.f32.mrf.mxu0
  %v886 = vadd.f32 0.0, %v885
  %v887 = vpop.f32.mrf.mxu0
  %888 = vmatprep.mubr.f32.mxu0 %v373
  %889 = vmatmul.mubr.f32.gmra.mxu0 %v37
  %v890 = vpop.f32.mrf.mxu0
  %v891 = vadd.f32 0.0, %v890
  %v892 = vpop.f32.mrf.mxu0
  %893 = vmatprep.mubr.f32.mxu0 %v376
  %894 = vmatmul.mubr.f32.gmra.mxu0 %v39
  %v895 = vpop.f32.mrf.mxu0
  %v896 = vadd.f32 0.0, %v895
  %v897 = vpop.f32.mrf.mxu0
  %898 = vmatprep.mubr.f32.mxu0 %v379
  %899 = vmatmul.mubr.f32.gmra.mxu0 %v41
  %v900 = vpop.f32.mrf.mxu0
  %v901 = vadd.f32 0.0, %v900
  %v902 = vpop.f32.mrf.mxu0
  %903 = vmatprep.mubr.f32.mxu0 %v382
  %904 = vmatmul.mubr.f32.gmra.mxu0 %v43
  %v905 = vpop.f32.mrf.mxu0
  %v906 = vadd.f32 0.0, %v905
  %v907 = vpop.f32.mrf.mxu0
  %908 = vmatprep.mubr.f32.mxu0 %v385
  %909 = vmatmul.mubr.f32.gmra.mxu0 %v45
  %v910 = vpop.f32.mrf.mxu0
  %v911 = vadd.f32 0.0, %v910
  %v912 = vpop.f32.mrf.mxu0
  %913 = vmatprep.mubr.f32.mxu0 %v388
  %914 = vmatmul.mubr.f32.gmra.mxu0 %v47
  %v915 = vpop.f32.mrf.mxu0
  %v916 = vadd.f32 0.0, %v915
  %v917 = vpop.f32.mrf.mxu0
  %918 = vmatprep.mubr.f32.mxu0 %v391
  %919 = vmatmul.mubr.f32.gmra.mxu0 %v49
  %v920 = vpop.f32.mrf.mxu0
  %v921 = vadd.f32 0.0, %v920
  %v922 = vpop.f32.mrf.mxu0
  %923 = vmatprep.mubr.f32.mxu0 %v394
  %924 = vmatmul.mubr.f32.gmra.mxu0 %v51
  %v925 = vpop.f32.mrf.mxu0
  %v926 = vadd.f32 0.0, %v925
  %v927 = vpop.f32.mrf.mxu0
  %928 = vmatprep.mubr.f32.mxu0 %v397
  %929 = vmatmul.mubr.f32.gmra.mxu0 %v53
  %v930 = vpop.f32.mrf.mxu0
  %v931 = vadd.f32 0.0, %v930
  %v932 = vpop.f32.mrf.mxu0
  %933 = vmatprep.mubr.f32.mxu0 %v400
  %934 = vmatmul.mubr.f32.gmra.mxu0 %v55
  %v935 = vpop.f32.mrf.mxu0
  %v936 = vadd.f32 0.0, %v935
  %v937 = vpop.f32.mrf.mxu0
  %938 = vmatprep.mubr.f32.mxu0 %v403
  %939 = vmatmul.mubr.f32.gmra.mxu0 %v57
  %v940 = vpop.f32.mrf.mxu0
  %v941 = vadd.f32 0.0, %v940
  %v942 = vpop.f32.mrf.mxu0
  %943 = vmatprep.mubr.f32.mxu0 %v406
  %944 = vmatmul.mubr.f32.gmra.mxu0 %v59
  %v945 = vpop.f32.mrf.mxu0
  %v946 = vadd.f32 0.0, %v945
  %v947 = vpop.f32.mrf.mxu0
  %948 = vmatprep.mubr.f32.mxu0 %v409
  %949 = vmatmul.mubr.f32.gmra.mxu0 %v61
  %v950 = vpop.f32.mrf.mxu0
  %v951 = vadd.f32 0.0, %v950
  %v952 = vpop.f32.mrf.mxu0
  %953 = vmatprep.mubr.f32.mxu0 %v412
  %954 = vmatmul.mubr.f32.gmra.mxu0 %v63
  %v955 = vpop.f32.mrf.mxu0
  %v956 = vadd.f32 0.0, %v955
  %v957 = vpop.f32.mrf.mxu0
  %958 = vmatprep.mubr.f32.mxu0 %v415
  %959 = vmatmul.mubr.f32.gmra.mxu0 %v65
  %v960 = vpop.f32.mrf.mxu0
  %v961 = vadd.f32 0.0, %v960
  %v962 = vpop.f32.mrf.mxu0
  %963 = vmatprep.mubr.f32.mxu0 %v418
  %964 = vmatmul.mubr.f32.gmra.mxu0 %v67
  %v965 = vpop.f32.mrf.mxu0
  %v966 = vadd.f32 0.0, %v965
  %v967 = vpop.f32.mrf.mxu0
  %968 = vmatprep.mubr.f32.mxu0 %v421
  %969 = vmatmul.mubr.f32.gmra.mxu0 %v69
  %v970 = vpop.f32.mrf.mxu0
  %v971 = vadd.f32 0.0, %v970
  %v972 = vpop.f32.mrf.mxu0
  %973 = vmatprep.mubr.f32.mxu0 %v424
  %974 = vmatmul.mubr.f32.gmra.mxu0 %v71
  %v975 = vpop.f32.mrf.mxu0
  %v976 = vadd.f32 0.0, %v975
  %v977 = vpop.f32.mrf.mxu0
  %978 = vmatprep.mubr.f32.mxu0 %v427
  %979 = vmatmul.mubr.f32.gmra.mxu0 %v73
  %v980 = vpop.f32.mrf.mxu0
  %v981 = vadd.f32 0.0, %v980
  %v982 = vpop.f32.mrf.mxu0
  %983 = vmatprep.mubr.f32.mxu0 %v430
  %984 = vmatmul.mubr.f32.gmra.mxu0 %v75
  %v985 = vpop.f32.mrf.mxu0
  %v986 = vadd.f32 0.0, %v985
  %v987 = vpop.f32.mrf.mxu0
  %988 = vmatprep.mubr.f32.mxu0 %v433
  %989 = vmatmul.mubr.f32.gmra.mxu0 %v77
  %v990 = vpop.f32.mrf.mxu0
  %v991 = vadd.f32 0.0, %v990
  %v992 = vpop.f32.mrf.mxu0
  %993 = vmatprep.mubr.f32.mxu0 %v436
  %994 = vmatmul.mubr.f32.gmra.mxu0 %v79
  %v995 = vpop.f32.mrf.mxu0
  %v996 = vadd.f32 0.0, %v995
  %v997 = vpop.f32.mrf.mxu0
  %998 = vmatprep.mubr.f32.mxu0 %v439
  %999 = vmatmul.mubr.f32.gmra.mxu0 %v81
  %v1000 = vpop.f32.mrf.mxu0
  %v1001 = vadd.f32 0.0, %v1000
  %v1002 = vpop.f32.mrf.mxu0
  %1003 = vmatprep.mubr.f32.mxu0 %v442
  %1004 = vmatmul.mubr.f32.gmra.mxu0 %v83
  %v1005 = vpop.f32.mrf.mxu0
  %v1006 = vadd.f32 0.0, %v1005
  %v1007 = vpop.f32.mrf.mxu0
  %1008 = vmatprep.mubr.f32.mxu0 %v445
  %1009 = vmatmul.mubr.f32.gmra.mxu0 %v85
  %v1010 = vpop.f32.mrf.mxu0
  %v1011 = vadd.f32 0.0, %v1010
  %v1012 = vpop.f32.mrf.mxu0
  %1013 = vmatprep.mubr.f32.mxu0 %v448
  %1014 = vmatmul.mubr.f32.gmra.mxu0 %v87
  %v1015 = vpop.f32.mrf.mxu0
  %v1016 = vadd.f32 0.0, %v1015
  %v1017 = vpop.f32.mrf.mxu0
  %1018 = vmatprep.mubr.f32.mxu0 %v451
  %1019 = vmatmul.mubr.f32.gmra.mxu0 %v89
  %v1020 = vpop.f32.mrf.mxu0
  %v1021 = vadd.f32 0.0, %v1020
  %v1022 = vpop.f32.mrf.mxu0
  %1023 = vmatprep.mubr.f32.mxu0 %v454
  %1024 = vmatmul.mubr.f32.gmra.mxu0 %v91
  %v1025 = vpop.f32.mrf.mxu0
  %v1026 = vadd.f32 0.0, %v1025
  %v1027 = vpop.f32.mrf.mxu0
  %1028 = vmatprep.mubr.f32.mxu0 %v457
  %1029 = vmatmul.mubr.f32.gmra.mxu0 %v93
  %v1030 = vpop.f32.mrf.mxu0
  %v1031 = vadd.f32 0.0, %v1030
  %v1032 = vpop.f32.mrf.mxu0
  %1033 = vmatprep.mubr.f32.mxu0 %v460
  %1034 = vmatmul.mubr.f32.gmra.mxu0 %v95
  %v1035 = vpop.f32.mrf.mxu0
  %v1036 = vadd.f32 0.0, %v1035
  %v1037 = vpop.f32.mrf.mxu0
  %1038 = vmatprep.mubr.f32.mxu0 %v463
  %1039 = vmatmul.mubr.f32.gmra.mxu0 %v97
  %v1040 = vpop.f32.mrf.mxu0
  %v1041 = vadd.f32 0.0, %v1040
  %v1042 = vpop.f32.mrf.mxu0
  %1043 = vmatprep.mubr.f32.mxu0 %v466
  %1044 = vmatmul.mubr.f32.gmra.mxu0 %v99
  %v1045 = vpop.f32.mrf.mxu0
  %v1046 = vadd.f32 0.0, %v1045
  %v1047 = vpop.f32.mrf.mxu0
  %1048 = vmatprep.mubr.f32.mxu0 %v469
  %1049 = vmatmul.mubr.f32.gmra.mxu0 %v101
  %v1050 = vpop.f32.mrf.mxu0
  %v1051 = vadd.f32 0.0, %v1050
  %v1052 = vpop.f32.mrf.mxu0
  %1053 = vmatprep.mubr.f32.mxu0 %v472
  %1054 = vmatmul.mubr.f32.gmra.mxu0 %v103
  %v1055 = vpop.f32.mrf.mxu0
  %v1056 = vadd.f32 0.0, %v1055
  %v1057 = vpop.f32.mrf.mxu0
  %1058 = vmatprep.mubr.f32.mxu0 %v475
  %1059 = vmatmul.mubr.f32.gmra.mxu0 %v105
  %v1060 = vpop.f32.mrf.mxu0
  %v1061 = vadd.f32 0.0, %v1060
  %v1062 = vpop.f32.mrf.mxu0
  %1063 = vmatprep.mubr.f32.mxu0 %v478
  %1064 = vmatmul.mubr.f32.gmra.mxu0 %v107
  %v1065 = vpop.f32.mrf.mxu0
  %v1066 = vadd.f32 0.0, %v1065
  %v1067 = vpop.f32.mrf.mxu0
  %1068 = vmatprep.mubr.f32.mxu0 %v481
  %1069 = vmatmul.mubr.f32.gmra.mxu0 %v109
  %v1070 = vpop.f32.mrf.mxu0
  %v1071 = vadd.f32 0.0, %v1070
  %v1072 = vpop.f32.mrf.mxu0
  %1073 = vmatprep.mubr.f32.mxu0 %v484
  %1074 = vmatmul.mubr.f32.gmra.mxu0 %v111
  %v1075 = vpop.f32.mrf.mxu0
  %v1076 = vadd.f32 0.0, %v1075
  %v1077 = vpop.f32.mrf.mxu0
  %1078 = vmatprep.mubr.f32.mxu0 %v487
  %1079 = vmatmul.mubr.f32.gmra.mxu0 %v113
  %v1080 = vpop.f32.mrf.mxu0
  %v1081 = vadd.f32 0.0, %v1080
  %v1082 = vpop.f32.mrf.mxu0
  %1083 = vmatprep.mubr.f32.mxu0 %v490
  %1084 = vmatmul.mubr.f32.gmra.mxu0 %v115
  %v1085 = vpop.f32.mrf.mxu0
  %v1086 = vadd.f32 0.0, %v1085
  %v1087 = vpop.f32.mrf.mxu0
  %1088 = vmatprep.mubr.f32.mxu0 %v493
  %1089 = vmatmul.mubr.f32.gmra.mxu0 %v117
  %v1090 = vpop.f32.mrf.mxu0
  %v1091 = vadd.f32 0.0, %v1090
  %v1092 = vpop.f32.mrf.mxu0
  %1093 = vmatprep.mubr.f32.mxu0 %v496
  %1094 = vmatmul.mubr.f32.gmra.mxu0 %v119
  %v1095 = vpop.f32.mrf.mxu0
  %v1096 = vadd.f32 0.0, %v1095
  %v1097 = vpop.f32.mrf.mxu0
  %1098 = vmatprep.mubr.f32.mxu0 %v499
  %1099 = vmatmul.mubr.f32.gmra.mxu0 %v121
  %v1100 = vpop.f32.mrf.mxu0
  %v1101 = vadd.f32 0.0, %v1100
  %v1102 = vpop.f32.mrf.mxu0
  %1103 = vmatprep.mubr.f32.mxu0 %v502
  %1104 = vmatmul.mubr.f32.gmra.mxu0 %v123
  %v1105 = vpop.f32.mrf.mxu0
  %v1106 = vadd.f32 0.0, %v1105
  %v1107 = vpop.f32.mrf.mxu0
  %1108 = vmatprep.mubr.f32.mxu0 %v505
  %1109 = vmatmul.mubr.f32.gmra.mxu0 %v125
  %v1110 = vpop.f32.mrf.mxu0
  %v1111 = vadd.f32 0.0, %v1110
  %v1112 = vpop.f32.mrf.mxu0
  %1113 = vmatprep.mubr.f32.mxu0 %v508
  %1114 = vmatmul.mubr.f32.gmra.mxu0 %v127
  %v1115 = vpop.f32.mrf.mxu0
  %v1116 = vadd.f32 0.0, %v1115
  %v1117 = vpop.f32.mrf.mxu0
  %1118 = vmatprep.mubr.f32.mxu0 %v511
  %1119 = vmatmul.mubr.f32.gmra.mxu0 %v129
  %v1120 = vpop.f32.mrf.mxu0
  %v1121 = vadd.f32 0.0, %v1120
  %v1122 = vpop.f32.mrf.mxu0
  %1123 = vmatprep.mubr.f32.mxu0 %v514
  %1124 = vmatmul.mubr.f32.gmra.mxu0 %v131
  %v1125 = vpop.f32.mrf.mxu0
  %v1126 = vadd.f32 0.0, %v1125
  %v1127 = vpop.f32.mrf.mxu0
  %1128 = vmatprep.mubr.f32.mxu0 %v517
  %1129 = vmatmul.mubr.f32.gmra.mxu0 %v133
  %v1130 = vpop.f32.mrf.mxu0
  %v1131 = vadd.f32 0.0, %v1130
  %v1132 = vpop.f32.mrf.mxu0
  %1133 = vmatprep.mubr.f32.mxu0 %v520
  %1134 = vmatmul.mubr.f32.gmra.mxu0 %v135
  %v1135 = vpop.f32.mrf.mxu0
  %v1136 = vadd.f32 0.0, %v1135
  %v1137 = vpop.f32.mrf.mxu0
  %1138 = vmatprep.mubr.f32.mxu0 %v523
  %1139 = vmatmul.mubr.f32.gmra.mxu0 %v137
  %v1140 = vpop.f32.mrf.mxu0
  %v1141 = vadd.f32 0.0, %v1140
  %v1142 = vpop.f32.mrf.mxu0
  %1143 = vmatprep.mubr.f32.mxu0 %v526
  %1144 = vmatmul.mubr.f32.gmra.mxu0 %v139
  %v1145 = vpop.f32.mrf.mxu0
  %v1146 = vadd.f32 0.0, %v1145
  %v1147 = vpop.f32.mrf.mxu0
  %1148 = vmatprep.mubr.f32.mxu0 %v529
  %1149 = vmatmul.mubr.f32.gmra.mxu0 %v141
  %v1150 = vpop.f32.mrf.mxu0
  %v1151 = vadd.f32 0.0, %v1150
  %v1152 = vpop.f32.mrf.mxu0
  %1153 = vmatprep.mubr.f32.mxu0 %v532
  %1154 = vmatmul.mubr.f32.gmra.mxu0 %v143
  %v1155 = vpop.f32.mrf.mxu0
  %v1156 = vadd.f32 0.0, %v1155
  %v1157 = vpop.f32.mrf.mxu0
  %1158 = vmatprep.mubr.f32.mxu0 %v535
  %1159 = vmatmul.mubr.f32.gmra.mxu0 %v145
  %v1160 = vpop.f32.mrf.mxu0
  %v1161 = vadd.f32 0.0, %v1160
  %v1162 = vpop.f32.mrf.mxu0
  %1163 = vmatprep.mubr.f32.mxu0 %v538
  %1164 = vmatmul.mubr.f32.gmra.mxu0 %v147
  %v1165 = vpop.f32.mrf.mxu0
  %v1166 = vadd.f32 0.0, %v1165
  %v1167 = vpop.f32.mrf.mxu0
  %1168 = vmatprep.mubr.f32.mxu0 %v541
  %1169 = vmatmul.mubr.f32.gmra.mxu0 %v149
  %v1170 = vpop.f32.mrf.mxu0
  %v1171 = vadd.f32 0.0, %v1170
  %v1172 = vpop.f32.mrf.mxu0
  %1173 = vmatprep.mubr.f32.mxu0 %v544
  %1174 = vmatmul.mubr.f32.gmra.mxu0 %v151
  %v1175 = vpop.f32.mrf.mxu0
  %v1176 = vadd.f32 0.0, %v1175
  %v1177 = vpop.f32.mrf.mxu0
  %1178 = vmatprep.mubr.f32.mxu0 %v547
  %1179 = vmatmul.mubr.f32.gmra.mxu0 %v153
  %v1180 = vpop.f32.mrf.mxu0
  %v1181 = vadd.f32 0.0, %v1180
  %v1182 = vpop.f32.mrf.mxu0
  %1183 = vmatprep.mubr.f32.mxu0 %v550
  %1184 = vmatmul.mubr.f32.gmra.mxu0 %v155
  %v1185 = vpop.f32.mrf.mxu0
  %v1186 = vadd.f32 0.0, %v1185
  %v1187 = vpop.f32.mrf.mxu0
  %1188 = vmatprep.mubr.f32.mxu0 %v553
  %1189 = vmatmul.mubr.f32.gmra.mxu0 %v157
  %v1190 = vpop.f32.mrf.mxu0
  %v1191 = vadd.f32 0.0, %v1190
  %v1192 = vpop.f32.mrf.mxu0
  %1193 = vmatprep.mubr.f32.mxu0 %v556
  %1194 = vmatmul.mubr.f32.gmra.mxu0 %v159
  %v1195 = vpop.f32.mrf.mxu0
  %v1196 = vadd.f32 0.0, %v1195
  %v1197 = vpop.f32.mrf.mxu0
  %1198 = vmatprep.mubr.f32.mxu0 %v559
  %1199 = vmatmul.mubr.f32.gmra.mxu0 %v161
  %v1200 = vpop.f32.mrf.mxu0
  %v1201 = vadd.f32 0.0, %v1200
  %v1202 = vpop.f32.mrf.mxu0
  %1203 = vmatprep.mubr.f32.mxu0 %v562
  %1204 = vmatmul.mubr.f32.gmra.mxu0 %v163
  %v1205 = vpop.f32.mrf.mxu0
  %v1206 = vadd.f32 0.0, %v1205
  %v1207 = vpop.f32.mrf.mxu0
  %1208 = vmatprep.mubr.f32.mxu0 %v565
  %1209 = vmatmul.mubr.f32.gmra.mxu0 %v165
  %v1210 = vpop.f32.mrf.mxu0
  %v1211 = vadd.f32 0.0, %v1210
  %v1212 = vpop.f32.mrf.mxu0
  %1213 = vmatprep.mubr.f32.mxu0 %v568
  %1214 = vmatmul.mubr.f32.gmra.mxu0 %v167
  %v1215 = vpop.f32.mrf.mxu0
  %v1216 = vadd.f32 0.0, %v1215
  %v1217 = vpop.f32.mrf.mxu0
  %1218 = vmatprep.mubr.f32.mxu0 %v571
  %1219 = vmatmul.mubr.f32.gmra.mxu0 %v169
  %v1220 = vpop.f32.mrf.mxu0
  %v1221 = vadd.f32 0.0, %v1220
  %v1222 = vpop.f32.mrf.mxu0
  %1223 = vmatprep.mubr.f32.mxu0 %v574
  %1224 = vmatmul.mubr.f32.gmra.mxu0 %v171
  %v1225 = vpop.f32.mrf.mxu0
  %v1226 = vadd.f32 0.0, %v1225
  %v1227 = vpop.f32.mrf.mxu0
  %1228 = vmatprep.mubr.f32.mxu0 %v577
  %1229 = vmatmul.mubr.f32.gmra.mxu0 %v173
  %v1230 = vpop.f32.mrf.mxu0
  %v1231 = vadd.f32 0.0, %v1230
  %v1232 = vpop.f32.mrf.mxu0
  %1233 = vmatprep.mubr.f32.mxu0 %v580
  %1234 = vmatmul.mubr.f32.gmra.mxu0 %v175
  %v1235 = vpop.f32.mrf.mxu0
  %v1236 = vadd.f32 0.0, %v1235
  %v1237 = vpop.f32.mrf.mxu0
  %1238 = vmatprep.mubr.f32.mxu0 %v583
  %1239 = vmatmul.mubr.f32.gmra.mxu0 %v177
  %v1240 = vpop.f32.mrf.mxu0
  %v1241 = vadd.f32 0.0, %v1240
  %v1242 = vpop.f32.mrf.mxu0
  %1243 = vmatprep.mubr.f32.mxu0 %v586
  %1244 = vmatmul.mubr.f32.gmra.mxu0 %v179
  %v1245 = vpop.f32.mrf.mxu0
  %v1246 = vadd.f32 0.0, %v1245
  %v1247 = vpop.f32.mrf.mxu0
  %1248 = vmatprep.mubr.f32.mxu0 %v589
  %1249 = vmatmul.mubr.f32.gmra.mxu0 %v181
  %v1250 = vpop.f32.mrf.mxu0
  %v1251 = vadd.f32 0.0, %v1250
  %v1252 = vpop.f32.mrf.mxu0
  %1253 = vmatprep.mubr.f32.mxu0 %v592
  %1254 = vmatmul.mubr.f32.gmra.mxu0 %v183
  %v1255 = vpop.f32.mrf.mxu0
  %v1256 = vadd.f32 0.0, %v1255
  %v1257 = vpop.f32.mrf.mxu0
  %1258 = vmatprep.mubr.f32.mxu0 %v595
  %1259 = vmatmul.mubr.f32.gmra.mxu0 %v185
  %v1260 = vpop.f32.mrf.mxu0
  %v1261 = vadd.f32 0.0, %v1260
  %v1262 = vpop.f32.mrf.mxu0
  %1263 = vmatprep.mubr.f32.mxu0 %v598
  %1264 = vmatmul.mubr.f32.gmra.mxu0 %v187
  %v1265 = vpop.f32.mrf.mxu0
  %v1266 = vadd.f32 0.0, %v1265
  %v1267 = vpop.f32.mrf.mxu0
  %1268 = vmatprep.mubr.f32.mxu0 %v601
  %1269 = vmatmul.mubr.f32.gmra.mxu0 %v189
  %v1270 = vpop.f32.mrf.mxu0
  %v1271 = vadd.f32 0.0, %v1270
  %v1272 = vpop.f32.mrf.mxu0
  %1273 = vmatprep.mubr.f32.mxu0 %v604
  %1274 = vmatmul.mubr.f32.gmra.mxu0 %v191
  %v1275 = vpop.f32.mrf.mxu0
  %v1276 = vadd.f32 0.0, %v1275
  %v1277 = vpop.f32.mrf.mxu0
  %1278 = vmatprep.mubr.f32.mxu0 %v607
  %1279 = vmatmul.mubr.f32.gmra.mxu0 %v193
  %v1280 = vpop.f32.mrf.mxu0
  %v1281 = vadd.f32 0.0, %v1280
  %v1282 = vpop.f32.mrf.mxu0
  %1283 = vmatprep.mubr.f32.mxu0 %v610
  %1284 = vmatmul.mubr.f32.gmra.mxu0 %v195
  %v1285 = vpop.f32.mrf.mxu0
  %v1286 = vadd.f32 0.0, %v1285
  %v1287 = vpop.f32.mrf.mxu0
  %1288 = vmatprep.mubr.f32.mxu0 %v613
  %1289 = vmatmul.mubr.f32.gmra.mxu0 %v197
  %v1290 = vpop.f32.mrf.mxu0
  %v1291 = vadd.f32 0.0, %v1290
  %v1292 = vpop.f32.mrf.mxu0
  %1293 = vmatprep.mubr.f32.mxu0 %v616
  %1294 = vmatmul.mubr.f32.gmra.mxu0 %v199
  %v1295 = vpop.f32.mrf.mxu0
  %v1296 = vadd.f32 0.0, %v1295
  %v1297 = vpop.f32.mrf.mxu0
  %1298 = vmatprep.mubr.f32.mxu0 %v619
  %1299 = vmatmul.mubr.f32.gmra.mxu0 %v201
  %v1300 = vpop.f32.mrf.mxu0
  %v1301 = vadd.f32 0.0, %v1300
  %v1302 = vpop.f32.mrf.mxu0
  %1303 = vmatprep.mubr.f32.mxu0 %v622
  %1304 = vmatmul.mubr.f32.gmra.mxu0 %v203
  %v1305 = vpop.f32.mrf.mxu0
  %v1306 = vadd.f32 0.0, %v1305
  %v1307 = vpop.f32.mrf.mxu0
  %1308 = vmatprep.mubr.f32.mxu0 %v625
  %1309 = vmatmul.mubr.f32.gmra.mxu0 %v205
  %v1310 = vpop.f32.mrf.mxu0
  %v1311 = vadd.f32 0.0, %v1310
  %v1312 = vpop.f32.mrf.mxu0
  %1313 = vmatprep.mubr.f32.mxu0 %v628
  %1314 = vmatmul.mubr.f32.gmra.mxu0 %v207
  %v1315 = vpop.f32.mrf.mxu0
  %v1316 = vadd.f32 0.0, %v1315
  %v1317 = vpop.f32.mrf.mxu0
  %1318 = vmatprep.mubr.f32.mxu0 %v631
  %1319 = vmatmul.mubr.f32.gmra.mxu0 %v209
  %v1320 = vpop.f32.mrf.mxu0
  %v1321 = vadd.f32 0.0, %v1320
  %v1322 = vpop.f32.mrf.mxu0
  %1323 = vmatprep.mubr.f32.mxu0 %v634
  %1324 = vmatmul.mubr.f32.gmra.mxu0 %v211
  %v1325 = vpop.f32.mrf.mxu0
  %v1326 = vadd.f32 0.0, %v1325
  %v1327 = vpop.f32.mrf.mxu0
  %1328 = vmatprep.mubr.f32.mxu0 %v637
  %1329 = vmatmul.mubr.f32.gmra.mxu0 %v213
  %v1330 = vpop.f32.mrf.mxu0
  %v1331 = vadd.f32 0.0, %v1330
  %v1332 = vpop.f32.mrf.mxu0
  %1333 = vmatprep.mubr.f32.mxu0 %v640
  %1334 = vmatmul.mubr.f32.gmra.mxu0 %v215
  %v1335 = vpop.f32.mrf.mxu0
  %v1336 = vadd.f32 0.0, %v1335
  %v1337 = vpop.f32.mrf.mxu0
  %1338 = vmatprep.mubr.f32.mxu0 %v643
  %1339 = vmatmul.mubr.f32.gmra.mxu0 %v217
  %v1340 = vpop.f32.mrf.mxu0
  %v1341 = vadd.f32 0.0, %v1340
  %v1342 = vpop.f32.mrf.mxu0
  %1343 = vmatprep.mubr.f32.mxu0 %v646
  %1344 = vmatmul.mubr.f32.gmra.mxu0 %v219
  %v1345 = vpop.f32.mrf.mxu0
  %v1346 = vadd.f32 0.0, %v1345
  %v1347 = vpop.f32.mrf.mxu0
  %1348 = vmatprep.mubr.f32.mxu0 %v649
  %1349 = vmatmul.mubr.f32.gmra.mxu0 %v221
  %v1350 = vpop.f32.mrf.mxu0
  %v1351 = vadd.f32 0.0, %v1350
  %v1352 = vpop.f32.mrf.mxu0
  %1353 = vmatprep.mubr.f32.mxu0 %v652
  %1354 = vmatmul.mubr.f32.gmra.mxu0 %v223
  %v1355 = vpop.f32.mrf.mxu0
  %v1356 = vadd.f32 0.0, %v1355
  %v1357 = vpop.f32.mrf.mxu0
  %1358 = vmatprep.mubr.f32.mxu0 %v655
  %1359 = vmatmul.mubr.f32.gmra.mxu0 %v225
  %v1360 = vpop.f32.mrf.mxu0
  %v1361 = vadd.f32 0.0, %v1360
  %v1362 = vpop.f32.mrf.mxu0
  %1363 = vmatprep.mubr.f32.mxu0 %v658
  %1364 = vmatmul.mubr.f32.gmra.mxu0 %v227
  %v1365 = vpop.f32.mrf.mxu0
  %v1366 = vadd.f32 0.0, %v1365
  %v1367 = vpop.f32.mrf.mxu0
  %1368 = vmatprep.mubr.f32.mxu0 %v661
  %1369 = vmatmul.mubr.f32.gmra.mxu0 %v229
  %v1370 = vpop.f32.mrf.mxu0
  %v1371 = vadd.f32 0.0, %v1370
  %v1372 = vpop.f32.mrf.mxu0
  %1373 = vmatprep.mubr.f32.mxu0 %v664
  %1374 = vmatmul.mubr.f32.gmra.mxu0 %v231
  %v1375 = vpop.f32.mrf.mxu0
  %v1376 = vadd.f32 0.0, %v1375
  %v1377 = vpop.f32.mrf.mxu0
  %1378 = vmatprep.mubr.f32.mxu0 %v667
  %1379 = vmatmul.mubr.f32.gmra.mxu0 %v233
  %v1380 = vpop.f32.mrf.mxu0
  %v1381 = vadd.f32 0.0, %v1380
  %v1382 = vpop.f32.mrf.mxu0
  %1383 = vmatprep.mubr.f32.mxu0 %v670
  %1384 = vmatmul.mubr.f32.gmra.mxu0 %v235
  %v1385 = vpop.f32.mrf.mxu0
  %v1386 = vadd.f32 0.0, %v1385
  %v1387 = vpop.f32.mrf.mxu0
  %1388 = vmatprep.mubr.f32.mxu0 %v673
  %1389 = vmatmul.mubr.f32.gmra.mxu0 %v237
  %v1390 = vpop.f32.mrf.mxu0
  %v1391 = vadd.f32 0.0, %v1390
  %v1392 = vpop.f32.mrf.mxu0
  %1393 = vmatprep.mubr.f32.mxu0 %v676
  %1394 = vmatmul.mubr.f32.gmra.mxu0 %v239
  %v1395 = vpop.f32.mrf.mxu0
  %v1396 = vadd.f32 0.0, %v1395
  %v1397 = vpop.f32.mrf.mxu0
  %1398 = vmatprep.mubr.f32.mxu0 %v679
  %1399 = vmatmul.mubr.f32.gmra.mxu0 %v241
  %v1400 = vpop.f32.mrf.mxu0
  %v1401 = vadd.f32 0.0, %v1400
  %v1402 = vpop.f32.mrf.mxu0
  %1403 = vmatprep.mubr.f32.mxu0 %v682
  %1404 = vmatmul.mubr.f32.gmra.mxu0 %v243
  %v1405 = vpop.f32.mrf.mxu0
  %v1406 = vadd.f32 0.0, %v1405
  %v1407 = vpop.f32.mrf.mxu0
  %1408 = vmatprep.mubr.f32.mxu0 %v685
  %1409 = vmatmul.mubr.f32.gmra.mxu0 %v245
  %v1410 = vpop.f32.mrf.mxu0
  %v1411 = vadd.f32 0.0, %v1410
  %v1412 = vpop.f32.mrf.mxu0
  %1413 = vmatprep.mubr.f32.mxu0 %v688
  %1414 = vmatmul.mubr.f32.gmra.mxu0 %v247
  %v1415 = vpop.f32.mrf.mxu0
  %v1416 = vadd.f32 0.0, %v1415
  %v1417 = vpop.f32.mrf.mxu0
  %1418 = vmatprep.mubr.f32.mxu0 %v691
  %1419 = vmatmul.mubr.f32.gmra.mxu0 %v249
  %v1420 = vpop.f32.mrf.mxu0
  %v1421 = vadd.f32 0.0, %v1420
  %v1422 = vpop.f32.mrf.mxu0
  %1423 = vmatprep.mubr.f32.mxu0 %v694
  %1424 = vmatmul.mubr.f32.gmra.mxu0 %v251
  %v1425 = vpop.f32.mrf.mxu0
  %v1426 = vadd.f32 0.0, %v1425
  %v1427 = vpop.f32.mrf.mxu0
  %1428 = vmatprep.mubr.f32.mxu0 %v697
  %1429 = vmatmul.mubr.f32.gmra.mxu0 %v253
  %v1430 = vpop.f32.mrf.mxu0
  %v1431 = vadd.f32 0.0, %v1430
  %v1432 = vpop.f32.mrf.mxu0
  %1433 = vmatprep.mubr.f32.mxu0 %v700
  %1434 = vmatmul.mubr.f32.gmra.mxu0 %v255
  %v1435 = vpop.f32.mrf.mxu0
  %v1436 = vadd.f32 0.0, %v1435
  %v1437 = vpop.f32.mrf.mxu0
  %1438 = vmatprep.mubr.f32.mxu0 %v703
  %1439 = vmatmul.mubr.f32.gmra.mxu0 %v257
  %v1440 = vpop.f32.mrf.mxu0
  %v1441 = vadd.f32 0.0, %v1440
  %v1442 = vpop.f32.mrf.mxu0
  %1443 = vmatprep.mubr.f32.mxu0 %v706
  %1444 = vmatmul.mubr.f32.gmra.mxu0 %v259
  %v1445 = vpop.f32.mrf.mxu0
  %v1446 = vadd.f32 0.0, %v1445
  %v1447 = vpop.f32.mrf.mxu0
  %1448 = vmatprep.mubr.f32.mxu0 %v709
  %1449 = vmatmul.mubr.f32.gmra.mxu0 %v261
  %v1450 = vpop.f32.mrf.mxu0
  %v1451 = vadd.f32 0.0, %v1450
  %v1452 = vpop.f32.mrf.mxu0
  %1453 = vmatprep.mubr.f32.mxu0 %v712
  %1454 = vmatmul.mubr.f32.gmra.mxu0 %v263
  %v1455 = vpop.f32.mrf.mxu0
  %v1456 = vadd.f32 0.0, %v1455
  %v1457 = vpop.f32.mrf.mxu0
  %1458 = vmatprep.mubr.f32.mxu0 %v715
  %1459 = vmatmul.mubr.f32.gmra.mxu0 %v265
  %v1460 = vpop.f32.mrf.mxu0
  %v1461 = vadd.f32 0.0, %v1460
  %v1462 = vpop.f32.mrf.mxu0
  %1463 = vmatprep.mubr.f32.mxu0 %v718
  %1464 = vmatmul.mubr.f32.gmra.mxu0 %v267
  %v1465 = vpop.f32.mrf.mxu0
  %v1466 = vadd.f32 0.0, %v1465
  %v1467 = vpop.f32.mrf.mxu0
  %1468 = vmatprep.mubr.f32.mxu0 %v721
  %1469 = vmatmul.mubr.f32.gmra.mxu0 %v269
  %v1470 = vpop.f32.mrf.mxu0
  %v1471 = vadd.f32 0.0, %v1470
  %v1472 = vpop.f32.mrf.mxu0
  %1473 = vmatprep.mubr.f32.mxu0 %v724
  %1474 = vmatmul.mubr.f32.gmra.mxu0 %v271
  %v1475 = vpop.f32.mrf.mxu0
  %v1476 = vadd.f32 0.0, %v1475
  %v1477 = vpop.f32.mrf.mxu0
  %1478 = vmatprep.mubr.f32.mxu0 %v727
  %1479 = vmatmul.mubr.f32.gmra.mxu0 %v273
  %v1480 = vpop.f32.mrf.mxu0
  %v1481 = vadd.f32 0.0, %v1480
  %v1482 = vpop.f32.mrf.mxu0
  %1483 = vmatprep.mubr.f32.mxu0 %v730
  %1484 = vmatmul.mubr.f32.gmra.mxu0 %v275
  %v1485 = vpop.f32.mrf.mxu0
  %v1486 = vadd.f32 0.0, %v1485
  %v1487 = vpop.f32.mrf.mxu0
  %1488 = vmatprep.mubr.f32.mxu0 %v733
  %1489 = vmatmul.mubr.f32.gmra.mxu0 %v277
  %v1490 = vpop.f32.mrf.mxu0
  %v1491 = vadd.f32 0.0, %v1490
  %v1492 = vpop.f32.mrf.mxu0
  %1493 = vmatprep.mubr.f32.mxu0 %v736
  %1494 = vmatmul.mubr.f32.gmra.mxu0 %v279
  %v1495 = vpop.f32.mrf.mxu0
  %v1496 = vadd.f32 0.0, %v1495
  %v1497 = vpop.f32.mrf.mxu0
  %1498 = vmatprep.mubr.f32.mxu0 %v739
  %1499 = vmatmul.mubr.f32.gmra.mxu0 %v281
  %v1500 = vpop.f32.mrf.mxu0
  %v1501 = vadd.f32 0.0, %v1500
  %v1502 = vpop.f32.mrf.mxu0
  %1503 = vmatprep.mubr.f32.mxu0 %v742
  %1504 = vmatmul.mubr.f32.gmra.mxu0 %v283
  %v1505 = vpop.f32.mrf.mxu0
  %v1506 = vadd.f32 0.0, %v1505
  %v1507 = vpop.f32.mrf.mxu0
  %1508 = vmatprep.mubr.f32.mxu0 %v745
  %1509 = vmatmul.mubr.f32.gmra.mxu0 %v285
  %v1510 = vpop.f32.mrf.mxu0
  %v1511 = vadd.f32 0.0, %v1510
  %v1512 = vpop.f32.mrf.mxu0
  %1513 = vmatprep.mubr.f32.mxu0 %v748
  %1514 = vmatmul.mubr.f32.gmra.mxu0 %v287
  %v1515 = vpop.f32.mrf.mxu0
  %v1516 = vadd.f32 0.0, %v1515
  %v1517 = vpop.f32.mrf.mxu0
  %1518 = vmatprep.mubr.f32.mxu0 %v751
  %1519 = vmatmul.mubr.f32.gmra.mxu0 %v289
  %v1520 = vpop.f32.mrf.mxu0
  %v1521 = vadd.f32 0.0, %v1520
  %v1522 = vpop.f32.mrf.mxu0
  %1523 = vmatprep.mubr.f32.mxu0 %v754
  %1524 = vmatmul.mubr.f32.gmra.mxu0 %v291
  %v1525 = vpop.f32.mrf.mxu0
  %v1526 = vadd.f32 0.0, %v1525
  %v1527 = vpop.f32.mrf.mxu0
  %1528 = vmatprep.mubr.f32.mxu0 %v757
  %1529 = vmatmul.mubr.f32.gmra.mxu0 %v293
  %v1530 = vpop.f32.mrf.mxu0
  %v1531 = vadd.f32 0.0, %v1530
  %v1532 = vpop.f32.mrf.mxu0
  %1533 = vmatprep.mubr.f32.mxu0 %v760
  %1534 = vmatmul.mubr.f32.gmra.mxu0 %v295
  %v1535 = vpop.f32.mrf.mxu0
  %v1536 = vadd.f32 0.0, %v1535
  %v1537 = vpop.f32.mrf.mxu0
  %1538 = vmatprep.mubr.f32.mxu0 %v763
  %1539 = vmatmul.mubr.f32.gmra.mxu0 %v297
  %v1540 = vpop.f32.mrf.mxu0
  %v1541 = vadd.f32 0.0, %v1540
  %v1542 = vpop.f32.mrf.mxu0
  %1543 = vmatprep.mubr.f32.mxu0 %v766
  %1544 = vmatmul.mubr.f32.gmra.mxu0 %v299
  %v1545 = vpop.f32.mrf.mxu0
  %v1546 = vadd.f32 0.0, %v1545
  %v1547 = vpop.f32.mrf.mxu0
  %1548 = vmatprep.mubr.f32.mxu0 %v769
  %1549 = vmatmul.mubr.f32.gmra.mxu0 %v301
  %v1550 = vpop.f32.mrf.mxu0
  %v1551 = vadd.f32 0.0, %v1550
  %v1552 = vpop.f32.mrf.mxu0
  %1553 = vmatprep.mubr.f32.mxu0 %v772
  %1554 = vmatmul.mubr.f32.gmra.mxu0 %v303
  %v1555 = vpop.f32.mrf.mxu0
  %v1556 = vadd.f32 0.0, %v1555
  %v1557 = vpop.f32.mrf.mxu0
  %1558 = vdwg.mxu0
  %vm1559 = vcmask 261120
  %v1560 = vsel %vm1559, %v841, 0.0
  %v1561 = vsel %vm1559, %v846, 0.0
  %v1562 = vadd.f32 %v1560, %v1561
  %v1563 = vsel %vm1559, %v851, 0.0
  %v1564 = vadd.f32 %v1562, %v1563
  %v1565 = vsel %vm1559, %v856, 0.0
  %v1566 = vadd.f32 %v1564, %v1565
  %v1567 = vsel %vm1559, %v861, 0.0
  %v1568 = vadd.f32 %v1566, %v1567
  %v1569 = vsel %vm1559, %v866, 0.0
  %v1570 = vadd.f32 %v1568, %v1569
  %v1571 = vsel %vm1559, %v871, 0.0
  %v1572 = vadd.f32 %v1570, %v1571
  %v1573 = vsel %vm1559, %v876, 0.0
  %v1574 = vadd.f32 %v1572, %v1573
  %v1575 = vsel %vm1559, %v881, 0.0
  %v1576 = vadd.f32 %v1574, %v1575
  %v1577 = vsel %vm1559, %v886, 0.0
  %v1578 = vadd.f32 %v1576, %v1577
  %v1579 = vsel %vm1559, %v891, 0.0
  %v1580 = vadd.f32 %v1578, %v1579
  %v1581 = vsel %vm1559, %v896, 0.0
  %v1582 = vadd.f32 %v1580, %v1581
  %v1583 = vsel %vm1559, %v901, 0.0
  %v1584 = vadd.f32 %v1582, %v1583
  %v1585 = vsel %vm1559, %v906, 0.0
  %v1586 = vadd.f32 %v1584, %v1585
  %v1587 = vsel %vm1559, %v911, 0.0
  %v1588 = vadd.f32 %v1586, %v1587
  %v1589 = vsel %vm1559, %v916, 0.0
  %v1590 = vadd.f32 %v1588, %v1589
  %v1591 = vsel %vm1559, %v921, 0.0
  %v1592 = vadd.f32 %v1590, %v1591
  %v1593 = vsel %vm1559, %v926, 0.0
  %v1594 = vadd.f32 %v1592, %v1593
  %v1595 = vsel %vm1559, %v931, 0.0
  %v1596 = vadd.f32 %v1594, %v1595
  %v1597 = vsel %vm1559, %v936, 0.0
  %v1598 = vadd.f32 %v1596, %v1597
  %v1599 = vsel %vm1559, %v941, 0.0
  %v1600 = vadd.f32 %v1598, %v1599
  %v1601 = vsel %vm1559, %v946, 0.0
  %v1602 = vadd.f32 %v1600, %v1601
  %v1603 = vsel %vm1559, %v951, 0.0
  %v1604 = vadd.f32 %v1602, %v1603
  %v1605 = vsel %vm1559, %v956, 0.0
  %v1606 = vadd.f32 %v1604, %v1605
  %v1607 = vsel %vm1559, %v961, 0.0
  %v1608 = vadd.f32 %v1606, %v1607
  %v1609 = vsel %vm1559, %v966, 0.0
  %v1610 = vadd.f32 %v1608, %v1609
  %v1611 = vsel %vm1559, %v971, 0.0
  %v1612 = vadd.f32 %v1610, %v1611
  %v1613 = vsel %vm1559, %v976, 0.0
  %v1614 = vadd.f32 %v1612, %v1613
  %v1615 = vsel %vm1559, %v981, 0.0
  %v1616 = vadd.f32 %v1614, %v1615
  %v1617 = vsel %vm1559, %v986, 0.0
  %v1618 = vadd.f32 %v1616, %v1617
  %v1619 = vsel %vm1559, %v991, 0.0
  %v1620 = vadd.f32 %v1618, %v1619
  %v1621 = vsel %vm1559, %v996, 0.0
  %v1622 = vadd.f32 %v1620, %v1621
  %v1623 = vsel %vm1559, %v1001, 0.0
  %v1624 = vadd.f32 %v1622, %v1623
  %v1625 = vsel %vm1559, %v1006, 0.0
  %v1626 = vadd.f32 %v1624, %v1625
  %v1627 = vsel %vm1559, %v1011, 0.0
  %v1628 = vadd.f32 %v1626, %v1627
  %v1629 = vsel %vm1559, %v1016, 0.0
  %v1630 = vadd.f32 %v1628, %v1629
  %v1631 = vsel %vm1559, %v1021, 0.0
  %v1632 = vadd.f32 %v1630, %v1631
  %v1633 = vsel %vm1559, %v1026, 0.0
  %v1634 = vadd.f32 %v1632, %v1633
  %v1635 = vsel %vm1559, %v1031, 0.0
  %v1636 = vadd.f32 %v1634, %v1635
  %v1637 = vsel %vm1559, %v1036, 0.0
  %v1638 = vadd.f32 %v1636, %v1637
  %v1639 = vsel %vm1559, %v1041, 0.0
  %v1640 = vadd.f32 %v1638, %v1639
  %v1641 = vsel %vm1559, %v1046, 0.0
  %v1642 = vadd.f32 %v1640, %v1641
  %v1643 = vsel %vm1559, %v1051, 0.0
  %v1644 = vadd.f32 %v1642, %v1643
  %v1645 = vsel %vm1559, %v1056, 0.0
  %v1646 = vadd.f32 %v1644, %v1645
  %v1647 = vsel %vm1559, %v1061, 0.0
  %v1648 = vadd.f32 %v1646, %v1647
  %v1649 = vsel %vm1559, %v1066, 0.0
  %v1650 = vadd.f32 %v1648, %v1649
  %v1651 = vsel %vm1559, %v1071, 0.0
  %v1652 = vadd.f32 %v1650, %v1651
  %v1653 = vsel %vm1559, %v1076, 0.0
  %v1654 = vadd.f32 %v1652, %v1653
  %v1655 = vsel %vm1559, %v1081, 0.0
  %v1656 = vadd.f32 %v1654, %v1655
  %v1657 = vsel %vm1559, %v1086, 0.0
  %v1658 = vadd.f32 %v1656, %v1657
  %v1659 = vsel %vm1559, %v1091, 0.0
  %v1660 = vadd.f32 %v1658, %v1659
  %v1661 = vsel %vm1559, %v1096, 0.0
  %v1662 = vadd.f32 %v1660, %v1661
  %v1663 = vsel %vm1559, %v1101, 0.0
  %v1664 = vadd.f32 %v1662, %v1663
  %v1665 = vsel %vm1559, %v1106, 0.0
  %v1666 = vadd.f32 %v1664, %v1665
  %v1667 = vsel %vm1559, %v1111, 0.0
  %v1668 = vadd.f32 %v1666, %v1667
  %v1669 = vsel %vm1559, %v1116, 0.0
  %v1670 = vadd.f32 %v1668, %v1669
  %v1671 = vsel %vm1559, %v1121, 0.0
  %v1672 = vadd.f32 %v1670, %v1671
  %v1673 = vsel %vm1559, %v1126, 0.0
  %v1674 = vadd.f32 %v1672, %v1673
  %v1675 = vsel %vm1559, %v1131, 0.0
  %v1676 = vadd.f32 %v1674, %v1675
  %v1677 = vsel %vm1559, %v1136, 0.0
  %v1678 = vadd.f32 %v1676, %v1677
  %v1679 = vsel %vm1559, %v1141, 0.0
  %v1680 = vadd.f32 %v1678, %v1679
  %v1681 = vsel %vm1559, %v1146, 0.0
  %v1682 = vadd.f32 %v1680, %v1681
  %v1683 = vsel %vm1559, %v1151, 0.0
  %v1684 = vadd.f32 %v1682, %v1683
  %v1685 = vsel %vm1559, %v1156, 0.0
  %v1686 = vadd.f32 %v1684, %v1685
  %v1687 = vsel %vm1559, %v1161, 0.0
  %v1688 = vadd.f32 %v1686, %v1687
  %v1689 = vsel %vm1559, %v1166, 0.0
  %v1690 = vadd.f32 %v1688, %v1689
  %v1691 = vsel %vm1559, %v1171, 0.0
  %v1692 = vadd.f32 %v1690, %v1691
  %v1693 = vsel %vm1559, %v1176, 0.0
  %v1694 = vadd.f32 %v1692, %v1693
  %v1695 = vsel %vm1559, %v1181, 0.0
  %v1696 = vadd.f32 %v1694, %v1695
  %v1697 = vsel %vm1559, %v1186, 0.0
  %v1698 = vadd.f32 %v1696, %v1697
  %v1699 = vsel %vm1559, %v1191, 0.0
  %v1700 = vadd.f32 %v1698, %v1699
  %v1701 = vsel %vm1559, %v1196, 0.0
  %v1702 = vadd.f32 %v1700, %v1701
  %v1703 = vsel %vm1559, %v1201, 0.0
  %v1704 = vadd.f32 %v1702, %v1703
  %v1705 = vsel %vm1559, %v1206, 0.0
  %v1706 = vadd.f32 %v1704, %v1705
  %v1707 = vsel %vm1559, %v1211, 0.0
  %v1708 = vadd.f32 %v1706, %v1707
  %v1709 = vsel %vm1559, %v1216, 0.0
  %v1710 = vadd.f32 %v1708, %v1709
  %v1711 = vsel %vm1559, %v1221, 0.0
  %v1712 = vadd.f32 %v1710, %v1711
  %v1713 = vsel %vm1559, %v1226, 0.0
  %v1714 = vadd.f32 %v1712, %v1713
  %v1715 = vsel %vm1559, %v1231, 0.0
  %v1716 = vadd.f32 %v1714, %v1715
  %v1717 = vsel %vm1559, %v1236, 0.0
  %v1718 = vadd.f32 %v1716, %v1717
  %v1719 = vsel %vm1559, %v1241, 0.0
  %v1720 = vadd.f32 %v1718, %v1719
  %v1721 = vsel %vm1559, %v1246, 0.0
  %v1722 = vadd.f32 %v1720, %v1721
  %v1723 = vsel %vm1559, %v1251, 0.0
  %v1724 = vadd.f32 %v1722, %v1723
  %v1725 = vsel %vm1559, %v1256, 0.0
  %v1726 = vadd.f32 %v1724, %v1725
  %v1727 = vsel %vm1559, %v1261, 0.0
  %v1728 = vadd.f32 %v1726, %v1727
  %v1729 = vsel %vm1559, %v1266, 0.0
  %v1730 = vadd.f32 %v1728, %v1729
  %v1731 = vsel %vm1559, %v1271, 0.0
  %v1732 = vadd.f32 %v1730, %v1731
  %v1733 = vsel %vm1559, %v1276, 0.0
  %v1734 = vadd.f32 %v1732, %v1733
  %v1735 = vsel %vm1559, %v1281, 0.0
  %v1736 = vadd.f32 %v1734, %v1735
  %v1737 = vsel %vm1559, %v1286, 0.0
  %v1738 = vadd.f32 %v1736, %v1737
  %v1739 = vsel %vm1559, %v1291, 0.0
  %v1740 = vadd.f32 %v1738, %v1739
  %v1741 = vsel %vm1559, %v1296, 0.0
  %v1742 = vadd.f32 %v1740, %v1741
  %v1743 = vsel %vm1559, %v1301, 0.0
  %v1744 = vadd.f32 %v1742, %v1743
  %v1745 = vsel %vm1559, %v1306, 0.0
  %v1746 = vadd.f32 %v1744, %v1745
  %v1747 = vsel %vm1559, %v1311, 0.0
  %v1748 = vadd.f32 %v1746, %v1747
  %v1749 = vsel %vm1559, %v1316, 0.0
  %v1750 = vadd.f32 %v1748, %v1749
  %v1751 = vsel %vm1559, %v1321, 0.0
  %v1752 = vadd.f32 %v1750, %v1751
  %v1753 = vsel %vm1559, %v1326, 0.0
  %v1754 = vadd.f32 %v1752, %v1753
  %v1755 = vsel %vm1559, %v1331, 0.0
  %v1756 = vadd.f32 %v1754, %v1755
  %v1757 = vsel %vm1559, %v1336, 0.0
  %v1758 = vadd.f32 %v1756, %v1757
  %v1759 = vsel %vm1559, %v1341, 0.0
  %v1760 = vadd.f32 %v1758, %v1759
  %v1761 = vsel %vm1559, %v1346, 0.0
  %v1762 = vadd.f32 %v1760, %v1761
  %v1763 = vsel %vm1559, %v1351, 0.0
  %v1764 = vadd.f32 %v1762, %v1763
  %v1765 = vsel %vm1559, %v1356, 0.0
  %v1766 = vadd.f32 %v1764, %v1765
  %v1767 = vsel %vm1559, %v1361, 0.0
  %v1768 = vadd.f32 %v1766, %v1767
  %v1769 = vsel %vm1559, %v1366, 0.0
  %v1770 = vadd.f32 %v1768, %v1769
  %v1771 = vsel %vm1559, %v1371, 0.0
  %v1772 = vadd.f32 %v1770, %v1771
  %v1773 = vsel %vm1559, %v1376, 0.0
  %v1774 = vadd.f32 %v1772, %v1773
  %v1775 = vsel %vm1559, %v1381, 0.0
  %v1776 = vadd.f32 %v1774, %v1775
  %v1777 = vsel %vm1559, %v1386, 0.0
  %v1778 = vadd.f32 %v1776, %v1777
  %v1779 = vsel %vm1559, %v1391, 0.0
  %v1780 = vadd.f32 %v1778, %v1779
  %v1781 = vsel %vm1559, %v1396, 0.0
  %v1782 = vadd.f32 %v1780, %v1781
  %v1783 = vsel %vm1559, %v1401, 0.0
  %v1784 = vadd.f32 %v1782, %v1783
  %v1785 = vsel %vm1559, %v1406, 0.0
  %v1786 = vadd.f32 %v1784, %v1785
  %v1787 = vsel %vm1559, %v1411, 0.0
  %v1788 = vadd.f32 %v1786, %v1787
  %v1789 = vsel %vm1559, %v1416, 0.0
  %v1790 = vadd.f32 %v1788, %v1789
  %v1791 = vsel %vm1559, %v1421, 0.0
  %v1792 = vadd.f32 %v1790, %v1791
  %v1793 = vsel %vm1559, %v1426, 0.0
  %v1794 = vadd.f32 %v1792, %v1793
  %v1795 = vsel %vm1559, %v1431, 0.0
  %v1796 = vadd.f32 %v1794, %v1795
  %v1797 = vsel %vm1559, %v1436, 0.0
  %v1798 = vadd.f32 %v1796, %v1797
  %v1799 = vsel %vm1559, %v1441, 0.0
  %v1800 = vadd.f32 %v1798, %v1799
  %v1801 = vsel %vm1559, %v1446, 0.0
  %v1802 = vadd.f32 %v1800, %v1801
  %v1803 = vsel %vm1559, %v1451, 0.0
  %v1804 = vadd.f32 %v1802, %v1803
  %v1805 = vsel %vm1559, %v1456, 0.0
  %v1806 = vadd.f32 %v1804, %v1805
  %v1807 = vsel %vm1559, %v1461, 0.0
  %v1808 = vadd.f32 %v1806, %v1807
  %v1809 = vsel %vm1559, %v1466, 0.0
  %v1810 = vadd.f32 %v1808, %v1809
  %v1811 = vsel %vm1559, %v1471, 0.0
  %v1812 = vadd.f32 %v1810, %v1811
  %v1813 = vsel %vm1559, %v1476, 0.0
  %v1814 = vadd.f32 %v1812, %v1813
  %v1815 = vsel %vm1559, %v1481, 0.0
  %v1816 = vadd.f32 %v1814, %v1815
  %v1817 = vsel %vm1559, %v1486, 0.0
  %v1818 = vadd.f32 %v1816, %v1817
  %v1819 = vsel %vm1559, %v1491, 0.0
  %v1820 = vadd.f32 %v1818, %v1819
  %v1821 = vsel %vm1559, %v1496, 0.0
  %v1822 = vadd.f32 %v1820, %v1821
  %v1823 = vsel %vm1559, %v1501, 0.0
  %v1824 = vadd.f32 %v1822, %v1823
  %v1825 = vsel %vm1559, %v1506, 0.0
  %v1826 = vadd.f32 %v1824, %v1825
  %v1827 = vsel %vm1559, %v1511, 0.0
  %v1828 = vadd.f32 %v1826, %v1827
  %v1829 = vsel %vm1559, %v1516, 0.0
  %v1830 = vadd.f32 %v1828, %v1829
  %v1831 = vsel %vm1559, %v1521, 0.0
  %v1832 = vadd.f32 %v1830, %v1831
  %v1833 = vsel %vm1559, %v1526, 0.0
  %v1834 = vadd.f32 %v1832, %v1833
  %v1835 = vsel %vm1559, %v1531, 0.0
  %v1836 = vadd.f32 %v1834, %v1835
  %v1837 = vsel %vm1559, %v1536, 0.0
  %v1838 = vadd.f32 %v1836, %v1837
  %v1839 = vsel %vm1559, %v1541, 0.0
  %v1840 = vadd.f32 %v1838, %v1839
  %v1841 = vsel %vm1559, %v1546, 0.0
  %v1842 = vadd.f32 %v1840, %v1841
  %v1843 = vsel %vm1559, %v1551, 0.0
  %v1844 = vadd.f32 %v1842, %v1843
  %v1845 = vsel %vm1559, %v1556, 0.0
  %v1846 = vadd.f32 %v1844, %v1845
  %v1847 = vrot.slane %v1846, 4
  %v1848 = vadd.f32 %v1846, %v1847
  %v1849 = vrot.slane %v1848, 2
  %v1850 = vadd.f32 %v1848, %v1849
  %v1851 = vrot.slane %v1850, 1
  %v1852 = vadd.f32 %v1850, %v1851
  %v1853 = vmul.f32 %v841, %v841
  %v1854 = vmul.f32 %v846, %v846
  %v1855 = vmul.f32 %v851, %v851
  %v1856 = vmul.f32 %v856, %v856
  %v1857 = vmul.f32 %v861, %v861
  %v1858 = vmul.f32 %v866, %v866
  %v1859 = vmul.f32 %v871, %v871
  %v1860 = vmul.f32 %v876, %v876
  %v1861 = vmul.f32 %v881, %v881
  %v1862 = vmul.f32 %v886, %v886
  %v1863 = vmul.f32 %v891, %v891
  %v1864 = vmul.f32 %v896, %v896
  %v1865 = vmul.f32 %v901, %v901
  %v1866 = vmul.f32 %v906, %v906
  %v1867 = vmul.f32 %v911, %v911
  %v1868 = vmul.f32 %v916, %v916
  %v1869 = vmul.f32 %v921, %v921
  %v1870 = vmul.f32 %v926, %v926
  %v1871 = vmul.f32 %v931, %v931
  %v1872 = vmul.f32 %v936, %v936
  %v1873 = vmul.f32 %v941, %v941
  %v1874 = vmul.f32 %v946, %v946
  %v1875 = vmul.f32 %v951, %v951
  %v1876 = vmul.f32 %v956, %v956
  %v1877 = vmul.f32 %v961, %v961
  %v1878 = vmul.f32 %v966, %v966
  %v1879 = vmul.f32 %v971, %v971
  %v1880 = vmul.f32 %v976, %v976
  %v1881 = vmul.f32 %v981, %v981
  %v1882 = vmul.f32 %v986, %v986
  %v1883 = vmul.f32 %v991, %v991
  %v1884 = vmul.f32 %v996, %v996
  %v1885 = vmul.f32 %v1001, %v1001
  %v1886 = vmul.f32 %v1006, %v1006
  %v1887 = vmul.f32 %v1011, %v1011
  %v1888 = vmul.f32 %v1016, %v1016
  %v1889 = vmul.f32 %v1021, %v1021
  %v1890 = vmul.f32 %v1026, %v1026
  %v1891 = vmul.f32 %v1031, %v1031
  %v1892 = vmul.f32 %v1036, %v1036
  %v1893 = vmul.f32 %v1041, %v1041
  %v1894 = vmul.f32 %v1046, %v1046
  %v1895 = vmul.f32 %v1051, %v1051
  %v1896 = vmul.f32 %v1056, %v1056
  %v1897 = vmul.f32 %v1061, %v1061
  %v1898 = vmul.f32 %v1066, %v1066
  %v1899 = vmul.f32 %v1071, %v1071
  %v1900 = vmul.f32 %v1076, %v1076
  %v1901 = vmul.f32 %v1081, %v1081
  %v1902 = vmul.f32 %v1086, %v1086
  %v1903 = vmul.f32 %v1091, %v1091
  %v1904 = vmul.f32 %v1096, %v1096
  %v1905 = vmul.f32 %v1101, %v1101
  %v1906 = vmul.f32 %v1106, %v1106
  %v1907 = vmul.f32 %v1111, %v1111
  %v1908 = vmul.f32 %v1116, %v1116
  %v1909 = vmul.f32 %v1121, %v1121
  %v1910 = vmul.f32 %v1126, %v1126
  %v1911 = vmul.f32 %v1131, %v1131
  %v1912 = vmul.f32 %v1136, %v1136
  %v1913 = vmul.f32 %v1141, %v1141
  %v1914 = vmul.f32 %v1146, %v1146
  %v1915 = vmul.f32 %v1151, %v1151
  %v1916 = vmul.f32 %v1156, %v1156
  %v1917 = vmul.f32 %v1161, %v1161
  %v1918 = vmul.f32 %v1166, %v1166
  %v1919 = vmul.f32 %v1171, %v1171
  %v1920 = vmul.f32 %v1176, %v1176
  %v1921 = vmul.f32 %v1181, %v1181
  %v1922 = vmul.f32 %v1186, %v1186
  %v1923 = vmul.f32 %v1191, %v1191
  %v1924 = vmul.f32 %v1196, %v1196
  %v1925 = vmul.f32 %v1201, %v1201
  %v1926 = vmul.f32 %v1206, %v1206
  %v1927 = vmul.f32 %v1211, %v1211
  %v1928 = vmul.f32 %v1216, %v1216
  %v1929 = vmul.f32 %v1221, %v1221
  %v1930 = vmul.f32 %v1226, %v1226
  %v1931 = vmul.f32 %v1231, %v1231
  %v1932 = vmul.f32 %v1236, %v1236
  %v1933 = vmul.f32 %v1241, %v1241
  %v1934 = vmul.f32 %v1246, %v1246
  %v1935 = vmul.f32 %v1251, %v1251
  %v1936 = vmul.f32 %v1256, %v1256
  %v1937 = vmul.f32 %v1261, %v1261
  %v1938 = vmul.f32 %v1266, %v1266
  %v1939 = vmul.f32 %v1271, %v1271
  %v1940 = vmul.f32 %v1276, %v1276
  %v1941 = vmul.f32 %v1281, %v1281
  %v1942 = vmul.f32 %v1286, %v1286
  %v1943 = vmul.f32 %v1291, %v1291
  %v1944 = vmul.f32 %v1296, %v1296
  %v1945 = vmul.f32 %v1301, %v1301
  %v1946 = vmul.f32 %v1306, %v1306
  %v1947 = vmul.f32 %v1311, %v1311
  %v1948 = vmul.f32 %v1316, %v1316
  %v1949 = vmul.f32 %v1321, %v1321
  %v1950 = vmul.f32 %v1326, %v1326
  %v1951 = vmul.f32 %v1331, %v1331
  %v1952 = vmul.f32 %v1336, %v1336
  %v1953 = vmul.f32 %v1341, %v1341
  %v1954 = vmul.f32 %v1346, %v1346
  %v1955 = vmul.f32 %v1351, %v1351
  %v1956 = vmul.f32 %v1356, %v1356
  %v1957 = vmul.f32 %v1361, %v1361
  %v1958 = vmul.f32 %v1366, %v1366
  %v1959 = vmul.f32 %v1371, %v1371
  %v1960 = vmul.f32 %v1376, %v1376
  %v1961 = vmul.f32 %v1381, %v1381
  %v1962 = vmul.f32 %v1386, %v1386
  %v1963 = vmul.f32 %v1391, %v1391
  %v1964 = vmul.f32 %v1396, %v1396
  %v1965 = vmul.f32 %v1401, %v1401
  %v1966 = vmul.f32 %v1406, %v1406
  %v1967 = vmul.f32 %v1411, %v1411
  %v1968 = vmul.f32 %v1416, %v1416
  %v1969 = vmul.f32 %v1421, %v1421
  %v1970 = vmul.f32 %v1426, %v1426
  %v1971 = vmul.f32 %v1431, %v1431
  %v1972 = vmul.f32 %v1436, %v1436
  %v1973 = vmul.f32 %v1441, %v1441
  %v1974 = vmul.f32 %v1446, %v1446
  %v1975 = vmul.f32 %v1451, %v1451
  %v1976 = vmul.f32 %v1456, %v1456
  %v1977 = vmul.f32 %v1461, %v1461
  %v1978 = vmul.f32 %v1466, %v1466
  %v1979 = vmul.f32 %v1471, %v1471
  %v1980 = vmul.f32 %v1476, %v1476
  %v1981 = vmul.f32 %v1481, %v1481
  %v1982 = vmul.f32 %v1486, %v1486
  %v1983 = vmul.f32 %v1491, %v1491
  %v1984 = vmul.f32 %v1496, %v1496
  %v1985 = vmul.f32 %v1501, %v1501
  %v1986 = vmul.f32 %v1506, %v1506
  %v1987 = vmul.f32 %v1511, %v1511
  %v1988 = vmul.f32 %v1516, %v1516
  %v1989 = vmul.f32 %v1521, %v1521
  %v1990 = vmul.f32 %v1526, %v1526
  %v1991 = vmul.f32 %v1531, %v1531
  %v1992 = vmul.f32 %v1536, %v1536
  %v1993 = vmul.f32 %v1541, %v1541
  %v1994 = vmul.f32 %v1546, %v1546
  %v1995 = vmul.f32 %v1551, %v1551
  %v1996 = vmul.f32 %v1556, %v1556
  %v1997 = vsel %vm1559, %v1853, 0.0
  %v1998 = vsel %vm1559, %v1854, 0.0
  %v1999 = vadd.f32 %v1997, %v1998
  %v2000 = vsel %vm1559, %v1855, 0.0
  %v2001 = vadd.f32 %v1999, %v2000
  %v2002 = vsel %vm1559, %v1856, 0.0
  %v2003 = vadd.f32 %v2001, %v2002
  %v2004 = vsel %vm1559, %v1857, 0.0
  %v2005 = vadd.f32 %v2003, %v2004
  %v2006 = vsel %vm1559, %v1858, 0.0
  %v2007 = vadd.f32 %v2005, %v2006
  %v2008 = vsel %vm1559, %v1859, 0.0
  %v2009 = vadd.f32 %v2007, %v2008
  %v2010 = vsel %vm1559, %v1860, 0.0
  %v2011 = vadd.f32 %v2009, %v2010
  %v2012 = vsel %vm1559, %v1861, 0.0
  %v2013 = vadd.f32 %v2011, %v2012
  %v2014 = vsel %vm1559, %v1862, 0.0
  %v2015 = vadd.f32 %v2013, %v2014
  %v2016 = vsel %vm1559, %v1863, 0.0
  %v2017 = vadd.f32 %v2015, %v2016
  %v2018 = vsel %vm1559, %v1864, 0.0
  %v2019 = vadd.f32 %v2017, %v2018
  %v2020 = vsel %vm1559, %v1865, 0.0
  %v2021 = vadd.f32 %v2019, %v2020
  %v2022 = vsel %vm1559, %v1866, 0.0
  %v2023 = vadd.f32 %v2021, %v2022
  %v2024 = vsel %vm1559, %v1867, 0.0
  %v2025 = vadd.f32 %v2023, %v2024
  %v2026 = vsel %vm1559, %v1868, 0.0
  %v2027 = vadd.f32 %v2025, %v2026
  %v2028 = vsel %vm1559, %v1869, 0.0
  %v2029 = vadd.f32 %v2027, %v2028
  %v2030 = vsel %vm1559, %v1870, 0.0
  %v2031 = vadd.f32 %v2029, %v2030
  %v2032 = vsel %vm1559, %v1871, 0.0
  %v2033 = vadd.f32 %v2031, %v2032
  %v2034 = vsel %vm1559, %v1872, 0.0
  %v2035 = vadd.f32 %v2033, %v2034
  %v2036 = vsel %vm1559, %v1873, 0.0
  %v2037 = vadd.f32 %v2035, %v2036
  %v2038 = vsel %vm1559, %v1874, 0.0
  %v2039 = vadd.f32 %v2037, %v2038
  %v2040 = vsel %vm1559, %v1875, 0.0
  %v2041 = vadd.f32 %v2039, %v2040
  %v2042 = vsel %vm1559, %v1876, 0.0
  %v2043 = vadd.f32 %v2041, %v2042
  %v2044 = vsel %vm1559, %v1877, 0.0
  %v2045 = vadd.f32 %v2043, %v2044
  %v2046 = vsel %vm1559, %v1878, 0.0
  %v2047 = vadd.f32 %v2045, %v2046
  %v2048 = vsel %vm1559, %v1879, 0.0
  %v2049 = vadd.f32 %v2047, %v2048
  %v2050 = vsel %vm1559, %v1880, 0.0
  %v2051 = vadd.f32 %v2049, %v2050
  %v2052 = vsel %vm1559, %v1881, 0.0
  %v2053 = vadd.f32 %v2051, %v2052
  %v2054 = vsel %vm1559, %v1882, 0.0
  %v2055 = vadd.f32 %v2053, %v2054
  %v2056 = vsel %vm1559, %v1883, 0.0
  %v2057 = vadd.f32 %v2055, %v2056
  %v2058 = vsel %vm1559, %v1884, 0.0
  %v2059 = vadd.f32 %v2057, %v2058
  %v2060 = vsel %vm1559, %v1885, 0.0
  %v2061 = vadd.f32 %v2059, %v2060
  %v2062 = vsel %vm1559, %v1886, 0.0
  %v2063 = vadd.f32 %v2061, %v2062
  %v2064 = vsel %vm1559, %v1887, 0.0
  %v2065 = vadd.f32 %v2063, %v2064
  %v2066 = vsel %vm1559, %v1888, 0.0
  %v2067 = vadd.f32 %v2065, %v2066
  %v2068 = vsel %vm1559, %v1889, 0.0
  %v2069 = vadd.f32 %v2067, %v2068
  %v2070 = vsel %vm1559, %v1890, 0.0
  %v2071 = vadd.f32 %v2069, %v2070
  %v2072 = vsel %vm1559, %v1891, 0.0
  %v2073 = vadd.f32 %v2071, %v2072
  %v2074 = vsel %vm1559, %v1892, 0.0
  %v2075 = vadd.f32 %v2073, %v2074
  %v2076 = vsel %vm1559, %v1893, 0.0
  %v2077 = vadd.f32 %v2075, %v2076
  %v2078 = vsel %vm1559, %v1894, 0.0
  %v2079 = vadd.f32 %v2077, %v2078
  %v2080 = vsel %vm1559, %v1895, 0.0
  %v2081 = vadd.f32 %v2079, %v2080
  %v2082 = vsel %vm1559, %v1896, 0.0
  %v2083 = vadd.f32 %v2081, %v2082
  %v2084 = vsel %vm1559, %v1897, 0.0
  %v2085 = vadd.f32 %v2083, %v2084
  %v2086 = vsel %vm1559, %v1898, 0.0
  %v2087 = vadd.f32 %v2085, %v2086
  %v2088 = vsel %vm1559, %v1899, 0.0
  %v2089 = vadd.f32 %v2087, %v2088
  %v2090 = vsel %vm1559, %v1900, 0.0
  %v2091 = vadd.f32 %v2089, %v2090
  %v2092 = vsel %vm1559, %v1901, 0.0
  %v2093 = vadd.f32 %v2091, %v2092
  %v2094 = vsel %vm1559, %v1902, 0.0
  %v2095 = vadd.f32 %v2093, %v2094
  %v2096 = vsel %vm1559, %v1903, 0.0
  %v2097 = vadd.f32 %v2095, %v2096
  %v2098 = vsel %vm1559, %v1904, 0.0
  %v2099 = vadd.f32 %v2097, %v2098
  %v2100 = vsel %vm1559, %v1905, 0.0
  %v2101 = vadd.f32 %v2099, %v2100
  %v2102 = vsel %vm1559, %v1906, 0.0
  %v2103 = vadd.f32 %v2101, %v2102
  %v2104 = vsel %vm1559, %v1907, 0.0
  %v2105 = vadd.f32 %v2103, %v2104
  %v2106 = vsel %vm1559, %v1908, 0.0
  %v2107 = vadd.f32 %v2105, %v2106
  %v2108 = vsel %vm1559, %v1909, 0.0
  %v2109 = vadd.f32 %v2107, %v2108
  %v2110 = vsel %vm1559, %v1910, 0.0
  %v2111 = vadd.f32 %v2109, %v2110
  %v2112 = vsel %vm1559, %v1911, 0.0
  %v2113 = vadd.f32 %v2111, %v2112
  %v2114 = vsel %vm1559, %v1912, 0.0
  %v2115 = vadd.f32 %v2113, %v2114
  %v2116 = vsel %vm1559, %v1913, 0.0
  %v2117 = vadd.f32 %v2115, %v2116
  %v2118 = vsel %vm1559, %v1914, 0.0
  %v2119 = vadd.f32 %v2117, %v2118
  %v2120 = vsel %vm1559, %v1915, 0.0
  %v2121 = vadd.f32 %v2119, %v2120
  %v2122 = vsel %vm1559, %v1916, 0.0
  %v2123 = vadd.f32 %v2121, %v2122
  %v2124 = vsel %vm1559, %v1917, 0.0
  %v2125 = vadd.f32 %v2123, %v2124
  %v2126 = vsel %vm1559, %v1918, 0.0
  %v2127 = vadd.f32 %v2125, %v2126
  %v2128 = vsel %vm1559, %v1919, 0.0
  %v2129 = vadd.f32 %v2127, %v2128
  %v2130 = vsel %vm1559, %v1920, 0.0
  %v2131 = vadd.f32 %v2129, %v2130
  %v2132 = vsel %vm1559, %v1921, 0.0
  %v2133 = vadd.f32 %v2131, %v2132
  %v2134 = vsel %vm1559, %v1922, 0.0
  %v2135 = vadd.f32 %v2133, %v2134
  %v2136 = vsel %vm1559, %v1923, 0.0
  %v2137 = vadd.f32 %v2135, %v2136
  %v2138 = vsel %vm1559, %v1924, 0.0
  %v2139 = vadd.f32 %v2137, %v2138
  %v2140 = vsel %vm1559, %v1925, 0.0
  %v2141 = vadd.f32 %v2139, %v2140
  %v2142 = vsel %vm1559, %v1926, 0.0
  %v2143 = vadd.f32 %v2141, %v2142
  %v2144 = vsel %vm1559, %v1927, 0.0
  %v2145 = vadd.f32 %v2143, %v2144
  %v2146 = vsel %vm1559, %v1928, 0.0
  %v2147 = vadd.f32 %v2145, %v2146
  %v2148 = vsel %vm1559, %v1929, 0.0
  %v2149 = vadd.f32 %v2147, %v2148
  %v2150 = vsel %vm1559, %v1930, 0.0
  %v2151 = vadd.f32 %v2149, %v2150
  %v2152 = vsel %vm1559, %v1931, 0.0
  %v2153 = vadd.f32 %v2151, %v2152
  %v2154 = vsel %vm1559, %v1932, 0.0
  %v2155 = vadd.f32 %v2153, %v2154
  %v2156 = vsel %vm1559, %v1933, 0.0
  %v2157 = vadd.f32 %v2155, %v2156
  %v2158 = vsel %vm1559, %v1934, 0.0
  %v2159 = vadd.f32 %v2157, %v2158
  %v2160 = vsel %vm1559, %v1935, 0.0
  %v2161 = vadd.f32 %v2159, %v2160
  %v2162 = vsel %vm1559, %v1936, 0.0
  %v2163 = vadd.f32 %v2161, %v2162
  %v2164 = vsel %vm1559, %v1937, 0.0
  %v2165 = vadd.f32 %v2163, %v2164
  %v2166 = vsel %vm1559, %v1938, 0.0
  %v2167 = vadd.f32 %v2165, %v2166
  %v2168 = vsel %vm1559, %v1939, 0.0
  %v2169 = vadd.f32 %v2167, %v2168
  %v2170 = vsel %vm1559, %v1940, 0.0
  %v2171 = vadd.f32 %v2169, %v2170
  %v2172 = vsel %vm1559, %v1941, 0.0
  %v2173 = vadd.f32 %v2171, %v2172
  %v2174 = vsel %vm1559, %v1942, 0.0
  %v2175 = vadd.f32 %v2173, %v2174
  %v2176 = vsel %vm1559, %v1943, 0.0
  %v2177 = vadd.f32 %v2175, %v2176
  %v2178 = vsel %vm1559, %v1944, 0.0
  %v2179 = vadd.f32 %v2177, %v2178
  %v2180 = vsel %vm1559, %v1945, 0.0
  %v2181 = vadd.f32 %v2179, %v2180
  %v2182 = vsel %vm1559, %v1946, 0.0
  %v2183 = vadd.f32 %v2181, %v2182
  %v2184 = vsel %vm1559, %v1947, 0.0
  %v2185 = vadd.f32 %v2183, %v2184
  %v2186 = vsel %vm1559, %v1948, 0.0
  %v2187 = vadd.f32 %v2185, %v2186
  %v2188 = vsel %vm1559, %v1949, 0.0
  %v2189 = vadd.f32 %v2187, %v2188
  %v2190 = vsel %vm1559, %v1950, 0.0
  %v2191 = vadd.f32 %v2189, %v2190
  %v2192 = vsel %vm1559, %v1951, 0.0
  %v2193 = vadd.f32 %v2191, %v2192
  %v2194 = vsel %vm1559, %v1952, 0.0
  %v2195 = vadd.f32 %v2193, %v2194
  %v2196 = vsel %vm1559, %v1953, 0.0
  %v2197 = vadd.f32 %v2195, %v2196
  %v2198 = vsel %vm1559, %v1954, 0.0
  %v2199 = vadd.f32 %v2197, %v2198
  %v2200 = vsel %vm1559, %v1955, 0.0
  %v2201 = vadd.f32 %v2199, %v2200
  %v2202 = vsel %vm1559, %v1956, 0.0
  %v2203 = vadd.f32 %v2201, %v2202
  %v2204 = vsel %vm1559, %v1957, 0.0
  %v2205 = vadd.f32 %v2203, %v2204
  %v2206 = vsel %vm1559, %v1958, 0.0
  %v2207 = vadd.f32 %v2205, %v2206
  %v2208 = vsel %vm1559, %v1959, 0.0
  %v2209 = vadd.f32 %v2207, %v2208
  %v2210 = vsel %vm1559, %v1960, 0.0
  %v2211 = vadd.f32 %v2209, %v2210
  %v2212 = vsel %vm1559, %v1961, 0.0
  %v2213 = vadd.f32 %v2211, %v2212
  %v2214 = vsel %vm1559, %v1962, 0.0
  %v2215 = vadd.f32 %v2213, %v2214
  %v2216 = vsel %vm1559, %v1963, 0.0
  %v2217 = vadd.f32 %v2215, %v2216
  %v2218 = vsel %vm1559, %v1964, 0.0
  %v2219 = vadd.f32 %v2217, %v2218
  %v2220 = vsel %vm1559, %v1965, 0.0
  %v2221 = vadd.f32 %v2219, %v2220
  %v2222 = vsel %vm1559, %v1966, 0.0
  %v2223 = vadd.f32 %v2221, %v2222
  %v2224 = vsel %vm1559, %v1967, 0.0
  %v2225 = vadd.f32 %v2223, %v2224
  %v2226 = vsel %vm1559, %v1968, 0.0
  %v2227 = vadd.f32 %v2225, %v2226
  %v2228 = vsel %vm1559, %v1969, 0.0
  %v2229 = vadd.f32 %v2227, %v2228
  %v2230 = vsel %vm1559, %v1970, 0.0
  %v2231 = vadd.f32 %v2229, %v2230
  %v2232 = vsel %vm1559, %v1971, 0.0
  %v2233 = vadd.f32 %v2231, %v2232
  %v2234 = vsel %vm1559, %v1972, 0.0
  %v2235 = vadd.f32 %v2233, %v2234
  %v2236 = vsel %vm1559, %v1973, 0.0
  %v2237 = vadd.f32 %v2235, %v2236
  %v2238 = vsel %vm1559, %v1974, 0.0
  %v2239 = vadd.f32 %v2237, %v2238
  %v2240 = vsel %vm1559, %v1975, 0.0
  %v2241 = vadd.f32 %v2239, %v2240
  %v2242 = vsel %vm1559, %v1976, 0.0
  %v2243 = vadd.f32 %v2241, %v2242
  %v2244 = vsel %vm1559, %v1977, 0.0
  %v2245 = vadd.f32 %v2243, %v2244
  %v2246 = vsel %vm1559, %v1978, 0.0
  %v2247 = vadd.f32 %v2245, %v2246
  %v2248 = vsel %vm1559, %v1979, 0.0
  %v2249 = vadd.f32 %v2247, %v2248
  %v2250 = vsel %vm1559, %v1980, 0.0
  %v2251 = vadd.f32 %v2249, %v2250
  %v2252 = vsel %vm1559, %v1981, 0.0
  %v2253 = vadd.f32 %v2251, %v2252
  %v2254 = vsel %vm1559, %v1982, 0.0
  %v2255 = vadd.f32 %v2253, %v2254
  %v2256 = vsel %vm1559, %v1983, 0.0
  %v2257 = vadd.f32 %v2255, %v2256
  %v2258 = vsel %vm1559, %v1984, 0.0
  %v2259 = vadd.f32 %v2257, %v2258
  %v2260 = vsel %vm1559, %v1985, 0.0
  %v2261 = vadd.f32 %v2259, %v2260
  %v2262 = vsel %vm1559, %v1986, 0.0
  %v2263 = vadd.f32 %v2261, %v2262
  %v2264 = vsel %vm1559, %v1987, 0.0
  %v2265 = vadd.f32 %v2263, %v2264
  %v2266 = vsel %vm1559, %v1988, 0.0
  %v2267 = vadd.f32 %v2265, %v2266
  %v2268 = vsel %vm1559, %v1989, 0.0
  %v2269 = vadd.f32 %v2267, %v2268
  %v2270 = vsel %vm1559, %v1990, 0.0
  %v2271 = vadd.f32 %v2269, %v2270
  %v2272 = vsel %vm1559, %v1991, 0.0
  %v2273 = vadd.f32 %v2271, %v2272
  %v2274 = vsel %vm1559, %v1992, 0.0
  %v2275 = vadd.f32 %v2273, %v2274
  %v2276 = vsel %vm1559, %v1993, 0.0
  %v2277 = vadd.f32 %v2275, %v2276
  %v2278 = vsel %vm1559, %v1994, 0.0
  %v2279 = vadd.f32 %v2277, %v2278
  %v2280 = vsel %vm1559, %v1995, 0.0
  %v2281 = vadd.f32 %v2279, %v2280
  %v2282 = vsel %vm1559, %v1996, 0.0
  %v2283 = vadd.f32 %v2281, %v2282
  %v2284 = vrot.slane %v2283, 4
  %v2285 = vadd.f32 %v2283, %v2284
  %v2286 = vrot.slane %v2285, 2
  %v2287 = vadd.f32 %v2285, %v2286
  %v2288 = vrot.slane %v2287, 1
  %v2289 = vadd.f32 %v2287, %v2288
  %v2290 = vmul.f32 %v1852, 0.00086805556
  %v2291 = vmul.f32 %v2289, 0.00086805556
  %v2292 = vmul.f32 %v2290, %v2290
  %v2293 = vsub.f32 %v2291, %v2292
  %v2294 = vmax.f32 %v2293, 0.0
  %v2295 = vld [vmem:[%s2] sm:$0x1]
  %v2296 = vadd.f32 %v2294, 1e-05
  %v2297 = vrsqrt.pop %v2296
  %v2298 = vmul.f32 %v2295, %v2297
  %v2299 = vld [vmem:[%s3] sm:$0x1]
  %v2300 = vmul.f32 %v2290, %v2298
  %v2301 = vsub.f32 %v2299, %v2300
  %v2303 = vlaneseq
  %v2304 = vshrl.u32 %v2303, 7
  %v2305 = vsub.s32 0, %v2304
  %v2306 = vrot.slane %v2298, %v2305
  %v2308 = vmul.f32 %v841, %v2306
  %v2309 = vmul.f32 %v846, %v2306
  %v2310 = vmul.f32 %v851, %v2306
  %v2311 = vmul.f32 %v856, %v2306
  %v2312 = vmul.f32 %v861, %v2306
  %v2313 = vmul.f32 %v866, %v2306
  %v2314 = vmul.f32 %v871, %v2306
  %v2315 = vmul.f32 %v876, %v2306
  %v2316 = vmul.f32 %v881, %v2306
  %v2317 = vmul.f32 %v886, %v2306
  %v2318 = vmul.f32 %v891, %v2306
  %v2319 = vmul.f32 %v896, %v2306
  %v2320 = vmul.f32 %v901, %v2306
  %v2321 = vmul.f32 %v906, %v2306
  %v2322 = vmul.f32 %v911, %v2306
  %v2323 = vmul.f32 %v916, %v2306
  %v2324 = vmul.f32 %v921, %v2306
  %v2325 = vmul.f32 %v926, %v2306
  %v2326 = vmul.f32 %v931, %v2306
  %v2327 = vmul.f32 %v936, %v2306
  %v2328 = vmul.f32 %v941, %v2306
  %v2329 = vmul.f32 %v946, %v2306
  %v2330 = vmul.f32 %v951, %v2306
  %v2331 = vmul.f32 %v956, %v2306
  %v2332 = vmul.f32 %v961, %v2306
  %v2333 = vmul.f32 %v966, %v2306
  %v2334 = vmul.f32 %v971, %v2306
  %v2335 = vmul.f32 %v976, %v2306
  %v2336 = vmul.f32 %v981, %v2306
  %v2337 = vmul.f32 %v986, %v2306
  %v2338 = vmul.f32 %v991, %v2306
  %v2339 = vmul.f32 %v996, %v2306
  %v2340 = vmul.f32 %v1001, %v2306
  %v2341 = vmul.f32 %v1006, %v2306
  %v2342 = vmul.f32 %v1011, %v2306
  %v2343 = vmul.f32 %v1016, %v2306
  %v2344 = vmul.f32 %v1021, %v2306
  %v2345 = vmul.f32 %v1026, %v2306
  %v2346 = vmul.f32 %v1031, %v2306
  %v2347 = vmul.f32 %v1036, %v2306
  %v2348 = vmul.f32 %v1041, %v2306
  %v2349 = vmul.f32 %v1046, %v2306
  %v2350 = vmul.f32 %v1051, %v2306
  %v2351 = vmul.f32 %v1056, %v2306
  %v2352 = vmul.f32 %v1061, %v2306
  %v2353 = vmul.f32 %v1066, %v2306
  %v2354 = vmul.f32 %v1071, %v2306
  %v2355 = vmul.f32 %v1076, %v2306
  %v2356 = vmul.f32 %v1081, %v2306
  %v2357 = vmul.f32 %v1086, %v2306
  %v2358 = vmul.f32 %v1091, %v2306
  %v2359 = vmul.f32 %v1096, %v2306
  %v2360 = vmul.f32 %v1101, %v2306
  %v2361 = vmul.f32 %v1106, %v2306
  %v2362 = vmul.f32 %v1111, %v2306
  %v2363 = vmul.f32 %v1116, %v2306
  %v2364 = vmul.f32 %v1121, %v2306
  %v2365 = vmul.f32 %v1126, %v2306
  %v2366 = vmul.f32 %v1131, %v2306
  %v2367 = vmul.f32 %v1136, %v2306
  %v2368 = vmul.f32 %v1141, %v2306
  %v2369 = vmul.f32 %v1146, %v2306
  %v2370 = vmul.f32 %v1151, %v2306
  %v2371 = vmul.f32 %v1156, %v2306
  %v2372 = vmul.f32 %v1161, %v2306
  %v2373 = vmul.f32 %v1166, %v2306
  %v2374 = vmul.f32 %v1171, %v2306
  %v2375 = vmul.f32 %v1176, %v2306
  %v2376 = vmul.f32 %v1181, %v2306
  %v2377 = vmul.f32 %v1186, %v2306
  %v2378 = vmul.f32 %v1191, %v2306
  %v2379 = vmul.f32 %v1196, %v2306
  %v2380 = vmul.f32 %v1201, %v2306
  %v2381 = vmul.f32 %v1206, %v2306
  %v2382 = vmul.f32 %v1211, %v2306
  %v2383 = vmul.f32 %v1216, %v2306
  %v2384 = vmul.f32 %v1221, %v2306
  %v2385 = vmul.f32 %v1226, %v2306
  %v2386 = vmul.f32 %v1231, %v2306
  %v2387 = vmul.f32 %v1236, %v2306
  %v2388 = vmul.f32 %v1241, %v2306
  %v2389 = vmul.f32 %v1246, %v2306
  %v2390 = vmul.f32 %v1251, %v2306
  %v2391 = vmul.f32 %v1256, %v2306
  %v2392 = vmul.f32 %v1261, %v2306
  %v2393 = vmul.f32 %v1266, %v2306
  %v2394 = vmul.f32 %v1271, %v2306
  %v2395 = vmul.f32 %v1276, %v2306
  %v2396 = vmul.f32 %v1281, %v2306
  %v2397 = vmul.f32 %v1286, %v2306
  %v2398 = vmul.f32 %v1291, %v2306
  %v2399 = vmul.f32 %v1296, %v2306
  %v2400 = vmul.f32 %v1301, %v2306
  %v2401 = vmul.f32 %v1306, %v2306
  %v2402 = vmul.f32 %v1311, %v2306
  %v2403 = vmul.f32 %v1316, %v2306
  %v2404 = vmul.f32 %v1321, %v2306
  %v2405 = vmul.f32 %v1326, %v2306
  %v2406 = vmul.f32 %v1331, %v2306
  %v2407 = vmul.f32 %v1336, %v2306
  %v2408 = vmul.f32 %v1341, %v2306
  %v2409 = vmul.f32 %v1346, %v2306
  %v2410 = vmul.f32 %v1351, %v2306
  %v2411 = vmul.f32 %v1356, %v2306
  %v2412 = vmul.f32 %v1361, %v2306
  %v2413 = vmul.f32 %v1366, %v2306
  %v2414 = vmul.f32 %v1371, %v2306
  %v2415 = vmul.f32 %v1376, %v2306
  %v2416 = vmul.f32 %v1381, %v2306
  %v2417 = vmul.f32 %v1386, %v2306
  %v2418 = vmul.f32 %v1391, %v2306
  %v2419 = vmul.f32 %v1396, %v2306
  %v2420 = vmul.f32 %v1401, %v2306
  %v2421 = vmul.f32 %v1406, %v2306
  %v2422 = vmul.f32 %v1411, %v2306
  %v2423 = vmul.f32 %v1416, %v2306
  %v2424 = vmul.f32 %v1421, %v2306
  %v2425 = vmul.f32 %v1426, %v2306
  %v2426 = vmul.f32 %v1431, %v2306
  %v2427 = vmul.f32 %v1436, %v2306
  %v2428 = vmul.f32 %v1441, %v2306
  %v2429 = vmul.f32 %v1446, %v2306
  %v2430 = vmul.f32 %v1451, %v2306
  %v2431 = vmul.f32 %v1456, %v2306
  %v2432 = vmul.f32 %v1461, %v2306
  %v2433 = vmul.f32 %v1466, %v2306
  %v2434 = vmul.f32 %v1471, %v2306
  %v2435 = vmul.f32 %v1476, %v2306
  %v2436 = vmul.f32 %v1481, %v2306
  %v2437 = vmul.f32 %v1486, %v2306
  %v2438 = vmul.f32 %v1491, %v2306
  %v2439 = vmul.f32 %v1496, %v2306
  %v2440 = vmul.f32 %v1501, %v2306
  %v2441 = vmul.f32 %v1506, %v2306
  %v2442 = vmul.f32 %v1511, %v2306
  %v2443 = vmul.f32 %v1516, %v2306
  %v2444 = vmul.f32 %v1521, %v2306
  %v2445 = vmul.f32 %v1526, %v2306
  %v2446 = vmul.f32 %v1531, %v2306
  %v2447 = vmul.f32 %v1536, %v2306
  %v2448 = vmul.f32 %v1541, %v2306
  %v2449 = vmul.f32 %v1546, %v2306
  %v2450 = vmul.f32 %v1551, %v2306
  %v2451 = vmul.f32 %v1556, %v2306
  %v2453 = vlaneseq
  %v2454 = vshrl.u32 %v2453, 7
  %v2455 = vsub.s32 0, %v2454
  %v2456 = vrot.slane %v2301, %v2455
  %v2458 = vadd.f32 %v2308, %v2456
  %v2459 = vadd.f32 %v2309, %v2456
  %v2460 = vadd.f32 %v2310, %v2456
  %v2461 = vadd.f32 %v2311, %v2456
  %v2462 = vadd.f32 %v2312, %v2456
  %v2463 = vadd.f32 %v2313, %v2456
  %v2464 = vadd.f32 %v2314, %v2456
  %v2465 = vadd.f32 %v2315, %v2456
  %v2466 = vadd.f32 %v2316, %v2456
  %v2467 = vadd.f32 %v2317, %v2456
  %v2468 = vadd.f32 %v2318, %v2456
  %v2469 = vadd.f32 %v2319, %v2456
  %v2470 = vadd.f32 %v2320, %v2456
  %v2471 = vadd.f32 %v2321, %v2456
  %v2472 = vadd.f32 %v2322, %v2456
  %v2473 = vadd.f32 %v2323, %v2456
  %v2474 = vadd.f32 %v2324, %v2456
  %v2475 = vadd.f32 %v2325, %v2456
  %v2476 = vadd.f32 %v2326, %v2456
  %v2477 = vadd.f32 %v2327, %v2456
  %v2478 = vadd.f32 %v2328, %v2456
  %v2479 = vadd.f32 %v2329, %v2456
  %v2480 = vadd.f32 %v2330, %v2456
  %v2481 = vadd.f32 %v2331, %v2456
  %v2482 = vadd.f32 %v2332, %v2456
  %v2483 = vadd.f32 %v2333, %v2456
  %v2484 = vadd.f32 %v2334, %v2456
  %v2485 = vadd.f32 %v2335, %v2456
  %v2486 = vadd.f32 %v2336, %v2456
  %v2487 = vadd.f32 %v2337, %v2456
  %v2488 = vadd.f32 %v2338, %v2456
  %v2489 = vadd.f32 %v2339, %v2456
  %v2490 = vadd.f32 %v2340, %v2456
  %v2491 = vadd.f32 %v2341, %v2456
  %v2492 = vadd.f32 %v2342, %v2456
  %v2493 = vadd.f32 %v2343, %v2456
  %v2494 = vadd.f32 %v2344, %v2456
  %v2495 = vadd.f32 %v2345, %v2456
  %v2496 = vadd.f32 %v2346, %v2456
  %v2497 = vadd.f32 %v2347, %v2456
  %v2498 = vadd.f32 %v2348, %v2456
  %v2499 = vadd.f32 %v2349, %v2456
  %v2500 = vadd.f32 %v2350, %v2456
  %v2501 = vadd.f32 %v2351, %v2456
  %v2502 = vadd.f32 %v2352, %v2456
  %v2503 = vadd.f32 %v2353, %v2456
  %v2504 = vadd.f32 %v2354, %v2456
  %v2505 = vadd.f32 %v2355, %v2456
  %v2506 = vadd.f32 %v2356, %v2456
  %v2507 = vadd.f32 %v2357, %v2456
  %v2508 = vadd.f32 %v2358, %v2456
  %v2509 = vadd.f32 %v2359, %v2456
  %v2510 = vadd.f32 %v2360, %v2456
  %v2511 = vadd.f32 %v2361, %v2456
  %v2512 = vadd.f32 %v2362, %v2456
  %v2513 = vadd.f32 %v2363, %v2456
  %v2514 = vadd.f32 %v2364, %v2456
  %v2515 = vadd.f32 %v2365, %v2456
  %v2516 = vadd.f32 %v2366, %v2456
  %v2517 = vadd.f32 %v2367, %v2456
  %v2518 = vadd.f32 %v2368, %v2456
  %v2519 = vadd.f32 %v2369, %v2456
  %v2520 = vadd.f32 %v2370, %v2456
  %v2521 = vadd.f32 %v2371, %v2456
  %v2522 = vadd.f32 %v2372, %v2456
  %v2523 = vadd.f32 %v2373, %v2456
  %v2524 = vadd.f32 %v2374, %v2456
  %v2525 = vadd.f32 %v2375, %v2456
  %v2526 = vadd.f32 %v2376, %v2456
  %v2527 = vadd.f32 %v2377, %v2456
  %v2528 = vadd.f32 %v2378, %v2456
  %v2529 = vadd.f32 %v2379, %v2456
  %v2530 = vadd.f32 %v2380, %v2456
  %v2531 = vadd.f32 %v2381, %v2456
  %v2532 = vadd.f32 %v2382, %v2456
  %v2533 = vadd.f32 %v2383, %v2456
  %v2534 = vadd.f32 %v2384, %v2456
  %v2535 = vadd.f32 %v2385, %v2456
  %v2536 = vadd.f32 %v2386, %v2456
  %v2537 = vadd.f32 %v2387, %v2456
  %v2538 = vadd.f32 %v2388, %v2456
  %v2539 = vadd.f32 %v2389, %v2456
  %v2540 = vadd.f32 %v2390, %v2456
  %v2541 = vadd.f32 %v2391, %v2456
  %v2542 = vadd.f32 %v2392, %v2456
  %v2543 = vadd.f32 %v2393, %v2456
  %v2544 = vadd.f32 %v2394, %v2456
  %v2545 = vadd.f32 %v2395, %v2456
  %v2546 = vadd.f32 %v2396, %v2456
  %v2547 = vadd.f32 %v2397, %v2456
  %v2548 = vadd.f32 %v2398, %v2456
  %v2549 = vadd.f32 %v2399, %v2456
  %v2550 = vadd.f32 %v2400, %v2456
  %v2551 = vadd.f32 %v2401, %v2456
  %v2552 = vadd.f32 %v2402, %v2456
  %v2553 = vadd.f32 %v2403, %v2456
  %v2554 = vadd.f32 %v2404, %v2456
  %v2555 = vadd.f32 %v2405, %v2456
  %v2556 = vadd.f32 %v2406, %v2456
  %v2557 = vadd.f32 %v2407, %v2456
  %v2558 = vadd.f32 %v2408, %v2456
  %v2559 = vadd.f32 %v2409, %v2456
  %v2560 = vadd.f32 %v2410, %v2456
  %v2561 = vadd.f32 %v2411, %v2456
  %v2562 = vadd.f32 %v2412, %v2456
  %v2563 = vadd.f32 %v2413, %v2456
  %v2564 = vadd.f32 %v2414, %v2456
  %v2565 = vadd.f32 %v2415, %v2456
  %v2566 = vadd.f32 %v2416, %v2456
  %v2567 = vadd.f32 %v2417, %v2456
  %v2568 = vadd.f32 %v2418, %v2456
  %v2569 = vadd.f32 %v2419, %v2456
  %v2570 = vadd.f32 %v2420, %v2456
  %v2571 = vadd.f32 %v2421, %v2456
  %v2572 = vadd.f32 %v2422, %v2456
  %v2573 = vadd.f32 %v2423, %v2456
  %v2574 = vadd.f32 %v2424, %v2456
  %v2575 = vadd.f32 %v2425, %v2456
  %v2576 = vadd.f32 %v2426, %v2456
  %v2577 = vadd.f32 %v2427, %v2456
  %v2578 = vadd.f32 %v2428, %v2456
  %v2579 = vadd.f32 %v2429, %v2456
  %v2580 = vadd.f32 %v2430, %v2456
  %v2581 = vadd.f32 %v2431, %v2456
  %v2582 = vadd.f32 %v2432, %v2456
  %v2583 = vadd.f32 %v2433, %v2456
  %v2584 = vadd.f32 %v2434, %v2456
  %v2585 = vadd.f32 %v2435, %v2456
  %v2586 = vadd.f32 %v2436, %v2456
  %v2587 = vadd.f32 %v2437, %v2456
  %v2588 = vadd.f32 %v2438, %v2456
  %v2589 = vadd.f32 %v2439, %v2456
  %v2590 = vadd.f32 %v2440, %v2456
  %v2591 = vadd.f32 %v2441, %v2456
  %v2592 = vadd.f32 %v2442, %v2456
  %v2593 = vadd.f32 %v2443, %v2456
  %v2594 = vadd.f32 %v2444, %v2456
  %v2595 = vadd.f32 %v2445, %v2456
  %v2596 = vadd.f32 %v2446, %v2456
  %v2597 = vadd.f32 %v2447, %v2456
  %v2598 = vadd.f32 %v2448, %v2456
  %v2599 = vadd.f32 %v2449, %v2456
  %v2600 = vadd.f32 %v2450, %v2456
  %v2601 = vadd.f32 %v2451, %v2456
  %v2602 = vmax.f32 %v2458, 0.0
  %v2603 = vmax.f32 %v2459, 0.0
  %v2604 = vmax.f32 %v2460, 0.0
  %v2605 = vmax.f32 %v2461, 0.0
  %v2606 = vmax.f32 %v2462, 0.0
  %v2607 = vmax.f32 %v2463, 0.0
  %v2608 = vmax.f32 %v2464, 0.0
  %v2609 = vmax.f32 %v2465, 0.0
  %v2610 = vmax.f32 %v2466, 0.0
  %v2611 = vmax.f32 %v2467, 0.0
  %v2612 = vmax.f32 %v2468, 0.0
  %v2613 = vmax.f32 %v2469, 0.0
  %v2614 = vmax.f32 %v2470, 0.0
  %v2615 = vmax.f32 %v2471, 0.0
  %v2616 = vmax.f32 %v2472, 0.0
  %v2617 = vmax.f32 %v2473, 0.0
  %v2618 = vmax.f32 %v2474, 0.0
  %v2619 = vmax.f32 %v2475, 0.0
  %v2620 = vmax.f32 %v2476, 0.0
  %v2621 = vmax.f32 %v2477, 0.0
  %v2622 = vmax.f32 %v2478, 0.0
  %v2623 = vmax.f32 %v2479, 0.0
  %v2624 = vmax.f32 %v2480, 0.0
  %v2625 = vmax.f32 %v2481, 0.0
  %v2626 = vmax.f32 %v2482, 0.0
  %v2627 = vmax.f32 %v2483, 0.0
  %v2628 = vmax.f32 %v2484, 0.0
  %v2629 = vmax.f32 %v2485, 0.0
  %v2630 = vmax.f32 %v2486, 0.0
  %v2631 = vmax.f32 %v2487, 0.0
  %v2632 = vmax.f32 %v2488, 0.0
  %v2633 = vmax.f32 %v2489, 0.0
  %v2634 = vmax.f32 %v2490, 0.0
  %v2635 = vmax.f32 %v2491, 0.0
  %v2636 = vmax.f32 %v2492, 0.0
  %v2637 = vmax.f32 %v2493, 0.0
  %v2638 = vmax.f32 %v2494, 0.0
  %v2639 = vmax.f32 %v2495, 0.0
  %v2640 = vmax.f32 %v2496, 0.0
  %v2641 = vmax.f32 %v2497, 0.0
  %v2642 = vmax.f32 %v2498, 0.0
  %v2643 = vmax.f32 %v2499, 0.0
  %v2644 = vmax.f32 %v2500, 0.0
  %v2645 = vmax.f32 %v2501, 0.0
  %v2646 = vmax.f32 %v2502, 0.0
  %v2647 = vmax.f32 %v2503, 0.0
  %v2648 = vmax.f32 %v2504, 0.0
  %v2649 = vmax.f32 %v2505, 0.0
  %v2650 = vmax.f32 %v2506, 0.0
  %v2651 = vmax.f32 %v2507, 0.0
  %v2652 = vmax.f32 %v2508, 0.0
  %v2653 = vmax.f32 %v2509, 0.0
  %v2654 = vmax.f32 %v2510, 0.0
  %v2655 = vmax.f32 %v2511, 0.0
  %v2656 = vmax.f32 %v2512, 0.0
  %v2657 = vmax.f32 %v2513, 0.0
  %v2658 = vmax.f32 %v2514, 0.0
  %v2659 = vmax.f32 %v2515, 0.0
  %v2660 = vmax.f32 %v2516, 0.0
  %v2661 = vmax.f32 %v2517, 0.0
  %v2662 = vmax.f32 %v2518, 0.0
  %v2663 = vmax.f32 %v2519, 0.0
  %v2664 = vmax.f32 %v2520, 0.0
  %v2665 = vmax.f32 %v2521, 0.0
  %v2666 = vmax.f32 %v2522, 0.0
  %v2667 = vmax.f32 %v2523, 0.0
  %v2668 = vmax.f32 %v2524, 0.0
  %v2669 = vmax.f32 %v2525, 0.0
  %v2670 = vmax.f32 %v2526, 0.0
  %v2671 = vmax.f32 %v2527, 0.0
  %v2672 = vmax.f32 %v2528, 0.0
  %v2673 = vmax.f32 %v2529, 0.0
  %v2674 = vmax.f32 %v2530, 0.0
  %v2675 = vmax.f32 %v2531, 0.0
  %v2676 = vmax.f32 %v2532, 0.0
  %v2677 = vmax.f32 %v2533, 0.0
  %v2678 = vmax.f32 %v2534, 0.0
  %v2679 = vmax.f32 %v2535, 0.0
  %v2680 = vmax.f32 %v2536, 0.0
  %v2681 = vmax.f32 %v2537, 0.0
  %v2682 = vmax.f32 %v2538, 0.0
  %v2683 = vmax.f32 %v2539, 0.0
  %v2684 = vmax.f32 %v2540, 0.0
  %v2685 = vmax.f32 %v2541, 0.0
  %v2686 = vmax.f32 %v2542, 0.0
  %v2687 = vmax.f32 %v2543, 0.0
  %v2688 = vmax.f32 %v2544, 0.0
  %v2689 = vmax.f32 %v2545, 0.0
  %v2690 = vmax.f32 %v2546, 0.0
  %v2691 = vmax.f32 %v2547, 0.0
  %v2692 = vmax.f32 %v2548, 0.0
  %v2693 = vmax.f32 %v2549, 0.0
  %v2694 = vmax.f32 %v2550, 0.0
  %v2695 = vmax.f32 %v2551, 0.0
  %v2696 = vmax.f32 %v2552, 0.0
  %v2697 = vmax.f32 %v2553, 0.0
  %v2698 = vmax.f32 %v2554, 0.0
  %v2699 = vmax.f32 %v2555, 0.0
  %v2700 = vmax.f32 %v2556, 0.0
  %v2701 = vmax.f32 %v2557, 0.0
  %v2702 = vmax.f32 %v2558, 0.0
  %v2703 = vmax.f32 %v2559, 0.0
  %v2704 = vmax.f32 %v2560, 0.0
  %v2705 = vmax.f32 %v2561, 0.0
  %v2706 = vmax.f32 %v2562, 0.0
  %v2707 = vmax.f32 %v2563, 0.0
  %v2708 = vmax.f32 %v2564, 0.0
  %v2709 = vmax.f32 %v2565, 0.0
  %v2710 = vmax.f32 %v2566, 0.0
  %v2711 = vmax.f32 %v2567, 0.0
  %v2712 = vmax.f32 %v2568, 0.0
  %v2713 = vmax.f32 %v2569, 0.0
  %v2714 = vmax.f32 %v2570, 0.0
  %v2715 = vmax.f32 %v2571, 0.0
  %v2716 = vmax.f32 %v2572, 0.0
  %v2717 = vmax.f32 %v2573, 0.0
  %v2718 = vmax.f32 %v2574, 0.0
  %v2719 = vmax.f32 %v2575, 0.0
  %v2720 = vmax.f32 %v2576, 0.0
  %v2721 = vmax.f32 %v2577, 0.0
  %v2722 = vmax.f32 %v2578, 0.0
  %v2723 = vmax.f32 %v2579, 0.0
  %v2724 = vmax.f32 %v2580, 0.0
  %v2725 = vmax.f32 %v2581, 0.0
  %v2726 = vmax.f32 %v2582, 0.0
  %v2727 = vmax.f32 %v2583, 0.0
  %v2728 = vmax.f32 %v2584, 0.0
  %v2729 = vmax.f32 %v2585, 0.0
  %v2730 = vmax.f32 %v2586, 0.0
  %v2731 = vmax.f32 %v2587, 0.0
  %v2732 = vmax.f32 %v2588, 0.0
  %v2733 = vmax.f32 %v2589, 0.0
  %v2734 = vmax.f32 %v2590, 0.0
  %v2735 = vmax.f32 %v2591, 0.0
  %v2736 = vmax.f32 %v2592, 0.0
  %v2737 = vmax.f32 %v2593, 0.0
  %v2738 = vmax.f32 %v2594, 0.0
  %v2739 = vmax.f32 %v2595, 0.0
  %v2740 = vmax.f32 %v2596, 0.0
  %v2741 = vmax.f32 %v2597, 0.0
  %v2742 = vmax.f32 %v2598, 0.0
  %v2743 = vmax.f32 %v2599, 0.0
  %v2744 = vmax.f32 %v2600, 0.0
  %v2745 = vmax.f32 %v2601, 0.0
  %2746 = vst.msk [vmem:[%s4] sm:$0xff] %vm1559, %v2602
  %2747 = vst.msk [vmem:[%s4 + $0x8] sm:$0xff] %vm1559, %v2603
  %2748 = vst.msk [vmem:[%s4 + $0x10] sm:$0xff] %vm1559, %v2604
  %2749 = vst.msk [vmem:[%s4 + $0x18] sm:$0xff] %vm1559, %v2605
  %2750 = vst.msk [vmem:[%s4 + $0x20] sm:$0xff] %vm1559, %v2606
  %2751 = vst.msk [vmem:[%s4 + $0x28] sm:$0xff] %vm1559, %v2607
  %2752 = vst.msk [vmem:[%s4 + $0x30] sm:$0xff] %vm1559, %v2608
  %2753 = vst.msk [vmem:[%s4 + $0x38] sm:$0xff] %vm1559, %v2609
  %2754 = vst.msk [vmem:[%s4 + $0x40] sm:$0xff] %vm1559, %v2610
  %2755 = vst.msk [vmem:[%s4 + $0x48] sm:$0xff] %vm1559, %v2611
  %2756 = vst.msk [vmem:[%s4 + $0x50] sm:$0xff] %vm1559, %v2612
  %2757 = vst.msk [vmem:[%s4 + $0x58] sm:$0xff] %vm1559, %v2613
  %2758 = vst.msk [vmem:[%s4 + $0x60] sm:$0xff] %vm1559, %v2614
  %2759 = vst.msk [vmem:[%s4 + $0x68] sm:$0xff] %vm1559, %v2615
  %2760 = vst.msk [vmem:[%s4 + $0x70] sm:$0xff] %vm1559, %v2616
  %2761 = vst.msk [vmem:[%s4 + $0x78] sm:$0xff] %vm1559, %v2617
  %2762 = vst.msk [vmem:[%s4 + $0x80] sm:$0xff] %vm1559, %v2618
  %2763 = vst.msk [vmem:[%s4 + $0x88] sm:$0xff] %vm1559, %v2619
  %2764 = vst.msk [vmem:[%s4 + $0x90] sm:$0xff] %vm1559, %v2620
  %2765 = vst.msk [vmem:[%s4 + $0x98] sm:$0xff] %vm1559, %v2621
  %2766 = vst.msk [vmem:[%s4 + $0xa0] sm:$0xff] %vm1559, %v2622
  %2767 = vst.msk [vmem:[%s4 + $0xa8] sm:$0xff] %vm1559, %v2623
  %2768 = vst.msk [vmem:[%s4 + $0xb0] sm:$0xff] %vm1559, %v2624
  %2769 = vst.msk [vmem:[%s4 + $0xb8] sm:$0xff] %vm1559, %v2625
  %2770 = vst.msk [vmem:[%s4 + $0xc0] sm:$0xff] %vm1559, %v2626
  %2771 = vst.msk [vmem:[%s4 + $0xc8] sm:$0xff] %vm1559, %v2627
  %2772 = vst.msk [vmem:[%s4 + $0xd0] sm:$0xff] %vm1559, %v2628
  %2773 = vst.msk [vmem:[%s4 + $0xd8] sm:$0xff] %vm1559, %v2629
  %2774 = vst.msk [vmem:[%s4 + $0xe0] sm:$0xff] %vm1559, %v2630
  %2775 = vst.msk [vmem:[%s4 + $0xe8] sm:$0xff] %vm1559, %v2631
  %2776 = vst.msk [vmem:[%s4 + $0xf0] sm:$0xff] %vm1559, %v2632
  %2777 = vst.msk [vmem:[%s4 + $0xf8] sm:$0xff] %vm1559, %v2633
  %2778 = vst.msk [vmem:[%s4 + $0x100] sm:$0xff] %vm1559, %v2634
  %2779 = vst.msk [vmem:[%s4 + $0x108] sm:$0xff] %vm1559, %v2635
  %2780 = vst.msk [vmem:[%s4 + $0x110] sm:$0xff] %vm1559, %v2636
  %2781 = vst.msk [vmem:[%s4 + $0x118] sm:$0xff] %vm1559, %v2637
  %2782 = vst.msk [vmem:[%s4 + $0x120] sm:$0xff] %vm1559, %v2638
  %2783 = vst.msk [vmem:[%s4 + $0x128] sm:$0xff] %vm1559, %v2639
  %2784 = vst.msk [vmem:[%s4 + $0x130] sm:$0xff] %vm1559, %v2640
  %2785 = vst.msk [vmem:[%s4 + $0x138] sm:$0xff] %vm1559, %v2641
  %2786 = vst.msk [vmem:[%s4 + $0x140] sm:$0xff] %vm1559, %v2642
  %2787 = vst.msk [vmem:[%s4 + $0x148] sm:$0xff] %vm1559, %v2643
  %2788 = vst.msk [vmem:[%s4 + $0x150] sm:$0xff] %vm1559, %v2644
  %2789 = vst.msk [vmem:[%s4 + $0x158] sm:$0xff] %vm1559, %v2645
  %2790 = vst.msk [vmem:[%s4 + $0x160] sm:$0xff] %vm1559, %v2646
  %2791 = vst.msk [vmem:[%s4 + $0x168] sm:$0xff] %vm1559, %v2647
  %2792 = vst.msk [vmem:[%s4 + $0x170] sm:$0xff] %vm1559, %v2648
  %2793 = vst.msk [vmem:[%s4 + $0x178] sm:$0xff] %vm1559, %v2649
  %2794 = vst.msk [vmem:[%s4 + $0x180] sm:$0xff] %vm1559, %v2650
  %2795 = vst.msk [vmem:[%s4 + $0x188] sm:$0xff] %vm1559, %v2651
  %2796 = vst.msk [vmem:[%s4 + $0x190] sm:$0xff] %vm1559, %v2652
  %2797 = vst.msk [vmem:[%s4 + $0x198] sm:$0xff] %vm1559, %v2653
  %2798 = vst.msk [vmem:[%s4 + $0x1a0] sm:$0xff] %vm1559, %v2654
  %2799 = vst.msk [vmem:[%s4 + $0x1a8] sm:$0xff] %vm1559, %v2655
  %2800 = vst.msk [vmem:[%s4 + $0x1b0] sm:$0xff] %vm1559, %v2656
  %2801 = vst.msk [vmem:[%s4 + $0x1b8] sm:$0xff] %vm1559, %v2657
  %2802 = vst.msk [vmem:[%s4 + $0x1c0] sm:$0xff] %vm1559, %v2658
  %2803 = vst.msk [vmem:[%s4 + $0x1c8] sm:$0xff] %vm1559, %v2659
  %2804 = vst.msk [vmem:[%s4 + $0x1d0] sm:$0xff] %vm1559, %v2660
  %2805 = vst.msk [vmem:[%s4 + $0x1d8] sm:$0xff] %vm1559, %v2661
  %2806 = vst.msk [vmem:[%s4 + $0x1e0] sm:$0xff] %vm1559, %v2662
  %2807 = vst.msk [vmem:[%s4 + $0x1e8] sm:$0xff] %vm1559, %v2663
  %2808 = vst.msk [vmem:[%s4 + $0x1f0] sm:$0xff] %vm1559, %v2664
  %2809 = vst.msk [vmem:[%s4 + $0x1f8] sm:$0xff] %vm1559, %v2665
  %2810 = vst.msk [vmem:[%s4 + $0x200] sm:$0xff] %vm1559, %v2666
  %2811 = vst.msk [vmem:[%s4 + $0x208] sm:$0xff] %vm1559, %v2667
  %2812 = vst.msk [vmem:[%s4 + $0x210] sm:$0xff] %vm1559, %v2668
  %2813 = vst.msk [vmem:[%s4 + $0x218] sm:$0xff] %vm1559, %v2669
  %2814 = vst.msk [vmem:[%s4 + $0x220] sm:$0xff] %vm1559, %v2670
  %2815 = vst.msk [vmem:[%s4 + $0x228] sm:$0xff] %vm1559, %v2671
  %2816 = vst.msk [vmem:[%s4 + $0x230] sm:$0xff] %vm1559, %v2672
  %2817 = vst.msk [vmem:[%s4 + $0x238] sm:$0xff] %vm1559, %v2673
  %2818 = vst.msk [vmem:[%s4 + $0x240] sm:$0xff] %vm1559, %v2674
  %2819 = vst.msk [vmem:[%s4 + $0x248] sm:$0xff] %vm1559, %v2675
  %2820 = vst.msk [vmem:[%s4 + $0x250] sm:$0xff] %vm1559, %v2676
  %2821 = vst.msk [vmem:[%s4 + $0x258] sm:$0xff] %vm1559, %v2677
  %2822 = vst.msk [vmem:[%s4 + $0x260] sm:$0xff] %vm1559, %v2678
  %2823 = vst.msk [vmem:[%s4 + $0x268] sm:$0xff] %vm1559, %v2679
  %2824 = vst.msk [vmem:[%s4 + $0x270] sm:$0xff] %vm1559, %v2680
  %2825 = vst.msk [vmem:[%s4 + $0x278] sm:$0xff] %vm1559, %v2681
  %2826 = vst.msk [vmem:[%s4 + $0x280] sm:$0xff] %vm1559, %v2682
  %2827 = vst.msk [vmem:[%s4 + $0x288] sm:$0xff] %vm1559, %v2683
  %2828 = vst.msk [vmem:[%s4 + $0x290] sm:$0xff] %vm1559, %v2684
  %2829 = vst.msk [vmem:[%s4 + $0x298] sm:$0xff] %vm1559, %v2685
  %2830 = vst.msk [vmem:[%s4 + $0x2a0] sm:$0xff] %vm1559, %v2686
  %2831 = vst.msk [vmem:[%s4 + $0x2a8] sm:$0xff] %vm1559, %v2687
  %2832 = vst.msk [vmem:[%s4 + $0x2b0] sm:$0xff] %vm1559, %v2688
  %2833 = vst.msk [vmem:[%s4 + $0x2b8] sm:$0xff] %vm1559, %v2689
  %2834 = vst.msk [vmem:[%s4 + $0x2c0] sm:$0xff] %vm1559, %v2690
  %2835 = vst.msk [vmem:[%s4 + $0x2c8] sm:$0xff] %vm1559, %v2691
  %2836 = vst.msk [vmem:[%s4 + $0x2d0] sm:$0xff] %vm1559, %v2692
  %2837 = vst.msk [vmem:[%s4 + $0x2d8] sm:$0xff] %vm1559, %v2693
  %2838 = vst.msk [vmem:[%s4 + $0x2e0] sm:$0xff] %vm1559, %v2694
  %2839 = vst.msk [vmem:[%s4 + $0x2e8] sm:$0xff] %vm1559, %v2695
  %2840 = vst.msk [vmem:[%s4 + $0x2f0] sm:$0xff] %vm1559, %v2696
  %2841 = vst.msk [vmem:[%s4 + $0x2f8] sm:$0xff] %vm1559, %v2697
  %2842 = vst.msk [vmem:[%s4 + $0x300] sm:$0xff] %vm1559, %v2698
  %2843 = vst.msk [vmem:[%s4 + $0x308] sm:$0xff] %vm1559, %v2699
  %2844 = vst.msk [vmem:[%s4 + $0x310] sm:$0xff] %vm1559, %v2700
  %2845 = vst.msk [vmem:[%s4 + $0x318] sm:$0xff] %vm1559, %v2701
  %2846 = vst.msk [vmem:[%s4 + $0x320] sm:$0xff] %vm1559, %v2702
  %2847 = vst.msk [vmem:[%s4 + $0x328] sm:$0xff] %vm1559, %v2703
  %2848 = vst.msk [vmem:[%s4 + $0x330] sm:$0xff] %vm1559, %v2704
  %2849 = vst.msk [vmem:[%s4 + $0x338] sm:$0xff] %vm1559, %v2705
  %2850 = vst.msk [vmem:[%s4 + $0x340] sm:$0xff] %vm1559, %v2706
  %2851 = vst.msk [vmem:[%s4 + $0x348] sm:$0xff] %vm1559, %v2707
  %2852 = vst.msk [vmem:[%s4 + $0x350] sm:$0xff] %vm1559, %v2708
  %2853 = vst.msk [vmem:[%s4 + $0x358] sm:$0xff] %vm1559, %v2709
  %2854 = vst.msk [vmem:[%s4 + $0x360] sm:$0xff] %vm1559, %v2710
  %2855 = vst.msk [vmem:[%s4 + $0x368] sm:$0xff] %vm1559, %v2711
  %2856 = vst.msk [vmem:[%s4 + $0x370] sm:$0xff] %vm1559, %v2712
  %2857 = vst.msk [vmem:[%s4 + $0x378] sm:$0xff] %vm1559, %v2713
  %2858 = vst.msk [vmem:[%s4 + $0x380] sm:$0xff] %vm1559, %v2714
  %2859 = vst.msk [vmem:[%s4 + $0x388] sm:$0xff] %vm1559, %v2715
  %2860 = vst.msk [vmem:[%s4 + $0x390] sm:$0xff] %vm1559, %v2716
  %2861 = vst.msk [vmem:[%s4 + $0x398] sm:$0xff] %vm1559, %v2717
  %2862 = vst.msk [vmem:[%s4 + $0x3a0] sm:$0xff] %vm1559, %v2718
  %2863 = vst.msk [vmem:[%s4 + $0x3a8] sm:$0xff] %vm1559, %v2719
  %2864 = vst.msk [vmem:[%s4 + $0x3b0] sm:$0xff] %vm1559, %v2720
  %2865 = vst.msk [vmem:[%s4 + $0x3b8] sm:$0xff] %vm1559, %v2721
  %2866 = vst.msk [vmem:[%s4 + $0x3c0] sm:$0xff] %vm1559, %v2722
  %2867 = vst.msk [vmem:[%s4 + $0x3c8] sm:$0xff] %vm1559, %v2723
  %2868 = vst.msk [vmem:[%s4 + $0x3d0] sm:$0xff] %vm1559, %v2724
  %2869 = vst.msk [vmem:[%s4 + $0x3d8] sm:$0xff] %vm1559, %v2725
  %2870 = vst.msk [vmem:[%s4 + $0x3e0] sm:$0xff] %vm1559, %v2726
  %2871 = vst.msk [vmem:[%s4 + $0x3e8] sm:$0xff] %vm1559, %v2727
  %2872 = vst.msk [vmem:[%s4 + $0x3f0] sm:$0xff] %vm1559, %v2728
  %2873 = vst.msk [vmem:[%s4 + $0x3f8] sm:$0xff] %vm1559, %v2729
  %2874 = vst.msk [vmem:[%s4 + $0x400] sm:$0xff] %vm1559, %v2730
  %2875 = vst.msk [vmem:[%s4 + $0x408] sm:$0xff] %vm1559, %v2731
  %2876 = vst.msk [vmem:[%s4 + $0x410] sm:$0xff] %vm1559, %v2732
  %2877 = vst.msk [vmem:[%s4 + $0x418] sm:$0xff] %vm1559, %v2733
  %2878 = vst.msk [vmem:[%s4 + $0x420] sm:$0xff] %vm1559, %v2734
  %2879 = vst.msk [vmem:[%s4 + $0x428] sm:$0xff] %vm1559, %v2735
  %2880 = vst.msk [vmem:[%s4 + $0x430] sm:$0xff] %vm1559, %v2736
  %2881 = vst.msk [vmem:[%s4 + $0x438] sm:$0xff] %vm1559, %v2737
  %2882 = vst.msk [vmem:[%s4 + $0x440] sm:$0xff] %vm1559, %v2738
  %2883 = vst.msk [vmem:[%s4 + $0x448] sm:$0xff] %vm1559, %v2739
  %2884 = vst.msk [vmem:[%s4 + $0x450] sm:$0xff] %vm1559, %v2740
  %2885 = vst.msk [vmem:[%s4 + $0x458] sm:$0xff] %vm1559, %v2741
  %2886 = vst.msk [vmem:[%s4 + $0x460] sm:$0xff] %vm1559, %v2742
  %2887 = vst.msk [vmem:[%s4 + $0x468] sm:$0xff] %vm1559, %v2743
  %2888 = vst.msk [vmem:[%s4 + $0x470] sm:$0xff] %vm1559, %v2744
  %2889 = vst.msk [vmem:[%s4 + $0x478] sm:$0xff] %vm1559, %v2745
  // Predicated region
  $region18: #{gdan_forward.5} parent=0 // pred_check
    _
  $region19: #{gdan_forward.5} parent=0 // pred_check_branch
    %2891 = sbr.rel (0) target = $region21
  $region20: #{gdan_forward.5} parent=0 // pred_region
    _
  $region21: #{gdan_forward.5} parent=0 // pred_fallthru
    _
  // Predicated region
  $region22: #{gdan_forward.5} parent=0 // pred_check
    _
  $region23: #{gdan_forward.5} parent=0 // pred_check_branch
    %2893 = sbr.rel (0) target = $region25
  $region24: #{gdan_forward.5} parent=0 // pred_region
    _
  $region25: #{gdan_forward.5} parent=0 // pred_fallthru
    _

// kernel: gdan_forward.6
$region0: #{gdan_forward.6}
  #allocation0 [shape = 'u32[]', space=smem, size = 0x4, offset = 0x4, fixed_abs, tag = 'smem constant byte address 0x4 - core index']
  #allocation1 [shape = 'u32[144,128]{1,0:T(1,128)}', space=vmem, size = 0x12000, scoped, tag = 'internal scratch']
  %s0 = inlined_call_operand.vmem [shape: f32[288,288], index: 0, kind: input, shape index: {}]
  %s1 = inlined_call_operand.vmem [shape: bf16[288,32], index: 1, kind: input, shape index: {}]
  %s2 = inlined_call_operand.vmem [shape: f32[1,32], index: 2, kind: input, shape index: {}]
  %s3 = inlined_call_operand.vmem [shape: f32[1,32], index: 3, kind: input, shape index: {}]
  %s4 = inlined_call_operand.vmem [shape: f32[288,32], index: 4, kind: output, shape index: {}]
  %s5 = sld [smem:[#allocation0]]
  $region26: #{gdan_forward.6} parent=0
    _
  %s7 = ssub.s32 1, %s5
  %s8 = scalar_select 0, %s7, %s5
  // Predicated region
  $region2: #{gdan_forward.6} parent=0 // pred_check
    _
  $region3: #{gdan_forward.6} parent=0 // pred_check_branch
    %10 = sbr.rel (0) target = $region5
  $region4: #{gdan_forward.6} parent=0 // pred_region
    _
  $region5: #{gdan_forward.6} parent=0 // pred_fallthru
    _
  // Predicated region
  $region6: #{gdan_forward.6} parent=0 // pred_check
    _
  $region7: #{gdan_forward.6} parent=0 // pred_check_branch
    %12 = sbr.rel (0) target = $region9
  $region8: #{gdan_forward.6} parent=0 // pred_region
    _
  $region9: #{gdan_forward.6} parent=0 // pred_fallthru
    _
  // Predicated region
  $region10: #{gdan_forward.6} parent=0 // pred_check
    _
  $region11: #{gdan_forward.6} parent=0 // pred_check_branch
    %14 = sbr.rel (0) target = $region13
  $region12: #{gdan_forward.6} parent=0 // pred_region
    _
  $region13: #{gdan_forward.6} parent=0 // pred_fallthru
    _
  // Predicated region
  $region14: #{gdan_forward.6} parent=0 // pred_check
    _
  $region15: #{gdan_forward.6} parent=0 // pred_check_branch
    %16 = sbr.rel (0) target = $region17
  $region16: #{gdan_forward.6} parent=0 // pred_region
    _
  $region17: #{gdan_forward.6} parent=0 // pred_fallthru
    _
  %v17 = vld [vmem:[%s0] sm:$0xff]
  %v18 = vld [vmem:[%s0 + $0x8] sm:$0xff]
  %v19 = vld [vmem:[%s0 + $0x10] sm:$0xff]
  %v20 = vld [vmem:[%s0 + $0x18] sm:$0xff]
  %v21 = vld [vmem:[%s0 + $0x20] sm:$0xff]
  %v22 = vld [vmem:[%s0 + $0x28] sm:$0xff]
  %v23 = vld [vmem:[%s0 + $0x30] sm:$0xff]
  %v24 = vld [vmem:[%s0 + $0x38] sm:$0xff]
  %v25 = vld [vmem:[%s0 + $0x40] sm:$0xff]
  %v26 = vld [vmem:[%s0 + $0x48] sm:$0xff]
  %v27 = vld [vmem:[%s0 + $0x50] sm:$0xff]
  %v28 = vld [vmem:[%s0 + $0x58] sm:$0xff]
  %v29 = vld [vmem:[%s0 + $0x60] sm:$0xff]
  %v30 = vld [vmem:[%s0 + $0x68] sm:$0xff]
  %v31 = vld [vmem:[%s0 + $0x70] sm:$0xff]
  %v32 = vld [vmem:[%s0 + $0x78] sm:$0xff]
  %v33 = vld [vmem:[%s0 + $0x80] sm:$0xff]
  %v34 = vld [vmem:[%s0 + $0x88] sm:$0xff]
  %v35 = vld [vmem:[%s0 + $0x90] sm:$0xff]
  %v36 = vld [vmem:[%s0 + $0x98] sm:$0xff]
  %v37 = vld [vmem:[%s0 + $0xa0] sm:$0xff]
  %v38 = vld [vmem:[%s0 + $0xa8] sm:$0xff]
  %v39 = vld [vmem:[%s0 + $0xb0] sm:$0xff]
  %v40 = vld [vmem:[%s0 + $0xb8] sm:$0xff]
  %v41 = vld [vmem:[%s0 + $0xc0] sm:$0xff]
  %v42 = vld [vmem:[%s0 + $0xc8] sm:$0xff]
  %v43 = vld [vmem:[%s0 + $0xd0] sm:$0xff]
  %v44 = vld [vmem:[%s0 + $0xd8] sm:$0xff]
  %v45 = vld [vmem:[%s0 + $0xe0] sm:$0xff]
  %v46 = vld [vmem:[%s0 + $0xe8] sm:$0xff]
  %v47 = vld [vmem:[%s0 + $0xf0] sm:$0xff]
  %v48 = vld [vmem:[%s0 + $0xf8] sm:$0xff]
  %v49 = vld [vmem:[%s0 + $0x100] sm:$0xff]
  %v50 = vld [vmem:[%s0 + $0x108] sm:$0xff]
  %v51 = vld [vmem:[%s0 + $0x110] sm:$0xff]
  %v52 = vld [vmem:[%s0 + $0x118] sm:$0xff]
  %v53 = vld [vmem:[%s0 + $0x120] sm:$0xff]
  %v54 = vld [vmem:[%s0 + $0x128] sm:$0xff]
  %v55 = vld [vmem:[%s0 + $0x130] sm:$0xff]
  %v56 = vld [vmem:[%s0 + $0x138] sm:$0xff]
  %v57 = vld [vmem:[%s0 + $0x140] sm:$0xff]
  %v58 = vld [vmem:[%s0 + $0x148] sm:$0xff]
  %v59 = vld [vmem:[%s0 + $0x150] sm:$0xff]
  %v60 = vld [vmem:[%s0 + $0x158] sm:$0xff]
  %v61 = vld [vmem:[%s0 + $0x160] sm:$0xff]
  %v62 = vld [vmem:[%s0 + $0x168] sm:$0xff]
  %v63 = vld [vmem:[%s0 + $0x170] sm:$0xff]
  %v64 = vld [vmem:[%s0 + $0x178] sm:$0xff]
  %v65 = vld [vmem:[%s0 + $0x180] sm:$0xff]
  %v66 = vld [vmem:[%s0 + $0x188] sm:$0xff]
  %v67 = vld [vmem:[%s0 + $0x190] sm:$0xff]
  %v68 = vld [vmem:[%s0 + $0x198] sm:$0xff]
  %v69 = vld [vmem:[%s0 + $0x1a0] sm:$0xff]
  %v70 = vld [vmem:[%s0 + $0x1a8] sm:$0xff]
  %v71 = vld [vmem:[%s0 + $0x1b0] sm:$0xff]
  %v72 = vld [vmem:[%s0 + $0x1b8] sm:$0xff]
  %v73 = vld [vmem:[%s0 + $0x1c0] sm:$0xff]
  %v74 = vld [vmem:[%s0 + $0x1c8] sm:$0xff]
  %v75 = vld [vmem:[%s0 + $0x1d0] sm:$0xff]
  %v76 = vld [vmem:[%s0 + $0x1d8] sm:$0xff]
  %v77 = vld [vmem:[%s0 + $0x1e0] sm:$0xff]
  %v78 = vld [vmem:[%s0 + $0x1e8] sm:$0xff]
  %v79 = vld [vmem:[%s0 + $0x1f0] sm:$0xff]
  %v80 = vld [vmem:[%s0 + $0x1f8] sm:$0xff]
  %v81 = vld [vmem:[%s0 + $0x200] sm:$0xff]
  %v82 = vld [vmem:[%s0 + $0x208] sm:$0xff]
  %v83 = vld [vmem:[%s0 + $0x210] sm:$0xff]
  %v84 = vld [vmem:[%s0 + $0x218] sm:$0xff]
  %v85 = vld [vmem:[%s0 + $0x220] sm:$0xff]
  %v86 = vld [vmem:[%s0 + $0x228] sm:$0xff]
  %v87 = vld [vmem:[%s0 + $0x230] sm:$0xff]
  %v88 = vld [vmem:[%s0 + $0x238] sm:$0xff]
  %v89 = vld [vmem:[%s0 + $0x240] sm:$0xff]
  %v90 = vld [vmem:[%s0 + $0x248] sm:$0xff]
  %v91 = vld [vmem:[%s0 + $0x250] sm:$0xff]
  %v92 = vld [vmem:[%s0 + $0x258] sm:$0xff]
  %v93 = vld [vmem:[%s0 + $0x260] sm:$0xff]
  %v94 = vld [vmem:[%s0 + $0x268] sm:$0xff]
  %v95 = vld [vmem:[%s0 + $0x270] sm:$0xff]
  %v96 = vld [vmem:[%s0 + $0x278] sm:$0xff]
  %v97 = vld [vmem:[%s0 + $0x280] sm:$0xff]
  %v98 = vld [vmem:[%s0 + $0x288] sm:$0xff]
  %v99 = vld [vmem:[%s0 + $0x290] sm:$0xff]
  %v100 = vld [vmem:[%s0 + $0x298] sm:$0xff]
  %v101 = vld [vmem:[%s0 + $0x2a0] sm:$0xff]
  %v102 = vld [vmem:[%s0 + $0x2a8] sm:$0xff]
  %v103 = vld [vmem:[%s0 + $0x2b0] sm:$0xff]
  %v104 = vld [vmem:[%s0 + $0x2b8] sm:$0xff]
  %v105 = vld [vmem:[%s0 + $0x2c0] sm:$0xff]
  %v106 = vld [vmem:[%s0 + $0x2c8] sm:$0xff]
  %v107 = vld [vmem:[%s0 + $0x2d0] sm:$0xff]
  %v108 = vld [vmem:[%s0 + $0x2d8] sm:$0xff]
  %v109 = vld [vmem:[%s0 + $0x2e0] sm:$0xff]
  %v110 = vld [vmem:[%s0 + $0x2e8] sm:$0xff]
  %v111 = vld [vmem:[%s0 + $0x2f0] sm:$0xff]
  %v112 = vld [vmem:[%s0 + $0x2f8] sm:$0xff]
  %v113 = vld [vmem:[%s0 + $0x300] sm:$0xff]
  %v114 = vld [vmem:[%s0 + $0x308] sm:$0xff]
  %v115 = vld [vmem:[%s0 + $0x310] sm:$0xff]
  %v116 = vld [vmem:[%s0 + $0x318] sm:$0xff]
  %v117 = vld [vmem:[%s0 + $0x320] sm:$0xff]
  %v118 = vld [vmem:[%s0 + $0x328] sm:$0xff]
  %v119 = vld [vmem:[%s0 + $0x330] sm:$0xff]
  %v120 = vld [vmem:[%s0 + $0x338] sm:$0xff]
  %v121 = vld [vmem:[%s0 + $0x340] sm:$0xff]
  %v122 = vld [vmem:[%s0 + $0x348] sm:$0xff]
  %v123 = vld [vmem:[%s0 + $0x350] sm:$0xff]
  %v124 = vld [vmem:[%s0 + $0x358] sm:$0xff]
  %v125 = vld [vmem:[%s1] sm:$0xf]
  %v126 = vld [vmem:[%s1 + $0x4] sm:$0xf]
  %v127 = vld [vmem:[%s1 + $0x8] sm:$0xf]
  %v128 = vld [vmem:[%s1 + $0xc] sm:$0xf]
  %v129 = vld [vmem:[%s1 + $0x10] sm:$0xf]
  %v130 = vld [vmem:[%s1 + $0x14] sm:$0xf]
  %v131 = vld [vmem:[%s1 + $0x18] sm:$0xf]
  %v132 = vld [vmem:[%s1 + $0x1c] sm:$0xf]
  %v133 = vld [vmem:[%s1 + $0x20] sm:$0xf]
  %v134 = vld [vmem:[%s1 + $0x24] sm:$0xf]
  %v135 = vld [vmem:[%s1 + $0x28] sm:$0xf]
  %v136 = vld [vmem:[%s1 + $0x2c] sm:$0xf]
  %v137 = vld [vmem:[%s1 + $0x30] sm:$0xf]
  %v138 = vld [vmem:[%s1 + $0x34] sm:$0xf]
  %v139 = vld [vmem:[%s1 + $0x38] sm:$0xf]
  %v140 = vld [vmem:[%s1 + $0x3c] sm:$0xf]
  %v141 = vld [vmem:[%s1 + $0x40] sm:$0xf]
  %v142 = vld [vmem:[%s1 + $0x44] sm:$0xf]
  %v143 = vld [vmem:[%s1 + $0x48] sm:$0xf]
  %v144 = vld [vmem:[%s1 + $0x4c] sm:$0xf]
  %v145 = vld [vmem:[%s1 + $0x50] sm:$0xf]
  %v146 = vld [vmem:[%s1 + $0x54] sm:$0xf]
  %v147 = vld [vmem:[%s1 + $0x58] sm:$0xf]
  %v148 = vld [vmem:[%s1 + $0x5c] sm:$0xf]
  %v149 = vld [vmem:[%s1 + $0x60] sm:$0xf]
  %v150 = vld [vmem:[%s1 + $0x64] sm:$0xf]
  %v151 = vld [vmem:[%s1 + $0x68] sm:$0xf]
  %v152 = vld [vmem:[%s1 + $0x6c] sm:$0xf]
  %v153 = vld [vmem:[%s1 + $0x70] sm:$0xf]
  %v154 = vld [vmem:[%s1 + $0x74] sm:$0xf]
  %v155 = vld [vmem:[%s1 + $0x78] sm:$0xf]
  %v156 = vld [vmem:[%s1 + $0x7c] sm:$0xf]
  %v157 = vld [vmem:[%s1 + $0x80] sm:$0xf]
  %v158 = vld [vmem:[%s1 + $0x84] sm:$0xf]
  %v159 = vld [vmem:[%s1 + $0x88] sm:$0xf]
  %v160 = vld [vmem:[%s1 + $0x8c] sm:$0xf]
  %v161 = vunpack.c.l.bf16 %v125
  %v162 = vunpack.c.l.bf16 %v126
  %v163 = vunpack.c.l.bf16 %v127
  %v164 = vunpack.c.l.bf16 %v128
  %v165 = vunpack.c.l.bf16 %v129
  %v166 = vunpack.c.l.bf16 %v130
  %v167 = vunpack.c.l.bf16 %v131
  %v168 = vunpack.c.l.bf16 %v132
  %v169 = vunpack.c.l.bf16 %v133
  %v170 = vunpack.c.l.bf16 %v134
  %v171 = vunpack.c.l.bf16 %v135
  %v172 = vunpack.c.l.bf16 %v136
  %v173 = vunpack.c.l.bf16 %v137
  %v174 = vunpack.c.l.bf16 %v138
  %v175 = vunpack.c.l.bf16 %v139
  %v176 = vunpack.c.l.bf16 %v140
  %v177 = vunpack.c.l.bf16 %v141
  %v178 = vunpack.c.l.bf16 %v142
  %v179 = vunpack.c.l.bf16 %v143
  %v180 = vunpack.c.l.bf16 %v144
  %v181 = vunpack.c.l.bf16 %v145
  %v182 = vunpack.c.l.bf16 %v146
  %v183 = vunpack.c.l.bf16 %v147
  %v184 = vunpack.c.l.bf16 %v148
  %v185 = vunpack.c.l.bf16 %v149
  %v186 = vunpack.c.l.bf16 %v150
  %v187 = vunpack.c.l.bf16 %v151
  %v188 = vunpack.c.l.bf16 %v152
  %v189 = vunpack.c.l.bf16 %v153
  %v190 = vunpack.c.l.bf16 %v154
  %v191 = vunpack.c.l.bf16 %v155
  %v192 = vunpack.c.l.bf16 %v156
  %v193 = vunpack.c.l.bf16 %v157
  %v194 = vunpack.c.l.bf16 %v158
  %v195 = vunpack.c.l.bf16 %v159
  %v196 = vunpack.c.l.bf16 %v160
  %vm197 = vcmask 261120
  %v199 = vsel %vm197, %v19, 0
  %v202 = vsel %vm197, %v22, 0
  %v205 = vsel %vm197, %v25, 0
  %v208 = vsel %vm197, %v28, 0
  %v211 = vsel %vm197, %v31, 0
  %v214 = vsel %vm197, %v34, 0
  %v217 = vsel %vm197, %v37, 0
  %v220 = vsel %vm197, %v40, 0
  %v223 = vsel %vm197, %v43, 0
  %v226 = vsel %vm197, %v46, 0
  %v229 = vsel %vm197, %v49, 0
  %v232 = vsel %vm197, %v52, 0
  %v235 = vsel %vm197, %v55, 0
  %v238 = vsel %vm197, %v58, 0
  %v241 = vsel %vm197, %v61, 0
  %v244 = vsel %vm197, %v64, 0
  %v247 = vsel %vm197, %v67, 0
  %v250 = vsel %vm197, %v70, 0
  %v253 = vsel %vm197, %v73, 0
  %v256 = vsel %vm197, %v76, 0
  %v259 = vsel %vm197, %v79, 0
  %v262 = vsel %vm197, %v82, 0
  %v265 = vsel %vm197, %v85, 0
  %v268 = vsel %vm197, %v88, 0
  %v271 = vsel %vm197, %v91, 0
  %v274 = vsel %vm197, %v94, 0
  %v277 = vsel %vm197, %v97, 0
  %v280 = vsel %vm197, %v100, 0
  %v283 = vsel %vm197, %v103, 0
  %v286 = vsel %vm197, %v106, 0
  %v289 = vsel %vm197, %v109, 0
  %v292 = vsel %vm197, %v112, 0
  %v295 = vsel %vm197, %v115, 0
  %v298 = vsel %vm197, %v118, 0
  %v301 = vsel %vm197, %v121, 0
  %v304 = vsel %vm197, %v124, 0
  %306 = vmatprep.subr.mxu0 0.0
  %307 = vmatpush1.msra.mxu0 %v176
  %308 = vmatprep.subr.mxu0 0.0
  %309 = vmatpush1.msra.mxu0 %v175
  %310 = vmatprep.subr.mxu0 0.0
  %311 = vmatpush1.msra.mxu0 %v174
  %312 = vmatprep.subr.mxu0 0.0
  %313 = vmatpush1.msra.mxu0 %v173
  %314 = vmatprep.subr.mxu0 0.0
  %315 = vmatpush1.msra.mxu0 %v172
  %316 = vmatprep.subr.mxu0 0.0
  %317 = vmatpush1.msra.mxu0 %v171
  %318 = vmatprep.subr.mxu0 0.0
  %319 = vmatpush1.msra.mxu0 %v170
  %320 = vmatprep.subr.mxu0 0.0
  %321 = vmatpush1.msra.mxu0 %v169
  %322 = vmatprep.subr.mxu0 0.0
  %323 = vmatpush1.msra.mxu0 %v168
  %324 = vmatprep.subr.mxu0 0.0
  %325 = vmatpush1.msra.mxu0 %v167
  %326 = vmatprep.subr.mxu0 0.0
  %327 = vmatpush1.msra.mxu0 %v166
  %328 = vmatprep.subr.mxu0 0.0
  %329 = vmatpush1.msra.mxu0 %v165
  %330 = vmatprep.subr.mxu0 0.0
  %331 = vmatpush1.msra.mxu0 %v164
  %332 = vmatprep.subr.mxu0 0.0
  %333 = vmatpush1.msra.mxu0 %v163
  %334 = vmatprep.subr.mxu0 0.0
  %335 = vmatpush1.msra.mxu0 %v162
  %336 = vmatprep.subr.mxu0 0.0
  %337 = vmatpush1.msra.mxu0 %v161
  %338 = vmatprep.subr.mxu0 0.0
  %339 = vmatpush2.msra.mxu0 %v192
  %340 = vmatprep.subr.mxu0 0.0
  %341 = vmatpush2.msra.mxu0 %v191
  %342 = vmatprep.subr.mxu0 0.0
  %343 = vmatpush2.msra.mxu0 %v190
  %344 = vmatprep.subr.mxu0 0.0
  %345 = vmatpush2.msra.mxu0 %v189
  %346 = vmatprep.subr.mxu0 0.0
  %347 = vmatpush2.msra.mxu0 %v188
  %348 = vmatprep.subr.mxu0 0.0
  %349 = vmatpush2.msra.mxu0 %v187
  %350 = vmatprep.subr.mxu0 0.0
  %351 = vmatpush2.msra.mxu0 %v186
  %352 = vmatprep.subr.mxu0 0.0
  %353 = vmatpush2.msra.mxu0 %v185
  %354 = vmatprep.subr.mxu0 0.0
  %355 = vmatpush2.msra.mxu0 %v184
  %356 = vmatprep.subr.mxu0 0.0
  %357 = vmatpush2.msra.mxu0 %v183
  %358 = vmatprep.subr.mxu0 0.0
  %359 = vmatpush2.msra.mxu0 %v182
  %360 = vmatprep.subr.mxu0 0.0
  %361 = vmatpush2.msra.mxu0 %v181
  %362 = vmatprep.subr.mxu0 0.0
  %363 = vmatpush2.msra.mxu0 %v180
  %364 = vmatprep.subr.mxu0 0.0
  %365 = vmatpush2.msra.mxu0 %v179
  %366 = vmatprep.subr.mxu0 0.0
  %367 = vmatpush2.msra.mxu0 %v178
  %368 = vmatprep.subr.mxu0 0.0
  %369 = vmatpush2.msra.mxu0 %v177
  %370 = vmatprep.mubr.f32.mxu0 %v18
  %371 = vmatmul.mubr.f32.gmra.mxu0 %v17
  %v372 = vpop.f32.mrf.mxu0
  %v373 = vadd.f32 0.0, %v372
  %v374 = vpop.f32.mrf.mxu0
  %375 = vmatprep.mubr.f32.mxu0 %v21
  %376 = vmatmul.mubr.f32.gmra.mxu0 %v20
  %v377 = vpop.f32.mrf.mxu0
  %v378 = vadd.f32 0.0, %v377
  %v379 = vpop.f32.mrf.mxu0
  %380 = vmatprep.mubr.f32.mxu0 %v24
  %381 = vmatmul.mubr.f32.gmra.mxu0 %v23
  %v382 = vpop.f32.mrf.mxu0
  %v383 = vadd.f32 0.0, %v382
  %v384 = vpop.f32.mrf.mxu0
  %385 = vmatprep.mubr.f32.mxu0 %v27
  %386 = vmatmul.mubr.f32.gmra.mxu0 %v26
  %v387 = vpop.f32.mrf.mxu0
  %v388 = vadd.f32 0.0, %v387
  %v389 = vpop.f32.mrf.mxu0
  %390 = vmatprep.mubr.f32.mxu0 %v30
  %391 = vmatmul.mubr.f32.gmra.mxu0 %v29
  %v392 = vpop.f32.mrf.mxu0
  %v393 = vadd.f32 0.0, %v392
  %v394 = vpop.f32.mrf.mxu0
  %395 = vmatprep.mubr.f32.mxu0 %v33
  %396 = vmatmul.mubr.f32.gmra.mxu0 %v32
  %v397 = vpop.f32.mrf.mxu0
  %v398 = vadd.f32 0.0, %v397
  %v399 = vpop.f32.mrf.mxu0
  %400 = vmatprep.mubr.f32.mxu0 %v36
  %401 = vmatmul.mubr.f32.gmra.mxu0 %v35
  %v402 = vpop.f32.mrf.mxu0
  %v403 = vadd.f32 0.0, %v402
  %v404 = vpop.f32.mrf.mxu0
  %405 = vmatprep.mubr.f32.mxu0 %v39
  %406 = vmatmul.mubr.f32.gmra.mxu0 %v38
  %v407 = vpop.f32.mrf.mxu0
  %v408 = vadd.f32 0.0, %v407
  %v409 = vpop.f32.mrf.mxu0
  %410 = vmatprep.mubr.f32.mxu0 %v42
  %411 = vmatmul.mubr.f32.gmra.mxu0 %v41
  %v412 = vpop.f32.mrf.mxu0
  %v413 = vadd.f32 0.0, %v412
  %v414 = vpop.f32.mrf.mxu0
  %415 = vmatprep.mubr.f32.mxu0 %v45
  %416 = vmatmul.mubr.f32.gmra.mxu0 %v44
  %v417 = vpop.f32.mrf.mxu0
  %v418 = vadd.f32 0.0, %v417
  %v419 = vpop.f32.mrf.mxu0
  %420 = vmatprep.mubr.f32.mxu0 %v48
  %421 = vmatmul.mubr.f32.gmra.mxu0 %v47
  %v422 = vpop.f32.mrf.mxu0
  %v423 = vadd.f32 0.0, %v422
  %v424 = vpop.f32.mrf.mxu0
  %425 = vmatprep.mubr.f32.mxu0 %v51
  %426 = vmatmul.mubr.f32.gmra.mxu0 %v50
  %v427 = vpop.f32.mrf.mxu0
  %v428 = vadd.f32 0.0, %v427
  %v429 = vpop.f32.mrf.mxu0
  %430 = vmatprep.mubr.f32.mxu0 %v54
  %431 = vmatmul.mubr.f32.gmra.mxu0 %v53
  %v432 = vpop.f32.mrf.mxu0
  %v433 = vadd.f32 0.0, %v432
  %v434 = vpop.f32.mrf.mxu0
  %435 = vmatprep.mubr.f32.mxu0 %v57
  %436 = vmatmul.mubr.f32.gmra.mxu0 %v56
  %v437 = vpop.f32.mrf.mxu0
  %v438 = vadd.f32 0.0, %v437
  %v439 = vpop.f32.mrf.mxu0
  %440 = vmatprep.mubr.f32.mxu0 %v60
  %441 = vmatmul.mubr.f32.gmra.mxu0 %v59
  %v442 = vpop.f32.mrf.mxu0
  %v443 = vadd.f32 0.0, %v442
  %v444 = vpop.f32.mrf.mxu0
  %445 = vmatprep.mubr.f32.mxu0 %v63
  %446 = vmatmul.mubr.f32.gmra.mxu0 %v62
  %v447 = vpop.f32.mrf.mxu0
  %v448 = vadd.f32 0.0, %v447
  %v449 = vpop.f32.mrf.mxu0
  %450 = vmatprep.mubr.f32.mxu0 %v66
  %451 = vmatmul.mubr.f32.gmra.mxu0 %v65
  %v452 = vpop.f32.mrf.mxu0
  %v453 = vadd.f32 0.0, %v452
  %v454 = vpop.f32.mrf.mxu0
  %455 = vmatprep.mubr.f32.mxu0 %v69
  %456 = vmatmul.mubr.f32.gmra.mxu0 %v68
  %v457 = vpop.f32.mrf.mxu0
  %v458 = vadd.f32 0.0, %v457
  %v459 = vpop.f32.mrf.mxu0
  %460 = vmatprep.mubr.f32.mxu0 %v72
  %461 = vmatmul.mubr.f32.gmra.mxu0 %v71
  %v462 = vpop.f32.mrf.mxu0
  %v463 = vadd.f32 0.0, %v462
  %v464 = vpop.f32.mrf.mxu0
  %465 = vmatprep.mubr.f32.mxu0 %v75
  %466 = vmatmul.mubr.f32.gmra.mxu0 %v74
  %v467 = vpop.f32.mrf.mxu0
  %v468 = vadd.f32 0.0, %v467
  %v469 = vpop.f32.mrf.mxu0
  %470 = vmatprep.mubr.f32.mxu0 %v78
  %471 = vmatmul.mubr.f32.gmra.mxu0 %v77
  %v472 = vpop.f32.mrf.mxu0
  %v473 = vadd.f32 0.0, %v472
  %v474 = vpop.f32.mrf.mxu0
  %475 = vmatprep.mubr.f32.mxu0 %v81
  %476 = vmatmul.mubr.f32.gmra.mxu0 %v80
  %v477 = vpop.f32.mrf.mxu0
  %v478 = vadd.f32 0.0, %v477
  %v479 = vpop.f32.mrf.mxu0
  %480 = vmatprep.mubr.f32.mxu0 %v84
  %481 = vmatmul.mubr.f32.gmra.mxu0 %v83
  %v482 = vpop.f32.mrf.mxu0
  %v483 = vadd.f32 0.0, %v482
  %v484 = vpop.f32.mrf.mxu0
  %485 = vmatprep.mubr.f32.mxu0 %v87
  %486 = vmatmul.mubr.f32.gmra.mxu0 %v86
  %v487 = vpop.f32.mrf.mxu0
  %v488 = vadd.f32 0.0, %v487
  %v489 = vpop.f32.mrf.mxu0
  %490 = vmatprep.mubr.f32.mxu0 %v90
  %491 = vmatmul.mubr.f32.gmra.mxu0 %v89
  %v492 = vpop.f32.mrf.mxu0
  %v493 = vadd.f32 0.0, %v492
  %v494 = vpop.f32.mrf.mxu0
  %495 = vmatprep.mubr.f32.mxu0 %v93
  %496 = vmatmul.mubr.f32.gmra.mxu0 %v92
  %v497 = vpop.f32.mrf.mxu0
  %v498 = vadd.f32 0.0, %v497
  %v499 = vpop.f32.mrf.mxu0
  %500 = vmatprep.mubr.f32.mxu0 %v96
  %501 = vmatmul.mubr.f32.gmra.mxu0 %v95
  %v502 = vpop.f32.mrf.mxu0
  %v503 = vadd.f32 0.0, %v502
  %v504 = vpop.f32.mrf.mxu0
  %505 = vmatprep.mubr.f32.mxu0 %v99
  %506 = vmatmul.mubr.f32.gmra.mxu0 %v98
  %v507 = vpop.f32.mrf.mxu0
  %v508 = vadd.f32 0.0, %v507
  %v509 = vpop.f32.mrf.mxu0
  %510 = vmatprep.mubr.f32.mxu0 %v102
  %511 = vmatmul.mubr.f32.gmra.mxu0 %v101
  %v512 = vpop.f32.mrf.mxu0
  %v513 = vadd.f32 0.0, %v512
  %v514 = vpop.f32.mrf.mxu0
  %515 = vmatprep.mubr.f32.mxu0 %v105
  %516 = vmatmul.mubr.f32.gmra.mxu0 %v104
  %v517 = vpop.f32.mrf.mxu0
  %v518 = vadd.f32 0.0, %v517
  %v519 = vpop.f32.mrf.mxu0
  %520 = vmatprep.mubr.f32.mxu0 %v108
  %521 = vmatmul.mubr.f32.gmra.mxu0 %v107
  %v522 = vpop.f32.mrf.mxu0
  %v523 = vadd.f32 0.0, %v522
  %v524 = vpop.f32.mrf.mxu0
  %525 = vmatprep.mubr.f32.mxu0 %v111
  %526 = vmatmul.mubr.f32.gmra.mxu0 %v110
  %v527 = vpop.f32.mrf.mxu0
  %v528 = vadd.f32 0.0, %v527
  %v529 = vpop.f32.mrf.mxu0
  %530 = vmatprep.mubr.f32.mxu0 %v114
  %531 = vmatmul.mubr.f32.gmra.mxu0 %v113
  %v532 = vpop.f32.mrf.mxu0
  %v533 = vadd.f32 0.0, %v532
  %v534 = vpop.f32.mrf.mxu0
  %535 = vmatprep.mubr.f32.mxu0 %v117
  %536 = vmatmul.mubr.f32.gmra.mxu0 %v116
  %v537 = vpop.f32.mrf.mxu0
  %v538 = vadd.f32 0.0, %v537
  %v539 = vpop.f32.mrf.mxu0
  %540 = vmatprep.mubr.f32.mxu0 %v120
  %541 = vmatmul.mubr.f32.gmra.mxu0 %v119
  %v542 = vpop.f32.mrf.mxu0
  %v543 = vadd.f32 0.0, %v542
  %v544 = vpop.f32.mrf.mxu0
  %545 = vmatprep.mubr.f32.mxu0 %v123
  %546 = vmatmul.mubr.f32.gmra.mxu0 %v122
  %v547 = vpop.f32.mrf.mxu0
  %v548 = vadd.f32 0.0, %v547
  %v549 = vpop.f32.mrf.mxu0
  %550 = vdwg.mxu0
  %551 = vmatprep.subr.mxu0 0.0
  %552 = vmatpush1.msra.mxu0 0.0
  %553 = vmatprep.subr.mxu0 0.0
  %554 = vmatpush1.msra.mxu0 0.0
  %555 = vmatprep.subr.mxu0 0.0
  %556 = vmatpush1.msra.mxu0 0.0
  %557 = vmatprep.subr.mxu0 0.0
  %558 = vmatpush1.msra.mxu0 0.0
  %559 = vmatprep.subr.mxu0 0.0
  %560 = vmatpush1.msra.mxu0 0.0
  %561 = vmatprep.subr.mxu0 0.0
  %562 = vmatpush1.msra.mxu0 0.0
  %563 = vmatprep.subr.mxu0 0.0
  %564 = vmatpush1.msra.mxu0 0.0
  %565 = vmatprep.subr.mxu0 0.0
  %566 = vmatpush1.msra.mxu0 0.0
  %567 = vmatprep.subr.mxu0 0.0
  %568 = vmatpush1.msra.mxu0 0.0
  %569 = vmatprep.subr.mxu0 0.0
  %570 = vmatpush1.msra.mxu0 0.0
  %571 = vmatprep.subr.mxu0 0.0
  %572 = vmatpush1.msra.mxu0 0.0
  %573 = vmatprep.subr.mxu0 0.0
  %574 = vmatpush1.msra.mxu0 0.0
  %575 = vmatprep.subr.mxu0 0.0
  %576 = vmatpush1.msra.mxu0 %v196
  %577 = vmatprep.subr.mxu0 0.0
  %578 = vmatpush1.msra.mxu0 %v195
  %579 = vmatprep.subr.mxu0 0.0
  %580 = vmatpush1.msra.mxu0 %v194
  %581 = vmatprep.subr.mxu0 0.0
  %582 = vmatpush1.msra.mxu0 %v193
  %583 = vmatprep.subr.mxu0 0.0
  %584 = vmatpush2.msra.mxu0 0.0
  %585 = vmatprep.subr.mxu0 0.0
  %586 = vmatpush2.msra.mxu0 0.0
  %587 = vmatprep.subr.mxu0 0.0
  %588 = vmatpush2.msra.mxu0 0.0
  %589 = vmatprep.subr.mxu0 0.0
  %590 = vmatpush2.msra.mxu0 0.0
  %591 = vmatprep.subr.mxu0 0.0
  %592 = vmatpush2.msra.mxu0 0.0
  %593 = vmatprep.subr.mxu0 0.0
  %594 = vmatpush2.msra.mxu0 0.0
  %595 = vmatprep.subr.mxu0 0.0
  %596 = vmatpush2.msra.mxu0 0.0
  %597 = vmatprep.subr.mxu0 0.0
  %598 = vmatpush2.msra.mxu0 0.0
  %599 = vmatprep.subr.mxu0 0.0
  %600 = vmatpush2.msra.mxu0 0.0
  %601 = vmatprep.subr.mxu0 0.0
  %602 = vmatpush2.msra.mxu0 0.0
  %603 = vmatprep.subr.mxu0 0.0
  %604 = vmatpush2.msra.mxu0 0.0
  %605 = vmatprep.subr.mxu0 0.0
  %606 = vmatpush2.msra.mxu0 0.0
  %607 = vmatprep.subr.mxu0 0.0
  %608 = vmatpush2.msra.mxu0 0.0
  %609 = vmatprep.subr.mxu0 0.0
  %610 = vmatpush2.msra.mxu0 0.0
  %611 = vmatprep.subr.mxu0 0.0
  %612 = vmatpush2.msra.mxu0 0.0
  %613 = vmatprep.subr.mxu0 0.0
  %614 = vmatpush2.msra.mxu0 0.0
  %615 = vmatprep.mubr.f32.mxu0 0.0
  %616 = vmatmul.mubr.f32.gmra.mxu0 %v199
  %v617 = vpop.f32.mrf.mxu0
  %v618 = vadd.f32 %v373, %v617
  %v619 = vpop.f32.mrf.mxu0
  %620 = vmatprep.mubr.f32.mxu0 0.0
  %621 = vmatmul.mubr.f32.gmra.mxu0 %v202
  %v622 = vpop.f32.mrf.mxu0
  %v623 = vadd.f32 %v378, %v622
  %v624 = vpop.f32.mrf.mxu0
  %625 = vmatprep.mubr.f32.mxu0 0.0
  %626 = vmatmul.mubr.f32.gmra.mxu0 %v205
  %v627 = vpop.f32.mrf.mxu0
  %v628 = vadd.f32 %v383, %v627
  %v629 = vpop.f32.mrf.mxu0
  %630 = vmatprep.mubr.f32.mxu0 0.0
  %631 = vmatmul.mubr.f32.gmra.mxu0 %v208
  %v632 = vpop.f32.mrf.mxu0
  %v633 = vadd.f32 %v388, %v632
  %v634 = vpop.f32.mrf.mxu0
  %635 = vmatprep.mubr.f32.mxu0 0.0
  %636 = vmatmul.mubr.f32.gmra.mxu0 %v211
  %v637 = vpop.f32.mrf.mxu0
  %v638 = vadd.f32 %v393, %v637
  %v639 = vpop.f32.mrf.mxu0
  %640 = vmatprep.mubr.f32.mxu0 0.0
  %641 = vmatmul.mubr.f32.gmra.mxu0 %v214
  %v642 = vpop.f32.mrf.mxu0
  %v643 = vadd.f32 %v398, %v642
  %v644 = vpop.f32.mrf.mxu0
  %645 = vmatprep.mubr.f32.mxu0 0.0
  %646 = vmatmul.mubr.f32.gmra.mxu0 %v217
  %v647 = vpop.f32.mrf.mxu0
  %v648 = vadd.f32 %v403, %v647
  %v649 = vpop.f32.mrf.mxu0
  %650 = vmatprep.mubr.f32.mxu0 0.0
  %651 = vmatmul.mubr.f32.gmra.mxu0 %v220
  %v652 = vpop.f32.mrf.mxu0
  %v653 = vadd.f32 %v408, %v652
  %v654 = vpop.f32.mrf.mxu0
  %655 = vmatprep.mubr.f32.mxu0 0.0
  %656 = vmatmul.mubr.f32.gmra.mxu0 %v223
  %v657 = vpop.f32.mrf.mxu0
  %v658 = vadd.f32 %v413, %v657
  %v659 = vpop.f32.mrf.mxu0
  %660 = vmatprep.mubr.f32.mxu0 0.0
  %661 = vmatmul.mubr.f32.gmra.mxu0 %v226
  %v662 = vpop.f32.mrf.mxu0
  %v663 = vadd.f32 %v418, %v662
  %v664 = vpop.f32.mrf.mxu0
  %665 = vmatprep.mubr.f32.mxu0 0.0
  %666 = vmatmul.mubr.f32.gmra.mxu0 %v229
  %v667 = vpop.f32.mrf.mxu0
  %v668 = vadd.f32 %v423, %v667
  %v669 = vpop.f32.mrf.mxu0
  %670 = vmatprep.mubr.f32.mxu0 0.0
  %671 = vmatmul.mubr.f32.gmra.mxu0 %v232
  %v672 = vpop.f32.mrf.mxu0
  %v673 = vadd.f32 %v428, %v672
  %v674 = vpop.f32.mrf.mxu0
  %675 = vmatprep.mubr.f32.mxu0 0.0
  %676 = vmatmul.mubr.f32.gmra.mxu0 %v235
  %v677 = vpop.f32.mrf.mxu0
  %v678 = vadd.f32 %v433, %v677
  %v679 = vpop.f32.mrf.mxu0
  %680 = vmatprep.mubr.f32.mxu0 0.0
  %681 = vmatmul.mubr.f32.gmra.mxu0 %v238
  %v682 = vpop.f32.mrf.mxu0
  %v683 = vadd.f32 %v438, %v682
  %v684 = vpop.f32.mrf.mxu0
  %685 = vmatprep.mubr.f32.mxu0 0.0
  %686 = vmatmul.mubr.f32.gmra.mxu0 %v241
  %v687 = vpop.f32.mrf.mxu0
  %v688 = vadd.f32 %v443, %v687
  %v689 = vpop.f32.mrf.mxu0
  %690 = vmatprep.mubr.f32.mxu0 0.0
  %691 = vmatmul.mubr.f32.gmra.mxu0 %v244
  %v692 = vpop.f32.mrf.mxu0
  %v693 = vadd.f32 %v448, %v692
  %v694 = vpop.f32.mrf.mxu0
  %695 = vmatprep.mubr.f32.mxu0 0.0
  %696 = vmatmul.mubr.f32.gmra.mxu0 %v247
  %v697 = vpop.f32.mrf.mxu0
  %v698 = vadd.f32 %v453, %v697
  %v699 = vpop.f32.mrf.mxu0
  %700 = vmatprep.mubr.f32.mxu0 0.0
  %701 = vmatmul.mubr.f32.gmra.mxu0 %v250
  %v702 = vpop.f32.mrf.mxu0
  %v703 = vadd.f32 %v458, %v702
  %v704 = vpop.f32.mrf.mxu0
  %705 = vmatprep.mubr.f32.mxu0 0.0
  %706 = vmatmul.mubr.f32.gmra.mxu0 %v253
  %v707 = vpop.f32.mrf.mxu0
  %v708 = vadd.f32 %v463, %v707
  %v709 = vpop.f32.mrf.mxu0
  %710 = vmatprep.mubr.f32.mxu0 0.0
  %711 = vmatmul.mubr.f32.gmra.mxu0 %v256
  %v712 = vpop.f32.mrf.mxu0
  %v713 = vadd.f32 %v468, %v712
  %v714 = vpop.f32.mrf.mxu0
  %715 = vmatprep.mubr.f32.mxu0 0.0
  %716 = vmatmul.mubr.f32.gmra.mxu0 %v259
  %v717 = vpop.f32.mrf.mxu0
  %v718 = vadd.f32 %v473, %v717
  %v719 = vpop.f32.mrf.mxu0
  %720 = vmatprep.mubr.f32.mxu0 0.0
  %721 = vmatmul.mubr.f32.gmra.mxu0 %v262
  %v722 = vpop.f32.mrf.mxu0
  %v723 = vadd.f32 %v478, %v722
  %v724 = vpop.f32.mrf.mxu0
  %725 = vmatprep.mubr.f32.mxu0 0.0
  %726 = vmatmul.mubr.f32.gmra.mxu0 %v265
  %v727 = vpop.f32.mrf.mxu0
  %v728 = vadd.f32 %v483, %v727
  %v729 = vpop.f32.mrf.mxu0
  %730 = vmatprep.mubr.f32.mxu0 0.0
  %731 = vmatmul.mubr.f32.gmra.mxu0 %v268
  %v732 = vpop.f32.mrf.mxu0
  %v733 = vadd.f32 %v488, %v732
  %v734 = vpop.f32.mrf.mxu0
  %735 = vmatprep.mubr.f32.mxu0 0.0
  %736 = vmatmul.mubr.f32.gmra.mxu0 %v271
  %v737 = vpop.f32.mrf.mxu0
  %v738 = vadd.f32 %v493, %v737
  %v739 = vpop.f32.mrf.mxu0
  %740 = vmatprep.mubr.f32.mxu0 0.0
  %741 = vmatmul.mubr.f32.gmra.mxu0 %v274
  %v742 = vpop.f32.mrf.mxu0
  %v743 = vadd.f32 %v498, %v742
  %v744 = vpop.f32.mrf.mxu0
  %745 = vmatprep.mubr.f32.mxu0 0.0
  %746 = vmatmul.mubr.f32.gmra.mxu0 %v277
  %v747 = vpop.f32.mrf.mxu0
  %v748 = vadd.f32 %v503, %v747
  %v749 = vpop.f32.mrf.mxu0
  %750 = vmatprep.mubr.f32.mxu0 0.0
  %751 = vmatmul.mubr.f32.gmra.mxu0 %v280
  %v752 = vpop.f32.mrf.mxu0
  %v753 = vadd.f32 %v508, %v752
  %v754 = vpop.f32.mrf.mxu0
  %755 = vmatprep.mubr.f32.mxu0 0.0
  %756 = vmatmul.mubr.f32.gmra.mxu0 %v283
  %v757 = vpop.f32.mrf.mxu0
  %v758 = vadd.f32 %v513, %v757
  %v759 = vpop.f32.mrf.mxu0
  %760 = vmatprep.mubr.f32.mxu0 0.0
  %761 = vmatmul.mubr.f32.gmra.mxu0 %v286
  %v762 = vpop.f32.mrf.mxu0
  %v763 = vadd.f32 %v518, %v762
  %v764 = vpop.f32.mrf.mxu0
  %765 = vmatprep.mubr.f32.mxu0 0.0
  %766 = vmatmul.mubr.f32.gmra.mxu0 %v289
  %v767 = vpop.f32.mrf.mxu0
  %v768 = vadd.f32 %v523, %v767
  %v769 = vpop.f32.mrf.mxu0
  %770 = vmatprep.mubr.f32.mxu0 0.0
  %771 = vmatmul.mubr.f32.gmra.mxu0 %v292
  %v772 = vpop.f32.mrf.mxu0
  %v773 = vadd.f32 %v528, %v772
  %v774 = vpop.f32.mrf.mxu0
  %775 = vmatprep.mubr.f32.mxu0 0.0
  %776 = vmatmul.mubr.f32.gmra.mxu0 %v295
  %v777 = vpop.f32.mrf.mxu0
  %v778 = vadd.f32 %v533, %v777
  %v779 = vpop.f32.mrf.mxu0
  %780 = vmatprep.mubr.f32.mxu0 0.0
  %781 = vmatmul.mubr.f32.gmra.mxu0 %v298
  %v782 = vpop.f32.mrf.mxu0
  %v783 = vadd.f32 %v538, %v782
  %v784 = vpop.f32.mrf.mxu0
  %785 = vmatprep.mubr.f32.mxu0 0.0
  %786 = vmatmul.mubr.f32.gmra.mxu0 %v301
  %v787 = vpop.f32.mrf.mxu0
  %v788 = vadd.f32 %v543, %v787
  %v789 = vpop.f32.mrf.mxu0
  %790 = vmatprep.mubr.f32.mxu0 0.0
  %791 = vmatmul.mubr.f32.gmra.mxu0 %v304
  %v792 = vpop.f32.mrf.mxu0
  %v793 = vadd.f32 %v548, %v792
  %v794 = vpop.f32.mrf.mxu0
  %795 = vdwg.mxu0
  %v796 = vsel %vm197, %v618, 0.0
  %v797 = vsel %vm197, %v623, 0.0
  %v798 = vadd.f32 %v796, %v797
  %v799 = vsel %vm197, %v628, 0.0
  %v800 = vadd.f32 %v798, %v799
  %v801 = vsel %vm197, %v633, 0.0
  %v802 = vadd.f32 %v800, %v801
  %v803 = vsel %vm197, %v638, 0.0
  %v804 = vadd.f32 %v802, %v803
  %v805 = vsel %vm197, %v643, 0.0
  %v806 = vadd.f32 %v804, %v805
  %v807 = vsel %vm197, %v648, 0.0
  %v808 = vadd.f32 %v806, %v807
  %v809 = vsel %vm197, %v653, 0.0
  %v810 = vadd.f32 %v808, %v809
  %v811 = vsel %vm197, %v658, 0.0
  %v812 = vadd.f32 %v810, %v811
  %v813 = vsel %vm197, %v663, 0.0
  %v814 = vadd.f32 %v812, %v813
  %v815 = vsel %vm197, %v668, 0.0
  %v816 = vadd.f32 %v814, %v815
  %v817 = vsel %vm197, %v673, 0.0
  %v818 = vadd.f32 %v816, %v817
  %v819 = vsel %vm197, %v678, 0.0
  %v820 = vadd.f32 %v818, %v819
  %v821 = vsel %vm197, %v683, 0.0
  %v822 = vadd.f32 %v820, %v821
  %v823 = vsel %vm197, %v688, 0.0
  %v824 = vadd.f32 %v822, %v823
  %v825 = vsel %vm197, %v693, 0.0
  %v826 = vadd.f32 %v824, %v825
  %v827 = vsel %vm197, %v698, 0.0
  %v828 = vadd.f32 %v826, %v827
  %v829 = vsel %vm197, %v703, 0.0
  %v830 = vadd.f32 %v828, %v829
  %v831 = vsel %vm197, %v708, 0.0
  %v832 = vadd.f32 %v830, %v831
  %v833 = vsel %vm197, %v713, 0.0
  %v834 = vadd.f32 %v832, %v833
  %v835 = vsel %vm197, %v718, 0.0
  %v836 = vadd.f32 %v834, %v835
  %v837 = vsel %vm197, %v723, 0.0
  %v838 = vadd.f32 %v836, %v837
  %v839 = vsel %vm197, %v728, 0.0
  %v840 = vadd.f32 %v838, %v839
  %v841 = vsel %vm197, %v733, 0.0
  %v842 = vadd.f32 %v840, %v841
  %v843 = vsel %vm197, %v738, 0.0
  %v844 = vadd.f32 %v842, %v843
  %v845 = vsel %vm197, %v743, 0.0
  %v846 = vadd.f32 %v844, %v845
  %v847 = vsel %vm197, %v748, 0.0
  %v848 = vadd.f32 %v846, %v847
  %v849 = vsel %vm197, %v753, 0.0
  %v850 = vadd.f32 %v848, %v849
  %v851 = vsel %vm197, %v758, 0.0
  %v852 = vadd.f32 %v850, %v851
  %v853 = vsel %vm197, %v763, 0.0
  %v854 = vadd.f32 %v852, %v853
  %v855 = vsel %vm197, %v768, 0.0
  %v856 = vadd.f32 %v854, %v855
  %v857 = vsel %vm197, %v773, 0.0
  %v858 = vadd.f32 %v856, %v857
  %v859 = vsel %vm197, %v778, 0.0
  %v860 = vadd.f32 %v858, %v859
  %v861 = vsel %vm197, %v783, 0.0
  %v862 = vadd.f32 %v860, %v861
  %v863 = vsel %vm197, %v788, 0.0
  %v864 = vadd.f32 %v862, %v863
  %v865 = vsel %vm197, %v793, 0.0
  %v866 = vadd.f32 %v864, %v865
  %v867 = vrot.slane %v866, 4
  %v868 = vadd.f32 %v866, %v867
  %v869 = vrot.slane %v868, 2
  %v870 = vadd.f32 %v868, %v869
  %v871 = vrot.slane %v870, 1
  %v872 = vadd.f32 %v870, %v871
  %v873 = vmul.f32 %v618, %v618
  %v874 = vmul.f32 %v623, %v623
  %v875 = vmul.f32 %v628, %v628
  %v876 = vmul.f32 %v633, %v633
  %v877 = vmul.f32 %v638, %v638
  %v878 = vmul.f32 %v643, %v643
  %v879 = vmul.f32 %v648, %v648
  %v880 = vmul.f32 %v653, %v653
  %v881 = vmul.f32 %v658, %v658
  %v882 = vmul.f32 %v663, %v663
  %v883 = vmul.f32 %v668, %v668
  %v884 = vmul.f32 %v673, %v673
  %v885 = vmul.f32 %v678, %v678
  %v886 = vmul.f32 %v683, %v683
  %v887 = vmul.f32 %v688, %v688
  %v888 = vmul.f32 %v693, %v693
  %v889 = vmul.f32 %v698, %v698
  %v890 = vmul.f32 %v703, %v703
  %v891 = vmul.f32 %v708, %v708
  %v892 = vmul.f32 %v713, %v713
  %v893 = vmul.f32 %v718, %v718
  %v894 = vmul.f32 %v723, %v723
  %v895 = vmul.f32 %v728, %v728
  %v896 = vmul.f32 %v733, %v733
  %v897 = vmul.f32 %v738, %v738
  %v898 = vmul.f32 %v743, %v743
  %v899 = vmul.f32 %v748, %v748
  %v900 = vmul.f32 %v753, %v753
  %v901 = vmul.f32 %v758, %v758
  %v902 = vmul.f32 %v763, %v763
  %v903 = vmul.f32 %v768, %v768
  %v904 = vmul.f32 %v773, %v773
  %v905 = vmul.f32 %v778, %v778
  %v906 = vmul.f32 %v783, %v783
  %v907 = vmul.f32 %v788, %v788
  %v908 = vmul.f32 %v793, %v793
  %v909 = vsel %vm197, %v873, 0.0
  %v910 = vsel %vm197, %v874, 0.0
  %v911 = vadd.f32 %v909, %v910
  %v912 = vsel %vm197, %v875, 0.0
  %v913 = vadd.f32 %v911, %v912
  %v914 = vsel %vm197, %v876, 0.0
  %v915 = vadd.f32 %v913, %v914
  %v916 = vsel %vm197, %v877, 0.0
  %v917 = vadd.f32 %v915, %v916
  %v918 = vsel %vm197, %v878, 0.0
  %v919 = vadd.f32 %v917, %v918
  %v920 = vsel %vm197, %v879, 0.0
  %v921 = vadd.f32 %v919, %v920
  %v922 = vsel %vm197, %v880, 0.0
  %v923 = vadd.f32 %v921, %v922
  %v924 = vsel %vm197, %v881, 0.0
  %v925 = vadd.f32 %v923, %v924
  %v926 = vsel %vm197, %v882, 0.0
  %v927 = vadd.f32 %v925, %v926
  %v928 = vsel %vm197, %v883, 0.0
  %v929 = vadd.f32 %v927, %v928
  %v930 = vsel %vm197, %v884, 0.0
  %v931 = vadd.f32 %v929, %v930
  %v932 = vsel %vm197, %v885, 0.0
  %v933 = vadd.f32 %v931, %v932
  %v934 = vsel %vm197, %v886, 0.0
  %v935 = vadd.f32 %v933, %v934
  %v936 = vsel %vm197, %v887, 0.0
  %v937 = vadd.f32 %v935, %v936
  %v938 = vsel %vm197, %v888, 0.0
  %v939 = vadd.f32 %v937, %v938
  %v940 = vsel %vm197, %v889, 0.0
  %v941 = vadd.f32 %v939, %v940
  %v942 = vsel %vm197, %v890, 0.0
  %v943 = vadd.f32 %v941, %v942
  %v944 = vsel %vm197, %v891, 0.0
  %v945 = vadd.f32 %v943, %v944
  %v946 = vsel %vm197, %v892, 0.0
  %v947 = vadd.f32 %v945, %v946
  %v948 = vsel %vm197, %v893, 0.0
  %v949 = vadd.f32 %v947, %v948
  %v950 = vsel %vm197, %v894, 0.0
  %v951 = vadd.f32 %v949, %v950
  %v952 = vsel %vm197, %v895, 0.0
  %v953 = vadd.f32 %v951, %v952
  %v954 = vsel %vm197, %v896, 0.0
  %v955 = vadd.f32 %v953, %v954
  %v956 = vsel %vm197, %v897, 0.0
  %v957 = vadd.f32 %v955, %v956
  %v958 = vsel %vm197, %v898, 0.0
  %v959 = vadd.f32 %v957, %v958
  %v960 = vsel %vm197, %v899, 0.0
  %v961 = vadd.f32 %v959, %v960
  %v962 = vsel %vm197, %v900, 0.0
  %v963 = vadd.f32 %v961, %v962
  %v964 = vsel %vm197, %v901, 0.0
  %v965 = vadd.f32 %v963, %v964
  %v966 = vsel %vm197, %v902, 0.0
  %v967 = vadd.f32 %v965, %v966
  %v968 = vsel %vm197, %v903, 0.0
  %v969 = vadd.f32 %v967, %v968
  %v970 = vsel %vm197, %v904, 0.0
  %v971 = vadd.f32 %v969, %v970
  %v972 = vsel %vm197, %v905, 0.0
  %v973 = vadd.f32 %v971, %v972
  %v974 = vsel %vm197, %v906, 0.0
  %v975 = vadd.f32 %v973, %v974
  %v976 = vsel %vm197, %v907, 0.0
  %v977 = vadd.f32 %v975, %v976
  %v978 = vsel %vm197, %v908, 0.0
  %v979 = vadd.f32 %v977, %v978
  %v980 = vrot.slane %v979, 4
  %v981 = vadd.f32 %v979, %v980
  %v982 = vrot.slane %v981, 2
  %v983 = vadd.f32 %v981, %v982
  %v984 = vrot.slane %v983, 1
  %v985 = vadd.f32 %v983, %v984
  %v986 = vmul.f32 %v872, 0.0034722222
  %v987 = vmul.f32 %v985, 0.0034722222
  %v988 = vmul.f32 %v986, %v986
  %v989 = vsub.f32 %v987, %v988
  %v990 = vmax.f32 %v989, 0.0
  %v991 = vld [vmem:[%s2] sm:$0x1]
  %v992 = vadd.f32 %v990, 1e-05
  %v993 = vrsqrt.pop %v992
  %v994 = vmul.f32 %v991, %v993
  %v995 = vld [vmem:[%s3] sm:$0x1]
  %v996 = vmul.f32 %v986, %v994
  %v997 = vsub.f32 %v995, %v996
  %v999 = vlaneseq
  %v1000 = vshrl.u32 %v999, 7
  %v1001 = vsub.s32 0, %v1000
  %v1002 = vrot.slane %v994, %v1001
  %v1004 = vmul.f32 %v618, %v1002
  %v1005 = vmul.f32 %v623, %v1002
  %v1006 = vmul.f32 %v628, %v1002
  %v1007 = vmul.f32 %v633, %v1002
  %v1008 = vmul.f32 %v638, %v1002
  %v1009 = vmul.f32 %v643, %v1002
  %v1010 = vmul.f32 %v648, %v1002
  %v1011 = vmul.f32 %v653, %v1002
  %v1012 = vmul.f32 %v658, %v1002
  %v1013 = vmul.f32 %v663, %v1002
  %v1014 = vmul.f32 %v668, %v1002
  %v1015 = vmul.f32 %v673, %v1002
  %v1016 = vmul.f32 %v678, %v1002
  %v1017 = vmul.f32 %v683, %v1002
  %v1018 = vmul.f32 %v688, %v1002
  %v1019 = vmul.f32 %v693, %v1002
  %v1020 = vmul.f32 %v698, %v1002
  %v1021 = vmul.f32 %v703, %v1002
  %v1022 = vmul.f32 %v708, %v1002
  %v1023 = vmul.f32 %v713, %v1002
  %v1024 = vmul.f32 %v718, %v1002
  %v1025 = vmul.f32 %v723, %v1002
  %v1026 = vmul.f32 %v728, %v1002
  %v1027 = vmul.f32 %v733, %v1002
  %v1028 = vmul.f32 %v738, %v1002
  %v1029 = vmul.f32 %v743, %v1002
  %v1030 = vmul.f32 %v748, %v1002
  %v1031 = vmul.f32 %v753, %v1002
  %v1032 = vmul.f32 %v758, %v1002
  %v1033 = vmul.f32 %v763, %v1002
  %v1034 = vmul.f32 %v768, %v1002
  %v1035 = vmul.f32 %v773, %v1002
  %v1036 = vmul.f32 %v778, %v1002
  %v1037 = vmul.f32 %v783, %v1002
  %v1038 = vmul.f32 %v788, %v1002
  %v1039 = vmul.f32 %v793, %v1002
  %v1041 = vlaneseq
  %v1042 = vshrl.u32 %v1041, 7
  %v1043 = vsub.s32 0, %v1042
  %v1044 = vrot.slane %v997, %v1043
  %v1046 = vadd.f32 %v1004, %v1044
  %v1047 = vadd.f32 %v1005, %v1044
  %v1048 = vadd.f32 %v1006, %v1044
  %v1049 = vadd.f32 %v1007, %v1044
  %v1050 = vadd.f32 %v1008, %v1044
  %v1051 = vadd.f32 %v1009, %v1044
  %v1052 = vadd.f32 %v1010, %v1044
  %v1053 = vadd.f32 %v1011, %v1044
  %v1054 = vadd.f32 %v1012, %v1044
  %v1055 = vadd.f32 %v1013, %v1044
  %v1056 = vadd.f32 %v1014, %v1044
  %v1057 = vadd.f32 %v1015, %v1044
  %v1058 = vadd.f32 %v1016, %v1044
  %v1059 = vadd.f32 %v1017, %v1044
  %v1060 = vadd.f32 %v1018, %v1044
  %v1061 = vadd.f32 %v1019, %v1044
  %v1062 = vadd.f32 %v1020, %v1044
  %v1063 = vadd.f32 %v1021, %v1044
  %v1064 = vadd.f32 %v1022, %v1044
  %v1065 = vadd.f32 %v1023, %v1044
  %v1066 = vadd.f32 %v1024, %v1044
  %v1067 = vadd.f32 %v1025, %v1044
  %v1068 = vadd.f32 %v1026, %v1044
  %v1069 = vadd.f32 %v1027, %v1044
  %v1070 = vadd.f32 %v1028, %v1044
  %v1071 = vadd.f32 %v1029, %v1044
  %v1072 = vadd.f32 %v1030, %v1044
  %v1073 = vadd.f32 %v1031, %v1044
  %v1074 = vadd.f32 %v1032, %v1044
  %v1075 = vadd.f32 %v1033, %v1044
  %v1076 = vadd.f32 %v1034, %v1044
  %v1077 = vadd.f32 %v1035, %v1044
  %v1078 = vadd.f32 %v1036, %v1044
  %v1079 = vadd.f32 %v1037, %v1044
  %v1080 = vadd.f32 %v1038, %v1044
  %v1081 = vadd.f32 %v1039, %v1044
  %v1082 = vmax.f32 %v1046, 0.0
  %v1083 = vmax.f32 %v1047, 0.0
  %v1084 = vmax.f32 %v1048, 0.0
  %v1085 = vmax.f32 %v1049, 0.0
  %v1086 = vmax.f32 %v1050, 0.0
  %v1087 = vmax.f32 %v1051, 0.0
  %v1088 = vmax.f32 %v1052, 0.0
  %v1089 = vmax.f32 %v1053, 0.0
  %v1090 = vmax.f32 %v1054, 0.0
  %v1091 = vmax.f32 %v1055, 0.0
  %v1092 = vmax.f32 %v1056, 0.0
  %v1093 = vmax.f32 %v1057, 0.0
  %v1094 = vmax.f32 %v1058, 0.0
  %v1095 = vmax.f32 %v1059, 0.0
  %v1096 = vmax.f32 %v1060, 0.0
  %v1097 = vmax.f32 %v1061, 0.0
  %v1098 = vmax.f32 %v1062, 0.0
  %v1099 = vmax.f32 %v1063, 0.0
  %v1100 = vmax.f32 %v1064, 0.0
  %v1101 = vmax.f32 %v1065, 0.0
  %v1102 = vmax.f32 %v1066, 0.0
  %v1103 = vmax.f32 %v1067, 0.0
  %v1104 = vmax.f32 %v1068, 0.0
  %v1105 = vmax.f32 %v1069, 0.0
  %v1106 = vmax.f32 %v1070, 0.0
  %v1107 = vmax.f32 %v1071, 0.0
  %v1108 = vmax.f32 %v1072, 0.0
  %v1109 = vmax.f32 %v1073, 0.0
  %v1110 = vmax.f32 %v1074, 0.0
  %v1111 = vmax.f32 %v1075, 0.0
  %v1112 = vmax.f32 %v1076, 0.0
  %v1113 = vmax.f32 %v1077, 0.0
  %v1114 = vmax.f32 %v1078, 0.0
  %v1115 = vmax.f32 %v1079, 0.0
  %v1116 = vmax.f32 %v1080, 0.0
  %v1117 = vmax.f32 %v1081, 0.0
  %1118 = vst.msk [vmem:[%s4] sm:$0xff] %vm197, %v1082
  %1119 = vst.msk [vmem:[%s4 + $0x8] sm:$0xff] %vm197, %v1083
  %1120 = vst.msk [vmem:[%s4 + $0x10] sm:$0xff] %vm197, %v1084
  %1121 = vst.msk [vmem:[%s4 + $0x18] sm:$0xff] %vm197, %v1085
  %1122 = vst.msk [vmem:[%s4 + $0x20] sm:$0xff] %vm197, %v1086
  %1123 = vst.msk [vmem:[%s4 + $0x28] sm:$0xff] %vm197, %v1087
  %1124 = vst.msk [vmem:[%s4 + $0x30] sm:$0xff] %vm197, %v1088
  %1125 = vst.msk [vmem:[%s4 + $0x38] sm:$0xff] %vm197, %v1089
  %1126 = vst.msk [vmem:[%s4 + $0x40] sm:$0xff] %vm197, %v1090
  %1127 = vst.msk [vmem:[%s4 + $0x48] sm:$0xff] %vm197, %v1091
  %1128 = vst.msk [vmem:[%s4 + $0x50] sm:$0xff] %vm197, %v1092
  %1129 = vst.msk [vmem:[%s4 + $0x58] sm:$0xff] %vm197, %v1093
  %1130 = vst.msk [vmem:[%s4 + $0x60] sm:$0xff] %vm197, %v1094
  %1131 = vst.msk [vmem:[%s4 + $0x68] sm:$0xff] %vm197, %v1095
  %1132 = vst.msk [vmem:[%s4 + $0x70] sm:$0xff] %vm197, %v1096
  %1133 = vst.msk [vmem:[%s4 + $0x78] sm:$0xff] %vm197, %v1097
  %1134 = vst.msk [vmem:[%s4 + $0x80] sm:$0xff] %vm197, %v1098
  %1135 = vst.msk [vmem:[%s4 + $0x88] sm:$0xff] %vm197, %v1099
  %1136 = vst.msk [vmem:[%s4 + $0x90] sm:$0xff] %vm197, %v1100
  %1137 = vst.msk [vmem:[%s4 + $0x98] sm:$0xff] %vm197, %v1101
  %1138 = vst.msk [vmem:[%s4 + $0xa0] sm:$0xff] %vm197, %v1102
  %1139 = vst.msk [vmem:[%s4 + $0xa8] sm:$0xff] %vm197, %v1103
  %1140 = vst.msk [vmem:[%s4 + $0xb0] sm:$0xff] %vm197, %v1104
  %1141 = vst.msk [vmem:[%s4 + $0xb8] sm:$0xff] %vm197, %v1105
  %1142 = vst.msk [vmem:[%s4 + $0xc0] sm:$0xff] %vm197, %v1106
  %1143 = vst.msk [vmem:[%s4 + $0xc8] sm:$0xff] %vm197, %v1107
  %1144 = vst.msk [vmem:[%s4 + $0xd0] sm:$0xff] %vm197, %v1108
  %1145 = vst.msk [vmem:[%s4 + $0xd8] sm:$0xff] %vm197, %v1109
  %1146 = vst.msk [vmem:[%s4 + $0xe0] sm:$0xff] %vm197, %v1110
  %1147 = vst.msk [vmem:[%s4 + $0xe8] sm:$0xff] %vm197, %v1111
  %1148 = vst.msk [vmem:[%s4 + $0xf0] sm:$0xff] %vm197, %v1112
  %1149 = vst.msk [vmem:[%s4 + $0xf8] sm:$0xff] %vm197, %v1113
  %1150 = vst.msk [vmem:[%s4 + $0x100] sm:$0xff] %vm197, %v1114
  %1151 = vst.msk [vmem:[%s4 + $0x108] sm:$0xff] %vm197, %v1115
  %1152 = vst.msk [vmem:[%s4 + $0x110] sm:$0xff] %vm197, %v1116
  %1153 = vst.msk [vmem:[%s4 + $0x118] sm:$0xff] %vm197, %v1117
  // Predicated region
  $region18: #{gdan_forward.6} parent=0 // pred_check
    _
  $region19: #{gdan_forward.6} parent=0 // pred_check_branch
    %1155 = sbr.rel (0) target = $region21
  $region20: #{gdan_forward.6} parent=0 // pred_region
    _
  $region21: #{gdan_forward.6} parent=0 // pred_fallthru
    _
  // Predicated region
  $region22: #{gdan_forward.6} parent=0 // pred_check
    _
  $region23: #{gdan_forward.6} parent=0 // pred_check_branch
    %1157 = sbr.rel (0) target = $region25
  $region24: #{gdan_forward.6} parent=0 // pred_region
    _
  $region25: #{gdan_forward.6} parent=0 // pred_fallthru
    _

// kernel: gdan_forward.7
$region0: #{gdan_forward.7}
  #allocation0 [shape = 'u32[]', space=smem, size = 0x4, offset = 0x4, fixed_abs, tag = 'smem constant byte address 0x4 - core index']
  #allocation1 [shape = 'u32[144,128]{1,0:T(1,128)}', space=vmem, size = 0x12000, scoped, tag = 'internal scratch']
  %s0 = inlined_call_operand.vmem [shape: f32[72,288], index: 0, kind: input, shape index: {}]
  %s1 = inlined_call_operand.vmem [shape: bf16[288,64], index: 1, kind: input, shape index: {}]
  %s2 = inlined_call_operand.vmem [shape: f32[1,64], index: 2, kind: input, shape index: {}]
  %s3 = inlined_call_operand.vmem [shape: f32[1,64], index: 3, kind: input, shape index: {}]
  %s4 = inlined_call_operand.vmem [shape: f32[72,64], index: 4, kind: output, shape index: {}]
  %s5 = sld [smem:[#allocation0]]
  $region26: #{gdan_forward.7} parent=0
    _
  %s7 = ssub.s32 1, %s5
  %s8 = scalar_select 0, %s7, %s5
  // Predicated region
  $region2: #{gdan_forward.7} parent=0 // pred_check
    _
  $region3: #{gdan_forward.7} parent=0 // pred_check_branch
    %10 = sbr.rel (0) target = $region5
  $region4: #{gdan_forward.7} parent=0 // pred_region
    _
  $region5: #{gdan_forward.7} parent=0 // pred_fallthru
    _
  // Predicated region
  $region6: #{gdan_forward.7} parent=0 // pred_check
    _
  $region7: #{gdan_forward.7} parent=0 // pred_check_branch
    %12 = sbr.rel (0) target = $region9
  $region8: #{gdan_forward.7} parent=0 // pred_region
    _
  $region9: #{gdan_forward.7} parent=0 // pred_fallthru
    _
  // Predicated region
  $region10: #{gdan_forward.7} parent=0 // pred_check
    _
  $region11: #{gdan_forward.7} parent=0 // pred_check_branch
    %14 = sbr.rel (0) target = $region13
  $region12: #{gdan_forward.7} parent=0 // pred_region
    _
  $region13: #{gdan_forward.7} parent=0 // pred_fallthru
    _
  // Predicated region
  $region14: #{gdan_forward.7} parent=0 // pred_check
    _
  $region15: #{gdan_forward.7} parent=0 // pred_check_branch
    %16 = sbr.rel (0) target = $region17
  $region16: #{gdan_forward.7} parent=0 // pred_region
    _
  $region17: #{gdan_forward.7} parent=0 // pred_fallthru
    _
  %v17 = vld [vmem:[%s0] sm:$0xff]
  %v18 = vld [vmem:[%s0 + $0x8] sm:$0xff]
  %v19 = vld [vmem:[%s0 + $0x10] sm:$0xff]
  %v20 = vld [vmem:[%s0 + $0x18] sm:$0xff]
  %v21 = vld [vmem:[%s0 + $0x20] sm:$0xff]
  %v22 = vld [vmem:[%s0 + $0x28] sm:$0xff]
  %v23 = vld [vmem:[%s0 + $0x30] sm:$0xff]
  %v24 = vld [vmem:[%s0 + $0x38] sm:$0xff]
  %v25 = vld [vmem:[%s0 + $0x40] sm:$0xff]
  %v26 = vld [vmem:[%s0 + $0x48] sm:$0xff]
  %v27 = vld [vmem:[%s0 + $0x50] sm:$0xff]
  %v28 = vld [vmem:[%s0 + $0x58] sm:$0xff]
  %v29 = vld [vmem:[%s0 + $0x60] sm:$0xff]
  %v30 = vld [vmem:[%s0 + $0x68] sm:$0xff]
  %v31 = vld [vmem:[%s0 + $0x70] sm:$0xff]
  %v32 = vld [vmem:[%s0 + $0x78] sm:$0xff]
  %v33 = vld [vmem:[%s0 + $0x80] sm:$0xff]
  %v34 = vld [vmem:[%s0 + $0x88] sm:$0xff]
  %v35 = vld [vmem:[%s0 + $0x90] sm:$0xff]
  %v36 = vld [vmem:[%s0 + $0x98] sm:$0xff]
  %v37 = vld [vmem:[%s0 + $0xa0] sm:$0xff]
  %v38 = vld [vmem:[%s0 + $0xa8] sm:$0xff]
  %v39 = vld [vmem:[%s0 + $0xb0] sm:$0xff]
  %v40 = vld [vmem:[%s0 + $0xb8] sm:$0xff]
  %v41 = vld [vmem:[%s0 + $0xc0] sm:$0xff]
  %v42 = vld [vmem:[%s0 + $0xc8] sm:$0xff]
  %v43 = vld [vmem:[%s0 + $0xd0] sm:$0xff]
  %v44 = vld [vmem:[%s1] sm:$0xf]
  %v45 = vld [vmem:[%s1 + $0x4] sm:$0xf]
  %v46 = vld [vmem:[%s1 + $0x8] sm:$0xf]
  %v47 = vld [vmem:[%s1 + $0xc] sm:$0xf]
  %v48 = vld [vmem:[%s1 + $0x10] sm:$0xf]
  %v49 = vld [vmem:[%s1 + $0x14] sm:$0xf]
  %v50 = vld [vmem:[%s1 + $0x18] sm:$0xf]
  %v51 = vld [vmem:[%s1 + $0x1c] sm:$0xf]
  %v52 = vld [vmem:[%s1 + $0x20] sm:$0xf]
  %v53 = vld [vmem:[%s1 + $0x24] sm:$0xf]
  %v54 = vld [vmem:[%s1 + $0x28] sm:$0xf]
  %v55 = vld [vmem:[%s1 + $0x2c] sm:$0xf]
  %v56 = vld [vmem:[%s1 + $0x30] sm:$0xf]
  %v57 = vld [vmem:[%s1 + $0x34] sm:$0xf]
  %v58 = vld [vmem:[%s1 + $0x38] sm:$0xf]
  %v59 = vld [vmem:[%s1 + $0x3c] sm:$0xf]
  %v60 = vld [vmem:[%s1 + $0x40] sm:$0xf]
  %v61 = vld [vmem:[%s1 + $0x44] sm:$0xf]
  %v62 = vld [vmem:[%s1 + $0x48] sm:$0xf]
  %v63 = vld [vmem:[%s1 + $0x4c] sm:$0xf]
  %v64 = vld [vmem:[%s1 + $0x50] sm:$0xf]
  %v65 = vld [vmem:[%s1 + $0x54] sm:$0xf]
  %v66 = vld [vmem:[%s1 + $0x58] sm:$0xf]
  %v67 = vld [vmem:[%s1 + $0x5c] sm:$0xf]
  %v68 = vld [vmem:[%s1 + $0x60] sm:$0xf]
  %v69 = vld [vmem:[%s1 + $0x64] sm:$0xf]
  %v70 = vld [vmem:[%s1 + $0x68] sm:$0xf]
  %v71 = vld [vmem:[%s1 + $0x6c] sm:$0xf]
  %v72 = vld [vmem:[%s1 + $0x70] sm:$0xf]
  %v73 = vld [vmem:[%s1 + $0x74] sm:$0xf]
  %v74 = vld [vmem:[%s1 + $0x78] sm:$0xf]
  %v75 = vld [vmem:[%s1 + $0x7c] sm:$0xf]
  %v76 = vld [vmem:[%s1 + $0x80] sm:$0xf]
  %v77 = vld [vmem:[%s1 + $0x84] sm:$0xf]
  %v78 = vld [vmem:[%s1 + $0x88] sm:$0xf]
  %v79 = vld [vmem:[%s1 + $0x8c] sm:$0xf]
  %v80 = vunpack.c.l.bf16 %v44
  %v81 = vunpack.c.l.bf16 %v45
  %v82 = vunpack.c.l.bf16 %v46
  %v83 = vunpack.c.l.bf16 %v47
  %v84 = vunpack.c.l.bf16 %v48
  %v85 = vunpack.c.l.bf16 %v49
  %v86 = vunpack.c.l.bf16 %v50
  %v87 = vunpack.c.l.bf16 %v51
  %v88 = vunpack.c.l.bf16 %v52
  %v89 = vunpack.c.l.bf16 %v53
  %v90 = vunpack.c.l.bf16 %v54
  %v91 = vunpack.c.l.bf16 %v55
  %v92 = vunpack.c.l.bf16 %v56
  %v93 = vunpack.c.l.bf16 %v57
  %v94 = vunpack.c.l.bf16 %v58
  %v95 = vunpack.c.l.bf16 %v59
  %v96 = vunpack.c.l.bf16 %v60
  %v97 = vunpack.c.l.bf16 %v61
  %v98 = vunpack.c.l.bf16 %v62
  %v99 = vunpack.c.l.bf16 %v63
  %v100 = vunpack.c.l.bf16 %v64
  %v101 = vunpack.c.l.bf16 %v65
  %v102 = vunpack.c.l.bf16 %v66
  %v103 = vunpack.c.l.bf16 %v67
  %v104 = vunpack.c.l.bf16 %v68
  %v105 = vunpack.c.l.bf16 %v69
  %v106 = vunpack.c.l.bf16 %v70
  %v107 = vunpack.c.l.bf16 %v71
  %v108 = vunpack.c.l.bf16 %v72
  %v109 = vunpack.c.l.bf16 %v73
  %v110 = vunpack.c.l.bf16 %v74
  %v111 = vunpack.c.l.bf16 %v75
  %v112 = vunpack.c.l.bf16 %v76
  %v113 = vunpack.c.l.bf16 %v77
  %v114 = vunpack.c.l.bf16 %v78
  %v115 = vunpack.c.l.bf16 %v79
  %vm116 = vcmask 261120
  %v118 = vsel %vm116, %v19, 0
  %v121 = vsel %vm116, %v22, 0
  %v124 = vsel %vm116, %v25, 0
  %v127 = vsel %vm116, %v28, 0
  %v130 = vsel %vm116, %v31, 0
  %v133 = vsel %vm116, %v34, 0
  %v136 = vsel %vm116, %v37, 0
  %v139 = vsel %vm116, %v40, 0
  %v142 = vsel %vm116, %v43, 0
  %144 = vmatprep.subr.mxu0 0.0
  %145 = vmatpush1.msra.mxu0 %v95
  %146 = vmatprep.subr.mxu0 0.0
  %147 = vmatpush1.msra.mxu0 %v94
  %148 = vmatprep.subr.mxu0 0.0
  %149 = vmatpush1.msra.mxu0 %v93
  %150 = vmatprep.subr.mxu0 0.0
  %151 = vmatpush1.msra.mxu0 %v92
  %152 = vmatprep.subr.mxu0 0.0
  %153 = vmatpush1.msra.mxu0 %v91
  %154 = vmatprep.subr.mxu0 0.0
  %155 = vmatpush1.msra.mxu0 %v90
  %156 = vmatprep.subr.mxu0 0.0
  %157 = vmatpush1.msra.mxu0 %v89
  %158 = vmatprep.subr.mxu0 0.0
  %159 = vmatpush1.msra.mxu0 %v88
  %160 = vmatprep.subr.mxu0 0.0
  %161 = vmatpush1.msra.mxu0 %v87
  %162 = vmatprep.subr.mxu0 0.0
  %163 = vmatpush1.msra.mxu0 %v86
  %164 = vmatprep.subr.mxu0 0.0
  %165 = vmatpush1.msra.mxu0 %v85
  %166 = vmatprep.subr.mxu0 0.0
  %167 = vmatpush1.msra.mxu0 %v84
  %168 = vmatprep.subr.mxu0 0.0
  %169 = vmatpush1.msra.mxu0 %v83
  %170 = vmatprep.subr.mxu0 0.0
  %171 = vmatpush1.msra.mxu0 %v82
  %172 = vmatprep.subr.mxu0 0.0
  %173 = vmatpush1.msra.mxu0 %v81
  %174 = vmatprep.subr.mxu0 0.0
  %175 = vmatpush1.msra.mxu0 %v80
  %176 = vmatprep.subr.mxu0 0.0
  %177 = vmatpush2.msra.mxu0 %v111
  %178 = vmatprep.subr.mxu0 0.0
  %179 = vmatpush2.msra.mxu0 %v110
  %180 = vmatprep.subr.mxu0 0.0
  %181 = vmatpush2.msra.mxu0 %v109
  %182 = vmatprep.subr.mxu0 0.0
  %183 = vmatpush2.msra.mxu0 %v108
  %184 = vmatprep.subr.mxu0 0.0
  %185 = vmatpush2.msra.mxu0 %v107
  %186 = vmatprep.subr.mxu0 0.0
  %187 = vmatpush2.msra.mxu0 %v106
  %188 = vmatprep.subr.mxu0 0.0
  %189 = vmatpush2.msra.mxu0 %v105
  %190 = vmatprep.subr.mxu0 0.0
  %191 = vmatpush2.msra.mxu0 %v104
  %192 = vmatprep.subr.mxu0 0.0
  %193 = vmatpush2.msra.mxu0 %v103
  %194 = vmatprep.subr.mxu0 0.0
  %195 = vmatpush2.msra.mxu0 %v102
  %196 = vmatprep.subr.mxu0 0.0
  %197 = vmatpush2.msra.mxu0 %v101
  %198 = vmatprep.subr.mxu0 0.0
  %199 = vmatpush2.msra.mxu0 %v100
  %200 = vmatprep.subr.mxu0 0.0
  %201 = vmatpush2.msra.mxu0 %v99
  %202 = vmatprep.subr.mxu0 0.0
  %203 = vmatpush2.msra.mxu0 %v98
  %204 = vmatprep.subr.mxu0 0.0
  %205 = vmatpush2.msra.mxu0 %v97
  %206 = vmatprep.subr.mxu0 0.0
  %207 = vmatpush2.msra.mxu0 %v96
  %208 = vmatprep.mubr.f32.mxu0 %v18
  %209 = vmatmul.mubr.f32.gmra.mxu0 %v17
  %v210 = vpop.f32.mrf.mxu0
  %v211 = vadd.f32 0.0, %v210
  %v212 = vpop.f32.mrf.mxu0
  %213 = vmatprep.mubr.f32.mxu0 %v21
  %214 = vmatmul.mubr.f32.gmra.mxu0 %v20
  %v215 = vpop.f32.mrf.mxu0
  %v216 = vadd.f32 0.0, %v215
  %v217 = vpop.f32.mrf.mxu0
  %218 = vmatprep.mubr.f32.mxu0 %v24
  %219 = vmatmul.mubr.f32.gmra.mxu0 %v23
  %v220 = vpop.f32.mrf.mxu0
  %v221 = vadd.f32 0.0, %v220
  %v222 = vpop.f32.mrf.mxu0
  %223 = vmatprep.mubr.f32.mxu0 %v27
  %224 = vmatmul.mubr.f32.gmra.mxu0 %v26
  %v225 = vpop.f32.mrf.mxu0
  %v226 = vadd.f32 0.0, %v225
  %v227 = vpop.f32.mrf.mxu0
  %228 = vmatprep.mubr.f32.mxu0 %v30
  %229 = vmatmul.mubr.f32.gmra.mxu0 %v29
  %v230 = vpop.f32.mrf.mxu0
  %v231 = vadd.f32 0.0, %v230
  %v232 = vpop.f32.mrf.mxu0
  %233 = vmatprep.mubr.f32.mxu0 %v33
  %234 = vmatmul.mubr.f32.gmra.mxu0 %v32
  %v235 = vpop.f32.mrf.mxu0
  %v236 = vadd.f32 0.0, %v235
  %v237 = vpop.f32.mrf.mxu0
  %238 = vmatprep.mubr.f32.mxu0 %v36
  %239 = vmatmul.mubr.f32.gmra.mxu0 %v35
  %v240 = vpop.f32.mrf.mxu0
  %v241 = vadd.f32 0.0, %v240
  %v242 = vpop.f32.mrf.mxu0
  %243 = vmatprep.mubr.f32.mxu0 %v39
  %244 = vmatmul.mubr.f32.gmra.mxu0 %v38
  %v245 = vpop.f32.mrf.mxu0
  %v246 = vadd.f32 0.0, %v245
  %v247 = vpop.f32.mrf.mxu0
  %248 = vmatprep.mubr.f32.mxu0 %v42
  %249 = vmatmul.mubr.f32.gmra.mxu0 %v41
  %v250 = vpop.f32.mrf.mxu0
  %v251 = vadd.f32 0.0, %v250
  %v252 = vpop.f32.mrf.mxu0
  %253 = vdwg.mxu0
  %254 = vmatprep.subr.mxu0 0.0
  %255 = vmatpush1.msra.mxu0 0.0
  %256 = vmatprep.subr.mxu0 0.0
  %257 = vmatpush1.msra.mxu0 0.0
  %258 = vmatprep.subr.mxu0 0.0
  %259 = vmatpush1.msra.mxu0 0.0
  %260 = vmatprep.subr.mxu0 0.0
  %261 = vmatpush1.msra.mxu0 0.0
  %262 = vmatprep.subr.mxu0 0.0
  %263 = vmatpush1.msra.mxu0 0.0
  %264 = vmatprep.subr.mxu0 0.0
  %265 = vmatpush1.msra.mxu0 0.0
  %266 = vmatprep.subr.mxu0 0.0
  %267 = vmatpush1.msra.mxu0 0.0
  %268 = vmatprep.subr.mxu0 0.0
  %269 = vmatpush1.msra.mxu0 0.0
  %270 = vmatprep.subr.mxu0 0.0
  %271 = vmatpush1.msra.mxu0 0.0
  %272 = vmatprep.subr.mxu0 0.0
  %273 = vmatpush1.msra.mxu0 0.0
  %274 = vmatprep.subr.mxu0 0.0
  %275 = vmatpush1.msra.mxu0 0.0
  %276 = vmatprep.subr.mxu0 0.0
  %277 = vmatpush1.msra.mxu0 0.0
  %278 = vmatprep.subr.mxu0 0.0
  %279 = vmatpush1.msra.mxu0 %v115
  %280 = vmatprep.subr.mxu0 0.0
  %281 = vmatpush1.msra.mxu0 %v114
  %282 = vmatprep.subr.mxu0 0.0
  %283 = vmatpush1.msra.mxu0 %v113
  %284 = vmatprep.subr.mxu0 0.0
  %285 = vmatpush1.msra.mxu0 %v112
  %286 = vmatprep.subr.mxu0 0.0
  %287 = vmatpush2.msra.mxu0 0.0
  %288 = vmatprep.subr.mxu0 0.0
  %289 = vmatpush2.msra.mxu0 0.0
  %290 = vmatprep.subr.mxu0 0.0
  %291 = vmatpush2.msra.mxu0 0.0
  %292 = vmatprep.subr.mxu0 0.0
  %293 = vmatpush2.msra.mxu0 0.0
  %294 = vmatprep.subr.mxu0 0.0
  %295 = vmatpush2.msra.mxu0 0.0
  %296 = vmatprep.subr.mxu0 0.0
  %297 = vmatpush2.msra.mxu0 0.0
  %298 = vmatprep.subr.mxu0 0.0
  %299 = vmatpush2.msra.mxu0 0.0
  %300 = vmatprep.subr.mxu0 0.0
  %301 = vmatpush2.msra.mxu0 0.0
  %302 = vmatprep.subr.mxu0 0.0
  %303 = vmatpush2.msra.mxu0 0.0
  %304 = vmatprep.subr.mxu0 0.0
  %305 = vmatpush2.msra.mxu0 0.0
  %306 = vmatprep.subr.mxu0 0.0
  %307 = vmatpush2.msra.mxu0 0.0
  %308 = vmatprep.subr.mxu0 0.0
  %309 = vmatpush2.msra.mxu0 0.0
  %310 = vmatprep.subr.mxu0 0.0
  %311 = vmatpush2.msra.mxu0 0.0
  %312 = vmatprep.subr.mxu0 0.0
  %313 = vmatpush2.msra.mxu0 0.0
  %314 = vmatprep.subr.mxu0 0.0
  %315 = vmatpush2.msra.mxu0 0.0
  %316 = vmatprep.subr.mxu0 0.0
  %317 = vmatpush2.msra.mxu0 0.0
  %318 = vmatprep.mubr.f32.mxu0 0.0
  %319 = vmatmul.mubr.f32.gmra.mxu0 %v118
  %v320 = vpop.f32.mrf.mxu0
  %v321 = vadd.f32 %v211, %v320
  %v322 = vpop.f32.mrf.mxu0
  %323 = vmatprep.mubr.f32.mxu0 0.0
  %324 = vmatmul.mubr.f32.gmra.mxu0 %v121
  %v325 = vpop.f32.mrf.mxu0
  %v326 = vadd.f32 %v216, %v325
  %v327 = vpop.f32.mrf.mxu0
  %328 = vmatprep.mubr.f32.mxu0 0.0
  %329 = vmatmul.mubr.f32.gmra.mxu0 %v124
  %v330 = vpop.f32.mrf.mxu0
  %v331 = vadd.f32 %v221, %v330
  %v332 = vpop.f32.mrf.mxu0
  %333 = vmatprep.mubr.f32.mxu0 0.0
  %334 = vmatmul.mubr.f32.gmra.mxu0 %v127
  %v335 = vpop.f32.mrf.mxu0
  %v336 = vadd.f32 %v226, %v335
  %v337 = vpop.f32.mrf.mxu0
  %338 = vmatprep.mubr.f32.mxu0 0.0
  %339 = vmatmul.mubr.f32.gmra.mxu0 %v130
  %v340 = vpop.f32.mrf.mxu0
  %v341 = vadd.f32 %v231, %v340
  %v342 = vpop.f32.mrf.mxu0
  %343 = vmatprep.mubr.f32.mxu0 0.0
  %344 = vmatmul.mubr.f32.gmra.mxu0 %v133
  %v345 = vpop.f32.mrf.mxu0
  %v346 = vadd.f32 %v236, %v345
  %v347 = vpop.f32.mrf.mxu0
  %348 = vmatprep.mubr.f32.mxu0 0.0
  %349 = vmatmul.mubr.f32.gmra.mxu0 %v136
  %v350 = vpop.f32.mrf.mxu0
  %v351 = vadd.f32 %v241, %v350
  %v352 = vpop.f32.mrf.mxu0
  %353 = vmatprep.mubr.f32.mxu0 0.0
  %354 = vmatmul.mubr.f32.gmra.mxu0 %v139
  %v355 = vpop.f32.mrf.mxu0
  %v356 = vadd.f32 %v246, %v355
  %v357 = vpop.f32.mrf.mxu0
  %358 = vmatprep.mubr.f32.mxu0 0.0
  %359 = vmatmul.mubr.f32.gmra.mxu0 %v142
  %v360 = vpop.f32.mrf.mxu0
  %v361 = vadd.f32 %v251, %v360
  %v362 = vpop.f32.mrf.mxu0
  %363 = vdwg.mxu0
  %vm364 = vcmask 523264
  %v365 = vsel %vm364, %v321, 0.0
  %v366 = vsel %vm364, %v326, 0.0
  %v367 = vadd.f32 %v365, %v366
  %v368 = vsel %vm364, %v331, 0.0
  %v369 = vadd.f32 %v367, %v368
  %v370 = vsel %vm364, %v336, 0.0
  %v371 = vadd.f32 %v369, %v370
  %v372 = vsel %vm364, %v341, 0.0
  %v373 = vadd.f32 %v371, %v372
  %v374 = vsel %vm364, %v346, 0.0
  %v375 = vadd.f32 %v373, %v374
  %v376 = vsel %vm364, %v351, 0.0
  %v377 = vadd.f32 %v375, %v376
  %v378 = vsel %vm364, %v356, 0.0
  %v379 = vadd.f32 %v377, %v378
  %v380 = vsel %vm364, %v361, 0.0
  %v381 = vadd.f32 %v379, %v380
  %v382 = vrot.slane %v381, 4
  %v383 = vadd.f32 %v381, %v382
  %v384 = vrot.slane %v383, 2
  %v385 = vadd.f32 %v383, %v384
  %v386 = vrot.slane %v385, 1
  %v387 = vadd.f32 %v385, %v386
  %v388 = vmul.f32 %v321, %v321
  %v389 = vmul.f32 %v326, %v326
  %v390 = vmul.f32 %v331, %v331
  %v391 = vmul.f32 %v336, %v336
  %v392 = vmul.f32 %v341, %v341
  %v393 = vmul.f32 %v346, %v346
  %v394 = vmul.f32 %v351, %v351
  %v395 = vmul.f32 %v356, %v356
  %v396 = vmul.f32 %v361, %v361
  %v397 = vsel %vm364, %v388, 0.0
  %v398 = vsel %vm364, %v389, 0.0
  %v399 = vadd.f32 %v397, %v398
  %v400 = vsel %vm364, %v390, 0.0
  %v401 = vadd.f32 %v399, %v400
  %v402 = vsel %vm364, %v391, 0.0
  %v403 = vadd.f32 %v401, %v402
  %v404 = vsel %vm364, %v392, 0.0
  %v405 = vadd.f32 %v403, %v404
  %v406 = vsel %vm364, %v393, 0.0
  %v407 = vadd.f32 %v405, %v406
  %v408 = vsel %vm364, %v394, 0.0
  %v409 = vadd.f32 %v407, %v408
  %v410 = vsel %vm364, %v395, 0.0
  %v411 = vadd.f32 %v409, %v410
  %v412 = vsel %vm364, %v396, 0.0
  %v413 = vadd.f32 %v411, %v412
  %v414 = vrot.slane %v413, 4
  %v415 = vadd.f32 %v413, %v414
  %v416 = vrot.slane %v415, 2
  %v417 = vadd.f32 %v415, %v416
  %v418 = vrot.slane %v417, 1
  %v419 = vadd.f32 %v417, %v418
  %v420 = vmul.f32 %v387, 0.013888889
  %v421 = vmul.f32 %v419, 0.013888889
  %v422 = vmul.f32 %v420, %v420
  %v423 = vsub.f32 %v421, %v422
  %v424 = vmax.f32 %v423, 0.0
  %v425 = vld [vmem:[%s2] sm:$0x1]
  %v426 = vadd.f32 %v424, 1e-05
  %v427 = vrsqrt.pop %v426
  %v428 = vmul.f32 %v425, %v427
  %v429 = vld [vmem:[%s3] sm:$0x1]
  %v430 = vmul.f32 %v420, %v428
  %v431 = vsub.f32 %v429, %v430
  %v433 = vlaneseq
  %v434 = vshrl.u32 %v433, 7
  %v435 = vsub.s32 0, %v434
  %v436 = vrot.slane %v428, %v435
  %v438 = vmul.f32 %v321, %v436
  %v439 = vmul.f32 %v326, %v436
  %v440 = vmul.f32 %v331, %v436
  %v441 = vmul.f32 %v336, %v436
  %v442 = vmul.f32 %v341, %v436
  %v443 = vmul.f32 %v346, %v436
  %v444 = vmul.f32 %v351, %v436
  %v445 = vmul.f32 %v356, %v436
  %v446 = vmul.f32 %v361, %v436
  %v448 = vlaneseq
  %v449 = vshrl.u32 %v448, 7
  %v450 = vsub.s32 0, %v449
  %v451 = vrot.slane %v431, %v450
  %v453 = vadd.f32 %v438, %v451
  %v454 = vadd.f32 %v439, %v451
  %v455 = vadd.f32 %v440, %v451
  %v456 = vadd.f32 %v441, %v451
  %v457 = vadd.f32 %v442, %v451
  %v458 = vadd.f32 %v443, %v451
  %v459 = vadd.f32 %v444, %v451
  %v460 = vadd.f32 %v445, %v451
  %v461 = vadd.f32 %v446, %v451
  %v462 = vmax.f32 %v453, 0.0
  %v463 = vmax.f32 %v454, 0.0
  %v464 = vmax.f32 %v455, 0.0
  %v465 = vmax.f32 %v456, 0.0
  %v466 = vmax.f32 %v457, 0.0
  %v467 = vmax.f32 %v458, 0.0
  %v468 = vmax.f32 %v459, 0.0
  %v469 = vmax.f32 %v460, 0.0
  %v470 = vmax.f32 %v461, 0.0
  %471 = vst.msk [vmem:[%s4] sm:$0xff] %vm364, %v462
  %472 = vst.msk [vmem:[%s4 + $0x8] sm:$0xff] %vm364, %v463
  %473 = vst.msk [vmem:[%s4 + $0x10] sm:$0xff] %vm364, %v464
  %474 = vst.msk [vmem:[%s4 + $0x18] sm:$0xff] %vm364, %v465
  %475 = vst.msk [vmem:[%s4 + $0x20] sm:$0xff] %vm364, %v466
  %476 = vst.msk [vmem:[%s4 + $0x28] sm:$0xff] %vm364, %v467
  %477 = vst.msk [vmem:[%s4 + $0x30] sm:$0xff] %vm364, %v468
  %478 = vst.msk [vmem:[%s4 + $0x38] sm:$0xff] %vm364, %v469
  %479 = vst.msk [vmem:[%s4 + $0x40] sm:$0xff] %vm364, %v470
  // Predicated region
  $region18: #{gdan_forward.7} parent=0 // pred_check
    _
  $region19: #{gdan_forward.7} parent=0 // pred_check_branch
    %481 = sbr.rel (0) target = $region21
  $region20: #{gdan_forward.7} parent=0 // pred_region
    _
  $region21: #{gdan_forward.7} parent=0 // pred_fallthru
    _
  // Predicated region
  $region22: #{gdan_forward.7} parent=0 // pred_check
    _
  $region23: #{gdan_forward.7} parent=0 // pred_check_branch
    %483 = sbr.rel (0) target = $region25
  $region24: #{gdan_forward.7} parent=0 // pred_region
    _
  $region25: #{gdan_forward.7} parent=0 // pred_fallthru
    _

// kernel: gdan_forward.8
$region0: #{gdan_forward.8}
  #allocation0 [shape = 'u32[]', space=smem, size = 0x4, offset = 0x4, fixed_abs, tag = 'smem constant byte address 0x4 - core index']
  #allocation1 [shape = 'u32[144,128]{1,0:T(1,128)}', space=vmem, size = 0x12000, scoped, tag = 'internal scratch']
  %s0 = inlined_call_operand.vmem [shape: f32[18,576], index: 0, kind: input, shape index: {}]
  %s1 = inlined_call_operand.vmem [shape: bf16[576,64], index: 1, kind: input, shape index: {}]
  %s2 = inlined_call_operand.vmem [shape: f32[1,64], index: 2, kind: input, shape index: {}]
  %s3 = inlined_call_operand.vmem [shape: f32[1,64], index: 3, kind: input, shape index: {}]
  %s4 = inlined_call_operand.vmem [shape: f32[18,64], index: 4, kind: output, shape index: {}]
  %s5 = sld [smem:[#allocation0]]
  $region26: #{gdan_forward.8} parent=0
    _
  %s7 = ssub.s32 1, %s5
  %s8 = scalar_select 0, %s7, %s5
  // Predicated region
  $region2: #{gdan_forward.8} parent=0 // pred_check
    _
  $region3: #{gdan_forward.8} parent=0 // pred_check_branch
    %10 = sbr.rel (0) target = $region5
  $region4: #{gdan_forward.8} parent=0 // pred_region
    _
  $region5: #{gdan_forward.8} parent=0 // pred_fallthru
    _
  // Predicated region
  $region6: #{gdan_forward.8} parent=0 // pred_check
    _
  $region7: #{gdan_forward.8} parent=0 // pred_check_branch
    %12 = sbr.rel (0) target = $region9
  $region8: #{gdan_forward.8} parent=0 // pred_region
    _
  $region9: #{gdan_forward.8} parent=0 // pred_fallthru
    _
  // Predicated region
  $region10: #{gdan_forward.8} parent=0 // pred_check
    _
  $region11: #{gdan_forward.8} parent=0 // pred_check_branch
    %14 = sbr.rel (0) target = $region13
  $region12: #{gdan_forward.8} parent=0 // pred_region
    _
  $region13: #{gdan_forward.8} parent=0 // pred_fallthru
    _
  // Predicated region
  $region14: #{gdan_forward.8} parent=0 // pred_check
    _
  $region15: #{gdan_forward.8} parent=0 // pred_check_branch
    %16 = sbr.rel (0) target = $region17
  $region16: #{gdan_forward.8} parent=0 // pred_region
    _
  $region17: #{gdan_forward.8} parent=0 // pred_fallthru
    _
  %v17 = vld [vmem:[%s0] sm:$0xff]
  %v18 = vld [vmem:[%s0 + $0x8] sm:$0xff]
  %v19 = vld [vmem:[%s0 + $0x10] sm:$0xff]
  %v20 = vld [vmem:[%s0 + $0x18] sm:$0xff]
  %v21 = vld [vmem:[%s0 + $0x20] sm:$0xff]
  %v22 = vld [vmem:[%s0 + $0x28] sm:$0xff]
  %v23 = vld [vmem:[%s0 + $0x30] sm:$0xff]
  %v24 = vld [vmem:[%s0 + $0x38] sm:$0xff]
  %v25 = vld [vmem:[%s0 + $0x40] sm:$0xff]
  %v26 = vld [vmem:[%s0 + $0x48] sm:$0xff]
  %v27 = vld [vmem:[%s0 + $0x50] sm:$0x3]
  %v28 = vld [vmem:[%s0 + $0x58] sm:$0x3]
  %v29 = vld [vmem:[%s0 + $0x60] sm:$0x3]
  %v30 = vld [vmem:[%s0 + $0x68] sm:$0x3]
  %v31 = vld [vmem:[%s0 + $0x70] sm:$0x3]
  %v32 = vld [vmem:[%s1] sm:$0xf]
  %v33 = vld [vmem:[%s1 + $0x4] sm:$0xf]
  %v34 = vld [vmem:[%s1 + $0x8] sm:$0xf]
  %v35 = vld [vmem:[%s1 + $0xc] sm:$0xf]
  %v36 = vld [vmem:[%s1 + $0x10] sm:$0xf]
  %v37 = vld [vmem:[%s1 + $0x14] sm:$0xf]
  %v38 = vld [vmem:[%s1 + $0x18] sm:$0xf]
  %v39 = vld [vmem:[%s1 + $0x1c] sm:$0xf]
  %v40 = vld [vmem:[%s1 + $0x20] sm:$0xf]
  %v41 = vld [vmem:[%s1 + $0x24] sm:$0xf]
  %v42 = vld [vmem:[%s1 + $0x28] sm:$0xf]
  %v43 = vld [vmem:[%s1 + $0x2c] sm:$0xf]
  %v44 = vld [vmem:[%s1 + $0x30] sm:$0xf]
  %v45 = vld [vmem:[%s1 + $0x34] sm:$0xf]
  %v46 = vld [vmem:[%s1 + $0x38] sm:$0xf]
  %v47 = vld [vmem:[%s1 + $0x3c] sm:$0xf]
  %v48 = vld [vmem:[%s1 + $0x40] sm:$0xf]
  %v49 = vld [vmem:[%s1 + $0x44] sm:$0xf]
  %v50 = vld [vmem:[%s1 + $0x48] sm:$0xf]
  %v51 = vld [vmem:[%s1 + $0x4c] sm:$0xf]
  %v52 = vld [vmem:[%s1 + $0x50] sm:$0xf]
  %v53 = vld [vmem:[%s1 + $0x54] sm:$0xf]
  %v54 = vld [vmem:[%s1 + $0x58] sm:$0xf]
  %v55 = vld [vmem:[%s1 + $0x5c] sm:$0xf]
  %v56 = vld [vmem:[%s1 + $0x60] sm:$0xf]
  %v57 = vld [vmem:[%s1 + $0x64] sm:$0xf]
  %v58 = vld [vmem:[%s1 + $0x68] sm:$0xf]
  %v59 = vld [vmem:[%s1 + $0x6c] sm:$0xf]
  %v60 = vld [vmem:[%s1 + $0x70] sm:$0xf]
  %v61 = vld [vmem:[%s1 + $0x74] sm:$0xf]
  %v62 = vld [vmem:[%s1 + $0x78] sm:$0xf]
  %v63 = vld [vmem:[%s1 + $0x7c] sm:$0xf]
  %v64 = vld [vmem:[%s1 + $0x80] sm:$0xf]
  %v65 = vld [vmem:[%s1 + $0x84] sm:$0xf]
  %v66 = vld [vmem:[%s1 + $0x88] sm:$0xf]
  %v67 = vld [vmem:[%s1 + $0x8c] sm:$0xf]
  %v68 = vld [vmem:[%s1 + $0x90] sm:$0xf]
  %v69 = vld [vmem:[%s1 + $0x94] sm:$0xf]
  %v70 = vld [vmem:[%s1 + $0x98] sm:$0xf]
  %v71 = vld [vmem:[%s1 + $0x9c] sm:$0xf]
  %v72 = vld [vmem:[%s1 + $0xa0] sm:$0xf]
  %v73 = vld [vmem:[%s1 + $0xa4] sm:$0xf]
  %v74 = vld [vmem:[%s1 + $0xa8] sm:$0xf]
  %v75 = vld [vmem:[%s1 + $0xac] sm:$0xf]
  %v76 = vld [vmem:[%s1 + $0xb0] sm:$0xf]
  %v77 = vld [vmem:[%s1 + $0xb4] sm:$0xf]
  %v78 = vld [vmem:[%s1 + $0xb8] sm:$0xf]
  %v79 = vld [vmem:[%s1 + $0xbc] sm:$0xf]
  %v80 = vld [vmem:[%s1 + $0xc0] sm:$0xf]
  %v81 = vld [vmem:[%s1 + $0xc4] sm:$0xf]
  %v82 = vld [vmem:[%s1 + $0xc8] sm:$0xf]
  %v83 = vld [vmem:[%s1 + $0xcc] sm:$0xf]
  %v84 = vld [vmem:[%s1 + $0xd0] sm:$0xf]
  %v85 = vld [vmem:[%s1 + $0xd4] sm:$0xf]
  %v86 = vld [vmem:[%s1 + $0xd8] sm:$0xf]
  %v87 = vld [vmem:[%s1 + $0xdc] sm:$0xf]
  %v88 = vld [vmem:[%s1 + $0xe0] sm:$0xf]
  %v89 = vld [vmem:[%s1 + $0xe4] sm:$0xf]
  %v90 = vld [vmem:[%s1 + $0xe8] sm:$0xf]
  %v91 = vld [vmem:[%s1 + $0xec] sm:$0xf]
  %v92 = vld [vmem:[%s1 + $0xf0] sm:$0xf]
  %v93 = vld [vmem:[%s1 + $0xf4] sm:$0xf]
  %v94 = vld [vmem:[%s1 + $0xf8] sm:$0xf]
  %v95 = vld [vmem:[%s1 + $0xfc] sm:$0xf]
  %v96 = vld [vmem:[%s1 + $0x100] sm:$0xf]
  %v97 = vld [vmem:[%s1 + $0x104] sm:$0xf]
  %v98 = vld [vmem:[%s1 + $0x108] sm:$0xf]
  %v99 = vld [vmem:[%s1 + $0x10c] sm:$0xf]
  %v100 = vld [vmem:[%s1 + $0x110] sm:$0xf]
  %v101 = vld [vmem:[%s1 + $0x114] sm:$0xf]
  %v102 = vld [vmem:[%s1 + $0x118] sm:$0xf]
  %v103 = vld [vmem:[%s1 + $0x11c] sm:$0xf]
  %v104 = vunpack.c.l.bf16 %v32
  %v105 = vunpack.c.l.bf16 %v33
  %v106 = vunpack.c.l.bf16 %v34
  %v107 = vunpack.c.l.bf16 %v35
  %v108 = vunpack.c.l.bf16 %v36
  %v109 = vunpack.c.l.bf16 %v37
  %v110 = vunpack.c.l.bf16 %v38
  %v111 = vunpack.c.l.bf16 %v39
  %v112 = vunpack.c.l.bf16 %v40
  %v113 = vunpack.c.l.bf16 %v41
  %v114 = vunpack.c.l.bf16 %v42
  %v115 = vunpack.c.l.bf16 %v43
  %v116 = vunpack.c.l.bf16 %v44
  %v117 = vunpack.c.l.bf16 %v45
  %v118 = vunpack.c.l.bf16 %v46
  %v119 = vunpack.c.l.bf16 %v47
  %v120 = vunpack.c.l.bf16 %v48
  %v121 = vunpack.c.l.bf16 %v49
  %v122 = vunpack.c.l.bf16 %v50
  %v123 = vunpack.c.l.bf16 %v51
  %v124 = vunpack.c.l.bf16 %v52
  %v125 = vunpack.c.l.bf16 %v53
  %v126 = vunpack.c.l.bf16 %v54
  %v127 = vunpack.c.l.bf16 %v55
  %v128 = vunpack.c.l.bf16 %v56
  %v129 = vunpack.c.l.bf16 %v57
  %v130 = vunpack.c.l.bf16 %v58
  %v131 = vunpack.c.l.bf16 %v59
  %v132 = vunpack.c.l.bf16 %v60
  %v133 = vunpack.c.l.bf16 %v61
  %v134 = vunpack.c.l.bf16 %v62
  %v135 = vunpack.c.l.bf16 %v63
  %v136 = vunpack.c.l.bf16 %v64
  %v137 = vunpack.c.l.bf16 %v65
  %v138 = vunpack.c.l.bf16 %v66
  %v139 = vunpack.c.l.bf16 %v67
  %v140 = vunpack.c.l.bf16 %v68
  %v141 = vunpack.c.l.bf16 %v69
  %v142 = vunpack.c.l.bf16 %v70
  %v143 = vunpack.c.l.bf16 %v71
  %v144 = vunpack.c.l.bf16 %v72
  %v145 = vunpack.c.l.bf16 %v73
  %v146 = vunpack.c.l.bf16 %v74
  %v147 = vunpack.c.l.bf16 %v75
  %v148 = vunpack.c.l.bf16 %v76
  %v149 = vunpack.c.l.bf16 %v77
  %v150 = vunpack.c.l.bf16 %v78
  %v151 = vunpack.c.l.bf16 %v79
  %v152 = vunpack.c.l.bf16 %v80
  %v153 = vunpack.c.l.bf16 %v81
  %v154 = vunpack.c.l.bf16 %v82
  %v155 = vunpack.c.l.bf16 %v83
  %v156 = vunpack.c.l.bf16 %v84
  %v157 = vunpack.c.l.bf16 %v85
  %v158 = vunpack.c.l.bf16 %v86
  %v159 = vunpack.c.l.bf16 %v87
  %v160 = vunpack.c.l.bf16 %v88
  %v161 = vunpack.c.l.bf16 %v89
  %v162 = vunpack.c.l.bf16 %v90
  %v163 = vunpack.c.l.bf16 %v91
  %v164 = vunpack.c.l.bf16 %v92
  %v165 = vunpack.c.l.bf16 %v93
  %v166 = vunpack.c.l.bf16 %v94
  %v167 = vunpack.c.l.bf16 %v95
  %v168 = vunpack.c.l.bf16 %v96
  %v169 = vunpack.c.l.bf16 %v97
  %v170 = vunpack.c.l.bf16 %v98
  %v171 = vunpack.c.l.bf16 %v99
  %v172 = vunpack.c.l.bf16 %v100
  %v173 = vunpack.c.l.bf16 %v101
  %v174 = vunpack.c.l.bf16 %v102
  %v175 = vunpack.c.l.bf16 %v103
  %vm176 = vcmask 523264
  %v178 = vsel %vm176, %v21, 0
  %v181 = vsel %vm176, %v26, 0
  %v184 = vsel %vm176, %v31, 0
  %186 = vmatprep.subr.mxu0 0.0
  %187 = vmatpush1.msra.mxu0 %v119
  %188 = vmatprep.subr.mxu0 0.0
  %189 = vmatpush1.msra.mxu0 %v118
  %190 = vmatprep.subr.mxu0 0.0
  %191 = vmatpush1.msra.mxu0 %v117
  %192 = vmatprep.subr.mxu0 0.0
  %193 = vmatpush1.msra.mxu0 %v116
  %194 = vmatprep.subr.mxu0 0.0
  %195 = vmatpush1.msra.mxu0 %v115
  %196 = vmatprep.subr.mxu0 0.0
  %197 = vmatpush1.msra.mxu0 %v114
  %198 = vmatprep.subr.mxu0 0.0
  %199 = vmatpush1.msra.mxu0 %v113
  %200 = vmatprep.subr.mxu0 0.0
  %201 = vmatpush1.msra.mxu0 %v112
  %202 = vmatprep.subr.mxu0 0.0
  %203 = vmatpush1.msra.mxu0 %v111
  %204 = vmatprep.subr.mxu0 0.0
  %205 = vmatpush1.msra.mxu0 %v110
  %206 = vmatprep.subr.mxu0 0.0
  %207 = vmatpush1.msra.mxu0 %v109
  %208 = vmatprep.subr.mxu0 0.0
  %209 = vmatpush1.msra.mxu0 %v108
  %210 = vmatprep.subr.mxu0 0.0
  %211 = vmatpush1.msra.mxu0 %v107
  %212 = vmatprep.subr.mxu0 0.0
  %213 = vmatpush1.msra.mxu0 %v106
  %214 = vmatprep.subr.mxu0 0.0
  %215 = vmatpush1.msra.mxu0 %v105
  %216 = vmatprep.subr.mxu0 0.0
  %217 = vmatpush1.msra.mxu0 %v104
  %218 = vmatprep.subr.mxu0 0.0
  %219 = vmatpush2.msra.mxu0 %v135
  %220 = vmatprep.subr.mxu0 0.0
  %221 = vmatpush2.msra.mxu0 %v134
  %222 = vmatprep.subr.mxu0 0.0
  %223 = vmatpush2.msra.mxu0 %v133
  %224 = vmatprep.subr.mxu0 0.0
  %225 = vmatpush2.msra.mxu0 %v132
  %226 = vmatprep.subr.mxu0 0.0
  %227 = vmatpush2.msra.mxu0 %v131
  %228 = vmatprep.subr.mxu0 0.0
  %229 = vmatpush2.msra.mxu0 %v130
  %230 = vmatprep.subr.mxu0 0.0
  %231 = vmatpush2.msra.mxu0 %v129
  %232 = vmatprep.subr.mxu0 0.0
  %233 = vmatpush2.msra.mxu0 %v128
  %234 = vmatprep.subr.mxu0 0.0
  %235 = vmatpush2.msra.mxu0 %v127
  %236 = vmatprep.subr.mxu0 0.0
  %237 = vmatpush2.msra.mxu0 %v126
  %238 = vmatprep.subr.mxu0 0.0
  %239 = vmatpush2.msra.mxu0 %v125
  %240 = vmatprep.subr.mxu0 0.0
  %241 = vmatpush2.msra.mxu0 %v124
  %242 = vmatprep.subr.mxu0 0.0
  %243 = vmatpush2.msra.mxu0 %v123
  %244 = vmatprep.subr.mxu0 0.0
  %245 = vmatpush2.msra.mxu0 %v122
  %246 = vmatprep.subr.mxu0 0.0
  %247 = vmatpush2.msra.mxu0 %v121
  %248 = vmatprep.subr.mxu0 0.0
  %249 = vmatpush2.msra.mxu0 %v120
  %250 = vmatprep.mubr.f32.mxu0 %v18
  %251 = vmatmul.mubr.f32.gmra.mxu0 %v17
  %v252 = vpop.f32.mrf.mxu0
  %v253 = vadd.f32 0.0, %v252
  %v254 = vpop.f32.mrf.mxu0
  %255 = vmatprep.mubr.f32.mxu0 %v23
  %256 = vmatmul.mubr.f32.gmra.mxu0 %v22
  %v257 = vpop.f32.mrf.mxu0
  %v258 = vadd.f32 0.0, %v257
  %v259 = vpop.f32.mrf.mxu0
  %260 = vmatprep.mubr.f32.mxu0 %v28
  %261 = vmatmul.mubr.f32.gmra.mxu0 %v27
  %v262 = vpop.f32.mrf.mxu0
  %v263 = vadd.f32 0.0, %v262
  %v264 = vpop.f32.mrf.mxu0
  %265 = vdwg.mxu0
  %266 = vmatprep.subr.mxu0 0.0
  %267 = vmatpush1.msra.mxu0 %v151
  %268 = vmatprep.subr.mxu0 0.0
  %269 = vmatpush1.msra.mxu0 %v150
  %270 = vmatprep.subr.mxu0 0.0
  %271 = vmatpush1.msra.mxu0 %v149
  %272 = vmatprep.subr.mxu0 0.0
  %273 = vmatpush1.msra.mxu0 %v148
  %274 = vmatprep.subr.mxu0 0.0
  %275 = vmatpush1.msra.mxu0 %v147
  %276 = vmatprep.subr.mxu0 0.0
  %277 = vmatpush1.msra.mxu0 %v146
  %278 = vmatprep.subr.mxu0 0.0
  %279 = vmatpush1.msra.mxu0 %v145
  %280 = vmatprep.subr.mxu0 0.0
  %281 = vmatpush1.msra.mxu0 %v144
  %282 = vmatprep.subr.mxu0 0.0
  %283 = vmatpush1.msra.mxu0 %v143
  %284 = vmatprep.subr.mxu0 0.0
  %285 = vmatpush1.msra.mxu0 %v142
  %286 = vmatprep.subr.mxu0 0.0
  %287 = vmatpush1.msra.mxu0 %v141
  %288 = vmatprep.subr.mxu0 0.0
  %289 = vmatpush1.msra.mxu0 %v140
  %290 = vmatprep.subr.mxu0 0.0
  %291 = vmatpush1.msra.mxu0 %v139
  %292 = vmatprep.subr.mxu0 0.0
  %293 = vmatpush1.msra.mxu0 %v138
  %294 = vmatprep.subr.mxu0 0.0
  %295 = vmatpush1.msra.mxu0 %v137
  %296 = vmatprep.subr.mxu0 0.0
  %297 = vmatpush1.msra.mxu0 %v136
  %298 = vmatprep.subr.mxu0 0.0
  %299 = vmatpush2.msra.mxu0 %v167
  %300 = vmatprep.subr.mxu0 0.0
  %301 = vmatpush2.msra.mxu0 %v166
  %302 = vmatprep.subr.mxu0 0.0
  %303 = vmatpush2.msra.mxu0 %v165
  %304 = vmatprep.subr.mxu0 0.0
  %305 = vmatpush2.msra.mxu0 %v164
  %306 = vmatprep.subr.mxu0 0.0
  %307 = vmatpush2.msra.mxu0 %v163
  %308 = vmatprep.subr.mxu0 0.0
  %309 = vmatpush2.msra.mxu0 %v162
  %310 = vmatprep.subr.mxu0 0.0
  %311 = vmatpush2.msra.mxu0 %v161
  %312 = vmatprep.subr.mxu0 0.0
  %313 = vmatpush2.msra.mxu0 %v160
  %314 = vmatprep.subr.mxu0 0.0
  %315 = vmatpush2.msra.mxu0 %v159
  %316 = vmatprep.subr.mxu0 0.0
  %317 = vmatpush2.msra.mxu0 %v158
  %318 = vmatprep.subr.mxu0 0.0
  %319 = vmatpush2.msra.mxu0 %v157
  %320 = vmatprep.subr.mxu0 0.0
  %321 = vmatpush2.msra.mxu0 %v156
  %322 = vmatprep.subr.mxu0 0.0
  %323 = vmatpush2.msra.mxu0 %v155
  %324 = vmatprep.subr.mxu0 0.0
  %325 = vmatpush2.msra.mxu0 %v154
  %326 = vmatprep.subr.mxu0 0.0
  %327 = vmatpush2.msra.mxu0 %v153
  %328 = vmatprep.subr.mxu0 0.0
  %329 = vmatpush2.msra.mxu0 %v152
  %330 = vmatprep.mubr.f32.mxu0 %v20
  %331 = vmatmul.mubr.f32.gmra.mxu0 %v19
  %v332 = vpop.f32.mrf.mxu0
  %v333 = vadd.f32 %v253, %v332
  %v334 = vpop.f32.mrf.mxu0
  %335 = vmatprep.mubr.f32.mxu0 %v25
  %336 = vmatmul.mubr.f32.gmra.mxu0 %v24
  %v337 = vpop.f32.mrf.mxu0
  %v338 = vadd.f32 %v258, %v337
  %v339 = vpop.f32.mrf.mxu0
  %340 = vmatprep.mubr.f32.mxu0 %v30
  %341 = vmatmul.mubr.f32.gmra.mxu0 %v29
  %v342 = vpop.f32.mrf.mxu0
  %v343 = vadd.f32 %v263, %v342
  %v344 = vpop.f32.mrf.mxu0
  %345 = vdwg.mxu0
  %346 = vmatprep.subr.mxu0 0.0
  %347 = vmatpush1.msra.mxu0 0.0
  %348 = vmatprep.subr.mxu0 0.0
  %349 = vmatpush1.msra.mxu0 0.0
  %350 = vmatprep.subr.mxu0 0.0
  %351 = vmatpush1.msra.mxu0 0.0
  %352 = vmatprep.subr.mxu0 0.0
  %353 = vmatpush1.msra.mxu0 0.0
  %354 = vmatprep.subr.mxu0 0.0
  %355 = vmatpush1.msra.mxu0 0.0
  %356 = vmatprep.subr.mxu0 0.0
  %357 = vmatpush1.msra.mxu0 0.0
  %358 = vmatprep.subr.mxu0 0.0
  %359 = vmatpush1.msra.mxu0 0.0
  %360 = vmatprep.subr.mxu0 0.0
  %361 = vmatpush1.msra.mxu0 0.0
  %362 = vmatprep.subr.mxu0 0.0
  %363 = vmatpush1.msra.mxu0 %v175
  %364 = vmatprep.subr.mxu0 0.0
  %365 = vmatpush1.msra.mxu0 %v174
  %366 = vmatprep.subr.mxu0 0.0
  %367 = vmatpush1.msra.mxu0 %v173
  %368 = vmatprep.subr.mxu0 0.0
  %369 = vmatpush1.msra.mxu0 %v172
  %370 = vmatprep.subr.mxu0 0.0
  %371 = vmatpush1.msra.mxu0 %v171
  %372 = vmatprep.subr.mxu0 0.0
  %373 = vmatpush1.msra.mxu0 %v170
  %374 = vmatprep.subr.mxu0 0.0
  %375 = vmatpush1.msra.mxu0 %v169
  %376 = vmatprep.subr.mxu0 0.0
  %377 = vmatpush1.msra.mxu0 %v168
  %378 = vmatprep.subr.mxu0 0.0
  %379 = vmatpush2.msra.mxu0 0.0
  %380 = vmatprep.subr.mxu0 0.0
  %381 = vmatpush2.msra.mxu0 0.0
  %382 = vmatprep.subr.mxu0 0.0
  %383 = vmatpush2.msra.mxu0 0.0
  %384 = vmatprep.subr.mxu0 0.0
  %385 = vmatpush2.msra.mxu0 0.0
  %386 = vmatprep.subr.mxu0 0.0
  %387 = vmatpush2.msra.mxu0 0.0
  %388 = vmatprep.subr.mxu0 0.0
  %389 = vmatpush2.msra.mxu0 0.0
  %390 = vmatprep.subr.mxu0 0.0
  %391 = vmatpush2.msra.mxu0 0.0
  %392 = vmatprep.subr.mxu0 0.0
  %393 = vmatpush2.msra.mxu0 0.0
  %394 = vmatprep.subr.mxu0 0.0
  %395 = vmatpush2.msra.mxu0 0.0
  %396 = vmatprep.subr.mxu0 0.0
  %397 = vmatpush2.msra.mxu0 0.0
  %398 = vmatprep.subr.mxu0 0.0
  %399 = vmatpush2.msra.mxu0 0.0
  %400 = vmatprep.subr.mxu0 0.0
  %401 = vmatpush2.msra.mxu0 0.0
  %402 = vmatprep.subr.mxu0 0.0
  %403 = vmatpush2.msra.mxu0 0.0
  %404 = vmatprep.subr.mxu0 0.0
  %405 = vmatpush2.msra.mxu0 0.0
  %406 = vmatprep.subr.mxu0 0.0
  %407 = vmatpush2.msra.mxu0 0.0
  %408 = vmatprep.subr.mxu0 0.0
  %409 = vmatpush2.msra.mxu0 0.0
  %410 = vmatprep.mubr.f32.mxu0 0.0
  %411 = vmatmul.mubr.f32.gmra.mxu0 %v178
  %v412 = vpop.f32.mrf.mxu0
  %v413 = vadd.f32 %v333, %v412
  %v414 = vpop.f32.mrf.mxu0
  %415 = vmatprep.mubr.f32.mxu0 0.0
  %416 = vmatmul.mubr.f32.gmra.mxu0 %v181
  %v417 = vpop.f32.mrf.mxu0
  %v418 = vadd.f32 %v338, %v417
  %v419 = vpop.f32.mrf.mxu0
  %420 = vmatprep.mubr.f32.mxu0 0.0
  %421 = vmatmul.mubr.f32.gmra.mxu0 %v184
  %v422 = vpop.f32.mrf.mxu0
  %v423 = vadd.f32 %v343, %v422
  %v424 = vpop.f32.mrf.mxu0
  %425 = vdwg.mxu0
  %v426 = vsel %vm176, %v413, 0.0
  %v427 = vsel %vm176, %v418, 0.0
  %v428 = vadd.f32 %v426, %v427
  %vm429 = vcmask 517120
  %v430 = vsel %vm429, %v423, 0.0
  %v431 = vadd.f32 %v428, %v430
  %v432 = vrot.slane %v431, 4
  %v433 = vadd.f32 %v431, %v432
  %v434 = vrot.slane %v433, 2
  %v435 = vadd.f32 %v433, %v434
  %v436 = vrot.slane %v435, 1
  %v437 = vadd.f32 %v435, %v436
  %v438 = vmul.f32 %v413, %v413
  %v439 = vmul.f32 %v418, %v418
  %v440 = vmul.f32 %v423, %v423
  %v441 = vsel %vm176, %v438, 0.0
  %v442 = vsel %vm176, %v439, 0.0
  %v443 = vadd.f32 %v441, %v442
  %v444 = vsel %vm429, %v440, 0.0
  %v445 = vadd.f32 %v443, %v444
  %v446 = vrot.slane %v445, 4
  %v447 = vadd.f32 %v445, %v446
  %v448 = vrot.slane %v447, 2
  %v449 = vadd.f32 %v447, %v448
  %v450 = vrot.slane %v449, 1
  %v451 = vadd.f32 %v449, %v450
  %v452 = vmul.f32 %v437, 0.055555556
  %v453 = vmul.f32 %v451, 0.055555556
  %v454 = vmul.f32 %v452, %v452
  %v455 = vsub.f32 %v453, %v454
  %v456 = vmax.f32 %v455, 0.0
  %v457 = vld [vmem:[%s2] sm:$0x1]
  %v458 = vadd.f32 %v456, 1e-05
  %v459 = vrsqrt.pop %v458
  %v460 = vmul.f32 %v457, %v459
  %v461 = vld [vmem:[%s3] sm:$0x1]
  %v462 = vmul.f32 %v452, %v460
  %v463 = vsub.f32 %v461, %v462
  %v465 = vlaneseq
  %v466 = vshrl.u32 %v465, 7
  %v467 = vsub.s32 0, %v466
  %v468 = vrot.slane %v460, %v467
  %v470 = vmul.f32 %v413, %v468
  %v471 = vmul.f32 %v418, %v468
  %v472 = vmul.f32 %v423, %v468
  %v474 = vlaneseq
  %v475 = vshrl.u32 %v474, 7
  %v476 = vsub.s32 0, %v475
  %v477 = vrot.slane %v463, %v476
  %v479 = vadd.f32 %v470, %v477
  %v480 = vadd.f32 %v471, %v477
  %v481 = vadd.f32 %v472, %v477
  %v482 = vmax.f32 %v479, 0.0
  %v483 = vmax.f32 %v480, 0.0
  %v484 = vmax.f32 %v481, 0.0
  %485 = vst.msk [vmem:[%s4] sm:$0xff] %vm176, %v482
  %486 = vst.msk [vmem:[%s4 + $0x8] sm:$0xff] %vm176, %v483
  %487 = vst.msk [vmem:[%s4 + $0x10] sm:$0x3] %vm429, %v484
  // Predicated region
  $region18: #{gdan_forward.8} parent=0 // pred_check
    _
  $region19: #{gdan_forward.8} parent=0 // pred_check_branch
    %489 = sbr.rel (0) target = $region21
  $region20: #{gdan_forward.8} parent=0 // pred_region
    _
  $region21: #{gdan_forward.8} parent=0 // pred_fallthru
    _
  // Predicated region
  $region22: #{gdan_forward.8} parent=0 // pred_check
    _
  $region23: #{gdan_forward.8} parent=0 // pred_check_branch
    %491 = sbr.rel (0) target = $region25
  $region24: #{gdan_forward.8} parent=0 // pred_region
    _
  $region25: #{gdan_forward.8} parent=0 // pred_fallthru
    _

// kernel: gdan_forward.9
$region0: #{gdan_forward.9}
  #allocation0 [shape = 'u32[]', space=smem, size = 0x4, offset = 0x4, fixed_abs, tag = 'smem constant byte address 0x4 - core index']
  #allocation1 [shape = 'u32[144,128]{1,0:T(1,128)}', space=vmem, size = 0x12000, scoped, tag = 'internal scratch']
  #allocation2 [shape = 'f32[1,1]{1,0:T(1,128)S(1)}', space=vmem, size = 0x200, scoped, tag = 'scoped memory for gdan_forward.9']
  %s0 = inlined_call_operand.smem [shape: u32[45], index: -1, kind: input, shape index: {}]
  %s1 = sld [smem:[%s0]]
  %s2 = scalar_lea.smem %s0, 1
  %s3 = sld [smem:[%s2]]
  %s4 = scalar_lea.smem %s0, 2
  %s5 = sld [smem:[%s4]]
  %s6 = scalar_lea.smem %s0, 3
  %s7 = sld [smem:[%s6]]
  %s8 = scalar_lea.smem %s0, 4
  %s9 = sld [smem:[%s8]]
  %s10 = scalar_lea.smem %s0, 5
  %s11 = sld [smem:[%s10]]
  %s12 = scalar_lea.smem %s0, 6
  %s13 = sld [smem:[%s12]]
  %s14 = scalar_lea.smem %s0, 7
  %s15 = sld [smem:[%s14]]
  %s16 = scalar_lea.smem %s0, 8
  %s17 = sld [smem:[%s16]]
  %s18 = scalar_lea.smem %s0, 9
  %s19 = sld [smem:[%s18]]
  %s20 = scalar_lea.smem %s0, 10
  %s21 = sld [smem:[%s20]]
  %s22 = scalar_lea.smem %s0, 11
  %s23 = sld [smem:[%s22]]
  %s24 = scalar_lea.smem %s0, 12
  %s25 = sld [smem:[%s24]]
  %s26 = scalar_lea.smem %s0, 13
  %s27 = sld [smem:[%s26]]
  %s28 = scalar_lea.smem %s0, 14
  %s29 = sld [smem:[%s28]]
  %s30 = scalar_lea.smem %s0, 15
  %s31 = sld [smem:[%s30]]
  %s32 = scalar_lea.smem %s0, 16
  %s33 = sld [smem:[%s32]]
  %s34 = scalar_lea.smem %s0, 17
  %s35 = sld [smem:[%s34]]
  %s36 = scalar_lea.smem %s0, 18
  %s37 = sld [smem:[%s36]]
  %s38 = scalar_lea.smem %s0, 19
  %s39 = sld [smem:[%s38]]
  %s40 = scalar_lea.smem %s0, 20
  %s41 = sld [smem:[%s40]]
  %s42 = scalar_lea.smem %s0, 21
  %s43 = sld [smem:[%s42]]
  %s44 = scalar_lea.smem %s0, 22
  %s45 = sld [smem:[%s44]]
  %s46 = scalar_lea.smem %s0, 23
  %s47 = sld [smem:[%s46]]
  %s48 = scalar_lea.smem %s0, 24
  %s49 = sld [smem:[%s48]]
  %s50 = scalar_lea.smem %s0, 25
  %s51 = sld [smem:[%s50]]
  %s52 = scalar_lea.smem %s0, 26
  %s53 = sld [smem:[%s52]]
  %s54 = scalar_lea.smem %s0, 27
  %s55 = sld [smem:[%s54]]
  %s56 = scalar_lea.smem %s0, 28
  %s57 = sld [smem:[%s56]]
  %s58 = scalar_lea.smem %s0, 29
  %s59 = sld [smem:[%s58]]
  %s60 = scalar_lea.smem %s0, 30
  %s61 = sld [smem:[%s60]]
  %s62 = scalar_lea.smem %s0, 31
  %s63 = sld [smem:[%s62]]
  %s64 = scalar_lea.smem %s0, 32
  %s65 = sld [smem:[%s64]]
  %s66 = scalar_lea.smem %s0, 33
  %s67 = sld [smem:[%s66]]
  %s68 = scalar_lea.smem %s0, 34
  %s69 = sld [smem:[%s68]]
  %s70 = scalar_lea.smem %s0, 35
  %s71 = sld [smem:[%s70]]
  %s72 = scalar_lea.smem %s0, 36
  %s73 = sld [smem:[%s72]]
  %s74 = scalar_lea.smem %s0, 37
  %s75 = sld [smem:[%s74]]
  %s76 = scalar_lea.smem %s0, 38
  %s77 = sld [smem:[%s76]]
  %s78 = scalar_lea.smem %s0, 39
  %s79 = sld [smem:[%s78]]
  %s80 = scalar_lea.smem %s0, 40
  %s81 = sld [smem:[%s80]]
  %s82 = scalar_lea.smem %s0, 41
  %s83 = sld [smem:[%s82]]
  %s84 = scalar_lea.smem %s0, 42
  %s85 = sld [smem:[%s84]]
  %s86 = scalar_lea.smem %s0, 43
  %s87 = sld [smem:[%s86]]
  %s88 = scalar_lea.smem %s0, 44
  %s89 = sld [smem:[%s88]]
  %90 = xla_tuple %s81, %s83, %s85, %s87, %s89
  %s91 = sld [smem:[#allocation0]]
  $region218: #{gdan_forward.9} parent=0
    _
  %s93 = ssub.s32 1, %s91
  %s94 = scalar_select 0, %s93, %s91
  %v95 = vstv %s79
  %96 = vst [vmem:[#allocation2] sm:$0x1] %v95
  $region1: #{gdan_forward.9} parent=0
    #allocation3 [shape = 'u8[512]{0}', space=vmem, size = 0x400, scoped, tag = 'input window, operand 31, single buffered']
    #allocation4 [shape = 's32[1]{0}', space=sflag, size = 0x4, scoped, tag = 'scoped memory for gdan_forward.9']
    #allocation5 [shape = 's32[1]{0}', space=sflag, size = 0x4, scoped, tag = 'scoped memory for gdan_forward.9']
    #allocation6 [shape = 'u8[512]{0}', space=vmem, size = 0x400, scoped, tag = 'input window, operand 33, single buffered']
    #allocation7 [shape = 's32[1]{0}', space=sflag, size = 0x4, scoped, tag = 'scoped memory for gdan_forward.9']
    #allocation8 [shape = 'u8[512]{0}', space=vmem, size = 0x400, scoped, tag = 'input window, operand 35, single buffered']
    #allocation9 [shape = 'u8[512]{0}', space=vmem, size = 0x400, scoped, tag = 'input window, operand 37, single buffered']
    #allocation10 [shape = 's32[1]{0}', space=sflag, size = 0x4, scoped, tag = 'scoped memory for gdan_forward.9']
    #allocation11 [shape = 'u8[1024]{0}', space=vmem, size = 0x400, scoped, tag = 'output window, operand 0, single buffered']
    #allocation12 [shape = 'u8[1024]{0}', space=vmem, size = 0x400, scoped, tag = 'output window, operand 2, single buffered']
    #allocation13 [shape = 's32[1]{0}', space=sflag, size = 0x4, scoped, tag = 'scoped memory for gdan_forward.9']
    #allocation14 [shape = 'u8[2048]{0}', space=vmem, size = 0x800, scoped, tag = 'output window, operand 3, single buffered']
    #allocation15 [shape = 'u8[2048]{0}', space=vmem, size = 0x800, scoped, tag = 'output window, operand 4, single buffered']
    #allocation16 [shape = 's32[1]{0}', space=sflag, size = 0x4, scoped, tag = 'scoped memory for gdan_forward.9']
    %97 = vsyncpa [#allocation4], 0
    %98 = vsyncpa [#allocation7], 0
    %99 = vsyncpa [#allocation10], 0
    %100 = vsyncpa [#allocation5], 0
    %101 = vsyncpa [#allocation13], 0
    %102 = vsyncpa [#allocation16], 0
    // Predicated region
    $region2: #{gdan_forward.9} parent=1 // pred_check
      _
    $region3: #{gdan_forward.9} parent=1 // pred_check_branch
      %104 = sbr.rel (0) target = $region5
    $region4: #{gdan_forward.9} parent=1 // pred_region
      _
    $region5: #{gdan_forward.9} parent=1 // pred_fallthru
      _
    // Predicated region
    $region6: #{gdan_forward.9} parent=1 // pred_check
      _
    $region7: #{gdan_forward.9} parent=1 // pred_check_branch
      %106 = sbr.rel (0) target = $region9
    $region8: #{gdan_forward.9} parent=1 // pred_region
      _
    $region9: #{gdan_forward.9} parent=1 // pred_fallthru
      _
    // Predicated region
    $region10: #{gdan_forward.9} parent=1 // pred_check
      _
    $region11: #{gdan_forward.9} parent=1 // pred_check_branch
      %108 = sbr.rel (0) target = $region13
    $region12: #{gdan_forward.9} parent=1 // pred_region
      _
    $region13: #{gdan_forward.9} parent=1 // pred_fallthru
      _
    // Predicated region
    $region14: #{gdan_forward.9} parent=1 // pred_check
      _
    $region15: #{gdan_forward.9} parent=1 // pred_check_branch
      %110 = sbr.rel (0) target = $region17
    $region16: #{gdan_forward.9} parent=1 // pred_region
      _
    $region17: #{gdan_forward.9} parent=1 // pred_fallthru
      _
    // Predicated region
    $region18: #{gdan_forward.9} parent=1 // pred_check
      _
    $region19: #{gdan_forward.9} parent=1 // pred_check_branch
      %112 = sbr.rel (0) target = $region21
    $region20: #{gdan_forward.9} parent=1 // pred_region
      _
    $region21: #{gdan_forward.9} parent=1 // pred_fallthru
      _
    // Predicated region
    $region22: #{gdan_forward.9} parent=1 // pred_check
      _
    $region23: #{gdan_forward.9} parent=1 // pred_check_branch
      %114 = sbr.rel (0) target = $region25
    $region24: #{gdan_forward.9} parent=1 // pred_region
      _
    $region25: #{gdan_forward.9} parent=1 // pred_fallthru
      _
    // Predicated region
    $region26: #{gdan_forward.9} parent=1 // pred_check
      _
    $region27: #{gdan_forward.9} parent=1 // pred_check_branch
      %116 = sbr.rel (0) target = $region29
    $region28: #{gdan_forward.9} parent=1 // pred_region
      _
    $region29: #{gdan_forward.9} parent=1 // pred_fallthru
      _
    // Predicated region
    $region30: #{gdan_forward.9} parent=1 // pred_check
      _
    $region31: #{gdan_forward.9} parent=1 // pred_check_branch
      %118 = sbr.rel (0) target = $region33
    $region32: #{gdan_forward.9} parent=1 // pred_region
      _
    $region33: #{gdan_forward.9} parent=1 // pred_fallthru
      _
    // Predicated region
    $region34: #{gdan_forward.9} parent=1 // pred_check
      _
    $region35: #{gdan_forward.9} parent=1 // pred_check_branch
      %120 = sbr.rel (0) target = $region37
    $region36: #{gdan_forward.9} parent=1 // pred_region
      _
    $region37: #{gdan_forward.9} parent=1 // pred_fallthru
      _
    // Predicated region
    $region38: #{gdan_forward.9} parent=1 // pred_check
      _
    $region39: #{gdan_forward.9} parent=1 // pred_check_branch
      %122 = sbr.rel (0) target = $region41
    $region40: #{gdan_forward.9} parent=1 // pred_region
      _
    $region41: #{gdan_forward.9} parent=1 // pred_fallthru
      _
    // Predicated region
    $region42: #{gdan_forward.9} parent=1 // pred_check
      _
    $region43: #{gdan_forward.9} parent=1 // pred_check_branch
      %124 = sbr.rel (0) target = $region45
    $region44: #{gdan_forward.9} parent=1 // pred_region
      _
    $region45: #{gdan_forward.9} parent=1 // pred_fallthru
      _
    // Predicated region
    $region46: #{gdan_forward.9} parent=1 // pred_check
      _
    $region47: #{gdan_forward.9} parent=1 // pred_check_branch
      %126 = sbr.rel (0) target = $region49
    $region48: #{gdan_forward.9} parent=1 // pred_region
      _
    $region49: #{gdan_forward.9} parent=1 // pred_fallthru
      _
    // Predicated region
    $region50: #{gdan_forward.9} parent=1 // pred_check
      _
    $region51: #{gdan_forward.9} parent=1 // pred_check_branch
      %128 = sbr.rel (0) target = $region53
    $region52: #{gdan_forward.9} parent=1 // pred_region
      _
    $region53: #{gdan_forward.9} parent=1 // pred_fallthru
      _
    // Predicated region
    $region54: #{gdan_forward.9} parent=1 // pred_check
      _
    $region55: #{gdan_forward.9} parent=1 // pred_check_branch
      %130 = sbr.rel (0) target = $region57
    $region56: #{gdan_forward.9} parent=1 // pred_region
      _
    $region57: #{gdan_forward.9} parent=1 // pred_fallthru
      _
    // Predicated region
    $region58: #{gdan_forward.9} parent=1 // pred_check
      _
    $region59: #{gdan_forward.9} parent=1 // pred_check_branch
      %132 = sbr.rel (0) target = $region61
    $region60: #{gdan_forward.9} parent=1 // pred_region
      _
    $region61: #{gdan_forward.9} parent=1 // pred_fallthru
      _
    // Predicated region
    $region62: #{gdan_forward.9} parent=1 // pred_check
      _
    $region63: #{gdan_forward.9} parent=1 // pred_check_branch
      %134 = sbr.rel (0) target = $region65
    $region64: #{gdan_forward.9} parent=1 // pred_region
      _
    $region65: #{gdan_forward.9} parent=1 // pred_fallthru
      _
    // Predicated region
    $region66: #{gdan_forward.9} parent=1 // pred_check
      _
    $region67: #{gdan_forward.9} parent=1 // pred_check_branch
      %136 = sbr.rel (0) target = $region69
    $region68: #{gdan_forward.9} parent=1 // pred_region
      _
    $region69: #{gdan_forward.9} parent=1 // pred_fallthru
      _
    // Predicated region
    $region70: #{gdan_forward.9} parent=1 // pred_check
      _
    $region71: #{gdan_forward.9} parent=1 // pred_check_branch
      %138 = sbr.rel (0) target = $region73
    $region72: #{gdan_forward.9} parent=1 // pred_region
      _
    $region73: #{gdan_forward.9} parent=1 // pred_fallthru
      _
    // Predicated region
    $region74: #{gdan_forward.9} parent=1 // pred_check
      _
    $region75: #{gdan_forward.9} parent=1 // pred_check_branch
      %140 = sbr.rel (0) target = $region77
    $region76: #{gdan_forward.9} parent=1 // pred_region
      _
    $region77: #{gdan_forward.9} parent=1 // pred_fallthru
      _
    // Predicated region
    $region78: #{gdan_forward.9} parent=1 // pred_check
      _
    $region79: #{gdan_forward.9} parent=1 // pred_check_branch
      %142 = sbr.rel (0) target = $region81
    $region80: #{gdan_forward.9} parent=1 // pred_region
      _
    $region81: #{gdan_forward.9} parent=1 // pred_fallthru
      _
    // Predicated region
    $region82: #{gdan_forward.9} parent=1 // pred_check
      _
    $region83: #{gdan_forward.9} parent=1 // pred_check_branch
      %144 = sbr.rel (0) target = $region85
    $region84: #{gdan_forward.9} parent=1 // pred_region
      _
    $region85: #{gdan_forward.9} parent=1 // pred_fallthru
      _
    // Predicated region
    $region86: #{gdan_forward.9} parent=1 // pred_check
      _
    $region87: #{gdan_forward.9} parent=1 // pred_check_branch
      %146 = sbr.rel (0) target = $region89
    $region88: #{gdan_forward.9} parent=1 // pred_region
      _
    $region89: #{gdan_forward.9} parent=1 // pred_fallthru
      _
    // Predicated region
    $region90: #{gdan_forward.9} parent=1 // pred_check
      _
    $region91: #{gdan_forward.9} parent=1 // pred_check_branch
      %148 = sbr.rel (0) target = $region93
    $region92: #{gdan_forward.9} parent=1 // pred_region
      _
    $region93: #{gdan_forward.9} parent=1 // pred_fallthru
      _
    // Predicated region
    $region94: #{gdan_forward.9} parent=1 // pred_check
      _
    $region95: #{gdan_forward.9} parent=1 // pred_check_branch
      %150 = sbr.rel (0) target = $region97
    $region96: #{gdan_forward.9} parent=1 // pred_region
      _
    $region97: #{gdan_forward.9} parent=1 // pred_fallthru
      _
    // Predicated region
    $region98: #{gdan_forward.9} parent=1 // pred_check
      _
    $region99: #{gdan_forward.9} parent=1 // pred_check_branch
      %152 = sbr.rel (0) target = $region101
    $region100: #{gdan_forward.9} parent=1 // pred_region
      _
    $region101: #{gdan_forward.9} parent=1 // pred_fallthru
      _
    // Predicated region
    $region102: #{gdan_forward.9} parent=1 // pred_check
      _
    $region103: #{gdan_forward.9} parent=1 // pred_check_branch
      %154 = sbr.rel (0) target = $region105
    $region104: #{gdan_forward.9} parent=1 // pred_region
      _
    $region105: #{gdan_forward.9} parent=1 // pred_fallthru
      _
    // Predicated region
    $region106: #{gdan_forward.9} parent=1 // pred_check
      _
    $region107: #{gdan_forward.9} parent=1 // pred_check_branch
      %156 = sbr.rel (0) target = $region109
    $region108: #{gdan_forward.9} parent=1 // pred_region
      _
    $region109: #{gdan_forward.9} parent=1 // pred_fallthru
      _
    // Predicated region
    $region110: #{gdan_forward.9} parent=1 // pred_check
      _
    $region111: #{gdan_forward.9} parent=1 // pred_check_branch
      %158 = sbr.rel (0) target = $region113
    $region112: #{gdan_forward.9} parent=1 // pred_region
      _
    $region113: #{gdan_forward.9} parent=1 // pred_fallthru
      _
    // Predicated region
    $region114: #{gdan_forward.9} parent=1 // pred_check
      _
    $region115: #{gdan_forward.9} parent=1 // pred_check_branch
      %160 = sbr.rel (0) target = $region117
    $region116: #{gdan_forward.9} parent=1 // pred_region
      _
    $region117: #{gdan_forward.9} parent=1 // pred_fallthru
      _
    // Predicated region
    $region118: #{gdan_forward.9} parent=1 // pred_check
      _
    $region119: #{gdan_forward.9} parent=1 // pred_check_branch
      %162 = sbr.rel (0) target = $region121
    $region120: #{gdan_forward.9} parent=1 // pred_region
      _
    $region121: #{gdan_forward.9} parent=1 // pred_fallthru
      _
    // Predicated region
    $region122: #{gdan_forward.9} parent=1 // pred_check
      _
    $region123: #{gdan_forward.9} parent=1 // pred_check_branch
      %164 = sbr.rel (0) target = $region125
    $region124: #{gdan_forward.9} parent=1 // pred_region
      _
    $region125: #{gdan_forward.9} parent=1 // pred_fallthru
      _
    // Predicated region
    $region126: #{gdan_forward.9} parent=1 // pred_check
      _
    $region127: #{gdan_forward.9} parent=1 // pred_check_branch
      %166 = sbr.rel (0) target = $region129
    $region128: #{gdan_forward.9} parent=1 // pred_region
      %s168 = ssub.s32 16, 16
      %169 = vsyncadd [#allocation4], %s168
      %s171 = sshll.u32 [#allocation3], 4
      %s172 = int_to_ptr.vmem [resolvable:$true] %s171
      %174 = dma.hbm_to_vmem [thread:$0]  %s63, 16, %s172, [#allocation4]
    $region129: #{gdan_forward.9} parent=1 // pred_fallthru
      _
    // Predicated region
    $region130: #{gdan_forward.9} parent=1 // pred_check
      _
    $region131: #{gdan_forward.9} parent=1 // pred_check_branch
      %176 = sbr.rel (0) target = $region133
    $region132: #{gdan_forward.9} parent=1 // pred_region
      _
    $region133: #{gdan_forward.9} parent=1 // pred_fallthru
      _
    // Predicated region
    $region134: #{gdan_forward.9} parent=1 // pred_check
      _
    $region135: #{gdan_forward.9} parent=1 // pred_check_branch
      %178 = sbr.rel (0) target = $region137
    $region136: #{gdan_forward.9} parent=1 // pred_region
      %s180 = ssub.s32 16, 16
      %181 = vsyncadd [#allocation7], %s180
      %s183 = sshll.u32 [#allocation6], 4
      %s184 = int_to_ptr.vmem [resolvable:$true] %s183
      %186 = dma.hbm_to_vmem [thread:$0]  %s67, 16, %s184, [#allocation7]
    $region137: #{gdan_forward.9} parent=1 // pred_fallthru
      _
    // Predicated region
    $region138: #{gdan_forward.9} parent=1 // pred_check
      _
    $region139: #{gdan_forward.9} parent=1 // pred_check_branch
      %188 = sbr.rel (0) target = $region141
    $region140: #{gdan_forward.9} parent=1 // pred_region
      _
    $region141: #{gdan_forward.9} parent=1 // pred_fallthru
      _
    // Predicated region
    $region142: #{gdan_forward.9} parent=1 // pred_check
      _
    $region143: #{gdan_forward.9} parent=1 // pred_check_branch
      %190 = sbr.rel (0) target = $region145
    $region144: #{gdan_forward.9} parent=1 // pred_region
      %s192 = ssub.s32 16, 16
      %193 = vsyncadd [#allocation7], %s192
      %s195 = sshll.u32 [#allocation8], 4
      %s196 = int_to_ptr.vmem [resolvable:$true] %s195
      %198 = dma.hbm_to_vmem [thread:$0]  %s71, 16, %s196, [#allocation7]
    $region145: #{gdan_forward.9} parent=1 // pred_fallthru
      _
    // Predicated region
    $region146: #{gdan_forward.9} parent=1 // pred_check
      _
    $region147: #{gdan_forward.9} parent=1 // pred_check_branch
      %200 = sbr.rel (0) target = $region149
    $region148: #{gdan_forward.9} parent=1 // pred_region
      _
    $region149: #{gdan_forward.9} parent=1 // pred_fallthru
      _
    // Predicated region
    $region150: #{gdan_forward.9} parent=1 // pred_check
      _
    $region151: #{gdan_forward.9} parent=1 // pred_check_branch
      %202 = sbr.rel (0) target = $region153
    $region152: #{gdan_forward.9} parent=1 // pred_region
      %s204 = ssub.s32 16, 16
      %205 = vsyncadd [#allocation10], %s204
      %s207 = sshll.u32 [#allocation9], 4
      %s208 = int_to_ptr.vmem [resolvable:$true] %s207
      %210 = dma.hbm_to_vmem [thread:$0]  %s75, 16, %s208, [#allocation10]
    $region153: #{gdan_forward.9} parent=1 // pred_fallthru
      _
    // Predicated region
    $region154: #{gdan_forward.9} parent=1 // pred_check
      _
    $region155: #{gdan_forward.9} parent=1 // pred_check_branch
      %212 = sbr.rel (0) target = $region157
    $region156: #{gdan_forward.9} parent=1 // pred_region
      _
    $region157: #{gdan_forward.9} parent=1 // pred_fallthru
      _
    // Predicated region
    $region158: #{gdan_forward.9} parent=1 // pred_check
      _
    $region159: #{gdan_forward.9} parent=1 // pred_check_branch
      %214 = sbr.rel (0) target = $region161
    $region160: #{gdan_forward.9} parent=1 // pred_region
      _
    $region161: #{gdan_forward.9} parent=1 // pred_fallthru
      _
    // Predicated region
    $region162: #{gdan_forward.9} parent=1 // pred_check
      _
    $region163: #{gdan_forward.9} parent=1 // pred_check_branch
      %216 = sbr.rel (0) target = $region165
    $region164: #{gdan_forward.9} parent=1 // pred_region
      %217 = dma.done [#allocation4], 16
    $region165: #{gdan_forward.9} parent=1 // pred_fallthru
      _
    // Predicated region
    $region166: #{gdan_forward.9} parent=1 // pred_check
      _
    $region167: #{gdan_forward.9} parent=1 // pred_check_branch
      %219 = sbr.rel (0) target = $region169
    $region168: #{gdan_forward.9} parent=1 // pred_region
      %220 = dma.done [#allocation7], 16
    $region169: #{gdan_forward.9} parent=1 // pred_fallthru
      _
    // Predicated region
    $region170: #{gdan_forward.9} parent=1 // pred_check
      _
    $region171: #{gdan_forward.9} parent=1 // pred_check_branch
      %222 = sbr.rel (0) target = $region173
    $region172: #{gdan_forward.9} parent=1 // pred_region
      %223 = dma.done [#allocation7], 16
    $region173: #{gdan_forward.9} parent=1 // pred_fallthru
      _
    // Predicated region
    $region174: #{gdan_forward.9} parent=1 // pred_check
      _
    $region175: #{gdan_forward.9} parent=1 // pred_check_branch
      %225 = sbr.rel (0) target = $region177
    $region176: #{gdan_forward.9} parent=1 // pred_region
      %226 = dma.done [#allocation10], 16
    $region177: #{gdan_forward.9} parent=1 // pred_fallthru
      _
    %v227 = vld [vmem:[%s1] sm:$0xff]
    %v228 = vld [vmem:[%s1 + $0x8] sm:$0x3]
    %v229 = vld [vmem:[%s9] sm:$0xff]
    %v230 = vld [vmem:[%s9 + $0x8] sm:$0xff]
    %v231 = vld [vmem:[%s9 + $0x10] sm:$0xff]
    %v232 = vld [vmem:[%s9 + $0x18] sm:$0xff]
    %v233 = vld [vmem:[%s9 + $0x20] sm:$0xff]
    %v234 = vld [vmem:[%s9 + $0x28] sm:$0xff]
    %v235 = vld [vmem:[%s9 + $0x30] sm:$0xff]
    %v236 = vld [vmem:[%s9 + $0x38] sm:$0xff]
    %v237 = vld [vmem:[%s9 + $0x40] sm:$0xff]
    %v238 = vld [vmem:[%s9 + $0x48] sm:$0xff]
    %v239 = vld [vmem:[%s9 + $0x50] sm:$0xff]
    %v240 = vld [vmem:[%s9 + $0x58] sm:$0xff]
    %v241 = vld [vmem:[%s9 + $0x60] sm:$0xff]
    %v242 = vld [vmem:[%s9 + $0x68] sm:$0xff]
    %v243 = vld [vmem:[%s9 + $0x70] sm:$0xff]
    %v244 = vld [vmem:[%s9 + $0x78] sm:$0xff]
    %v245 = vld [vmem:[%s9 + $0x80] sm:$0xff]
    %v246 = vld [vmem:[%s9 + $0x88] sm:$0xff]
    %v247 = vld [vmem:[%s9 + $0x90] sm:$0xff]
    %v248 = vld [vmem:[%s9 + $0x98] sm:$0xff]
    %v249 = vld [vmem:[%s9 + $0xa0] sm:$0xff]
    %v250 = vld [vmem:[%s9 + $0xa8] sm:$0xff]
    %v251 = vld [vmem:[%s9 + $0xb0] sm:$0xff]
    %v252 = vld [vmem:[%s9 + $0xb8] sm:$0xff]
    %v253 = vld [vmem:[%s9 + $0xc0] sm:$0xff]
    %v254 = vld [vmem:[%s9 + $0xc8] sm:$0xff]
    %v255 = vld [vmem:[%s9 + $0xd0] sm:$0xff]
    %v256 = vld [vmem:[%s9 + $0xd8] sm:$0xff]
    %v257 = vld [vmem:[%s9 + $0xe0] sm:$0xff]
    %v258 = vld [vmem:[%s9 + $0xe8] sm:$0xff]
    %v259 = vld [vmem:[%s9 + $0xf0] sm:$0xff]
    %v260 = vld [vmem:[%s9 + $0xf8] sm:$0xff]
    %v261 = vld [vmem:[%s9 + $0x100] sm:$0xff]
    %v262 = vld [vmem:[%s9 + $0x108] sm:$0xff]
    %v263 = vld [vmem:[%s9 + $0x110] sm:$0xff]
    %v264 = vld [vmem:[%s9 + $0x118] sm:$0xff]
    %v265 = vld [vmem:[%s9 + $0x120] sm:$0xff]
    %v266 = vld [vmem:[%s9 + $0x128] sm:$0xff]
    %v267 = vld [vmem:[%s9 + $0x130] sm:$0xff]
    %v268 = vld [vmem:[%s9 + $0x138] sm:$0xff]
    %v269 = vld [vmem:[%s9 + $0x140] sm:$0xff]
    %v270 = vld [vmem:[%s9 + $0x148] sm:$0xff]
    %v271 = vld [vmem:[%s9 + $0x150] sm:$0xff]
    %v272 = vld [vmem:[%s9 + $0x158] sm:$0xff]
    %v273 = vld [vmem:[%s9 + $0x160] sm:$0xff]
    %v274 = vld [vmem:[%s9 + $0x168] sm:$0xff]
    %v275 = vld [vmem:[%s9 + $0x170] sm:$0xff]
    %v276 = vld [vmem:[%s9 + $0x178] sm:$0xff]
    %v277 = vld [vmem:[%s9 + $0x180] sm:$0xff]
    %v278 = vld [vmem:[%s9 + $0x188] sm:$0xff]
    %v279 = vld [vmem:[%s9 + $0x190] sm:$0xff]
    %v280 = vld [vmem:[%s9 + $0x198] sm:$0xff]
    %v281 = vld [vmem:[%s9 + $0x1a0] sm:$0xff]
    %v282 = vld [vmem:[%s9 + $0x1a8] sm:$0xff]
    %v283 = vld [vmem:[%s9 + $0x1b0] sm:$0xff]
    %v284 = vld [vmem:[%s9 + $0x1b8] sm:$0xff]
    %v285 = vld [vmem:[%s9 + $0x1c0] sm:$0xff]
    %v286 = vld [vmem:[%s9 + $0x1c8] sm:$0xff]
    %v287 = vld [vmem:[%s9 + $0x1d0] sm:$0xff]
    %v288 = vld [vmem:[%s9 + $0x1d8] sm:$0xff]
    %v289 = vld [vmem:[%s9 + $0x1e0] sm:$0xff]
    %v290 = vld [vmem:[%s9 + $0x1e8] sm:$0xff]
    %v291 = vld [vmem:[%s9 + $0x1f0] sm:$0xff]
    %v292 = vld [vmem:[%s9 + $0x1f8] sm:$0xff]
    %v293 = vld [vmem:[%s9 + $0x200] sm:$0xff]
    %v294 = vld [vmem:[%s9 + $0x208] sm:$0xff]
    %v295 = vld [vmem:[%s9 + $0x210] sm:$0xff]
    %v296 = vld [vmem:[%s9 + $0x218] sm:$0xff]
    %v297 = vld [vmem:[%s9 + $0x220] sm:$0xff]
    %v298 = vld [vmem:[%s9 + $0x228] sm:$0xff]
    %v299 = vld [vmem:[%s9 + $0x230] sm:$0xff]
    %v300 = vld [vmem:[%s9 + $0x238] sm:$0xff]
    %v301 = vunpack.c.l.bf16 %v229
    %v302 = vunpack.c.h.bf16 %v229
    %v303 = vunpack.c.l.bf16 %v230
    %v304 = vunpack.c.h.bf16 %v230
    %v305 = vunpack.c.l.bf16 %v231
    %v306 = vunpack.c.h.bf16 %v231
    %v307 = vunpack.c.l.bf16 %v232
    %v308 = vunpack.c.h.bf16 %v232
    %v309 = vunpack.c.l.bf16 %v233
    %v310 = vunpack.c.h.bf16 %v233
    %v311 = vunpack.c.l.bf16 %v234
    %v312 = vunpack.c.h.bf16 %v234
    %v313 = vunpack.c.l.bf16 %v235
    %v314 = vunpack.c.h.bf16 %v235
    %v315 = vunpack.c.l.bf16 %v236
    %v316 = vunpack.c.h.bf16 %v236
    %v317 = vunpack.c.l.bf16 %v237
    %v318 = vunpack.c.h.bf16 %v237
    %v319 = vunpack.c.l.bf16 %v238
    %v320 = vunpack.c.h.bf16 %v238
    %v321 = vunpack.c.l.bf16 %v239
    %v322 = vunpack.c.h.bf16 %v239
    %v323 = vunpack.c.l.bf16 %v240
    %v324 = vunpack.c.h.bf16 %v240
    %v325 = vunpack.c.l.bf16 %v241
    %v326 = vunpack.c.h.bf16 %v241
    %v327 = vunpack.c.l.bf16 %v242
    %v328 = vunpack.c.h.bf16 %v242
    %v329 = vunpack.c.l.bf16 %v243
    %v330 = vunpack.c.h.bf16 %v243
    %v331 = vunpack.c.l.bf16 %v244
    %v332 = vunpack.c.h.bf16 %v244
    %v333 = vunpack.c.l.bf16 %v245
    %v334 = vunpack.c.h.bf16 %v245
    %v335 = vunpack.c.l.bf16 %v246
    %v336 = vunpack.c.h.bf16 %v246
    %v337 = vunpack.c.l.bf16 %v247
    %v338 = vunpack.c.h.bf16 %v247
    %v339 = vunpack.c.l.bf16 %v248
    %v340 = vunpack.c.h.bf16 %v248
    %v341 = vunpack.c.l.bf16 %v249
    %v342 = vunpack.c.h.bf16 %v249
    %v343 = vunpack.c.l.bf16 %v250
    %v344 = vunpack.c.h.bf16 %v250
    %v345 = vunpack.c.l.bf16 %v251
    %v346 = vunpack.c.h.bf16 %v251
    %v347 = vunpack.c.l.bf16 %v252
    %v348 = vunpack.c.h.bf16 %v252
    %v349 = vunpack.c.l.bf16 %v253
    %v350 = vunpack.c.h.bf16 %v253
    %v351 = vunpack.c.l.bf16 %v254
    %v352 = vunpack.c.h.bf16 %v254
    %v353 = vunpack.c.l.bf16 %v255
    %v354 = vunpack.c.h.bf16 %v255
    %v355 = vunpack.c.l.bf16 %v256
    %v356 = vunpack.c.h.bf16 %v256
    %v357 = vunpack.c.l.bf16 %v257
    %v358 = vunpack.c.h.bf16 %v257
    %v359 = vunpack.c.l.bf16 %v258
    %v360 = vunpack.c.h.bf16 %v258
    %v361 = vunpack.c.l.bf16 %v259
    %v362 = vunpack.c.h.bf16 %v259
    %v363 = vunpack.c.l.bf16 %v260
    %v364 = vunpack.c.h.bf16 %v260
    %v365 = vunpack.c.l.bf16 %v261
    %v366 = vunpack.c.h.bf16 %v261
    %v367 = vunpack.c.l.bf16 %v262
    %v368 = vunpack.c.h.bf16 %v262
    %v369 = vunpack.c.l.bf16 %v263
    %v370 = vunpack.c.h.bf16 %v263
    %v371 = vunpack.c.l.bf16 %v264
    %v372 = vunpack.c.h.bf16 %v264
    %v373 = vunpack.c.l.bf16 %v265
    %v374 = vunpack.c.h.bf16 %v265
    %v375 = vunpack.c.l.bf16 %v266
    %v376 = vunpack.c.h.bf16 %v266
    %v377 = vunpack.c.l.bf16 %v267
    %v378 = vunpack.c.h.bf16 %v267
    %v379 = vunpack.c.l.bf16 %v268
    %v380 = vunpack.c.h.bf16 %v268
    %v381 = vunpack.c.l.bf16 %v269
    %v382 = vunpack.c.h.bf16 %v269
    %v383 = vunpack.c.l.bf16 %v270
    %v384 = vunpack.c.h.bf16 %v270
    %v385 = vunpack.c.l.bf16 %v271
    %v386 = vunpack.c.h.bf16 %v271
    %v387 = vunpack.c.l.bf16 %v272
    %v388 = vunpack.c.h.bf16 %v272
    %v389 = vunpack.c.l.bf16 %v273
    %v390 = vunpack.c.h.bf16 %v273
    %v391 = vunpack.c.l.bf16 %v274
    %v392 = vunpack.c.h.bf16 %v274
    %v393 = vunpack.c.l.bf16 %v275
    %v394 = vunpack.c.h.bf16 %v275
    %v395 = vunpack.c.l.bf16 %v276
    %v396 = vunpack.c.h.bf16 %v276
    %v397 = vunpack.c.l.bf16 %v277
    %v398 = vunpack.c.h.bf16 %v277
    %v399 = vunpack.c.l.bf16 %v278
    %v400 = vunpack.c.h.bf16 %v278
    %v401 = vunpack.c.l.bf16 %v279
    %v402 = vunpack.c.h.bf16 %v279
    %v403 = vunpack.c.l.bf16 %v280
    %v404 = vunpack.c.h.bf16 %v280
    %v405 = vunpack.c.l.bf16 %v281
    %v406 = vunpack.c.h.bf16 %v281
    %v407 = vunpack.c.l.bf16 %v282
    %v408 = vunpack.c.h.bf16 %v282
    %v409 = vunpack.c.l.bf16 %v283
    %v410 = vunpack.c.h.bf16 %v283
    %v411 = vunpack.c.l.bf16 %v284
    %v412 = vunpack.c.h.bf16 %v284
    %v413 = vunpack.c.l.bf16 %v285
    %v414 = vunpack.c.h.bf16 %v285
    %v415 = vunpack.c.l.bf16 %v286
    %v416 = vunpack.c.h.bf16 %v286
    %v417 = vunpack.c.l.bf16 %v287
    %v418 = vunpack.c.h.bf16 %v287
    %v419 = vunpack.c.l.bf16 %v288
    %v420 = vunpack.c.h.bf16 %v288
    %v421 = vunpack.c.l.bf16 %v289
    %v422 = vunpack.c.h.bf16 %v289
    %v423 = vunpack.c.l.bf16 %v290
    %v424 = vunpack.c.h.bf16 %v290
    %v425 = vunpack.c.l.bf16 %v291
    %v426 = vunpack.c.h.bf16 %v291
    %v427 = vunpack.c.l.bf16 %v292
    %v428 = vunpack.c.h.bf16 %v292
    %v429 = vunpack.c.l.bf16 %v293
    %v430 = vunpack.c.h.bf16 %v293
    %v431 = vunpack.c.l.bf16 %v294
    %v432 = vunpack.c.h.bf16 %v294
    %v433 = vunpack.c.l.bf16 %v295
    %v434 = vunpack.c.h.bf16 %v295
    %v435 = vunpack.c.l.bf16 %v296
    %v436 = vunpack.c.h.bf16 %v296
    %v437 = vunpack.c.l.bf16 %v297
    %v438 = vunpack.c.h.bf16 %v297
    %v439 = vunpack.c.l.bf16 %v298
    %v440 = vunpack.c.h.bf16 %v298
    %v441 = vunpack.c.l.bf16 %v299
    %v442 = vunpack.c.h.bf16 %v299
    %v443 = vunpack.c.l.bf16 %v300
    %v444 = vunpack.c.h.bf16 %v300
    %v445 = vld [vmem:[%s11] sm:$0x3]
    %v447 = vlaneseq
    %v448 = vshrl.u32 %v447, 7
    %v449 = vsub.s32 0, %v448
    %v450 = vrot.slane %v445, %v449
    %v451 = vlaneseq
    %v452 = vshrl.u32 %v451, 7
    %v453 = vsub.s32 1, %v452
    %v454 = vrot.slane %v445, %v453
    %v459 = vcombine.high %v227, %v227
    %v461 = vunpack.c.l.s4 1983009808
    %v462 = vunpack.c.0.s8 %v461
    %v463 = vlaneseq
    %v464 = vshrl.u32 %v463, 7
    %v465 = vsub.s32 %v462, %v464
    %v466 = vrot.slane %v227, %v465
    %v468 = vunpack.c.l.s4 1983009808
    %v469 = vunpack.c.0.s8 %v468
    %v470 = vlaneseq
    %v471 = vshrl.u32 %v470, 7
    %v472 = vsub.s32 %v469, %v471
    %v473 = vrot.slane %v459, %v472
    %v474 = vcombine.high %v466, %v466
    %v475 = vcombine.high %v473, %v473
    %v477 = vunpack.c.l.s4 1983009808
    %v478 = vunpack.c.0.s8 %v477
    %v479 = vlaneseq
    %v480 = vshrl.u32 %v479, 7
    %v481 = vsub.s32 %v478, %v480
    %v482 = vrot.slane %v228, %v481
    %vm487 = vcmask 523264
    %v488 = vsel %vm487, %v482, 0
    %490 = vmatprep.subr.mxu0 %v332
    %491 = vmatpush1.msra.mxu0 %v331
    %492 = vmatprep.subr.mxu0 %v330
    %493 = vmatpush1.msra.mxu0 %v329
    %494 = vmatprep.subr.mxu0 %v328
    %495 = vmatpush1.msra.mxu0 %v327
    %496 = vmatprep.subr.mxu0 %v326
    %497 = vmatpush1.msra.mxu0 %v325
    %498 = vmatprep.subr.mxu0 %v324
    %499 = vmatpush1.msra.mxu0 %v323
    %500 = vmatprep.subr.mxu0 %v322
    %501 = vmatpush1.msra.mxu0 %v321
    %502 = vmatprep.subr.mxu0 %v320
    %503 = vmatpush1.msra.mxu0 %v319
    %504 = vmatprep.subr.mxu0 %v318
    %505 = vmatpush1.msra.mxu0 %v317
    %506 = vmatprep.subr.mxu0 %v316
    %507 = vmatpush1.msra.mxu0 %v315
    %508 = vmatprep.subr.mxu0 %v314
    %509 = vmatpush1.msra.mxu0 %v313
    %510 = vmatprep.subr.mxu0 %v312
    %511 = vmatpush1.msra.mxu0 %v311
    %512 = vmatprep.subr.mxu0 %v310
    %513 = vmatpush1.msra.mxu0 %v309
    %514 = vmatprep.subr.mxu0 %v308
    %515 = vmatpush1.msra.mxu0 %v307
    %516 = vmatprep.subr.mxu0 %v306
    %517 = vmatpush1.msra.mxu0 %v305
    %518 = vmatprep.subr.mxu0 %v304
    %519 = vmatpush1.msra.mxu0 %v303
    %520 = vmatprep.subr.mxu0 %v302
    %521 = vmatpush1.msra.mxu0 %v301
    %522 = vmatprep.subr.mxu0 %v364
    %523 = vmatpush2.msra.mxu0 %v363
    %524 = vmatprep.subr.mxu0 %v362
    %525 = vmatpush2.msra.mxu0 %v361
    %526 = vmatprep.subr.mxu0 %v360
    %527 = vmatpush2.msra.mxu0 %v359
    %528 = vmatprep.subr.mxu0 %v358
    %529 = vmatpush2.msra.mxu0 %v357
    %530 = vmatprep.subr.mxu0 %v356
    %531 = vmatpush2.msra.mxu0 %v355
    %532 = vmatprep.subr.mxu0 %v354
    %533 = vmatpush2.msra.mxu0 %v353
    %534 = vmatprep.subr.mxu0 %v352
    %535 = vmatpush2.msra.mxu0 %v351
    %536 = vmatprep.subr.mxu0 %v350
    %537 = vmatpush2.msra.mxu0 %v349
    %538 = vmatprep.subr.mxu0 %v348
    %539 = vmatpush2.msra.mxu0 %v347
    %540 = vmatprep.subr.mxu0 %v346
    %541 = vmatpush2.msra.mxu0 %v345
    %542 = vmatprep.subr.mxu0 %v344
    %543 = vmatpush2.msra.mxu0 %v343
    %544 = vmatprep.subr.mxu0 %v342
    %545 = vmatpush2.msra.mxu0 %v341
    %546 = vmatprep.subr.mxu0 %v340
    %547 = vmatpush2.msra.mxu0 %v339
    %548 = vmatprep.subr.mxu0 %v338
    %549 = vmatpush2.msra.mxu0 %v337
    %550 = vmatprep.subr.mxu0 %v336
    %551 = vmatpush2.msra.mxu0 %v335
    %552 = vmatprep.subr.mxu0 %v334
    %553 = vmatpush2.msra.mxu0 %v333
    %554 = vmatprep.mubr.f32.mxu0 %v474
    %555 = vmatmul.mubr.f32.gmra.mxu0 %v466
    %v556 = vpop.f32.mrf.mxu0
    %v557 = vadd.f32 %v450, %v556
    %v558 = vpop.f32.mrf.mxu0
    %v559 = vadd.f32 %v454, %v558
    %560 = vdwg.mxu0
    %561 = vmatprep.subr.mxu0 %v396
    %562 = vmatpush1.msra.mxu0 %v395
    %563 = vmatprep.subr.mxu0 %v394
    %564 = vmatpush1.msra.mxu0 %v393
    %565 = vmatprep.subr.mxu0 %v392
    %566 = vmatpush1.msra.mxu0 %v391
    %567 = vmatprep.subr.mxu0 %v390
    %568 = vmatpush1.msra.mxu0 %v389
    %569 = vmatprep.subr.mxu0 %v388
    %570 = vmatpush1.msra.mxu0 %v387
    %571 = vmatprep.subr.mxu0 %v386
    %572 = vmatpush1.msra.mxu0 %v385
    %573 = vmatprep.subr.mxu0 %v384
    %574 = vmatpush1.msra.mxu0 %v383
    %575 = vmatprep.subr.mxu0 %v382
    %576 = vmatpush1.msra.mxu0 %v381
    %577 = vmatprep.subr.mxu0 %v380
    %578 = vmatpush1.msra.mxu0 %v379
    %579 = vmatprep.subr.mxu0 %v378
    %580 = vmatpush1.msra.mxu0 %v377
    %581 = vmatprep.subr.mxu0 %v376
    %582 = vmatpush1.msra.mxu0 %v375
    %583 = vmatprep.subr.mxu0 %v374
    %584 = vmatpush1.msra.mxu0 %v373
    %585 = vmatprep.subr.mxu0 %v372
    %586 = vmatpush1.msra.mxu0 %v371
    %587 = vmatprep.subr.mxu0 %v370
    %588 = vmatpush1.msra.mxu0 %v369
    %589 = vmatprep.subr.mxu0 %v368
    %590 = vmatpush1.msra.mxu0 %v367
    %591 = vmatprep.subr.mxu0 %v366
    %592 = vmatpush1.msra.mxu0 %v365
    %593 = vmatprep.subr.mxu0 %v428
    %594 = vmatpush2.msra.mxu0 %v427
    %595 = vmatprep.subr.mxu0 %v426
    %596 = vmatpush2.msra.mxu0 %v425
    %597 = vmatprep.subr.mxu0 %v424
    %598 = vmatpush2.msra.mxu0 %v423
    %599 = vmatprep.subr.mxu0 %v422
    %600 = vmatpush2.msra.mxu0 %v421
    %601 = vmatprep.subr.mxu0 %v420
    %602 = vmatpush2.msra.mxu0 %v419
    %603 = vmatprep.subr.mxu0 %v418
    %604 = vmatpush2.msra.mxu0 %v417
    %605 = vmatprep.subr.mxu0 %v416
    %606 = vmatpush2.msra.mxu0 %v415
    %607 = vmatprep.subr.mxu0 %v414
    %608 = vmatpush2.msra.mxu0 %v413
    %609 = vmatprep.subr.mxu0 %v412
    %610 = vmatpush2.msra.mxu0 %v411
    %611 = vmatprep.subr.mxu0 %v410
    %612 = vmatpush2.msra.mxu0 %v409
    %613 = vmatprep.subr.mxu0 %v408
    %614 = vmatpush2.msra.mxu0 %v407
    %615 = vmatprep.subr.mxu0 %v406
    %616 = vmatpush2.msra.mxu0 %v405
    %617 = vmatprep.subr.mxu0 %v404
    %618 = vmatpush2.msra.mxu0 %v403
    %619 = vmatprep.subr.mxu0 %v402
    %620 = vmatpush2.msra.mxu0 %v401
    %621 = vmatprep.subr.mxu0 %v400
    %622 = vmatpush2.msra.mxu0 %v399
    %623 = vmatprep.subr.mxu0 %v398
    %624 = vmatpush2.msra.mxu0 %v397
    %625 = vmatprep.mubr.f32.mxu0 %v475
    %626 = vmatmul.mubr.f32.gmra.mxu0 %v473
    %v627 = vpop.f32.mrf.mxu0
    %v628 = vadd.f32 %v557, %v627
    %v629 = vpop.f32.mrf.mxu0
    %v630 = vadd.f32 %v559, %v629
    %631 = vdwg.mxu0
    %632 = vmatprep.subr.mxu0 0.0
    %633 = vmatpush1.msra.mxu0 0.0
    %634 = vmatprep.subr.mxu0 0.0
    %635 = vmatpush1.msra.mxu0 0.0
    %636 = vmatprep.subr.mxu0 0.0
    %637 = vmatpush1.msra.mxu0 0.0
    %638 = vmatprep.subr.mxu0 0.0
    %639 = vmatpush1.msra.mxu0 0.0
    %640 = vmatprep.subr.mxu0 0.0
    %641 = vmatpush1.msra.mxu0 0.0
    %642 = vmatprep.subr.mxu0 0.0
    %643 = vmatpush1.msra.mxu0 0.0
    %644 = vmatprep.subr.mxu0 0.0
    %645 = vmatpush1.msra.mxu0 0.0
    %646 = vmatprep.subr.mxu0 0.0
    %647 = vmatpush1.msra.mxu0 0.0
    %648 = vmatprep.subr.mxu0 %v444
    %649 = vmatpush1.msra.mxu0 %v443
    %650 = vmatprep.subr.mxu0 %v442
    %651 = vmatpush1.msra.mxu0 %v441
    %652 = vmatprep.subr.mxu0 %v440
    %653 = vmatpush1.msra.mxu0 %v439
    %654 = vmatprep.subr.mxu0 %v438
    %655 = vmatpush1.msra.mxu0 %v437
    %656 = vmatprep.subr.mxu0 %v436
    %657 = vmatpush1.msra.mxu0 %v435
    %658 = vmatprep.subr.mxu0 %v434
    %659 = vmatpush1.msra.mxu0 %v433
    %660 = vmatprep.subr.mxu0 %v432
    %661 = vmatpush1.msra.mxu0 %v431
    %662 = vmatprep.subr.mxu0 %v430
    %663 = vmatpush1.msra.mxu0 %v429
    %664 = vmatprep.subr.mxu0 0.0
    %665 = vmatpush2.msra.mxu0 0.0
    %666 = vmatprep.subr.mxu0 0.0
    %667 = vmatpush2.msra.mxu0 0.0
    %668 = vmatprep.subr.mxu0 0.0
    %669 = vmatpush2.msra.mxu0 0.0
    %670 = vmatprep.subr.mxu0 0.0
    %671 = vmatpush2.msra.mxu0 0.0
    %672 = vmatprep.subr.mxu0 0.0
    %673 = vmatpush2.msra.mxu0 0.0
    %674 = vmatprep.subr.mxu0 0.0
    %675 = vmatpush2.msra.mxu0 0.0
    %676 = vmatprep.subr.mxu0 0.0
    %677 = vmatpush2.msra.mxu0 0.0
    %678 = vmatprep.subr.mxu0 0.0
    %679 = vmatpush2.msra.mxu0 0.0
    %680 = vmatprep.subr.mxu0 0.0
    %681 = vmatpush2.msra.mxu0 0.0
    %682 = vmatprep.subr.mxu0 0.0
    %683 = vmatpush2.msra.mxu0 0.0
    %684 = vmatprep.subr.mxu0 0.0
    %685 = vmatpush2.msra.mxu0 0.0
    %686 = vmatprep.subr.mxu0 0.0
    %687 = vmatpush2.msra.mxu0 0.0
    %688 = vmatprep.subr.mxu0 0.0
    %689 = vmatpush2.msra.mxu0 0.0
    %690 = vmatprep.subr.mxu0 0.0
    %691 = vmatpush2.msra.mxu0 0.0
    %692 = vmatprep.subr.mxu0 0.0
    %693 = vmatpush2.msra.mxu0 0.0
    %694 = vmatprep.subr.mxu0 0.0
    %695 = vmatpush2.msra.mxu0 0.0
    %696 = vmatprep.mubr.f32.mxu0 0.0
    %697 = vmatmul.mubr.f32.gmra.mxu0 %v488
    %v698 = vpop.f32.mrf.mxu0
    %v699 = vadd.f32 %v628, %v698
    %v700 = vpop.f32.mrf.mxu0
    %v701 = vadd.f32 %v630, %v700
    %702 = vdwg.mxu0
    %v703 = vmax.f32 %v699, 0.0
    %v704 = vmax.f32 %v701, 0.0
    %v705 = vld [vmem:[%s13] sm:$0xff]
    %v706 = vld [vmem:[%s13 + $0x8] sm:$0xff]
    %v707 = vld [vmem:[%s13 + $0x10] sm:$0xff]
    %v708 = vld [vmem:[%s13 + $0x18] sm:$0xff]
    %v709 = vld [vmem:[%s13 + $0x20] sm:$0xff]
    %v710 = vld [vmem:[%s13 + $0x28] sm:$0xff]
    %v711 = vld [vmem:[%s13 + $0x30] sm:$0xff]
    %v712 = vld [vmem:[%s13 + $0x38] sm:$0xff]
    %v713 = vld [vmem:[%s13 + $0x40] sm:$0xff]
    %v714 = vld [vmem:[%s13 + $0x48] sm:$0xff]
    %v715 = vld [vmem:[%s13 + $0x50] sm:$0xff]
    %v716 = vld [vmem:[%s13 + $0x58] sm:$0xff]
    %v717 = vld [vmem:[%s13 + $0x60] sm:$0xff]
    %v718 = vld [vmem:[%s13 + $0x68] sm:$0xff]
    %v719 = vld [vmem:[%s13 + $0x70] sm:$0xff]
    %v720 = vld [vmem:[%s13 + $0x78] sm:$0xff]
    %v721 = vld [vmem:[%s13 + $0x80] sm:$0xff]
    %v722 = vld [vmem:[%s13 + $0x88] sm:$0xff]
    %v723 = vld [vmem:[%s13 + $0x90] sm:$0xff]
    %v724 = vld [vmem:[%s13 + $0x98] sm:$0xff]
    %v725 = vld [vmem:[%s13 + $0xa0] sm:$0xff]
    %v726 = vld [vmem:[%s13 + $0xa8] sm:$0xff]
    %v727 = vld [vmem:[%s13 + $0xb0] sm:$0xff]
    %v728 = vld [vmem:[%s13 + $0xb8] sm:$0xff]
    %v729 = vld [vmem:[%s13 + $0xc0] sm:$0xff]
    %v730 = vld [vmem:[%s13 + $0xc8] sm:$0xff]
    %v731 = vld [vmem:[%s13 + $0xd0] sm:$0xff]
    %v732 = vld [vmem:[%s13 + $0xd8] sm:$0xff]
    %v733 = vld [vmem:[%s13 + $0xe0] sm:$0xff]
    %v734 = vld [vmem:[%s13 + $0xe8] sm:$0xff]
    %v735 = vld [vmem:[%s13 + $0xf0] sm:$0xff]
    %v736 = vld [vmem:[%s13 + $0xf8] sm:$0xff]
    %v737 = vunpack.c.l.bf16 %v705
    %v738 = vunpack.c.h.bf16 %v705
    %v739 = vunpack.c.l.bf16 %v706
    %v740 = vunpack.c.h.bf16 %v706
    %v741 = vunpack.c.l.bf16 %v707
    %v742 = vunpack.c.h.bf16 %v707
    %v743 = vunpack.c.l.bf16 %v708
    %v744 = vunpack.c.h.bf16 %v708
    %v745 = vunpack.c.l.bf16 %v709
    %v746 = vunpack.c.h.bf16 %v709
    %v747 = vunpack.c.l.bf16 %v710
    %v748 = vunpack.c.h.bf16 %v710
    %v749 = vunpack.c.l.bf16 %v711
    %v750 = vunpack.c.h.bf16 %v711
    %v751 = vunpack.c.l.bf16 %v712
    %v752 = vunpack.c.h.bf16 %v712
    %v753 = vunpack.c.l.bf16 %v713
    %v754 = vunpack.c.h.bf16 %v713
    %v755 = vunpack.c.l.bf16 %v714
    %v756 = vunpack.c.h.bf16 %v714
    %v757 = vunpack.c.l.bf16 %v715
    %v758 = vunpack.c.h.bf16 %v715
    %v759 = vunpack.c.l.bf16 %v716
    %v760 = vunpack.c.h.bf16 %v716
    %v761 = vunpack.c.l.bf16 %v717
    %v762 = vunpack.c.h.bf16 %v717
    %v763 = vunpack.c.l.bf16 %v718
    %v764 = vunpack.c.h.bf16 %v718
    %v765 = vunpack.c.l.bf16 %v719
    %v766 = vunpack.c.h.bf16 %v719
    %v767 = vunpack.c.l.bf16 %v720
    %v768 = vunpack.c.h.bf16 %v720
    %v769 = vunpack.c.l.bf16 %v721
    %v770 = vunpack.c.h.bf16 %v721
    %v771 = vunpack.c.l.bf16 %v722
    %v772 = vunpack.c.h.bf16 %v722
    %v773 = vunpack.c.l.bf16 %v723
    %v774 = vunpack.c.h.bf16 %v723
    %v775 = vunpack.c.l.bf16 %v724
    %v776 = vunpack.c.h.bf16 %v724
    %v777 = vunpack.c.l.bf16 %v725
    %v778 = vunpack.c.h.bf16 %v725
    %v779 = vunpack.c.l.bf16 %v726
    %v780 = vunpack.c.h.bf16 %v726
    %v781 = vunpack.c.l.bf16 %v727
    %v782 = vunpack.c.h.bf16 %v727
    %v783 = vunpack.c.l.bf16 %v728
    %v784 = vunpack.c.h.bf16 %v728
    %v785 = vunpack.c.l.bf16 %v729
    %v786 = vunpack.c.h.bf16 %v729
    %v787 = vunpack.c.l.bf16 %v730
    %v788 = vunpack.c.h.bf16 %v730
    %v789 = vunpack.c.l.bf16 %v731
    %v790 = vunpack.c.h.bf16 %v731
    %v791 = vunpack.c.l.bf16 %v732
    %v792 = vunpack.c.h.bf16 %v732
    %v793 = vunpack.c.l.bf16 %v733
    %v794 = vunpack.c.h.bf16 %v733
    %v795 = vunpack.c.l.bf16 %v734
    %v796 = vunpack.c.h.bf16 %v734
    %v797 = vunpack.c.l.bf16 %v735
    %v798 = vunpack.c.h.bf16 %v735
    %v799 = vunpack.c.l.bf16 %v736
    %v800 = vunpack.c.h.bf16 %v736
    %v801 = vld [vmem:[%s15] sm:$0x3]
    %v803 = vlaneseq
    %v804 = vshrl.u32 %v803, 7
    %v805 = vsub.s32 0, %v804
    %v806 = vrot.slane %v801, %v805
    %v807 = vlaneseq
    %v808 = vshrl.u32 %v807, 7
    %v809 = vsub.s32 1, %v808
    %v810 = vrot.slane %v801, %v809
    %813 = vmatprep.subr.mxu0 %v768
    %814 = vmatpush1.msra.mxu0 %v767
    %815 = vmatprep.subr.mxu0 %v766
    %816 = vmatpush1.msra.mxu0 %v765
    %817 = vmatprep.subr.mxu0 %v764
    %818 = vmatpush1.msra.mxu0 %v763
    %819 = vmatprep.subr.mxu0 %v762
    %820 = vmatpush1.msra.mxu0 %v761
    %821 = vmatprep.subr.mxu0 %v760
    %822 = vmatpush1.msra.mxu0 %v759
    %823 = vmatprep.subr.mxu0 %v758
    %824 = vmatpush1.msra.mxu0 %v757
    %825 = vmatprep.subr.mxu0 %v756
    %826 = vmatpush1.msra.mxu0 %v755
    %827 = vmatprep.subr.mxu0 %v754
    %828 = vmatpush1.msra.mxu0 %v753
    %829 = vmatprep.subr.mxu0 %v752
    %830 = vmatpush1.msra.mxu0 %v751
    %831 = vmatprep.subr.mxu0 %v750
    %832 = vmatpush1.msra.mxu0 %v749
    %833 = vmatprep.subr.mxu0 %v748
    %834 = vmatpush1.msra.mxu0 %v747
    %835 = vmatprep.subr.mxu0 %v746
    %836 = vmatpush1.msra.mxu0 %v745
    %837 = vmatprep.subr.mxu0 %v744
    %838 = vmatpush1.msra.mxu0 %v743
    %839 = vmatprep.subr.mxu0 %v742
    %840 = vmatpush1.msra.mxu0 %v741
    %841 = vmatprep.subr.mxu0 %v740
    %842 = vmatpush1.msra.mxu0 %v739
    %843 = vmatprep.subr.mxu0 %v738
    %844 = vmatpush1.msra.mxu0 %v737
    %845 = vmatprep.subr.mxu0 %v800
    %846 = vmatpush2.msra.mxu0 %v799
    %847 = vmatprep.subr.mxu0 %v798
    %848 = vmatpush2.msra.mxu0 %v797
    %849 = vmatprep.subr.mxu0 %v796
    %850 = vmatpush2.msra.mxu0 %v795
    %851 = vmatprep.subr.mxu0 %v794
    %852 = vmatpush2.msra.mxu0 %v793
    %853 = vmatprep.subr.mxu0 %v792
    %854 = vmatpush2.msra.mxu0 %v791
    %855 = vmatprep.subr.mxu0 %v790
    %856 = vmatpush2.msra.mxu0 %v789
    %857 = vmatprep.subr.mxu0 %v788
    %858 = vmatpush2.msra.mxu0 %v787
    %859 = vmatprep.subr.mxu0 %v786
    %860 = vmatpush2.msra.mxu0 %v785
    %861 = vmatprep.subr.mxu0 %v784
    %862 = vmatpush2.msra.mxu0 %v783
    %863 = vmatprep.subr.mxu0 %v782
    %864 = vmatpush2.msra.mxu0 %v781
    %865 = vmatprep.subr.mxu0 %v780
    %866 = vmatpush2.msra.mxu0 %v779
    %867 = vmatprep.subr.mxu0 %v778
    %868 = vmatpush2.msra.mxu0 %v777
    %869 = vmatprep.subr.mxu0 %v776
    %870 = vmatpush2.msra.mxu0 %v775
    %871 = vmatprep.subr.mxu0 %v774
    %872 = vmatpush2.msra.mxu0 %v773
    %873 = vmatprep.subr.mxu0 %v772
    %874 = vmatpush2.msra.mxu0 %v771
    %875 = vmatprep.subr.mxu0 %v770
    %876 = vmatpush2.msra.mxu0 %v769
    %877 = vmatprep.mubr.f32.mxu0 %v704
    %878 = vmatmul.mubr.f32.gmra.mxu0 %v703
    %v879 = vpop.f32.mrf.mxu0
    %v880 = vadd.f32 %v806, %v879
    %v881 = vpop.f32.mrf.mxu0
    %v882 = vadd.f32 %v810, %v881
    %883 = vdwg.mxu0
    %v884 = vmax.f32 %v880, 0.0
    %v885 = vmax.f32 %v882, 0.0
    %v886 = vld [vmem:[%s17] sm:$0xf]
    %v887 = vld [vmem:[%s17 + $0x4] sm:$0xf]
    %v888 = vld [vmem:[%s17 + $0x8] sm:$0xf]
    %v889 = vld [vmem:[%s17 + $0xc] sm:$0xf]
    %v890 = vld [vmem:[%s17 + $0x10] sm:$0xf]
    %v891 = vld [vmem:[%s17 + $0x14] sm:$0xf]
    %v892 = vld [vmem:[%s17 + $0x18] sm:$0xf]
    %v893 = vld [vmem:[%s17 + $0x1c] sm:$0xf]
    %v894 = vld [vmem:[%s17 + $0x20] sm:$0xf]
    %v895 = vld [vmem:[%s17 + $0x24] sm:$0xf]
    %v896 = vld [vmem:[%s17 + $0x28] sm:$0xf]
    %v897 = vld [vmem:[%s17 + $0x2c] sm:$0xf]
    %v898 = vld [vmem:[%s17 + $0x30] sm:$0xf]
    %v899 = vld [vmem:[%s17 + $0x34] sm:$0xf]
    %v900 = vld [vmem:[%s17 + $0x38] sm:$0xf]
    %v901 = vld [vmem:[%s17 + $0x3c] sm:$0xf]
    %v902 = vld [vmem:[%s17 + $0x40] sm:$0xf]
    %v903 = vld [vmem:[%s17 + $0x44] sm:$0xf]
    %v904 = vld [vmem:[%s17 + $0x48] sm:$0xf]
    %v905 = vld [vmem:[%s17 + $0x4c] sm:$0xf]
    %v906 = vld [vmem:[%s17 + $0x50] sm:$0xf]
    %v907 = vld [vmem:[%s17 + $0x54] sm:$0xf]
    %v908 = vld [vmem:[%s17 + $0x58] sm:$0xf]
    %v909 = vld [vmem:[%s17 + $0x5c] sm:$0xf]
    %v910 = vld [vmem:[%s17 + $0x60] sm:$0xf]
    %v911 = vld [vmem:[%s17 + $0x64] sm:$0xf]
    %v912 = vld [vmem:[%s17 + $0x68] sm:$0xf]
    %v913 = vld [vmem:[%s17 + $0x6c] sm:$0xf]
    %v914 = vld [vmem:[%s17 + $0x70] sm:$0xf]
    %v915 = vld [vmem:[%s17 + $0x74] sm:$0xf]
    %v916 = vld [vmem:[%s17 + $0x78] sm:$0xf]
    %v917 = vld [vmem:[%s17 + $0x7c] sm:$0xf]
    %v918 = vunpack.c.l.bf16 %v886
    %v919 = vunpack.c.l.bf16 %v887
    %v920 = vunpack.c.l.bf16 %v888
    %v921 = vunpack.c.l.bf16 %v889
    %v922 = vunpack.c.l.bf16 %v890
    %v923 = vunpack.c.l.bf16 %v891
    %v924 = vunpack.c.l.bf16 %v892
    %v925 = vunpack.c.l.bf16 %v893
    %v926 = vunpack.c.l.bf16 %v894
    %v927 = vunpack.c.l.bf16 %v895
    %v928 = vunpack.c.l.bf16 %v896
    %v929 = vunpack.c.l.bf16 %v897
    %v930 = vunpack.c.l.bf16 %v898
    %v931 = vunpack.c.l.bf16 %v899
    %v932 = vunpack.c.l.bf16 %v900
    %v933 = vunpack.c.l.bf16 %v901
    %v934 = vunpack.c.l.bf16 %v902
    %v935 = vunpack.c.l.bf16 %v903
    %v936 = vunpack.c.l.bf16 %v904
    %v937 = vunpack.c.l.bf16 %v905
    %v938 = vunpack.c.l.bf16 %v906
    %v939 = vunpack.c.l.bf16 %v907
    %v940 = vunpack.c.l.bf16 %v908
    %v941 = vunpack.c.l.bf16 %v909
    %v942 = vunpack.c.l.bf16 %v910
    %v943 = vunpack.c.l.bf16 %v911
    %v944 = vunpack.c.l.bf16 %v912
    %v945 = vunpack.c.l.bf16 %v913
    %v946 = vunpack.c.l.bf16 %v914
    %v947 = vunpack.c.l.bf16 %v915
    %v948 = vunpack.c.l.bf16 %v916
    %v949 = vunpack.c.l.bf16 %v917
    %v950 = vld [vmem:[%s19] sm:$0x1]
    %v952 = vlaneseq
    %v953 = vshrl.u32 %v952, 7
    %v954 = vsub.s32 0, %v953
    %v955 = vrot.slane %v950, %v954
    %957 = vmatprep.subr.mxu0 0.0
    %958 = vmatpush1.msra.mxu0 %v933
    %959 = vmatprep.subr.mxu0 0.0
    %960 = vmatpush1.msra.mxu0 %v932
    %961 = vmatprep.subr.mxu0 0.0
    %962 = vmatpush1.msra.mxu0 %v931
    %963 = vmatprep.subr.mxu0 0.0
    %964 = vmatpush1.msra.mxu0 %v930
    %965 = vmatprep.subr.mxu0 0.0
    %966 = vmatpush1.msra.mxu0 %v929
    %967 = vmatprep.subr.mxu0 0.0
    %968 = vmatpush1.msra.mxu0 %v928
    %969 = vmatprep.subr.mxu0 0.0
    %970 = vmatpush1.msra.mxu0 %v927
    %971 = vmatprep.subr.mxu0 0.0
    %972 = vmatpush1.msra.mxu0 %v926
    %973 = vmatprep.subr.mxu0 0.0
    %974 = vmatpush1.msra.mxu0 %v925
    %975 = vmatprep.subr.mxu0 0.0
    %976 = vmatpush1.msra.mxu0 %v924
    %977 = vmatprep.subr.mxu0 0.0
    %978 = vmatpush1.msra.mxu0 %v923
    %979 = vmatprep.subr.mxu0 0.0
    %980 = vmatpush1.msra.mxu0 %v922
    %981 = vmatprep.subr.mxu0 0.0
    %982 = vmatpush1.msra.mxu0 %v921
    %983 = vmatprep.subr.mxu0 0.0
    %984 = vmatpush1.msra.mxu0 %v920
    %985 = vmatprep.subr.mxu0 0.0
    %986 = vmatpush1.msra.mxu0 %v919
    %987 = vmatprep.subr.mxu0 0.0
    %988 = vmatpush1.msra.mxu0 %v918
    %989 = vmatprep.subr.mxu0 0.0
    %990 = vmatpush2.msra.mxu0 %v949
    %991 = vmatprep.subr.mxu0 0.0
    %992 = vmatpush2.msra.mxu0 %v948
    %993 = vmatprep.subr.mxu0 0.0
    %994 = vmatpush2.msra.mxu0 %v947
    %995 = vmatprep.subr.mxu0 0.0
    %996 = vmatpush2.msra.mxu0 %v946
    %997 = vmatprep.subr.mxu0 0.0
    %998 = vmatpush2.msra.mxu0 %v945
    %999 = vmatprep.subr.mxu0 0.0
    %1000 = vmatpush2.msra.mxu0 %v944
    %1001 = vmatprep.subr.mxu0 0.0
    %1002 = vmatpush2.msra.mxu0 %v943
    %1003 = vmatprep.subr.mxu0 0.0
    %1004 = vmatpush2.msra.mxu0 %v942
    %1005 = vmatprep.subr.mxu0 0.0
    %1006 = vmatpush2.msra.mxu0 %v941
    %1007 = vmatprep.subr.mxu0 0.0
    %1008 = vmatpush2.msra.mxu0 %v940
    %1009 = vmatprep.subr.mxu0 0.0
    %1010 = vmatpush2.msra.mxu0 %v939
    %1011 = vmatprep.subr.mxu0 0.0
    %1012 = vmatpush2.msra.mxu0 %v938
    %1013 = vmatprep.subr.mxu0 0.0
    %1014 = vmatpush2.msra.mxu0 %v937
    %1015 = vmatprep.subr.mxu0 0.0
    %1016 = vmatpush2.msra.mxu0 %v936
    %1017 = vmatprep.subr.mxu0 0.0
    %1018 = vmatpush2.msra.mxu0 %v935
    %1019 = vmatprep.subr.mxu0 0.0
    %1020 = vmatpush2.msra.mxu0 %v934
    %1021 = vmatprep.mubr.f32.mxu0 %v885
    %1022 = vmatmul.mubr.f32.gmra.mxu0 %v884
    %v1023 = vpop.f32.mrf.mxu0
    %v1024 = vadd.f32 %v955, %v1023
    %v1025 = vpop.f32.mrf.mxu0
    %1026 = vdwg.mxu0
    %vm1027 = vcmask 25600
    %1028 = vst.msk [vmem:[#allocation11] sm:$0x3] %vm1027, %v1024
    %v1029 = vld [vmem:[%s3] sm:$0x3]
    %v1030 = vlaneseq
    %v1031 = vand.u32 %v1030, 127
    %1032 = vset.pattern.permute.xlu0 0
    %1033 = vperm.xlu0 %1032, %v1029
    %v1034 = vpop.permute.xlu0 %1033
    %vm1035 = vcmp.eq.s32.totalorder %v1031, %v1034
    %v1036 = vsel %vm1035, 1, 0
    %v1037 = vcvt.s32.f32 %v1036
    %v1038 = vld [vmem:[%s21] sm:$0x3]
    %v1039 = vunpack.c.l.bf16 %v1038
    %vm1040 = vcmask 31744
    %v1042 = vsel %vm1040, %v1037, 0
    %vm1044 = vcmask 1043456
    %v1046 = vsel %vm1044, %v1039, 0
    %1048 = vmatprep.subr.mxu0 0.0
    %1049 = vmatpush1.msra.mxu0 0.0
    %1050 = vmatprep.subr.mxu0 0.0
    %1051 = vmatpush1.msra.mxu0 0.0
    %1052 = vmatprep.subr.mxu0 0.0
    %1053 = vmatpush1.msra.mxu0 0.0
    %1054 = vmatprep.subr.mxu0 0.0
    %1055 = vmatpush1.msra.mxu0 0.0
    %1056 = vmatprep.subr.mxu0 0.0
    %1057 = vmatpush1.msra.mxu0 0.0
    %1058 = vmatprep.subr.mxu0 0.0
    %1059 = vmatpush1.msra.mxu0 0.0
    %1060 = vmatprep.subr.mxu0 0.0
    %1061 = vmatpush1.msra.mxu0 0.0
    %1062 = vmatprep.subr.mxu0 0.0
    %1063 = vmatpush1.msra.mxu0 0.0
    %1064 = vmatprep.subr.mxu0 0.0
    %1065 = vmatpush1.msra.mxu0 0.0
    %1066 = vmatprep.subr.mxu0 0.0
    %1067 = vmatpush1.msra.mxu0 0.0
    %1068 = vmatprep.subr.mxu0 0.0
    %1069 = vmatpush1.msra.mxu0 0.0
    %1070 = vmatprep.subr.mxu0 0.0
    %1071 = vmatpush1.msra.mxu0 0.0
    %1072 = vmatprep.subr.mxu0 0.0
    %1073 = vmatpush1.msra.mxu0 0.0
    %1074 = vmatprep.subr.mxu0 0.0
    %1075 = vmatpush1.msra.mxu0 0.0
    %1076 = vmatprep.subr.mxu0 0.0
    %1077 = vmatpush1.msra.mxu0 0.0
    %1078 = vmatprep.subr.mxu0 0.0
    %1079 = vmatpush1.msra.mxu0 %v1046
    %1080 = vmatprep.subr.mxu0 0.0
    %1081 = vmatpush2.msra.mxu0 0.0
    %1082 = vmatprep.subr.mxu0 0.0
    %1083 = vmatpush2.msra.mxu0 0.0
    %1084 = vmatprep.subr.mxu0 0.0
    %1085 = vmatpush2.msra.mxu0 0.0
    %1086 = vmatprep.subr.mxu0 0.0
    %1087 = vmatpush2.msra.mxu0 0.0
    %1088 = vmatprep.subr.mxu0 0.0
    %1089 = vmatpush2.msra.mxu0 0.0
    %1090 = vmatprep.subr.mxu0 0.0
    %1091 = vmatpush2.msra.mxu0 0.0
    %1092 = vmatprep.subr.mxu0 0.0
    %1093 = vmatpush2.msra.mxu0 0.0
    %1094 = vmatprep.subr.mxu0 0.0
    %1095 = vmatpush2.msra.mxu0 0.0
    %1096 = vmatprep.subr.mxu0 0.0
    %1097 = vmatpush2.msra.mxu0 0.0
    %1098 = vmatprep.subr.mxu0 0.0
    %1099 = vmatpush2.msra.mxu0 0.0
    %1100 = vmatprep.subr.mxu0 0.0
    %1101 = vmatpush2.msra.mxu0 0.0
    %1102 = vmatprep.subr.mxu0 0.0
    %1103 = vmatpush2.msra.mxu0 0.0
    %1104 = vmatprep.subr.mxu0 0.0
    %1105 = vmatpush2.msra.mxu0 0.0
    %1106 = vmatprep.subr.mxu0 0.0
    %1107 = vmatpush2.msra.mxu0 0.0
    %1108 = vmatprep.subr.mxu0 0.0
    %1109 = vmatpush2.msra.mxu0 0.0
    %1110 = vmatprep.subr.mxu0 0.0
    %1111 = vmatpush2.msra.mxu0 0.0
    %1112 = vmatprep.mubr.f32.mxu0 0.0
    %1113 = vmatmul.mubr.f32.gmra.mxu0 %v1042
    %v1114 = vpop.f32.mrf.mxu0
    %v1115 = vadd.f32 0.0, %v1114
    %v1116 = vpop.f32.mrf.mxu0
    %1117 = vdwg.mxu0
    %v1118 = vld [vmem:[%s23] sm:$0xff]
    %v1119 = vld [vmem:[%s23 + $0x8] sm:$0xff]
    %v1120 = vld [vmem:[%s23 + $0x10] sm:$0xff]
    %v1121 = vld [vmem:[%s23 + $0x18] sm:$0x11]
    %v1122 = vunpack.c.l.bf16 %v1118
    %v1123 = vunpack.c.h.bf16 %v1118
    %v1124 = vunpack.c.l.bf16 %v1119
    %v1125 = vunpack.c.h.bf16 %v1119
    %v1126 = vunpack.c.l.bf16 %v1120
    %v1127 = vunpack.c.h.bf16 %v1120
    %v1128 = vunpack.c.l.bf16 %v1121
    %v1129 = vunpack.c.h.bf16 %v1121
    %v1130 = vld [vmem:[%s25] sm:$0x3]
    %v1132 = vlaneseq
    %v1133 = vshrl.u32 %v1132, 7
    %v1134 = vsub.s32 0, %v1133
    %v1135 = vrot.slane %v1130, %v1134
    %v1136 = vlaneseq
    %v1137 = vshrl.u32 %v1136, 7
    %v1138 = vsub.s32 1, %v1137
    %v1139 = vrot.slane %v1130, %v1138
    %vm1142 = vcmask 203776
    %v1144 = vsel %vm1142, %v1115, 0
    %vm1146 = vcmask 1040384
    %v1148 = vsel %vm1146, %v1128, 0
    %v1151 = vsel %vm1146, %v1129, 0
    %1153 = vmatprep.subr.mxu0 0.0
    %1154 = vmatpush1.msra.mxu0 0.0
    %1155 = vmatprep.subr.mxu0 0.0
    %1156 = vmatpush1.msra.mxu0 0.0
    %1157 = vmatprep.subr.mxu0 0.0
    %1158 = vmatpush1.msra.mxu0 0.0
    %1159 = vmatprep.subr.mxu0 0.0
    %1160 = vmatpush1.msra.mxu0 0.0
    %1161 = vmatprep.subr.mxu0 0.0
    %1162 = vmatpush1.msra.mxu0 0.0
    %1163 = vmatprep.subr.mxu0 0.0
    %1164 = vmatpush1.msra.mxu0 0.0
    %1165 = vmatprep.subr.mxu0 0.0
    %1166 = vmatpush1.msra.mxu0 0.0
    %1167 = vmatprep.subr.mxu0 0.0
    %1168 = vmatpush1.msra.mxu0 0.0
    %1169 = vmatprep.subr.mxu0 0.0
    %1170 = vmatpush1.msra.mxu0 0.0
    %1171 = vmatprep.subr.mxu0 0.0
    %1172 = vmatpush1.msra.mxu0 0.0
    %1173 = vmatprep.subr.mxu0 0.0
    %1174 = vmatpush1.msra.mxu0 0.0
    %1175 = vmatprep.subr.mxu0 0.0
    %1176 = vmatpush1.msra.mxu0 0.0
    %1177 = vmatprep.subr.mxu0 %v1151
    %1178 = vmatpush1.msra.mxu0 %v1148
    %1179 = vmatprep.subr.mxu0 %v1127
    %1180 = vmatpush1.msra.mxu0 %v1126
    %1181 = vmatprep.subr.mxu0 %v1125
    %1182 = vmatpush1.msra.mxu0 %v1124
    %1183 = vmatprep.subr.mxu0 %v1123
    %1184 = vmatpush1.msra.mxu0 %v1122
    %1185 = vmatprep.subr.mxu0 0.0
    %1186 = vmatpush2.msra.mxu0 0.0
    %1187 = vmatprep.subr.mxu0 0.0
    %1188 = vmatpush2.msra.mxu0 0.0
    %1189 = vmatprep.subr.mxu0 0.0
    %1190 = vmatpush2.msra.mxu0 0.0
    %1191 = vmatprep.subr.mxu0 0.0
    %1192 = vmatpush2.msra.mxu0 0.0
    %1193 = vmatprep.subr.mxu0 0.0
    %1194 = vmatpush2.msra.mxu0 0.0
    %1195 = vmatprep.subr.mxu0 0.0
    %1196 = vmatpush2.msra.mxu0 0.0
    %1197 = vmatprep.subr.mxu0 0.0
    %1198 = vmatpush2.msra.mxu0 0.0
    %1199 = vmatprep.subr.mxu0 0.0
    %1200 = vmatpush2.msra.mxu0 0.0
    %1201 = vmatprep.subr.mxu0 0.0
    %1202 = vmatpush2.msra.mxu0 0.0
    %1203 = vmatprep.subr.mxu0 0.0
    %1204 = vmatpush2.msra.mxu0 0.0
    %1205 = vmatprep.subr.mxu0 0.0
    %1206 = vmatpush2.msra.mxu0 0.0
    %1207 = vmatprep.subr.mxu0 0.0
    %1208 = vmatpush2.msra.mxu0 0.0
    %1209 = vmatprep.subr.mxu0 0.0
    %1210 = vmatpush2.msra.mxu0 0.0
    %1211 = vmatprep.subr.mxu0 0.0
    %1212 = vmatpush2.msra.mxu0 0.0
    %1213 = vmatprep.subr.mxu0 0.0
    %1214 = vmatpush2.msra.mxu0 0.0
    %1215 = vmatprep.subr.mxu0 0.0
    %1216 = vmatpush2.msra.mxu0 0.0
    %1217 = vmatprep.mubr.f32.mxu0 0.0
    %1218 = vmatmul.mubr.f32.gmra.mxu0 %v1144
    %v1219 = vpop.f32.mrf.mxu0
    %v1220 = vadd.f32 %v1135, %v1219
    %v1221 = vpop.f32.mrf.mxu0
    %v1222 = vadd.f32 %v1139, %v1221
    %1223 = vdwg.mxu0
    %v1224 = vxor.u32 %v1220, 2147483648
    %v1225 = vxor.u32 %v1222, 2147483648
    %v1226 = vmul.f32 %v1224, 1.442695
    %v1227 = vpow.pop %v1226
    %v1228 = vmul.f32 %v1225, 1.442695
    %v1229 = vpow.pop %v1228
    %v1230 = vadd.f32 %v1227, 1.0
    %v1231 = vadd.f32 %v1229, 1.0
    %v1232 = vrcp.pop %v1230
    %v1233 = vmul.f32 1.0, %v1232
    %v1234 = vrcp.pop %v1231
    %v1235 = vmul.f32 1.0, %v1234
    %v1236 = vmul.f32 %v703, %v1233
    %v1237 = vmul.f32 %v704, %v1235
    %v1238 = vld [vmem:[%s27] sm:$0xff]
    %v1239 = vld [vmem:[%s27 + $0x8] sm:$0xff]
    %v1240 = vld [vmem:[%s27 + $0x10] sm:$0xff]
    %v1241 = vld [vmem:[%s27 + $0x18] sm:$0xff]
    %v1242 = vld [vmem:[%s27 + $0x20] sm:$0xff]
    %v1243 = vld [vmem:[%s27 + $0x28] sm:$0xff]
    %v1244 = vld [vmem:[%s27 + $0x30] sm:$0xff]
    %v1245 = vld [vmem:[%s27 + $0x38] sm:$0xff]
    %v1246 = vld [vmem:[%s27 + $0x40] sm:$0xff]
    %v1247 = vld [vmem:[%s27 + $0x48] sm:$0xff]
    %v1248 = vld [vmem:[%s27 + $0x50] sm:$0xff]
    %v1249 = vld [vmem:[%s27 + $0x58] sm:$0xff]
    %v1250 = vld [vmem:[%s27 + $0x60] sm:$0xff]
    %v1251 = vld [vmem:[%s27 + $0x68] sm:$0xff]
    %v1252 = vld [vmem:[%s27 + $0x70] sm:$0xff]
    %v1253 = vld [vmem:[%s27 + $0x78] sm:$0xff]
    %v1254 = vld [vmem:[%s27 + $0x80] sm:$0xff]
    %v1255 = vld [vmem:[%s27 + $0x88] sm:$0xff]
    %v1256 = vld [vmem:[%s27 + $0x90] sm:$0xff]
    %v1257 = vld [vmem:[%s27 + $0x98] sm:$0xff]
    %v1258 = vld [vmem:[%s27 + $0xa0] sm:$0xff]
    %v1259 = vld [vmem:[%s27 + $0xa8] sm:$0xff]
    %v1260 = vld [vmem:[%s27 + $0xb0] sm:$0xff]
    %v1261 = vld [vmem:[%s27 + $0xb8] sm:$0xff]
    %v1262 = vld [vmem:[%s27 + $0xc0] sm:$0xff]
    %v1263 = vld [vmem:[%s27 + $0xc8] sm:$0xff]
    %v1264 = vld [vmem:[%s27 + $0xd0] sm:$0xff]
    %v1265 = vld [vmem:[%s27 + $0xd8] sm:$0xff]
    %v1266 = vld [vmem:[%s27 + $0xe0] sm:$0xff]
    %v1267 = vld [vmem:[%s27 + $0xe8] sm:$0xff]
    %v1268 = vld [vmem:[%s27 + $0xf0] sm:$0xff]
    %v1269 = vld [vmem:[%s27 + $0xf8] sm:$0xff]
    %v1270 = vld [vmem:[%s27 + $0x100] sm:$0xff]
    %v1271 = vld [vmem:[%s27 + $0x108] sm:$0xff]
    %v1272 = vld [vmem:[%s27 + $0x110] sm:$0xff]
    %v1273 = vld [vmem:[%s27 + $0x118] sm:$0xff]
    %v1274 = vld [vmem:[%s27 + $0x120] sm:$0xff]
    %v1275 = vld [vmem:[%s27 + $0x128] sm:$0xff]
    %v1276 = vld [vmem:[%s27 + $0x130] sm:$0xff]
    %v1277 = vld [vmem:[%s27 + $0x138] sm:$0xff]
    %v1278 = vld [vmem:[%s27 + $0x140] sm:$0xff]
    %v1279 = vld [vmem:[%s27 + $0x148] sm:$0xff]
    %v1280 = vld [vmem:[%s27 + $0x150] sm:$0xff]
    %v1281 = vld [vmem:[%s27 + $0x158] sm:$0xff]
    %v1282 = vld [vmem:[%s27 + $0x160] sm:$0xff]
    %v1283 = vld [vmem:[%s27 + $0x168] sm:$0xff]
    %v1284 = vld [vmem:[%s27 + $0x170] sm:$0xff]
    %v1285 = vld [vmem:[%s27 + $0x178] sm:$0xff]
    %v1286 = vld [vmem:[%s27 + $0x180] sm:$0xff]
    %v1287 = vld [vmem:[%s27 + $0x188] sm:$0xff]
    %v1288 = vld [vmem:[%s27 + $0x190] sm:$0xff]
    %v1289 = vld [vmem:[%s27 + $0x198] sm:$0xff]
    %v1290 = vld [vmem:[%s27 + $0x1a0] sm:$0xff]
    %v1291 = vld [vmem:[%s27 + $0x1a8] sm:$0xff]
    %v1292 = vld [vmem:[%s27 + $0x1b0] sm:$0xff]
    %v1293 = vld [vmem:[%s27 + $0x1b8] sm:$0xff]
    %v1294 = vld [vmem:[%s27 + $0x1c0] sm:$0xff]
    %v1295 = vld [vmem:[%s27 + $0x1c8] sm:$0xff]
    %v1296 = vld [vmem:[%s27 + $0x1d0] sm:$0xff]
    %v1297 = vld [vmem:[%s27 + $0x1d8] sm:$0xff]
    %v1298 = vld [vmem:[%s27 + $0x1e0] sm:$0xff]
    %v1299 = vld [vmem:[%s27 + $0x1e8] sm:$0xff]
    %v1300 = vld [vmem:[%s27 + $0x1f0] sm:$0xff]
    %v1301 = vld [vmem:[%s27 + $0x1f8] sm:$0xff]
    %v1302 = vld [vmem:[%s27 + $0x200] sm:$0xff]
    %v1303 = vld [vmem:[%s27 + $0x208] sm:$0xff]
    %v1304 = vld [vmem:[%s27 + $0x210] sm:$0xff]
    %v1305 = vld [vmem:[%s27 + $0x218] sm:$0xff]
    %v1306 = vld [vmem:[%s27 + $0x220] sm:$0xff]
    %v1307 = vld [vmem:[%s27 + $0x228] sm:$0xff]
    %v1308 = vld [vmem:[%s27 + $0x230] sm:$0xff]
    %v1309 = vld [vmem:[%s27 + $0x238] sm:$0xff]
    %v1310 = vld [vmem:[%s27 + $0x240] sm:$0xff]
    %v1311 = vld [vmem:[%s27 + $0x248] sm:$0xff]
    %v1312 = vld [vmem:[%s27 + $0x250] sm:$0xff]
    %v1313 = vld [vmem:[%s27 + $0x258] sm:$0xff]
    %v1314 = vld [vmem:[%s27 + $0x260] sm:$0xff]
    %v1315 = vld [vmem:[%s27 + $0x268] sm:$0xff]
    %v1316 = vld [vmem:[%s27 + $0x270] sm:$0xff]
    %v1317 = vld [vmem:[%s27 + $0x278] sm:$0xff]
    %v1318 = vld [vmem:[%s27 + $0x280] sm:$0xff]
    %v1319 = vld [vmem:[%s27 + $0x288] sm:$0xff]
    %v1320 = vld [vmem:[%s27 + $0x290] sm:$0xff]
    %v1321 = vld [vmem:[%s27 + $0x298] sm:$0xff]
    %v1322 = vld [vmem:[%s27 + $0x2a0] sm:$0xff]
    %v1323 = vld [vmem:[%s27 + $0x2a8] sm:$0xff]
    %v1324 = vld [vmem:[%s27 + $0x2b0] sm:$0xff]
    %v1325 = vld [vmem:[%s27 + $0x2b8] sm:$0xff]
    %v1326 = vld [vmem:[%s27 + $0x2c0] sm:$0xff]
    %v1327 = vld [vmem:[%s27 + $0x2c8] sm:$0xff]
    %v1328 = vld [vmem:[%s27 + $0x2d0] sm:$0xff]
    %v1329 = vld [vmem:[%s27 + $0x2d8] sm:$0xff]
    %v1330 = vld [vmem:[%s27 + $0x2e0] sm:$0xff]
    %v1331 = vld [vmem:[%s27 + $0x2e8] sm:$0xff]
    %v1332 = vld [vmem:[%s27 + $0x2f0] sm:$0xff]
    %v1333 = vld [vmem:[%s27 + $0x2f8] sm:$0xff]
    %v1334 = vld [vmem:[%s27 + $0x300] sm:$0xff]
    %v1335 = vld [vmem:[%s27 + $0x308] sm:$0xff]
    %v1336 = vld [vmem:[%s27 + $0x310] sm:$0xff]
    %v1337 = vld [vmem:[%s27 + $0x318] sm:$0xff]
    %v1338 = vld [vmem:[%s27 + $0x320] sm:$0xff]
    %v1339 = vld [vmem:[%s27 + $0x328] sm:$0xff]
    %v1340 = vld [vmem:[%s27 + $0x330] sm:$0xff]
    %v1341 = vld [vmem:[%s27 + $0x338] sm:$0xff]
    %v1342 = vld [vmem:[%s27 + $0x340] sm:$0xff]
    %v1343 = vld [vmem:[%s27 + $0x348] sm:$0xff]
    %v1344 = vld [vmem:[%s27 + $0x350] sm:$0xff]
    %v1345 = vld [vmem:[%s27 + $0x358] sm:$0xff]
    %v1346 = vld [vmem:[%s27 + $0x360] sm:$0xff]
    %v1347 = vld [vmem:[%s27 + $0x368] sm:$0xff]
    %v1348 = vld [vmem:[%s27 + $0x370] sm:$0xff]
    %v1349 = vld [vmem:[%s27 + $0x378] sm:$0xff]
    %v1350 = vld [vmem:[%s27 + $0x380] sm:$0xff]
    %v1351 = vld [vmem:[%s27 + $0x388] sm:$0xff]
    %v1352 = vld [vmem:[%s27 + $0x390] sm:$0xff]
    %v1353 = vld [vmem:[%s27 + $0x398] sm:$0xff]
    %v1354 = vld [vmem:[%s27 + $0x3a0] sm:$0xff]
    %v1355 = vld [vmem:[%s27 + $0x3a8] sm:$0xff]
    %v1356 = vld [vmem:[%s27 + $0x3b0] sm:$0xff]
    %v1357 = vld [vmem:[%s27 + $0x3b8] sm:$0xff]
    %v1358 = vld [vmem:[%s27 + $0x3c0] sm:$0xff]
    %v1359 = vld [vmem:[%s27 + $0x3c8] sm:$0xff]
    %v1360 = vld [vmem:[%s27 + $0x3d0] sm:$0xff]
    %v1361 = vld [vmem:[%s27 + $0x3d8] sm:$0xff]
    %v1362 = vld [vmem:[%s27 + $0x3e0] sm:$0xff]
    %v1363 = vld [vmem:[%s27 + $0x3e8] sm:$0xff]
    %v1364 = vld [vmem:[%s27 + $0x3f0] sm:$0xff]
    %v1365 = vld [vmem:[%s27 + $0x3f8] sm:$0xff]
    %v1366 = vunpack.c.l.bf16 %v1238
    %v1367 = vunpack.c.h.bf16 %v1238
    %v1368 = vunpack.c.l.bf16 %v1239
    %v1369 = vunpack.c.h.bf16 %v1239
    %v1370 = vunpack.c.l.bf16 %v1240
    %v1371 = vunpack.c.h.bf16 %v1240
    %v1372 = vunpack.c.l.bf16 %v1241
    %v1373 = vunpack.c.h.bf16 %v1241
    %v1374 = vunpack.c.l.bf16 %v1242
    %v1375 = vunpack.c.h.bf16 %v1242
    %v1376 = vunpack.c.l.bf16 %v1243
    %v1377 = vunpack.c.h.bf16 %v1243
    %v1378 = vunpack.c.l.bf16 %v1244
    %v1379 = vunpack.c.h.bf16 %v1244
    %v1380 = vunpack.c.l.bf16 %v1245
    %v1381 = vunpack.c.h.bf16 %v1245
    %v1382 = vunpack.c.l.bf16 %v1246
    %v1383 = vunpack.c.h.bf16 %v1246
    %v1384 = vunpack.c.l.bf16 %v1247
    %v1385 = vunpack.c.h.bf16 %v1247
    %v1386 = vunpack.c.l.bf16 %v1248
    %v1387 = vunpack.c.h.bf16 %v1248
    %v1388 = vunpack.c.l.bf16 %v1249
    %v1389 = vunpack.c.h.bf16 %v1249
    %v1390 = vunpack.c.l.bf16 %v1250
    %v1391 = vunpack.c.h.bf16 %v1250
    %v1392 = vunpack.c.l.bf16 %v1251
    %v1393 = vunpack.c.h.bf16 %v1251
    %v1394 = vunpack.c.l.bf16 %v1252
    %v1395 = vunpack.c.h.bf16 %v1252
    %v1396 = vunpack.c.l.bf16 %v1253
    %v1397 = vunpack.c.h.bf16 %v1253
    %v1398 = vunpack.c.l.bf16 %v1254
    %v1399 = vunpack.c.h.bf16 %v1254
    %v1400 = vunpack.c.l.bf16 %v1255
    %v1401 = vunpack.c.h.bf16 %v1255
    %v1402 = vunpack.c.l.bf16 %v1256
    %v1403 = vunpack.c.h.bf16 %v1256
    %v1404 = vunpack.c.l.bf16 %v1257
    %v1405 = vunpack.c.h.bf16 %v1257
    %v1406 = vunpack.c.l.bf16 %v1258
    %v1407 = vunpack.c.h.bf16 %v1258
    %v1408 = vunpack.c.l.bf16 %v1259
    %v1409 = vunpack.c.h.bf16 %v1259
    %v1410 = vunpack.c.l.bf16 %v1260
    %v1411 = vunpack.c.h.bf16 %v1260
    %v1412 = vunpack.c.l.bf16 %v1261
    %v1413 = vunpack.c.h.bf16 %v1261
    %v1414 = vunpack.c.l.bf16 %v1262
    %v1415 = vunpack.c.h.bf16 %v1262
    %v1416 = vunpack.c.l.bf16 %v1263
    %v1417 = vunpack.c.h.bf16 %v1263
    %v1418 = vunpack.c.l.bf16 %v1264
    %v1419 = vunpack.c.h.bf16 %v1264
    %v1420 = vunpack.c.l.bf16 %v1265
    %v1421 = vunpack.c.h.bf16 %v1265
    %v1422 = vunpack.c.l.bf16 %v1266
    %v1423 = vunpack.c.h.bf16 %v1266
    %v1424 = vunpack.c.l.bf16 %v1267
    %v1425 = vunpack.c.h.bf16 %v1267
    %v1426 = vunpack.c.l.bf16 %v1268
    %v1427 = vunpack.c.h.bf16 %v1268
    %v1428 = vunpack.c.l.bf16 %v1269
    %v1429 = vunpack.c.h.bf16 %v1269
    %v1430 = vunpack.c.l.bf16 %v1270
    %v1431 = vunpack.c.h.bf16 %v1270
    %v1432 = vunpack.c.l.bf16 %v1271
    %v1433 = vunpack.c.h.bf16 %v1271
    %v1434 = vunpack.c.l.bf16 %v1272
    %v1435 = vunpack.c.h.bf16 %v1272
    %v1436 = vunpack.c.l.bf16 %v1273
    %v1437 = vunpack.c.h.bf16 %v1273
    %v1438 = vunpack.c.l.bf16 %v1274
    %v1439 = vunpack.c.h.bf16 %v1274
    %v1440 = vunpack.c.l.bf16 %v1275
    %v1441 = vunpack.c.h.bf16 %v1275
    %v1442 = vunpack.c.l.bf16 %v1276
    %v1443 = vunpack.c.h.bf16 %v1276
    %v1444 = vunpack.c.l.bf16 %v1277
    %v1445 = vunpack.c.h.bf16 %v1277
    %v1446 = vunpack.c.l.bf16 %v1278
    %v1447 = vunpack.c.h.bf16 %v1278
    %v1448 = vunpack.c.l.bf16 %v1279
    %v1449 = vunpack.c.h.bf16 %v1279
    %v1450 = vunpack.c.l.bf16 %v1280
    %v1451 = vunpack.c.h.bf16 %v1280
    %v1452 = vunpack.c.l.bf16 %v1281
    %v1453 = vunpack.c.h.bf16 %v1281
    %v1454 = vunpack.c.l.bf16 %v1282
    %v1455 = vunpack.c.h.bf16 %v1282
    %v1456 = vunpack.c.l.bf16 %v1283
    %v1457 = vunpack.c.h.bf16 %v1283
    %v1458 = vunpack.c.l.bf16 %v1284
    %v1459 = vunpack.c.h.bf16 %v1284
    %v1460 = vunpack.c.l.bf16 %v1285
    %v1461 = vunpack.c.h.bf16 %v1285
    %v1462 = vunpack.c.l.bf16 %v1286
    %v1463 = vunpack.c.h.bf16 %v1286
    %v1464 = vunpack.c.l.bf16 %v1287
    %v1465 = vunpack.c.h.bf16 %v1287
    %v1466 = vunpack.c.l.bf16 %v1288
    %v1467 = vunpack.c.h.bf16 %v1288
    %v1468 = vunpack.c.l.bf16 %v1289
    %v1469 = vunpack.c.h.bf16 %v1289
    %v1470 = vunpack.c.l.bf16 %v1290
    %v1471 = vunpack.c.h.bf16 %v1290
    %v1472 = vunpack.c.l.bf16 %v1291
    %v1473 = vunpack.c.h.bf16 %v1291
    %v1474 = vunpack.c.l.bf16 %v1292
    %v1475 = vunpack.c.h.bf16 %v1292
    %v1476 = vunpack.c.l.bf16 %v1293
    %v1477 = vunpack.c.h.bf16 %v1293
    %v1478 = vunpack.c.l.bf16 %v1294
    %v1479 = vunpack.c.h.bf16 %v1294
    %v1480 = vunpack.c.l.bf16 %v1295
    %v1481 = vunpack.c.h.bf16 %v1295
    %v1482 = vunpack.c.l.bf16 %v1296
    %v1483 = vunpack.c.h.bf16 %v1296
    %v1484 = vunpack.c.l.bf16 %v1297
    %v1485 = vunpack.c.h.bf16 %v1297
    %v1486 = vunpack.c.l.bf16 %v1298
    %v1487 = vunpack.c.h.bf16 %v1298
    %v1488 = vunpack.c.l.bf16 %v1299
    %v1489 = vunpack.c.h.bf16 %v1299
    %v1490 = vunpack.c.l.bf16 %v1300
    %v1491 = vunpack.c.h.bf16 %v1300
    %v1492 = vunpack.c.l.bf16 %v1301
    %v1493 = vunpack.c.h.bf16 %v1301
    %v1494 = vunpack.c.l.bf16 %v1302
    %v1495 = vunpack.c.h.bf16 %v1302
    %v1496 = vunpack.c.l.bf16 %v1303
    %v1497 = vunpack.c.h.bf16 %v1303
    %v1498 = vunpack.c.l.bf16 %v1304
    %v1499 = vunpack.c.h.bf16 %v1304
    %v1500 = vunpack.c.l.bf16 %v1305
    %v1501 = vunpack.c.h.bf16 %v1305
    %v1502 = vunpack.c.l.bf16 %v1306
    %v1503 = vunpack.c.h.bf16 %v1306
    %v1504 = vunpack.c.l.bf16 %v1307
    %v1505 = vunpack.c.h.bf16 %v1307
    %v1506 = vunpack.c.l.bf16 %v1308
    %v1507 = vunpack.c.h.bf16 %v1308
    %v1508 = vunpack.c.l.bf16 %v1309
    %v1509 = vunpack.c.h.bf16 %v1309
    %v1510 = vunpack.c.l.bf16 %v1310
    %v1511 = vunpack.c.h.bf16 %v1310
    %v1512 = vunpack.c.l.bf16 %v1311
    %v1513 = vunpack.c.h.bf16 %v1311
    %v1514 = vunpack.c.l.bf16 %v1312
    %v1515 = vunpack.c.h.bf16 %v1312
    %v1516 = vunpack.c.l.bf16 %v1313
    %v1517 = vunpack.c.h.bf16 %v1313
    %v1518 = vunpack.c.l.bf16 %v1314
    %v1519 = vunpack.c.h.bf16 %v1314
    %v1520 = vunpack.c.l.bf16 %v1315
    %v1521 = vunpack.c.h.bf16 %v1315
    %v1522 = vunpack.c.l.bf16 %v1316
    %v1523 = vunpack.c.h.bf16 %v1316
    %v1524 = vunpack.c.l.bf16 %v1317
    %v1525 = vunpack.c.h.bf16 %v1317
    %v1526 = vunpack.c.l.bf16 %v1318
    %v1527 = vunpack.c.h.bf16 %v1318
    %v1528 = vunpack.c.l.bf16 %v1319
    %v1529 = vunpack.c.h.bf16 %v1319
    %v1530 = vunpack.c.l.bf16 %v1320
    %v1531 = vunpack.c.h.bf16 %v1320
    %v1532 = vunpack.c.l.bf16 %v1321
    %v1533 = vunpack.c.h.bf16 %v1321
    %v1534 = vunpack.c.l.bf16 %v1322
    %v1535 = vunpack.c.h.bf16 %v1322
    %v1536 = vunpack.c.l.bf16 %v1323
    %v1537 = vunpack.c.h.bf16 %v1323
    %v1538 = vunpack.c.l.bf16 %v1324
    %v1539 = vunpack.c.h.bf16 %v1324
    %v1540 = vunpack.c.l.bf16 %v1325
    %v1541 = vunpack.c.h.bf16 %v1325
    %v1542 = vunpack.c.l.bf16 %v1326
    %v1543 = vunpack.c.h.bf16 %v1326
    %v1544 = vunpack.c.l.bf16 %v1327
    %v1545 = vunpack.c.h.bf16 %v1327
    %v1546 = vunpack.c.l.bf16 %v1328
    %v1547 = vunpack.c.h.bf16 %v1328
    %v1548 = vunpack.c.l.bf16 %v1329
    %v1549 = vunpack.c.h.bf16 %v1329
    %v1550 = vunpack.c.l.bf16 %v1330
    %v1551 = vunpack.c.h.bf16 %v1330
    %v1552 = vunpack.c.l.bf16 %v1331
    %v1553 = vunpack.c.h.bf16 %v1331
    %v1554 = vunpack.c.l.bf16 %v1332
    %v1555 = vunpack.c.h.bf16 %v1332
    %v1556 = vunpack.c.l.bf16 %v1333
    %v1557 = vunpack.c.h.bf16 %v1333
    %v1558 = vunpack.c.l.bf16 %v1334
    %v1559 = vunpack.c.h.bf16 %v1334
    %v1560 = vunpack.c.l.bf16 %v1335
    %v1561 = vunpack.c.h.bf16 %v1335
    %v1562 = vunpack.c.l.bf16 %v1336
    %v1563 = vunpack.c.h.bf16 %v1336
    %v1564 = vunpack.c.l.bf16 %v1337
    %v1565 = vunpack.c.h.bf16 %v1337
    %v1566 = vunpack.c.l.bf16 %v1338
    %v1567 = vunpack.c.h.bf16 %v1338
    %v1568 = vunpack.c.l.bf16 %v1339
    %v1569 = vunpack.c.h.bf16 %v1339
    %v1570 = vunpack.c.l.bf16 %v1340
    %v1571 = vunpack.c.h.bf16 %v1340
    %v1572 = vunpack.c.l.bf16 %v1341
    %v1573 = vunpack.c.h.bf16 %v1341
    %v1574 = vunpack.c.l.bf16 %v1342
    %v1575 = vunpack.c.h.bf16 %v1342
    %v1576 = vunpack.c.l.bf16 %v1343
    %v1577 = vunpack.c.h.bf16 %v1343
    %v1578 = vunpack.c.l.bf16 %v1344
    %v1579 = vunpack.c.h.bf16 %v1344
    %v1580 = vunpack.c.l.bf16 %v1345
    %v1581 = vunpack.c.h.bf16 %v1345
    %v1582 = vunpack.c.l.bf16 %v1346
    %v1583 = vunpack.c.h.bf16 %v1346
    %v1584 = vunpack.c.l.bf16 %v1347
    %v1585 = vunpack.c.h.bf16 %v1347
    %v1586 = vunpack.c.l.bf16 %v1348
    %v1587 = vunpack.c.h.bf16 %v1348
    %v1588 = vunpack.c.l.bf16 %v1349
    %v1589 = vunpack.c.h.bf16 %v1349
    %v1590 = vunpack.c.l.bf16 %v1350
    %v1591 = vunpack.c.h.bf16 %v1350
    %v1592 = vunpack.c.l.bf16 %v1351
    %v1593 = vunpack.c.h.bf16 %v1351
    %v1594 = vunpack.c.l.bf16 %v1352
    %v1595 = vunpack.c.h.bf16 %v1352
    %v1596 = vunpack.c.l.bf16 %v1353
    %v1597 = vunpack.c.h.bf16 %v1353
    %v1598 = vunpack.c.l.bf16 %v1354
    %v1599 = vunpack.c.h.bf16 %v1354
    %v1600 = vunpack.c.l.bf16 %v1355
    %v1601 = vunpack.c.h.bf16 %v1355
    %v1602 = vunpack.c.l.bf16 %v1356
    %v1603 = vunpack.c.h.bf16 %v1356
    %v1604 = vunpack.c.l.bf16 %v1357
    %v1605 = vunpack.c.h.bf16 %v1357
    %v1606 = vunpack.c.l.bf16 %v1358
    %v1607 = vunpack.c.h.bf16 %v1358
    %v1608 = vunpack.c.l.bf16 %v1359
    %v1609 = vunpack.c.h.bf16 %v1359
    %v1610 = vunpack.c.l.bf16 %v1360
    %v1611 = vunpack.c.h.bf16 %v1360
    %v1612 = vunpack.c.l.bf16 %v1361
    %v1613 = vunpack.c.h.bf16 %v1361
    %v1614 = vunpack.c.l.bf16 %v1362
    %v1615 = vunpack.c.h.bf16 %v1362
    %v1616 = vunpack.c.l.bf16 %v1363
    %v1617 = vunpack.c.h.bf16 %v1363
    %v1618 = vunpack.c.l.bf16 %v1364
    %v1619 = vunpack.c.h.bf16 %v1364
    %v1620 = vunpack.c.l.bf16 %v1365
    %v1621 = vunpack.c.h.bf16 %v1365
    %v1622 = vld [vmem:[%s29] sm:$0xff]
    %v1623 = vld [vmem:[%s29 + $0x8] sm:$0xff]
    %v1624 = vld [vmem:[%s29 + $0x10] sm:$0xff]
    %v1625 = vld [vmem:[%s29 + $0x18] sm:$0xff]
    %v1626 = vld [vmem:[%s29 + $0x20] sm:$0xff]
    %v1627 = vld [vmem:[%s29 + $0x28] sm:$0xff]
    %v1628 = vld [vmem:[%s29 + $0x30] sm:$0xff]
    %v1629 = vld [vmem:[%s29 + $0x38] sm:$0xff]
    %v1630 = vld [vmem:[%s29 + $0x40] sm:$0xff]
    %v1631 = vld [vmem:[%s29 + $0x48] sm:$0xff]
    %v1632 = vld [vmem:[%s29 + $0x50] sm:$0xff]
    %v1633 = vld [vmem:[%s29 + $0x58] sm:$0xff]
    %v1634 = vld [vmem:[%s29 + $0x60] sm:$0xff]
    %v1635 = vld [vmem:[%s29 + $0x68] sm:$0xff]
    %v1636 = vld [vmem:[%s29 + $0x70] sm:$0xff]
    %v1637 = vld [vmem:[%s29 + $0x78] sm:$0xff]
    %v1638 = vld [vmem:[%s29 + $0x80] sm:$0xff]
    %v1639 = vld [vmem:[%s29 + $0x88] sm:$0xff]
    %v1640 = vld [vmem:[%s29 + $0x90] sm:$0xff]
    %v1641 = vld [vmem:[%s29 + $0x98] sm:$0xff]
    %v1642 = vld [vmem:[%s29 + $0xa0] sm:$0xff]
    %v1643 = vld [vmem:[%s29 + $0xa8] sm:$0xff]
    %v1644 = vld [vmem:[%s29 + $0xb0] sm:$0xff]
    %v1645 = vld [vmem:[%s29 + $0xb8] sm:$0xff]
    %v1646 = vld [vmem:[%s29 + $0xc0] sm:$0xff]
    %v1647 = vld [vmem:[%s29 + $0xc8] sm:$0xff]
    %v1648 = vld [vmem:[%s29 + $0xd0] sm:$0xff]
    %v1649 = vld [vmem:[%s29 + $0xd8] sm:$0xff]
    %v1650 = vld [vmem:[%s29 + $0xe0] sm:$0xff]
    %v1651 = vld [vmem:[%s29 + $0xe8] sm:$0xff]
    %v1652 = vld [vmem:[%s29 + $0xf0] sm:$0xff]
    %v1653 = vld [vmem:[%s29 + $0xf8] sm:$0xff]
    %v1654 = vld [vmem:[%s29 + $0x100] sm:$0xff]
    %v1655 = vld [vmem:[%s29 + $0x108] sm:$0xff]
    %v1656 = vld [vmem:[%s29 + $0x110] sm:$0xff]
    %v1657 = vld [vmem:[%s29 + $0x118] sm:$0xff]
    %v1658 = vld [vmem:[%s29 + $0x120] sm:$0xff]
    %v1659 = vld [vmem:[%s29 + $0x128] sm:$0xff]
    %v1660 = vld [vmem:[%s29 + $0x130] sm:$0xff]
    %v1661 = vld [vmem:[%s29 + $0x138] sm:$0xff]
    %v1662 = vld [vmem:[%s29 + $0x140] sm:$0xff]
    %v1663 = vld [vmem:[%s29 + $0x148] sm:$0xff]
    %v1664 = vld [vmem:[%s29 + $0x150] sm:$0xff]
    %v1665 = vld [vmem:[%s29 + $0x158] sm:$0xff]
    %v1666 = vld [vmem:[%s29 + $0x160] sm:$0xff]
    %v1667 = vld [vmem:[%s29 + $0x168] sm:$0xff]
    %v1668 = vld [vmem:[%s29 + $0x170] sm:$0xff]
    %v1669 = vld [vmem:[%s29 + $0x178] sm:$0xff]
    %v1670 = vld [vmem:[%s29 + $0x180] sm:$0xff]
    %v1671 = vld [vmem:[%s29 + $0x188] sm:$0xff]
    %v1672 = vld [vmem:[%s29 + $0x190] sm:$0xff]
    %v1673 = vld [vmem:[%s29 + $0x198] sm:$0xff]
    %v1674 = vld [vmem:[%s29 + $0x1a0] sm:$0xff]
    %v1675 = vld [vmem:[%s29 + $0x1a8] sm:$0xff]
    %v1676 = vld [vmem:[%s29 + $0x1b0] sm:$0xff]
    %v1677 = vld [vmem:[%s29 + $0x1b8] sm:$0xff]
    %v1678 = vld [vmem:[%s29 + $0x1c0] sm:$0xff]
    %v1679 = vld [vmem:[%s29 + $0x1c8] sm:$0xff]
    %v1680 = vld [vmem:[%s29 + $0x1d0] sm:$0xff]
    %v1681 = vld [vmem:[%s29 + $0x1d8] sm:$0xff]
    %v1682 = vld [vmem:[%s29 + $0x1e0] sm:$0xff]
    %v1683 = vld [vmem:[%s29 + $0x1e8] sm:$0xff]
    %v1684 = vld [vmem:[%s29 + $0x1f0] sm:$0xff]
    %v1685 = vld [vmem:[%s29 + $0x1f8] sm:$0xff]
    %v1686 = vld [vmem:[%s29 + $0x200] sm:$0xff]
    %v1687 = vld [vmem:[%s29 + $0x208] sm:$0xff]
    %v1688 = vld [vmem:[%s29 + $0x210] sm:$0xff]
    %v1689 = vld [vmem:[%s29 + $0x218] sm:$0xff]
    %v1690 = vld [vmem:[%s29 + $0x220] sm:$0xff]
    %v1691 = vld [vmem:[%s29 + $0x228] sm:$0xff]
    %v1692 = vld [vmem:[%s29 + $0x230] sm:$0xff]
    %v1693 = vld [vmem:[%s29 + $0x238] sm:$0xff]
    %v1694 = vld [vmem:[%s29 + $0x240] sm:$0xff]
    %v1695 = vld [vmem:[%s29 + $0x248] sm:$0xff]
    %v1696 = vld [vmem:[%s29 + $0x250] sm:$0xff]
    %v1697 = vld [vmem:[%s29 + $0x258] sm:$0xff]
    %v1698 = vld [vmem:[%s29 + $0x260] sm:$0xff]
    %v1699 = vld [vmem:[%s29 + $0x268] sm:$0xff]
    %v1700 = vld [vmem:[%s29 + $0x270] sm:$0xff]
    %v1701 = vld [vmem:[%s29 + $0x278] sm:$0xff]
    %v1702 = vld [vmem:[%s29 + $0x280] sm:$0xff]
    %v1703 = vld [vmem:[%s29 + $0x288] sm:$0xff]
    %v1704 = vld [vmem:[%s29 + $0x290] sm:$0xff]
    %v1705 = vld [vmem:[%s29 + $0x298] sm:$0xff]
    %v1706 = vld [vmem:[%s29 + $0x2a0] sm:$0xff]
    %v1707 = vld [vmem:[%s29 + $0x2a8] sm:$0xff]
    %v1708 = vld [vmem:[%s29 + $0x2b0] sm:$0xff]
    %v1709 = vld [vmem:[%s29 + $0x2b8] sm:$0xff]
    %v1710 = vld [vmem:[%s29 + $0x2c0] sm:$0xff]
    %v1711 = vld [vmem:[%s29 + $0x2c8] sm:$0xff]
    %v1712 = vld [vmem:[%s29 + $0x2d0] sm:$0xff]
    %v1713 = vld [vmem:[%s29 + $0x2d8] sm:$0xff]
    %v1714 = vld [vmem:[%s29 + $0x2e0] sm:$0xff]
    %v1715 = vld [vmem:[%s29 + $0x2e8] sm:$0xff]
    %v1716 = vld [vmem:[%s29 + $0x2f0] sm:$0xff]
    %v1717 = vld [vmem:[%s29 + $0x2f8] sm:$0xff]
    %v1718 = vld [vmem:[%s29 + $0x300] sm:$0xff]
    %v1719 = vld [vmem:[%s29 + $0x308] sm:$0xff]
    %v1720 = vld [vmem:[%s29 + $0x310] sm:$0xff]
    %v1721 = vld [vmem:[%s29 + $0x318] sm:$0xff]
    %v1722 = vld [vmem:[%s29 + $0x320] sm:$0xff]
    %v1723 = vld [vmem:[%s29 + $0x328] sm:$0xff]
    %v1724 = vld [vmem:[%s29 + $0x330] sm:$0xff]
    %v1725 = vld [vmem:[%s29 + $0x338] sm:$0xff]
    %v1726 = vld [vmem:[%s29 + $0x340] sm:$0xff]
    %v1727 = vld [vmem:[%s29 + $0x348] sm:$0xff]
    %v1728 = vld [vmem:[%s29 + $0x350] sm:$0xff]
    %v1729 = vld [vmem:[%s29 + $0x358] sm:$0xff]
    %v1730 = vld [vmem:[%s29 + $0x360] sm:$0xff]
    %v1731 = vld [vmem:[%s29 + $0x368] sm:$0xff]
    %v1732 = vld [vmem:[%s29 + $0x370] sm:$0xff]
    %v1733 = vld [vmem:[%s29 + $0x378] sm:$0xff]
    %v1734 = vld [vmem:[%s29 + $0x380] sm:$0xff]
    %v1735 = vld [vmem:[%s29 + $0x388] sm:$0xff]
    %v1736 = vld [vmem:[%s29 + $0x390] sm:$0xff]
    %v1737 = vld [vmem:[%s29 + $0x398] sm:$0xff]
    %v1738 = vld [vmem:[%s29 + $0x3a0] sm:$0xff]
    %v1739 = vld [vmem:[%s29 + $0x3a8] sm:$0xff]
    %v1740 = vld [vmem:[%s29 + $0x3b0] sm:$0xff]
    %v1741 = vld [vmem:[%s29 + $0x3b8] sm:$0xff]
    %v1742 = vld [vmem:[%s29 + $0x3c0] sm:$0xff]
    %v1743 = vld [vmem:[%s29 + $0x3c8] sm:$0xff]
    %v1744 = vld [vmem:[%s29 + $0x3d0] sm:$0xff]
    %v1745 = vld [vmem:[%s29 + $0x3d8] sm:$0xff]
    %v1746 = vld [vmem:[%s29 + $0x3e0] sm:$0xff]
    %v1747 = vld [vmem:[%s29 + $0x3e8] sm:$0xff]
    %v1748 = vld [vmem:[%s29 + $0x3f0] sm:$0xff]
    %v1749 = vld [vmem:[%s29 + $0x3f8] sm:$0xff]
    %v1750 = vunpack.c.l.bf16 %v1622
    %v1751 = vunpack.c.h.bf16 %v1622
    %v1752 = vunpack.c.l.bf16 %v1623
    %v1753 = vunpack.c.h.bf16 %v1623
    %v1754 = vunpack.c.l.bf16 %v1624
    %v1755 = vunpack.c.h.bf16 %v1624
    %v1756 = vunpack.c.l.bf16 %v1625
    %v1757 = vunpack.c.h.bf16 %v1625
    %v1758 = vunpack.c.l.bf16 %v1626
    %v1759 = vunpack.c.h.bf16 %v1626
    %v1760 = vunpack.c.l.bf16 %v1627
    %v1761 = vunpack.c.h.bf16 %v1627
    %v1762 = vunpack.c.l.bf16 %v1628
    %v1763 = vunpack.c.h.bf16 %v1628
    %v1764 = vunpack.c.l.bf16 %v1629
    %v1765 = vunpack.c.h.bf16 %v1629
    %v1766 = vunpack.c.l.bf16 %v1630
    %v1767 = vunpack.c.h.bf16 %v1630
    %v1768 = vunpack.c.l.bf16 %v1631
    %v1769 = vunpack.c.h.bf16 %v1631
    %v1770 = vunpack.c.l.bf16 %v1632
    %v1771 = vunpack.c.h.bf16 %v1632
    %v1772 = vunpack.c.l.bf16 %v1633
    %v1773 = vunpack.c.h.bf16 %v1633
    %v1774 = vunpack.c.l.bf16 %v1634
    %v1775 = vunpack.c.h.bf16 %v1634
    %v1776 = vunpack.c.l.bf16 %v1635
    %v1777 = vunpack.c.h.bf16 %v1635
    %v1778 = vunpack.c.l.bf16 %v1636
    %v1779 = vunpack.c.h.bf16 %v1636
    %v1780 = vunpack.c.l.bf16 %v1637
    %v1781 = vunpack.c.h.bf16 %v1637
    %v1782 = vunpack.c.l.bf16 %v1638
    %v1783 = vunpack.c.h.bf16 %v1638
    %v1784 = vunpack.c.l.bf16 %v1639
    %v1785 = vunpack.c.h.bf16 %v1639
    %v1786 = vunpack.c.l.bf16 %v1640
    %v1787 = vunpack.c.h.bf16 %v1640
    %v1788 = vunpack.c.l.bf16 %v1641
    %v1789 = vunpack.c.h.bf16 %v1641
    %v1790 = vunpack.c.l.bf16 %v1642
    %v1791 = vunpack.c.h.bf16 %v1642
    %v1792 = vunpack.c.l.bf16 %v1643
    %v1793 = vunpack.c.h.bf16 %v1643
    %v1794 = vunpack.c.l.bf16 %v1644
    %v1795 = vunpack.c.h.bf16 %v1644
    %v1796 = vunpack.c.l.bf16 %v1645
    %v1797 = vunpack.c.h.bf16 %v1645
    %v1798 = vunpack.c.l.bf16 %v1646
    %v1799 = vunpack.c.h.bf16 %v1646
    %v1800 = vunpack.c.l.bf16 %v1647
    %v1801 = vunpack.c.h.bf16 %v1647
    %v1802 = vunpack.c.l.bf16 %v1648
    %v1803 = vunpack.c.h.bf16 %v1648
    %v1804 = vunpack.c.l.bf16 %v1649
    %v1805 = vunpack.c.h.bf16 %v1649
    %v1806 = vunpack.c.l.bf16 %v1650
    %v1807 = vunpack.c.h.bf16 %v1650
    %v1808 = vunpack.c.l.bf16 %v1651
    %v1809 = vunpack.c.h.bf16 %v1651
    %v1810 = vunpack.c.l.bf16 %v1652
    %v1811 = vunpack.c.h.bf16 %v1652
    %v1812 = vunpack.c.l.bf16 %v1653
    %v1813 = vunpack.c.h.bf16 %v1653
    %v1814 = vunpack.c.l.bf16 %v1654
    %v1815 = vunpack.c.h.bf16 %v1654
    %v1816 = vunpack.c.l.bf16 %v1655
    %v1817 = vunpack.c.h.bf16 %v1655
    %v1818 = vunpack.c.l.bf16 %v1656
    %v1819 = vunpack.c.h.bf16 %v1656
    %v1820 = vunpack.c.l.bf16 %v1657
    %v1821 = vunpack.c.h.bf16 %v1657
    %v1822 = vunpack.c.l.bf16 %v1658
    %v1823 = vunpack.c.h.bf16 %v1658
    %v1824 = vunpack.c.l.bf16 %v1659
    %v1825 = vunpack.c.h.bf16 %v1659
    %v1826 = vunpack.c.l.bf16 %v1660
    %v1827 = vunpack.c.h.bf16 %v1660
    %v1828 = vunpack.c.l.bf16 %v1661
    %v1829 = vunpack.c.h.bf16 %v1661
    %v1830 = vunpack.c.l.bf16 %v1662
    %v1831 = vunpack.c.h.bf16 %v1662
    %v1832 = vunpack.c.l.bf16 %v1663
    %v1833 = vunpack.c.h.bf16 %v1663
    %v1834 = vunpack.c.l.bf16 %v1664
    %v1835 = vunpack.c.h.bf16 %v1664
    %v1836 = vunpack.c.l.bf16 %v1665
    %v1837 = vunpack.c.h.bf16 %v1665
    %v1838 = vunpack.c.l.bf16 %v1666
    %v1839 = vunpack.c.h.bf16 %v1666
    %v1840 = vunpack.c.l.bf16 %v1667
    %v1841 = vunpack.c.h.bf16 %v1667
    %v1842 = vunpack.c.l.bf16 %v1668
    %v1843 = vunpack.c.h.bf16 %v1668
    %v1844 = vunpack.c.l.bf16 %v1669
    %v1845 = vunpack.c.h.bf16 %v1669
    %v1846 = vunpack.c.l.bf16 %v1670
    %v1847 = vunpack.c.h.bf16 %v1670
    %v1848 = vunpack.c.l.bf16 %v1671
    %v1849 = vunpack.c.h.bf16 %v1671
    %v1850 = vunpack.c.l.bf16 %v1672
    %v1851 = vunpack.c.h.bf16 %v1672
    %v1852 = vunpack.c.l.bf16 %v1673
    %v1853 = vunpack.c.h.bf16 %v1673
    %v1854 = vunpack.c.l.bf16 %v1674
    %v1855 = vunpack.c.h.bf16 %v1674
    %v1856 = vunpack.c.l.bf16 %v1675
    %v1857 = vunpack.c.h.bf16 %v1675
    %v1858 = vunpack.c.l.bf16 %v1676
    %v1859 = vunpack.c.h.bf16 %v1676
    %v1860 = vunpack.c.l.bf16 %v1677
    %v1861 = vunpack.c.h.bf16 %v1677
    %v1862 = vunpack.c.l.bf16 %v1678
    %v1863 = vunpack.c.h.bf16 %v1678
    %v1864 = vunpack.c.l.bf16 %v1679
    %v1865 = vunpack.c.h.bf16 %v1679
    %v1866 = vunpack.c.l.bf16 %v1680
    %v1867 = vunpack.c.h.bf16 %v1680
    %v1868 = vunpack.c.l.bf16 %v1681
    %v1869 = vunpack.c.h.bf16 %v1681
    %v1870 = vunpack.c.l.bf16 %v1682
    %v1871 = vunpack.c.h.bf16 %v1682
    %v1872 = vunpack.c.l.bf16 %v1683
    %v1873 = vunpack.c.h.bf16 %v1683
    %v1874 = vunpack.c.l.bf16 %v1684
    %v1875 = vunpack.c.h.bf16 %v1684
    %v1876 = vunpack.c.l.bf16 %v1685
    %v1877 = vunpack.c.h.bf16 %v1685
    %v1878 = vunpack.c.l.bf16 %v1686
    %v1879 = vunpack.c.h.bf16 %v1686
    %v1880 = vunpack.c.l.bf16 %v1687
    %v1881 = vunpack.c.h.bf16 %v1687
    %v1882 = vunpack.c.l.bf16 %v1688
    %v1883 = vunpack.c.h.bf16 %v1688
    %v1884 = vunpack.c.l.bf16 %v1689
    %v1885 = vunpack.c.h.bf16 %v1689
    %v1886 = vunpack.c.l.bf16 %v1690
    %v1887 = vunpack.c.h.bf16 %v1690
    %v1888 = vunpack.c.l.bf16 %v1691
    %v1889 = vunpack.c.h.bf16 %v1691
    %v1890 = vunpack.c.l.bf16 %v1692
    %v1891 = vunpack.c.h.bf16 %v1692
    %v1892 = vunpack.c.l.bf16 %v1693
    %v1893 = vunpack.c.h.bf16 %v1693
    %v1894 = vunpack.c.l.bf16 %v1694
    %v1895 = vunpack.c.h.bf16 %v1694
    %v1896 = vunpack.c.l.bf16 %v1695
    %v1897 = vunpack.c.h.bf16 %v1695
    %v1898 = vunpack.c.l.bf16 %v1696
    %v1899 = vunpack.c.h.bf16 %v1696
    %v1900 = vunpack.c.l.bf16 %v1697
    %v1901 = vunpack.c.h.bf16 %v1697
    %v1902 = vunpack.c.l.bf16 %v1698
    %v1903 = vunpack.c.h.bf16 %v1698
    %v1904 = vunpack.c.l.bf16 %v1699
    %v1905 = vunpack.c.h.bf16 %v1699
    %v1906 = vunpack.c.l.bf16 %v1700
    %v1907 = vunpack.c.h.bf16 %v1700
    %v1908 = vunpack.c.l.bf16 %v1701
    %v1909 = vunpack.c.h.bf16 %v1701
    %v1910 = vunpack.c.l.bf16 %v1702
    %v1911 = vunpack.c.h.bf16 %v1702
    %v1912 = vunpack.c.l.bf16 %v1703
    %v1913 = vunpack.c.h.bf16 %v1703
    %v1914 = vunpack.c.l.bf16 %v1704
    %v1915 = vunpack.c.h.bf16 %v1704
    %v1916 = vunpack.c.l.bf16 %v1705
    %v1917 = vunpack.c.h.bf16 %v1705
    %v1918 = vunpack.c.l.bf16 %v1706
    %v1919 = vunpack.c.h.bf16 %v1706
    %v1920 = vunpack.c.l.bf16 %v1707
    %v1921 = vunpack.c.h.bf16 %v1707
    %v1922 = vunpack.c.l.bf16 %v1708
    %v1923 = vunpack.c.h.bf16 %v1708
    %v1924 = vunpack.c.l.bf16 %v1709
    %v1925 = vunpack.c.h.bf16 %v1709
    %v1926 = vunpack.c.l.bf16 %v1710
    %v1927 = vunpack.c.h.bf16 %v1710
    %v1928 = vunpack.c.l.bf16 %v1711
    %v1929 = vunpack.c.h.bf16 %v1711
    %v1930 = vunpack.c.l.bf16 %v1712
    %v1931 = vunpack.c.h.bf16 %v1712
    %v1932 = vunpack.c.l.bf16 %v1713
    %v1933 = vunpack.c.h.bf16 %v1713
    %v1934 = vunpack.c.l.bf16 %v1714
    %v1935 = vunpack.c.h.bf16 %v1714
    %v1936 = vunpack.c.l.bf16 %v1715
    %v1937 = vunpack.c.h.bf16 %v1715
    %v1938 = vunpack.c.l.bf16 %v1716
    %v1939 = vunpack.c.h.bf16 %v1716
    %v1940 = vunpack.c.l.bf16 %v1717
    %v1941 = vunpack.c.h.bf16 %v1717
    %v1942 = vunpack.c.l.bf16 %v1718
    %v1943 = vunpack.c.h.bf16 %v1718
    %v1944 = vunpack.c.l.bf16 %v1719
    %v1945 = vunpack.c.h.bf16 %v1719
    %v1946 = vunpack.c.l.bf16 %v1720
    %v1947 = vunpack.c.h.bf16 %v1720
    %v1948 = vunpack.c.l.bf16 %v1721
    %v1949 = vunpack.c.h.bf16 %v1721
    %v1950 = vunpack.c.l.bf16 %v1722
    %v1951 = vunpack.c.h.bf16 %v1722
    %v1952 = vunpack.c.l.bf16 %v1723
    %v1953 = vunpack.c.h.bf16 %v1723
    %v1954 = vunpack.c.l.bf16 %v1724
    %v1955 = vunpack.c.h.bf16 %v1724
    %v1956 = vunpack.c.l.bf16 %v1725
    %v1957 = vunpack.c.h.bf16 %v1725
    %v1958 = vunpack.c.l.bf16 %v1726
    %v1959 = vunpack.c.h.bf16 %v1726
    %v1960 = vunpack.c.l.bf16 %v1727
    %v1961 = vunpack.c.h.bf16 %v1727
    %v1962 = vunpack.c.l.bf16 %v1728
    %v1963 = vunpack.c.h.bf16 %v1728
    %v1964 = vunpack.c.l.bf16 %v1729
    %v1965 = vunpack.c.h.bf16 %v1729
    %v1966 = vunpack.c.l.bf16 %v1730
    %v1967 = vunpack.c.h.bf16 %v1730
    %v1968 = vunpack.c.l.bf16 %v1731
    %v1969 = vunpack.c.h.bf16 %v1731
    %v1970 = vunpack.c.l.bf16 %v1732
    %v1971 = vunpack.c.h.bf16 %v1732
    %v1972 = vunpack.c.l.bf16 %v1733
    %v1973 = vunpack.c.h.bf16 %v1733
    %v1974 = vunpack.c.l.bf16 %v1734
    %v1975 = vunpack.c.h.bf16 %v1734
    %v1976 = vunpack.c.l.bf16 %v1735
    %v1977 = vunpack.c.h.bf16 %v1735
    %v1978 = vunpack.c.l.bf16 %v1736
    %v1979 = vunpack.c.h.bf16 %v1736
    %v1980 = vunpack.c.l.bf16 %v1737
    %v1981 = vunpack.c.h.bf16 %v1737
    %v1982 = vunpack.c.l.bf16 %v1738
    %v1983 = vunpack.c.h.bf16 %v1738
    %v1984 = vunpack.c.l.bf16 %v1739
    %v1985 = vunpack.c.h.bf16 %v1739
    %v1986 = vunpack.c.l.bf16 %v1740
    %v1987 = vunpack.c.h.bf16 %v1740
    %v1988 = vunpack.c.l.bf16 %v1741
    %v1989 = vunpack.c.h.bf16 %v1741
    %v1990 = vunpack.c.l.bf16 %v1742
    %v1991 = vunpack.c.h.bf16 %v1742
    %v1992 = vunpack.c.l.bf16 %v1743
    %v1993 = vunpack.c.h.bf16 %v1743
    %v1994 = vunpack.c.l.bf16 %v1744
    %v1995 = vunpack.c.h.bf16 %v1744
    %v1996 = vunpack.c.l.bf16 %v1745
    %v1997 = vunpack.c.h.bf16 %v1745
    %v1998 = vunpack.c.l.bf16 %v1746
    %v1999 = vunpack.c.h.bf16 %v1746
    %v2000 = vunpack.c.l.bf16 %v1747
    %v2001 = vunpack.c.h.bf16 %v1747
    %v2002 = vunpack.c.l.bf16 %v1748
    %v2003 = vunpack.c.h.bf16 %v1748
    %v2004 = vunpack.c.l.bf16 %v1749
    %v2005 = vunpack.c.h.bf16 %v1749
    %2006 = vmatprep.subr.mxu0 %v1871
    %2007 = vmatpush1.msra.mxu0 %v1870
    %2008 = vmatprep.subr.mxu0 %v1863
    %2009 = vmatpush1.msra.mxu0 %v1862
    %2010 = vmatprep.subr.mxu0 %v1855
    %2011 = vmatpush1.msra.mxu0 %v1854
    %2012 = vmatprep.subr.mxu0 %v1847
    %2013 = vmatpush1.msra.mxu0 %v1846
    %2014 = vmatprep.subr.mxu0 %v1839
    %2015 = vmatpush1.msra.mxu0 %v1838
    %2016 = vmatprep.subr.mxu0 %v1831
    %2017 = vmatpush1.msra.mxu0 %v1830
    %2018 = vmatprep.subr.mxu0 %v1823
    %2019 = vmatpush1.msra.mxu0 %v1822
    %2020 = vmatprep.subr.mxu0 %v1815
    %2021 = vmatpush1.msra.mxu0 %v1814
    %2022 = vmatprep.subr.mxu0 %v1807
    %2023 = vmatpush1.msra.mxu0 %v1806
    %2024 = vmatprep.subr.mxu0 %v1799
    %2025 = vmatpush1.msra.mxu0 %v1798
    %2026 = vmatprep.subr.mxu0 %v1791
    %2027 = vmatpush1.msra.mxu0 %v1790
    %2028 = vmatprep.subr.mxu0 %v1783
    %2029 = vmatpush1.msra.mxu0 %v1782
    %2030 = vmatprep.subr.mxu0 %v1775
    %2031 = vmatpush1.msra.mxu0 %v1774
    %2032 = vmatprep.subr.mxu0 %v1767
    %2033 = vmatpush1.msra.mxu0 %v1766
    %2034 = vmatprep.subr.mxu0 %v1759
    %2035 = vmatpush1.msra.mxu0 %v1758
    %2036 = vmatprep.subr.mxu0 %v1751
    %2037 = vmatpush1.msra.mxu0 %v1750
    %2038 = vmatprep.subr.mxu0 %v1999
    %2039 = vmatpush2.msra.mxu0 %v1998
    %2040 = vmatprep.subr.mxu0 %v1991
    %2041 = vmatpush2.msra.mxu0 %v1990
    %2042 = vmatprep.subr.mxu0 %v1983
    %2043 = vmatpush2.msra.mxu0 %v1982
    %2044 = vmatprep.subr.mxu0 %v1975
    %2045 = vmatpush2.msra.mxu0 %v1974
    %2046 = vmatprep.subr.mxu0 %v1967
    %2047 = vmatpush2.msra.mxu0 %v1966
    %2048 = vmatprep.subr.mxu0 %v1959
    %2049 = vmatpush2.msra.mxu0 %v1958
    %2050 = vmatprep.subr.mxu0 %v1951
    %2051 = vmatpush2.msra.mxu0 %v1950
    %2052 = vmatprep.subr.mxu0 %v1943
    %2053 = vmatpush2.msra.mxu0 %v1942
    %2054 = vmatprep.subr.mxu0 %v1935
    %2055 = vmatpush2.msra.mxu0 %v1934
    %2056 = vmatprep.subr.mxu0 %v1927
    %2057 = vmatpush2.msra.mxu0 %v1926
    %2058 = vmatprep.subr.mxu0 %v1919
    %2059 = vmatpush2.msra.mxu0 %v1918
    %2060 = vmatprep.subr.mxu0 %v1911
    %2061 = vmatpush2.msra.mxu0 %v1910
    %2062 = vmatprep.subr.mxu0 %v1903
    %2063 = vmatpush2.msra.mxu0 %v1902
    %2064 = vmatprep.subr.mxu0 %v1895
    %2065 = vmatpush2.msra.mxu0 %v1894
    %2066 = vmatprep.subr.mxu0 %v1887
    %2067 = vmatpush2.msra.mxu0 %v1886
    %2068 = vmatprep.subr.mxu0 %v1879
    %2069 = vmatpush2.msra.mxu0 %v1878
    %2070 = vmatprep.mubr.f32.mxu0 %v1235
    %2071 = vmatmul.mubr.f32.gmra.mxu0 %v1233
    %v2072 = vpop.f32.mrf.mxu0
    %v2073 = vadd.f32 0.0, %v2072
    %v2074 = vpop.f32.mrf.mxu0
    %v2075 = vadd.f32 0.0, %v2074
    %2076 = vdwg.mxu0
    %2077 = vmatprep.subr.mxu0 %v1873
    %2078 = vmatpush1.msra.mxu0 %v1872
    %2079 = vmatprep.subr.mxu0 %v1865
    %2080 = vmatpush1.msra.mxu0 %v1864
    %2081 = vmatprep.subr.mxu0 %v1857
    %2082 = vmatpush1.msra.mxu0 %v1856
    %2083 = vmatprep.subr.mxu0 %v1849
    %2084 = vmatpush1.msra.mxu0 %v1848
    %2085 = vmatprep.subr.mxu0 %v1841
    %2086 = vmatpush1.msra.mxu0 %v1840
    %2087 = vmatprep.subr.mxu0 %v1833
    %2088 = vmatpush1.msra.mxu0 %v1832
    %2089 = vmatprep.subr.mxu0 %v1825
    %2090 = vmatpush1.msra.mxu0 %v1824
    %2091 = vmatprep.subr.mxu0 %v1817
    %2092 = vmatpush1.msra.mxu0 %v1816
    %2093 = vmatprep.subr.mxu0 %v1809
    %2094 = vmatpush1.msra.mxu0 %v1808
    %2095 = vmatprep.subr.mxu0 %v1801
    %2096 = vmatpush1.msra.mxu0 %v1800
    %2097 = vmatprep.subr.mxu0 %v1793
    %2098 = vmatpush1.msra.mxu0 %v1792
    %2099 = vmatprep.subr.mxu0 %v1785
    %2100 = vmatpush1.msra.mxu0 %v1784
    %2101 = vmatprep.subr.mxu0 %v1777
    %2102 = vmatpush1.msra.mxu0 %v1776
    %2103 = vmatprep.subr.mxu0 %v1769
    %2104 = vmatpush1.msra.mxu0 %v1768
    %2105 = vmatprep.subr.mxu0 %v1761
    %2106 = vmatpush1.msra.mxu0 %v1760
    %2107 = vmatprep.subr.mxu0 %v1753
    %2108 = vmatpush1.msra.mxu0 %v1752
    %2109 = vmatprep.subr.mxu0 %v2001
    %2110 = vmatpush2.msra.mxu0 %v2000
    %2111 = vmatprep.subr.mxu0 %v1993
    %2112 = vmatpush2.msra.mxu0 %v1992
    %2113 = vmatprep.subr.mxu0 %v1985
    %2114 = vmatpush2.msra.mxu0 %v1984
    %2115 = vmatprep.subr.mxu0 %v1977
    %2116 = vmatpush2.msra.mxu0 %v1976
    %2117 = vmatprep.subr.mxu0 %v1969
    %2118 = vmatpush2.msra.mxu0 %v1968
    %2119 = vmatprep.subr.mxu0 %v1961
    %2120 = vmatpush2.msra.mxu0 %v1960
    %2121 = vmatprep.subr.mxu0 %v1953
    %2122 = vmatpush2.msra.mxu0 %v1952
    %2123 = vmatprep.subr.mxu0 %v1945
    %2124 = vmatpush2.msra.mxu0 %v1944
    %2125 = vmatprep.subr.mxu0 %v1937
    %2126 = vmatpush2.msra.mxu0 %v1936
    %2127 = vmatprep.subr.mxu0 %v1929
    %2128 = vmatpush2.msra.mxu0 %v1928
    %2129 = vmatprep.subr.mxu0 %v1921
    %2130 = vmatpush2.msra.mxu0 %v1920
    %2131 = vmatprep.subr.mxu0 %v1913
    %2132 = vmatpush2.msra.mxu0 %v1912
    %2133 = vmatprep.subr.mxu0 %v1905
    %2134 = vmatpush2.msra.mxu0 %v1904
    %2135 = vmatprep.subr.mxu0 %v1897
    %2136 = vmatpush2.msra.mxu0 %v1896
    %2137 = vmatprep.subr.mxu0 %v1889
    %2138 = vmatpush2.msra.mxu0 %v1888
    %2139 = vmatprep.subr.mxu0 %v1881
    %2140 = vmatpush2.msra.mxu0 %v1880
    %2141 = vmatprep.mubr.f32.mxu0 %v1235
    %2142 = vmatmul.mubr.f32.gmra.mxu0 %v1233
    %v2143 = vpop.f32.mrf.mxu0
    %v2144 = vadd.f32 0.0, %v2143
    %v2145 = vpop.f32.mrf.mxu0
    %v2146 = vadd.f32 0.0, %v2145
    %2147 = vdwg.mxu0
    %2148 = vmatprep.subr.mxu0 %v1875
    %2149 = vmatpush1.msra.mxu0 %v1874
    %2150 = vmatprep.subr.mxu0 %v1867
    %2151 = vmatpush1.msra.mxu0 %v1866
    %2152 = vmatprep.subr.mxu0 %v1859
    %2153 = vmatpush1.msra.mxu0 %v1858
    %2154 = vmatprep.subr.mxu0 %v1851
    %2155 = vmatpush1.msra.mxu0 %v1850
    %2156 = vmatprep.subr.mxu0 %v1843
    %2157 = vmatpush1.msra.mxu0 %v1842
    %2158 = vmatprep.subr.mxu0 %v1835
    %2159 = vmatpush1.msra.mxu0 %v1834
    %2160 = vmatprep.subr.mxu0 %v1827
    %2161 = vmatpush1.msra.mxu0 %v1826
    %2162 = vmatprep.subr.mxu0 %v1819
    %2163 = vmatpush1.msra.mxu0 %v1818
    %2164 = vmatprep.subr.mxu0 %v1811
    %2165 = vmatpush1.msra.mxu0 %v1810
    %2166 = vmatprep.subr.mxu0 %v1803
    %2167 = vmatpush1.msra.mxu0 %v1802
    %2168 = vmatprep.subr.mxu0 %v1795
    %2169 = vmatpush1.msra.mxu0 %v1794
    %2170 = vmatprep.subr.mxu0 %v1787
    %2171 = vmatpush1.msra.mxu0 %v1786
    %2172 = vmatprep.subr.mxu0 %v1779
    %2173 = vmatpush1.msra.mxu0 %v1778
    %2174 = vmatprep.subr.mxu0 %v1771
    %2175 = vmatpush1.msra.mxu0 %v1770
    %2176 = vmatprep.subr.mxu0 %v1763
    %2177 = vmatpush1.msra.mxu0 %v1762
    %2178 = vmatprep.subr.mxu0 %v1755
    %2179 = vmatpush1.msra.mxu0 %v1754
    %2180 = vmatprep.subr.mxu0 %v2003
    %2181 = vmatpush2.msra.mxu0 %v2002
    %2182 = vmatprep.subr.mxu0 %v1995
    %2183 = vmatpush2.msra.mxu0 %v1994
    %2184 = vmatprep.subr.mxu0 %v1987
    %2185 = vmatpush2.msra.mxu0 %v1986
    %2186 = vmatprep.subr.mxu0 %v1979
    %2187 = vmatpush2.msra.mxu0 %v1978
    %2188 = vmatprep.subr.mxu0 %v1971
    %2189 = vmatpush2.msra.mxu0 %v1970
    %2190 = vmatprep.subr.mxu0 %v1963
    %2191 = vmatpush2.msra.mxu0 %v1962
    %2192 = vmatprep.subr.mxu0 %v1955
    %2193 = vmatpush2.msra.mxu0 %v1954
    %2194 = vmatprep.subr.mxu0 %v1947
    %2195 = vmatpush2.msra.mxu0 %v1946
    %2196 = vmatprep.subr.mxu0 %v1939
    %2197 = vmatpush2.msra.mxu0 %v1938
    %2198 = vmatprep.subr.mxu0 %v1931
    %2199 = vmatpush2.msra.mxu0 %v1930
    %2200 = vmatprep.subr.mxu0 %v1923
    %2201 = vmatpush2.msra.mxu0 %v1922
    %2202 = vmatprep.subr.mxu0 %v1915
    %2203 = vmatpush2.msra.mxu0 %v1914
    %2204 = vmatprep.subr.mxu0 %v1907
    %2205 = vmatpush2.msra.mxu0 %v1906
    %2206 = vmatprep.subr.mxu0 %v1899
    %2207 = vmatpush2.msra.mxu0 %v1898
    %2208 = vmatprep.subr.mxu0 %v1891
    %2209 = vmatpush2.msra.mxu0 %v1890
    %2210 = vmatprep.subr.mxu0 %v1883
    %2211 = vmatpush2.msra.mxu0 %v1882
    %2212 = vmatprep.mubr.f32.mxu0 %v1235
    %2213 = vmatmul.mubr.f32.gmra.mxu0 %v1233
    %v2214 = vpop.f32.mrf.mxu0
    %v2215 = vadd.f32 0.0, %v2214
    %v2216 = vpop.f32.mrf.mxu0
    %v2217 = vadd.f32 0.0, %v2216
    %2218 = vdwg.mxu0
    %2219 = vmatprep.subr.mxu0 %v1877
    %2220 = vmatpush1.msra.mxu0 %v1876
    %2221 = vmatprep.subr.mxu0 %v1869
    %2222 = vmatpush1.msra.mxu0 %v1868
    %2223 = vmatprep.subr.mxu0 %v1861
    %2224 = vmatpush1.msra.mxu0 %v1860
    %2225 = vmatprep.subr.mxu0 %v1853
    %2226 = vmatpush1.msra.mxu0 %v1852
    %2227 = vmatprep.subr.mxu0 %v1845
    %2228 = vmatpush1.msra.mxu0 %v1844
    %2229 = vmatprep.subr.mxu0 %v1837
    %2230 = vmatpush1.msra.mxu0 %v1836
    %2231 = vmatprep.subr.mxu0 %v1829
    %2232 = vmatpush1.msra.mxu0 %v1828
    %2233 = vmatprep.subr.mxu0 %v1821
    %2234 = vmatpush1.msra.mxu0 %v1820
    %2235 = vmatprep.subr.mxu0 %v1813
    %2236 = vmatpush1.msra.mxu0 %v1812
    %2237 = vmatprep.subr.mxu0 %v1805
    %2238 = vmatpush1.msra.mxu0 %v1804
    %2239 = vmatprep.subr.mxu0 %v1797
    %2240 = vmatpush1.msra.mxu0 %v1796
    %2241 = vmatprep.subr.mxu0 %v1789
    %2242 = vmatpush1.msra.mxu0 %v1788
    %2243 = vmatprep.subr.mxu0 %v1781
    %2244 = vmatpush1.msra.mxu0 %v1780
    %2245 = vmatprep.subr.mxu0 %v1773
    %2246 = vmatpush1.msra.mxu0 %v1772
    %2247 = vmatprep.subr.mxu0 %v1765
    %2248 = vmatpush1.msra.mxu0 %v1764
    %2249 = vmatprep.subr.mxu0 %v1757
    %2250 = vmatpush1.msra.mxu0 %v1756
    %2251 = vmatprep.subr.mxu0 %v2005
    %2252 = vmatpush2.msra.mxu0 %v2004
    %2253 = vmatprep.subr.mxu0 %v1997
    %2254 = vmatpush2.msra.mxu0 %v1996
    %2255 = vmatprep.subr.mxu0 %v1989
    %2256 = vmatpush2.msra.mxu0 %v1988
    %2257 = vmatprep.subr.mxu0 %v1981
    %2258 = vmatpush2.msra.mxu0 %v1980
    %2259 = vmatprep.subr.mxu0 %v1973
    %2260 = vmatpush2.msra.mxu0 %v1972
    %2261 = vmatprep.subr.mxu0 %v1965
    %2262 = vmatpush2.msra.mxu0 %v1964
    %2263 = vmatprep.subr.mxu0 %v1957
    %2264 = vmatpush2.msra.mxu0 %v1956
    %2265 = vmatprep.subr.mxu0 %v1949
    %2266 = vmatpush2.msra.mxu0 %v1948
    %2267 = vmatprep.subr.mxu0 %v1941
    %2268 = vmatpush2.msra.mxu0 %v1940
    %2269 = vmatprep.subr.mxu0 %v1933
    %2270 = vmatpush2.msra.mxu0 %v1932
    %2271 = vmatprep.subr.mxu0 %v1925
    %2272 = vmatpush2.msra.mxu0 %v1924
    %2273 = vmatprep.subr.mxu0 %v1917
    %2274 = vmatpush2.msra.mxu0 %v1916
    %2275 = vmatprep.subr.mxu0 %v1909
    %2276 = vmatpush2.msra.mxu0 %v1908
    %2277 = vmatprep.subr.mxu0 %v1901
    %2278 = vmatpush2.msra.mxu0 %v1900
    %2279 = vmatprep.subr.mxu0 %v1893
    %2280 = vmatpush2.msra.mxu0 %v1892
    %2281 = vmatprep.subr.mxu0 %v1885
    %2282 = vmatpush2.msra.mxu0 %v1884
    %2283 = vmatprep.mubr.f32.mxu0 %v1235
    %2284 = vmatmul.mubr.f32.gmra.mxu0 %v1233
    %v2285 = vpop.f32.mrf.mxu0
    %v2286 = vadd.f32 0.0, %v2285
    %v2287 = vpop.f32.mrf.mxu0
    %v2288 = vadd.f32 0.0, %v2287
    %2289 = vdwg.mxu0
    %2290 = vmatprep.subr.mxu0 %v1487
    %2291 = vmatpush1.msra.mxu0 %v1486
    %2292 = vmatprep.subr.mxu0 %v1479
    %2293 = vmatpush1.msra.mxu0 %v1478
    %2294 = vmatprep.subr.mxu0 %v1471
    %2295 = vmatpush1.msra.mxu0 %v1470
    %2296 = vmatprep.subr.mxu0 %v1463
    %2297 = vmatpush1.msra.mxu0 %v1462
    %2298 = vmatprep.subr.mxu0 %v1455
    %2299 = vmatpush1.msra.mxu0 %v1454
    %2300 = vmatprep.subr.mxu0 %v1447
    %2301 = vmatpush1.msra.mxu0 %v1446
    %2302 = vmatprep.subr.mxu0 %v1439
    %2303 = vmatpush1.msra.mxu0 %v1438
    %2304 = vmatprep.subr.mxu0 %v1431
    %2305 = vmatpush1.msra.mxu0 %v1430
    %2306 = vmatprep.subr.mxu0 %v1423
    %2307 = vmatpush1.msra.mxu0 %v1422
    %2308 = vmatprep.subr.mxu0 %v1415
    %2309 = vmatpush1.msra.mxu0 %v1414
    %2310 = vmatprep.subr.mxu0 %v1407
    %2311 = vmatpush1.msra.mxu0 %v1406
    %2312 = vmatprep.subr.mxu0 %v1399
    %2313 = vmatpush1.msra.mxu0 %v1398
    %2314 = vmatprep.subr.mxu0 %v1391
    %2315 = vmatpush1.msra.mxu0 %v1390
    %2316 = vmatprep.subr.mxu0 %v1383
    %2317 = vmatpush1.msra.mxu0 %v1382
    %2318 = vmatprep.subr.mxu0 %v1375
    %2319 = vmatpush1.msra.mxu0 %v1374
    %2320 = vmatprep.subr.mxu0 %v1367
    %2321 = vmatpush1.msra.mxu0 %v1366
    %2322 = vmatprep.subr.mxu0 %v1615
    %2323 = vmatpush2.msra.mxu0 %v1614
    %2324 = vmatprep.subr.mxu0 %v1607
    %2325 = vmatpush2.msra.mxu0 %v1606
    %2326 = vmatprep.subr.mxu0 %v1599
    %2327 = vmatpush2.msra.mxu0 %v1598
    %2328 = vmatprep.subr.mxu0 %v1591
    %2329 = vmatpush2.msra.mxu0 %v1590
    %2330 = vmatprep.subr.mxu0 %v1583
    %2331 = vmatpush2.msra.mxu0 %v1582
    %2332 = vmatprep.subr.mxu0 %v1575
    %2333 = vmatpush2.msra.mxu0 %v1574
    %2334 = vmatprep.subr.mxu0 %v1567
    %2335 = vmatpush2.msra.mxu0 %v1566
    %2336 = vmatprep.subr.mxu0 %v1559
    %2337 = vmatpush2.msra.mxu0 %v1558
    %2338 = vmatprep.subr.mxu0 %v1551
    %2339 = vmatpush2.msra.mxu0 %v1550
    %2340 = vmatprep.subr.mxu0 %v1543
    %2341 = vmatpush2.msra.mxu0 %v1542
    %2342 = vmatprep.subr.mxu0 %v1535
    %2343 = vmatpush2.msra.mxu0 %v1534
    %2344 = vmatprep.subr.mxu0 %v1527
    %2345 = vmatpush2.msra.mxu0 %v1526
    %2346 = vmatprep.subr.mxu0 %v1519
    %2347 = vmatpush2.msra.mxu0 %v1518
    %2348 = vmatprep.subr.mxu0 %v1511
    %2349 = vmatpush2.msra.mxu0 %v1510
    %2350 = vmatprep.subr.mxu0 %v1503
    %2351 = vmatpush2.msra.mxu0 %v1502
    %2352 = vmatprep.subr.mxu0 %v1495
    %2353 = vmatpush2.msra.mxu0 %v1494
    %2354 = vmatprep.mubr.f32.mxu0 %v1237
    %2355 = vmatmul.mubr.f32.gmra.mxu0 %v1236
    %v2356 = vpop.f32.mrf.mxu0
    %v2357 = vadd.f32 %v2073, %v2356
    %v2358 = vpop.f32.mrf.mxu0
    %v2359 = vadd.f32 %v2075, %v2358
    %2360 = vdwg.mxu0
    %2361 = vmatprep.subr.mxu0 %v1489
    %2362 = vmatpush1.msra.mxu0 %v1488
    %2363 = vmatprep.subr.mxu0 %v1481
    %2364 = vmatpush1.msra.mxu0 %v1480
    %2365 = vmatprep.subr.mxu0 %v1473
    %2366 = vmatpush1.msra.mxu0 %v1472
    %2367 = vmatprep.subr.mxu0 %v1465
    %2368 = vmatpush1.msra.mxu0 %v1464
    %2369 = vmatprep.subr.mxu0 %v1457
    %2370 = vmatpush1.msra.mxu0 %v1456
    %2371 = vmatprep.subr.mxu0 %v1449
    %2372 = vmatpush1.msra.mxu0 %v1448
    %2373 = vmatprep.subr.mxu0 %v1441
    %2374 = vmatpush1.msra.mxu0 %v1440
    %2375 = vmatprep.subr.mxu0 %v1433
    %2376 = vmatpush1.msra.mxu0 %v1432
    %2377 = vmatprep.subr.mxu0 %v1425
    %2378 = vmatpush1.msra.mxu0 %v1424
    %2379 = vmatprep.subr.mxu0 %v1417
    %2380 = vmatpush1.msra.mxu0 %v1416
    %2381 = vmatprep.subr.mxu0 %v1409
    %2382 = vmatpush1.msra.mxu0 %v1408
    %2383 = vmatprep.subr.mxu0 %v1401
    %2384 = vmatpush1.msra.mxu0 %v1400
    %2385 = vmatprep.subr.mxu0 %v1393
    %2386 = vmatpush1.msra.mxu0 %v1392
    %2387 = vmatprep.subr.mxu0 %v1385
    %2388 = vmatpush1.msra.mxu0 %v1384
    %2389 = vmatprep.subr.mxu0 %v1377
    %2390 = vmatpush1.msra.mxu0 %v1376
    %2391 = vmatprep.subr.mxu0 %v1369
    %2392 = vmatpush1.msra.mxu0 %v1368
    %2393 = vmatprep.subr.mxu0 %v1617
    %2394 = vmatpush2.msra.mxu0 %v1616
    %2395 = vmatprep.subr.mxu0 %v1609
    %2396 = vmatpush2.msra.mxu0 %v1608
    %2397 = vmatprep.subr.mxu0 %v1601
    %2398 = vmatpush2.msra.mxu0 %v1600
    %2399 = vmatprep.subr.mxu0 %v1593
    %2400 = vmatpush2.msra.mxu0 %v1592
    %2401 = vmatprep.subr.mxu0 %v1585
    %2402 = vmatpush2.msra.mxu0 %v1584
    %2403 = vmatprep.subr.mxu0 %v1577
    %2404 = vmatpush2.msra.mxu0 %v1576
    %2405 = vmatprep.subr.mxu0 %v1569
    %2406 = vmatpush2.msra.mxu0 %v1568
    %2407 = vmatprep.subr.mxu0 %v1561
    %2408 = vmatpush2.msra.mxu0 %v1560
    %2409 = vmatprep.subr.mxu0 %v1553
    %2410 = vmatpush2.msra.mxu0 %v1552
    %2411 = vmatprep.subr.mxu0 %v1545
    %2412 = vmatpush2.msra.mxu0 %v1544
    %2413 = vmatprep.subr.mxu0 %v1537
    %2414 = vmatpush2.msra.mxu0 %v1536
    %2415 = vmatprep.subr.mxu0 %v1529
    %2416 = vmatpush2.msra.mxu0 %v1528
    %2417 = vmatprep.subr.mxu0 %v1521
    %2418 = vmatpush2.msra.mxu0 %v1520
    %2419 = vmatprep.subr.mxu0 %v1513
    %2420 = vmatpush2.msra.mxu0 %v1512
    %2421 = vmatprep.subr.mxu0 %v1505
    %2422 = vmatpush2.msra.mxu0 %v1504
    %2423 = vmatprep.subr.mxu0 %v1497
    %2424 = vmatpush2.msra.mxu0 %v1496
    %2425 = vmatprep.mubr.f32.mxu0 %v1237
    %2426 = vmatmul.mubr.f32.gmra.mxu0 %v1236
    %v2427 = vpop.f32.mrf.mxu0
    %v2428 = vadd.f32 %v2144, %v2427
    %v2429 = vpop.f32.mrf.mxu0
    %v2430 = vadd.f32 %v2146, %v2429
    %2431 = vdwg.mxu0
    %2432 = vmatprep.subr.mxu0 %v1491
    %2433 = vmatpush1.msra.mxu0 %v1490
    %2434 = vmatprep.subr.mxu0 %v1483
    %2435 = vmatpush1.msra.mxu0 %v1482
    %2436 = vmatprep.subr.mxu0 %v1475
    %2437 = vmatpush1.msra.mxu0 %v1474
    %2438 = vmatprep.subr.mxu0 %v1467
    %2439 = vmatpush1.msra.mxu0 %v1466
    %2440 = vmatprep.subr.mxu0 %v1459
    %2441 = vmatpush1.msra.mxu0 %v1458
    %2442 = vmatprep.subr.mxu0 %v1451
    %2443 = vmatpush1.msra.mxu0 %v1450
    %2444 = vmatprep.subr.mxu0 %v1443
    %2445 = vmatpush1.msra.mxu0 %v1442
    %2446 = vmatprep.subr.mxu0 %v1435
    %2447 = vmatpush1.msra.mxu0 %v1434
    %2448 = vmatprep.subr.mxu0 %v1427
    %2449 = vmatpush1.msra.mxu0 %v1426
    %2450 = vmatprep.subr.mxu0 %v1419
    %2451 = vmatpush1.msra.mxu0 %v1418
    %2452 = vmatprep.subr.mxu0 %v1411
    %2453 = vmatpush1.msra.mxu0 %v1410
    %2454 = vmatprep.subr.mxu0 %v1403
    %2455 = vmatpush1.msra.mxu0 %v1402
    %2456 = vmatprep.subr.mxu0 %v1395
    %2457 = vmatpush1.msra.mxu0 %v1394
    %2458 = vmatprep.subr.mxu0 %v1387
    %2459 = vmatpush1.msra.mxu0 %v1386
    %2460 = vmatprep.subr.mxu0 %v1379
    %2461 = vmatpush1.msra.mxu0 %v1378
    %2462 = vmatprep.subr.mxu0 %v1371
    %2463 = vmatpush1.msra.mxu0 %v1370
    %2464 = vmatprep.subr.mxu0 %v1619
    %2465 = vmatpush2.msra.mxu0 %v1618
    %2466 = vmatprep.subr.mxu0 %v1611
    %2467 = vmatpush2.msra.mxu0 %v1610
    %2468 = vmatprep.subr.mxu0 %v1603
    %2469 = vmatpush2.msra.mxu0 %v1602
    %2470 = vmatprep.subr.mxu0 %v1595
    %2471 = vmatpush2.msra.mxu0 %v1594
    %2472 = vmatprep.subr.mxu0 %v1587
    %2473 = vmatpush2.msra.mxu0 %v1586
    %2474 = vmatprep.subr.mxu0 %v1579
    %2475 = vmatpush2.msra.mxu0 %v1578
    %2476 = vmatprep.subr.mxu0 %v1571
    %2477 = vmatpush2.msra.mxu0 %v1570
    %2478 = vmatprep.subr.mxu0 %v1563
    %2479 = vmatpush2.msra.mxu0 %v1562
    %2480 = vmatprep.subr.mxu0 %v1555
    %2481 = vmatpush2.msra.mxu0 %v1554
    %2482 = vmatprep.subr.mxu0 %v1547
    %2483 = vmatpush2.msra.mxu0 %v1546
    %2484 = vmatprep.subr.mxu0 %v1539
    %2485 = vmatpush2.msra.mxu0 %v1538
    %2486 = vmatprep.subr.mxu0 %v1531
    %2487 = vmatpush2.msra.mxu0 %v1530
    %2488 = vmatprep.subr.mxu0 %v1523
    %2489 = vmatpush2.msra.mxu0 %v1522
    %2490 = vmatprep.subr.mxu0 %v1515
    %2491 = vmatpush2.msra.mxu0 %v1514
    %2492 = vmatprep.subr.mxu0 %v1507
    %2493 = vmatpush2.msra.mxu0 %v1506
    %2494 = vmatprep.subr.mxu0 %v1499
    %2495 = vmatpush2.msra.mxu0 %v1498
    %2496 = vmatprep.mubr.f32.mxu0 %v1237
    %2497 = vmatmul.mubr.f32.gmra.mxu0 %v1236
    %v2498 = vpop.f32.mrf.mxu0
    %v2499 = vadd.f32 %v2215, %v2498
    %v2500 = vpop.f32.mrf.mxu0
    %v2501 = vadd.f32 %v2217, %v2500
    %2502 = vdwg.mxu0
    %2503 = vmatprep.subr.mxu0 %v1493
    %2504 = vmatpush1.msra.mxu0 %v1492
    %2505 = vmatprep.subr.mxu0 %v1485
    %2506 = vmatpush1.msra.mxu0 %v1484
    %2507 = vmatprep.subr.mxu0 %v1477
    %2508 = vmatpush1.msra.mxu0 %v1476
    %2509 = vmatprep.subr.mxu0 %v1469
    %2510 = vmatpush1.msra.mxu0 %v1468
    %2511 = vmatprep.subr.mxu0 %v1461
    %2512 = vmatpush1.msra.mxu0 %v1460
    %2513 = vmatprep.subr.mxu0 %v1453
    %2514 = vmatpush1.msra.mxu0 %v1452
    %2515 = vmatprep.subr.mxu0 %v1445
    %2516 = vmatpush1.msra.mxu0 %v1444
    %2517 = vmatprep.subr.mxu0 %v1437
    %2518 = vmatpush1.msra.mxu0 %v1436
    %2519 = vmatprep.subr.mxu0 %v1429
    %2520 = vmatpush1.msra.mxu0 %v1428
    %2521 = vmatprep.subr.mxu0 %v1421
    %2522 = vmatpush1.msra.mxu0 %v1420
    %2523 = vmatprep.subr.mxu0 %v1413
    %2524 = vmatpush1.msra.mxu0 %v1412
    %2525 = vmatprep.subr.mxu0 %v1405
    %2526 = vmatpush1.msra.mxu0 %v1404
    %2527 = vmatprep.subr.mxu0 %v1397
    %2528 = vmatpush1.msra.mxu0 %v1396
    %2529 = vmatprep.subr.mxu0 %v1389
    %2530 = vmatpush1.msra.mxu0 %v1388
    %2531 = vmatprep.subr.mxu0 %v1381
    %2532 = vmatpush1.msra.mxu0 %v1380
    %2533 = vmatprep.subr.mxu0 %v1373
    %2534 = vmatpush1.msra.mxu0 %v1372
    %2535 = vmatprep.subr.mxu0 %v1621
    %2536 = vmatpush2.msra.mxu0 %v1620
    %2537 = vmatprep.subr.mxu0 %v1613
    %2538 = vmatpush2.msra.mxu0 %v1612
    %2539 = vmatprep.subr.mxu0 %v1605
    %2540 = vmatpush2.msra.mxu0 %v1604
    %2541 = vmatprep.subr.mxu0 %v1597
    %2542 = vmatpush2.msra.mxu0 %v1596
    %2543 = vmatprep.subr.mxu0 %v1589
    %2544 = vmatpush2.msra.mxu0 %v1588
    %2545 = vmatprep.subr.mxu0 %v1581
    %2546 = vmatpush2.msra.mxu0 %v1580
    %2547 = vmatprep.subr.mxu0 %v1573
    %2548 = vmatpush2.msra.mxu0 %v1572
    %2549 = vmatprep.subr.mxu0 %v1565
    %2550 = vmatpush2.msra.mxu0 %v1564
    %2551 = vmatprep.subr.mxu0 %v1557
    %2552 = vmatpush2.msra.mxu0 %v1556
    %2553 = vmatprep.subr.mxu0 %v1549
    %2554 = vmatpush2.msra.mxu0 %v1548
    %2555 = vmatprep.subr.mxu0 %v1541
    %2556 = vmatpush2.msra.mxu0 %v1540
    %2557 = vmatprep.subr.mxu0 %v1533
    %2558 = vmatpush2.msra.mxu0 %v1532
    %2559 = vmatprep.subr.mxu0 %v1525
    %2560 = vmatpush2.msra.mxu0 %v1524
    %2561 = vmatprep.subr.mxu0 %v1517
    %2562 = vmatpush2.msra.mxu0 %v1516
    %2563 = vmatprep.subr.mxu0 %v1509
    %2564 = vmatpush2.msra.mxu0 %v1508
    %2565 = vmatprep.subr.mxu0 %v1501
    %2566 = vmatpush2.msra.mxu0 %v1500
    %2567 = vmatprep.mubr.f32.mxu0 %v1237
    %2568 = vmatmul.mubr.f32.gmra.mxu0 %v1236
    %v2569 = vpop.f32.mrf.mxu0
    %v2570 = vadd.f32 %v2286, %v2569
    %v2571 = vpop.f32.mrf.mxu0
    %v2572 = vadd.f32 %v2288, %v2571
    %2573 = vdwg.mxu0
    %v2574 = vld [vmem:[%s31] sm:$0xff]
    %v2576 = vlaneseq
    %v2577 = vshrl.u32 %v2576, 7
    %v2578 = vsub.s32 0, %v2577
    %v2579 = vrot.slane %v2574, %v2578
    %v2580 = vlaneseq
    %v2581 = vshrl.u32 %v2580, 7
    %v2582 = vsub.s32 1, %v2581
    %v2583 = vrot.slane %v2574, %v2582
    %v2584 = vlaneseq
    %v2585 = vshrl.u32 %v2584, 7
    %v2586 = vsub.s32 2, %v2585
    %v2587 = vrot.slane %v2574, %v2586
    %v2588 = vlaneseq
    %v2589 = vshrl.u32 %v2588, 7
    %v2590 = vsub.s32 3, %v2589
    %v2591 = vrot.slane %v2574, %v2590
    %v2592 = vlaneseq
    %v2593 = vshrl.u32 %v2592, 7
    %v2594 = vsub.s32 4, %v2593
    %v2595 = vrot.slane %v2574, %v2594
    %v2596 = vlaneseq
    %v2597 = vshrl.u32 %v2596, 7
    %v2598 = vsub.s32 5, %v2597
    %v2599 = vrot.slane %v2574, %v2598
    %v2600 = vlaneseq
    %v2601 = vshrl.u32 %v2600, 7
    %v2602 = vsub.s32 6, %v2601
    %v2603 = vrot.slane %v2574, %v2602
    %v2604 = vlaneseq
    %v2605 = vshrl.u32 %v2604, 7
    %v2606 = vsub.s32 7, %v2605
    %v2607 = vrot.slane %v2574, %v2606
    %v2616 = vadd.f32 %v2357, %v2579
    %v2617 = vadd.f32 %v2359, %v2583
    %v2618 = vadd.f32 %v2428, %v2587
    %v2619 = vadd.f32 %v2430, %v2591
    %v2620 = vadd.f32 %v2499, %v2595
    %v2621 = vadd.f32 %v2501, %v2599
    %v2622 = vadd.f32 %v2570, %v2603
    %v2623 = vadd.f32 %v2572, %v2607
    %v2624 = vld [vmem:[%s5] sm:$0xf]
    %v2625 = vld [vmem:[%s33] sm:$0xff]
    %v2626 = vld [vmem:[%s33 + $0x8] sm:$0xff]
    %v2627 = vld [vmem:[%s33 + $0x10] sm:$0xff]
    %v2628 = vld [vmem:[%s33 + $0x18] sm:$0xff]
    %v2629 = vld [vmem:[%s33 + $0x20] sm:$0xff]
    %v2630 = vld [vmem:[%s33 + $0x28] sm:$0xff]
    %v2631 = vld [vmem:[%s33 + $0x30] sm:$0xff]
    %v2632 = vld [vmem:[%s33 + $0x38] sm:$0xff]
    %v2633 = vld [vmem:[%s33 + $0x40] sm:$0xff]
    %v2634 = vld [vmem:[%s33 + $0x48] sm:$0xff]
    %v2635 = vld [vmem:[%s33 + $0x50] sm:$0xff]
    %v2636 = vld [vmem:[%s33 + $0x58] sm:$0xff]
    %v2637 = vld [vmem:[%s33 + $0x60] sm:$0xff]
    %v2638 = vld [vmem:[%s33 + $0x68] sm:$0xff]
    %v2639 = vld [vmem:[%s33 + $0x70] sm:$0xff]
    %v2640 = vld [vmem:[%s33 + $0x78] sm:$0xff]
    %v2641 = vld [vmem:[%s33 + $0x80] sm:$0xff]
    %v2642 = vld [vmem:[%s33 + $0x88] sm:$0xff]
    %v2643 = vld [vmem:[%s33 + $0x90] sm:$0xff]
    %v2644 = vld [vmem:[%s33 + $0x98] sm:$0xff]
    %v2645 = vld [vmem:[%s33 + $0xa0] sm:$0xff]
    %v2646 = vld [vmem:[%s33 + $0xa8] sm:$0xff]
    %v2647 = vld [vmem:[%s33 + $0xb0] sm:$0xff]
    %v2648 = vld [vmem:[%s33 + $0xb8] sm:$0xff]
    %v2649 = vld [vmem:[%s33 + $0xc0] sm:$0xff]
    %v2650 = vld [vmem:[%s33 + $0xc8] sm:$0xff]
    %v2651 = vld [vmem:[%s33 + $0xd0] sm:$0xff]
    %v2652 = vld [vmem:[%s33 + $0xd8] sm:$0xff]
    %v2653 = vld [vmem:[%s33 + $0xe0] sm:$0xff]
    %v2654 = vld [vmem:[%s33 + $0xe8] sm:$0xff]
    %v2655 = vld [vmem:[%s33 + $0xf0] sm:$0xff]
    %v2656 = vld [vmem:[%s33 + $0xf8] sm:$0xff]
    %v2657 = vld [vmem:[%s33 + $0x100] sm:$0xff]
    %v2658 = vld [vmem:[%s33 + $0x108] sm:$0xff]
    %v2659 = vld [vmem:[%s33 + $0x110] sm:$0xff]
    %v2660 = vld [vmem:[%s33 + $0x118] sm:$0xff]
    %v2661 = vld [vmem:[%s33 + $0x120] sm:$0xff]
    %v2662 = vld [vmem:[%s33 + $0x128] sm:$0xff]
    %v2663 = vld [vmem:[%s33 + $0x130] sm:$0xff]
    %v2664 = vld [vmem:[%s33 + $0x138] sm:$0xff]
    %v2665 = vld [vmem:[%s33 + $0x140] sm:$0xff]
    %v2666 = vld [vmem:[%s33 + $0x148] sm:$0xff]
    %v2667 = vld [vmem:[%s33 + $0x150] sm:$0xff]
    %v2668 = vld [vmem:[%s33 + $0x158] sm:$0xff]
    %v2669 = vld [vmem:[%s33 + $0x160] sm:$0xff]
    %v2670 = vld [vmem:[%s33 + $0x168] sm:$0xff]
    %v2671 = vld [vmem:[%s33 + $0x170] sm:$0xff]
    %v2672 = vld [vmem:[%s33 + $0x178] sm:$0xff]
    %v2673 = vld [vmem:[%s33 + $0x180] sm:$0xff]
    %v2674 = vld [vmem:[%s33 + $0x188] sm:$0xff]
    %v2675 = vld [vmem:[%s33 + $0x190] sm:$0xff]
    %v2676 = vld [vmem:[%s33 + $0x198] sm:$0xff]
    %v2677 = vld [vmem:[%s33 + $0x1a0] sm:$0xff]
    %v2678 = vld [vmem:[%s33 + $0x1a8] sm:$0xff]
    %v2679 = vld [vmem:[%s33 + $0x1b0] sm:$0xff]
    %v2680 = vld [vmem:[%s33 + $0x1b8] sm:$0xff]
    %v2681 = vld [vmem:[%s33 + $0x1c0] sm:$0xff]
    %v2682 = vld [vmem:[%s33 + $0x1c8] sm:$0xff]
    %v2683 = vld [vmem:[%s33 + $0x1d0] sm:$0xff]
    %v2684 = vld [vmem:[%s33 + $0x1d8] sm:$0xff]
    %v2685 = vld [vmem:[%s33 + $0x1e0] sm:$0xff]
    %v2686 = vld [vmem:[%s33 + $0x1e8] sm:$0xff]
    %v2687 = vld [vmem:[%s33 + $0x1f0] sm:$0xff]
    %v2688 = vld [vmem:[%s33 + $0x1f8] sm:$0xff]
    %v2689 = vld [vmem:[%s33 + $0x200] sm:$0xff]
    %v2690 = vld [vmem:[%s33 + $0x208] sm:$0xff]
    %v2691 = vld [vmem:[%s33 + $0x210] sm:$0xff]
    %v2692 = vld [vmem:[%s33 + $0x218] sm:$0xff]
    %v2693 = vld [vmem:[%s33 + $0x220] sm:$0xff]
    %v2694 = vld [vmem:[%s33 + $0x228] sm:$0xff]
    %v2695 = vld [vmem:[%s33 + $0x230] sm:$0xff]
    %v2696 = vld [vmem:[%s33 + $0x238] sm:$0xff]
    %v2697 = vld [vmem:[%s33 + $0x240] sm:$0xff]
    %v2698 = vld [vmem:[%s33 + $0x248] sm:$0xff]
    %v2699 = vld [vmem:[%s33 + $0x250] sm:$0xff]
    %v2700 = vld [vmem:[%s33 + $0x258] sm:$0xff]
    %v2701 = vld [vmem:[%s33 + $0x260] sm:$0xff]
    %v2702 = vld [vmem:[%s33 + $0x268] sm:$0xff]
    %v2703 = vld [vmem:[%s33 + $0x270] sm:$0xff]
    %v2704 = vld [vmem:[%s33 + $0x278] sm:$0xff]
    %v2705 = vld [vmem:[%s33 + $0x280] sm:$0xff]
    %v2706 = vld [vmem:[%s33 + $0x288] sm:$0xff]
    %v2707 = vld [vmem:[%s33 + $0x290] sm:$0xff]
    %v2708 = vld [vmem:[%s33 + $0x298] sm:$0xff]
    %v2709 = vld [vmem:[%s33 + $0x2a0] sm:$0xff]
    %v2710 = vld [vmem:[%s33 + $0x2a8] sm:$0xff]
    %v2711 = vld [vmem:[%s33 + $0x2b0] sm:$0xff]
    %v2712 = vld [vmem:[%s33 + $0x2b8] sm:$0xff]
    %v2713 = vld [vmem:[%s33 + $0x2c0] sm:$0xff]
    %v2714 = vld [vmem:[%s33 + $0x2c8] sm:$0xff]
    %v2715 = vld [vmem:[%s33 + $0x2d0] sm:$0xff]
    %v2716 = vld [vmem:[%s33 + $0x2d8] sm:$0xff]
    %v2717 = vld [vmem:[%s33 + $0x2e0] sm:$0xff]
    %v2718 = vld [vmem:[%s33 + $0x2e8] sm:$0xff]
    %v2719 = vld [vmem:[%s33 + $0x2f0] sm:$0xff]
    %v2720 = vld [vmem:[%s33 + $0x2f8] sm:$0xff]
    %v2721 = vld [vmem:[%s33 + $0x300] sm:$0xff]
    %v2722 = vld [vmem:[%s33 + $0x308] sm:$0xff]
    %v2723 = vld [vmem:[%s33 + $0x310] sm:$0xff]
    %v2724 = vld [vmem:[%s33 + $0x318] sm:$0xff]
    %v2725 = vld [vmem:[%s33 + $0x320] sm:$0xff]
    %v2726 = vld [vmem:[%s33 + $0x328] sm:$0xff]
    %v2727 = vld [vmem:[%s33 + $0x330] sm:$0xff]
    %v2728 = vld [vmem:[%s33 + $0x338] sm:$0xff]
    %v2729 = vld [vmem:[%s33 + $0x340] sm:$0xff]
    %v2730 = vld [vmem:[%s33 + $0x348] sm:$0xff]
    %v2731 = vld [vmem:[%s33 + $0x350] sm:$0xff]
    %v2732 = vld [vmem:[%s33 + $0x358] sm:$0xff]
    %v2733 = vld [vmem:[%s33 + $0x360] sm:$0xff]
    %v2734 = vld [vmem:[%s33 + $0x368] sm:$0xff]
    %v2735 = vld [vmem:[%s33 + $0x370] sm:$0xff]
    %v2736 = vld [vmem:[%s33 + $0x378] sm:$0xff]
    %v2737 = vld [vmem:[%s33 + $0x380] sm:$0xff]
    %v2738 = vld [vmem:[%s33 + $0x388] sm:$0xff]
    %v2739 = vld [vmem:[%s33 + $0x390] sm:$0xff]
    %v2740 = vld [vmem:[%s33 + $0x398] sm:$0xff]
    %v2741 = vld [vmem:[%s33 + $0x3a0] sm:$0xff]
    %v2742 = vld [vmem:[%s33 + $0x3a8] sm:$0xff]
    %v2743 = vld [vmem:[%s33 + $0x3b0] sm:$0xff]
    %v2744 = vld [vmem:[%s33 + $0x3b8] sm:$0xff]
    %v2745 = vld [vmem:[%s33 + $0x3c0] sm:$0xff]
    %v2746 = vld [vmem:[%s33 + $0x3c8] sm:$0xff]
    %v2747 = vld [vmem:[%s33 + $0x3d0] sm:$0xff]
    %v2748 = vld [vmem:[%s33 + $0x3d8] sm:$0xff]
    %v2749 = vld [vmem:[%s33 + $0x3e0] sm:$0xff]
    %v2750 = vld [vmem:[%s33 + $0x3e8] sm:$0xff]
    %v2751 = vld [vmem:[%s33 + $0x3f0] sm:$0xff]
    %v2752 = vld [vmem:[%s33 + $0x3f8] sm:$0xff]
    %v2753 = vunpack.c.l.bf16 %v2625
    %v2754 = vunpack.c.h.bf16 %v2625
    %v2755 = vunpack.c.l.bf16 %v2626
    %v2756 = vunpack.c.h.bf16 %v2626
    %v2757 = vunpack.c.l.bf16 %v2627
    %v2758 = vunpack.c.h.bf16 %v2627
    %v2759 = vunpack.c.l.bf16 %v2628
    %v2760 = vunpack.c.h.bf16 %v2628
    %v2761 = vunpack.c.l.bf16 %v2629
    %v2762 = vunpack.c.h.bf16 %v2629
    %v2763 = vunpack.c.l.bf16 %v2630
    %v2764 = vunpack.c.h.bf16 %v2630
    %v2765 = vunpack.c.l.bf16 %v2631
    %v2766 = vunpack.c.h.bf16 %v2631
    %v2767 = vunpack.c.l.bf16 %v2632
    %v2768 = vunpack.c.h.bf16 %v2632
    %v2769 = vunpack.c.l.bf16 %v2633
    %v2770 = vunpack.c.h.bf16 %v2633
    %v2771 = vunpack.c.l.bf16 %v2634
    %v2772 = vunpack.c.h.bf16 %v2634
    %v2773 = vunpack.c.l.bf16 %v2635
    %v2774 = vunpack.c.h.bf16 %v2635
    %v2775 = vunpack.c.l.bf16 %v2636
    %v2776 = vunpack.c.h.bf16 %v2636
    %v2777 = vunpack.c.l.bf16 %v2637
    %v2778 = vunpack.c.h.bf16 %v2637
    %v2779 = vunpack.c.l.bf16 %v2638
    %v2780 = vunpack.c.h.bf16 %v2638
    %v2781 = vunpack.c.l.bf16 %v2639
    %v2782 = vunpack.c.h.bf16 %v2639
    %v2783 = vunpack.c.l.bf16 %v2640
    %v2784 = vunpack.c.h.bf16 %v2640
    %v2785 = vunpack.c.l.bf16 %v2641
    %v2786 = vunpack.c.h.bf16 %v2641
    %v2787 = vunpack.c.l.bf16 %v2642
    %v2788 = vunpack.c.h.bf16 %v2642
    %v2789 = vunpack.c.l.bf16 %v2643
    %v2790 = vunpack.c.h.bf16 %v2643
    %v2791 = vunpack.c.l.bf16 %v2644
    %v2792 = vunpack.c.h.bf16 %v2644
    %v2793 = vunpack.c.l.bf16 %v2645
    %v2794 = vunpack.c.h.bf16 %v2645
    %v2795 = vunpack.c.l.bf16 %v2646
    %v2796 = vunpack.c.h.bf16 %v2646
    %v2797 = vunpack.c.l.bf16 %v2647
    %v2798 = vunpack.c.h.bf16 %v2647
    %v2799 = vunpack.c.l.bf16 %v2648
    %v2800 = vunpack.c.h.bf16 %v2648
    %v2801 = vunpack.c.l.bf16 %v2649
    %v2802 = vunpack.c.h.bf16 %v2649
    %v2803 = vunpack.c.l.bf16 %v2650
    %v2804 = vunpack.c.h.bf16 %v2650
    %v2805 = vunpack.c.l.bf16 %v2651
    %v2806 = vunpack.c.h.bf16 %v2651
    %v2807 = vunpack.c.l.bf16 %v2652
    %v2808 = vunpack.c.h.bf16 %v2652
    %v2809 = vunpack.c.l.bf16 %v2653
    %v2810 = vunpack.c.h.bf16 %v2653
    %v2811 = vunpack.c.l.bf16 %v2654
    %v2812 = vunpack.c.h.bf16 %v2654
    %v2813 = vunpack.c.l.bf16 %v2655
    %v2814 = vunpack.c.h.bf16 %v2655
    %v2815 = vunpack.c.l.bf16 %v2656
    %v2816 = vunpack.c.h.bf16 %v2656
    %v2817 = vunpack.c.l.bf16 %v2657
    %v2818 = vunpack.c.h.bf16 %v2657
    %v2819 = vunpack.c.l.bf16 %v2658
    %v2820 = vunpack.c.h.bf16 %v2658
    %v2821 = vunpack.c.l.bf16 %v2659
    %v2822 = vunpack.c.h.bf16 %v2659
    %v2823 = vunpack.c.l.bf16 %v2660
    %v2824 = vunpack.c.h.bf16 %v2660
    %v2825 = vunpack.c.l.bf16 %v2661
    %v2826 = vunpack.c.h.bf16 %v2661
    %v2827 = vunpack.c.l.bf16 %v2662
    %v2828 = vunpack.c.h.bf16 %v2662
    %v2829 = vunpack.c.l.bf16 %v2663
    %v2830 = vunpack.c.h.bf16 %v2663
    %v2831 = vunpack.c.l.bf16 %v2664
    %v2832 = vunpack.c.h.bf16 %v2664
    %v2833 = vunpack.c.l.bf16 %v2665
    %v2834 = vunpack.c.h.bf16 %v2665
    %v2835 = vunpack.c.l.bf16 %v2666
    %v2836 = vunpack.c.h.bf16 %v2666
    %v2837 = vunpack.c.l.bf16 %v2667
    %v2838 = vunpack.c.h.bf16 %v2667
    %v2839 = vunpack.c.l.bf16 %v2668
    %v2840 = vunpack.c.h.bf16 %v2668
    %v2841 = vunpack.c.l.bf16 %v2669
    %v2842 = vunpack.c.h.bf16 %v2669
    %v2843 = vunpack.c.l.bf16 %v2670
    %v2844 = vunpack.c.h.bf16 %v2670
    %v2845 = vunpack.c.l.bf16 %v2671
    %v2846 = vunpack.c.h.bf16 %v2671
    %v2847 = vunpack.c.l.bf16 %v2672
    %v2848 = vunpack.c.h.bf16 %v2672
    %v2849 = vunpack.c.l.bf16 %v2673
    %v2850 = vunpack.c.h.bf16 %v2673
    %v2851 = vunpack.c.l.bf16 %v2674
    %v2852 = vunpack.c.h.bf16 %v2674
    %v2853 = vunpack.c.l.bf16 %v2675
    %v2854 = vunpack.c.h.bf16 %v2675
    %v2855 = vunpack.c.l.bf16 %v2676
    %v2856 = vunpack.c.h.bf16 %v2676
    %v2857 = vunpack.c.l.bf16 %v2677
    %v2858 = vunpack.c.h.bf16 %v2677
    %v2859 = vunpack.c.l.bf16 %v2678
    %v2860 = vunpack.c.h.bf16 %v2678
    %v2861 = vunpack.c.l.bf16 %v2679
    %v2862 = vunpack.c.h.bf16 %v2679
    %v2863 = vunpack.c.l.bf16 %v2680
    %v2864 = vunpack.c.h.bf16 %v2680
    %v2865 = vunpack.c.l.bf16 %v2681
    %v2866 = vunpack.c.h.bf16 %v2681
    %v2867 = vunpack.c.l.bf16 %v2682
    %v2868 = vunpack.c.h.bf16 %v2682
    %v2869 = vunpack.c.l.bf16 %v2683
    %v2870 = vunpack.c.h.bf16 %v2683
    %v2871 = vunpack.c.l.bf16 %v2684
    %v2872 = vunpack.c.h.bf16 %v2684
    %v2873 = vunpack.c.l.bf16 %v2685
    %v2874 = vunpack.c.h.bf16 %v2685
    %v2875 = vunpack.c.l.bf16 %v2686
    %v2876 = vunpack.c.h.bf16 %v2686
    %v2877 = vunpack.c.l.bf16 %v2687
    %v2878 = vunpack.c.h.bf16 %v2687
    %v2879 = vunpack.c.l.bf16 %v2688
    %v2880 = vunpack.c.h.bf16 %v2688
    %v2881 = vunpack.c.l.bf16 %v2689
    %v2882 = vunpack.c.h.bf16 %v2689
    %v2883 = vunpack.c.l.bf16 %v2690
    %v2884 = vunpack.c.h.bf16 %v2690
    %v2885 = vunpack.c.l.bf16 %v2691
    %v2886 = vunpack.c.h.bf16 %v2691
    %v2887 = vunpack.c.l.bf16 %v2692
    %v2888 = vunpack.c.h.bf16 %v2692
    %v2889 = vunpack.c.l.bf16 %v2693
    %v2890 = vunpack.c.h.bf16 %v2693
    %v2891 = vunpack.c.l.bf16 %v2694
    %v2892 = vunpack.c.h.bf16 %v2694
    %v2893 = vunpack.c.l.bf16 %v2695
    %v2894 = vunpack.c.h.bf16 %v2695
    %v2895 = vunpack.c.l.bf16 %v2696
    %v2896 = vunpack.c.h.bf16 %v2696
    %v2897 = vunpack.c.l.bf16 %v2697
    %v2898 = vunpack.c.h.bf16 %v2697
    %v2899 = vunpack.c.l.bf16 %v2698
    %v2900 = vunpack.c.h.bf16 %v2698
    %v2901 = vunpack.c.l.bf16 %v2699
    %v2902 = vunpack.c.h.bf16 %v2699
    %v2903 = vunpack.c.l.bf16 %v2700
    %v2904 = vunpack.c.h.bf16 %v2700
    %v2905 = vunpack.c.l.bf16 %v2701
    %v2906 = vunpack.c.h.bf16 %v2701
    %v2907 = vunpack.c.l.bf16 %v2702
    %v2908 = vunpack.c.h.bf16 %v2702
    %v2909 = vunpack.c.l.bf16 %v2703
    %v2910 = vunpack.c.h.bf16 %v2703
    %v2911 = vunpack.c.l.bf16 %v2704
    %v2912 = vunpack.c.h.bf16 %v2704
    %v2913 = vunpack.c.l.bf16 %v2705
    %v2914 = vunpack.c.h.bf16 %v2705
    %v2915 = vunpack.c.l.bf16 %v2706
    %v2916 = vunpack.c.h.bf16 %v2706
    %v2917 = vunpack.c.l.bf16 %v2707
    %v2918 = vunpack.c.h.bf16 %v2707
    %v2919 = vunpack.c.l.bf16 %v2708
    %v2920 = vunpack.c.h.bf16 %v2708
    %v2921 = vunpack.c.l.bf16 %v2709
    %v2922 = vunpack.c.h.bf16 %v2709
    %v2923 = vunpack.c.l.bf16 %v2710
    %v2924 = vunpack.c.h.bf16 %v2710
    %v2925 = vunpack.c.l.bf16 %v2711
    %v2926 = vunpack.c.h.bf16 %v2711
    %v2927 = vunpack.c.l.bf16 %v2712
    %v2928 = vunpack.c.h.bf16 %v2712
    %v2929 = vunpack.c.l.bf16 %v2713
    %v2930 = vunpack.c.h.bf16 %v2713
    %v2931 = vunpack.c.l.bf16 %v2714
    %v2932 = vunpack.c.h.bf16 %v2714
    %v2933 = vunpack.c.l.bf16 %v2715
    %v2934 = vunpack.c.h.bf16 %v2715
    %v2935 = vunpack.c.l.bf16 %v2716
    %v2936 = vunpack.c.h.bf16 %v2716
    %v2937 = vunpack.c.l.bf16 %v2717
    %v2938 = vunpack.c.h.bf16 %v2717
    %v2939 = vunpack.c.l.bf16 %v2718
    %v2940 = vunpack.c.h.bf16 %v2718
    %v2941 = vunpack.c.l.bf16 %v2719
    %v2942 = vunpack.c.h.bf16 %v2719
    %v2943 = vunpack.c.l.bf16 %v2720
    %v2944 = vunpack.c.h.bf16 %v2720
    %v2945 = vunpack.c.l.bf16 %v2721
    %v2946 = vunpack.c.h.bf16 %v2721
    %v2947 = vunpack.c.l.bf16 %v2722
    %v2948 = vunpack.c.h.bf16 %v2722
    %v2949 = vunpack.c.l.bf16 %v2723
    %v2950 = vunpack.c.h.bf16 %v2723
    %v2951 = vunpack.c.l.bf16 %v2724
    %v2952 = vunpack.c.h.bf16 %v2724
    %v2953 = vunpack.c.l.bf16 %v2725
    %v2954 = vunpack.c.h.bf16 %v2725
    %v2955 = vunpack.c.l.bf16 %v2726
    %v2956 = vunpack.c.h.bf16 %v2726
    %v2957 = vunpack.c.l.bf16 %v2727
    %v2958 = vunpack.c.h.bf16 %v2727
    %v2959 = vunpack.c.l.bf16 %v2728
    %v2960 = vunpack.c.h.bf16 %v2728
    %v2961 = vunpack.c.l.bf16 %v2729
    %v2962 = vunpack.c.h.bf16 %v2729
    %v2963 = vunpack.c.l.bf16 %v2730
    %v2964 = vunpack.c.h.bf16 %v2730
    %v2965 = vunpack.c.l.bf16 %v2731
    %v2966 = vunpack.c.h.bf16 %v2731
    %v2967 = vunpack.c.l.bf16 %v2732
    %v2968 = vunpack.c.h.bf16 %v2732
    %v2969 = vunpack.c.l.bf16 %v2733
    %v2970 = vunpack.c.h.bf16 %v2733
    %v2971 = vunpack.c.l.bf16 %v2734
    %v2972 = vunpack.c.h.bf16 %v2734
    %v2973 = vunpack.c.l.bf16 %v2735
    %v2974 = vunpack.c.h.bf16 %v2735
    %v2975 = vunpack.c.l.bf16 %v2736
    %v2976 = vunpack.c.h.bf16 %v2736
    %v2977 = vunpack.c.l.bf16 %v2737
    %v2978 = vunpack.c.h.bf16 %v2737
    %v2979 = vunpack.c.l.bf16 %v2738
    %v2980 = vunpack.c.h.bf16 %v2738
    %v2981 = vunpack.c.l.bf16 %v2739
    %v2982 = vunpack.c.h.bf16 %v2739
    %v2983 = vunpack.c.l.bf16 %v2740
    %v2984 = vunpack.c.h.bf16 %v2740
    %v2985 = vunpack.c.l.bf16 %v2741
    %v2986 = vunpack.c.h.bf16 %v2741
    %v2987 = vunpack.c.l.bf16 %v2742
    %v2988 = vunpack.c.h.bf16 %v2742
    %v2989 = vunpack.c.l.bf16 %v2743
    %v2990 = vunpack.c.h.bf16 %v2743
    %v2991 = vunpack.c.l.bf16 %v2744
    %v2992 = vunpack.c.h.bf16 %v2744
    %v2993 = vunpack.c.l.bf16 %v2745
    %v2994 = vunpack.c.h.bf16 %v2745
    %v2995 = vunpack.c.l.bf16 %v2746
    %v2996 = vunpack.c.h.bf16 %v2746
    %v2997 = vunpack.c.l.bf16 %v2747
    %v2998 = vunpack.c.h.bf16 %v2747
    %v2999 = vunpack.c.l.bf16 %v2748
    %v3000 = vunpack.c.h.bf16 %v2748
    %v3001 = vunpack.c.l.bf16 %v2749
    %v3002 = vunpack.c.h.bf16 %v2749
    %v3003 = vunpack.c.l.bf16 %v2750
    %v3004 = vunpack.c.h.bf16 %v2750
    %v3005 = vunpack.c.l.bf16 %v2751
    %v3006 = vunpack.c.h.bf16 %v2751
    %v3007 = vunpack.c.l.bf16 %v2752
    %v3008 = vunpack.c.h.bf16 %v2752
    %v3011 = vunpack.c.l.s4 1983009808
    %v3012 = vunpack.c.0.s8 %v3011
    %v3013 = vlaneseq
    %v3014 = vshrl.u32 %v3013, 7
    %v3015 = vsub.s32 %v3012, %v3014
    %v3016 = vrot.slane %v2624, %v3015
    %v3017 = vcombine.high %v3016, %v3016
    %3020 = vmatprep.subr.mxu0 %v2874
    %3021 = vmatpush1.msra.mxu0 %v2873
    %3022 = vmatprep.subr.mxu0 %v2866
    %3023 = vmatpush1.msra.mxu0 %v2865
    %3024 = vmatprep.subr.mxu0 %v2858
    %3025 = vmatpush1.msra.mxu0 %v2857
    %3026 = vmatprep.subr.mxu0 %v2850
    %3027 = vmatpush1.msra.mxu0 %v2849
    %3028 = vmatprep.subr.mxu0 %v2842
    %3029 = vmatpush1.msra.mxu0 %v2841
    %3030 = vmatprep.subr.mxu0 %v2834
    %3031 = vmatpush1.msra.mxu0 %v2833
    %3032 = vmatprep.subr.mxu0 %v2826
    %3033 = vmatpush1.msra.mxu0 %v2825
    %3034 = vmatprep.subr.mxu0 %v2818
    %3035 = vmatpush1.msra.mxu0 %v2817
    %3036 = vmatprep.subr.mxu0 %v2810
    %3037 = vmatpush1.msra.mxu0 %v2809
    %3038 = vmatprep.subr.mxu0 %v2802
    %3039 = vmatpush1.msra.mxu0 %v2801
    %3040 = vmatprep.subr.mxu0 %v2794
    %3041 = vmatpush1.msra.mxu0 %v2793
    %3042 = vmatprep.subr.mxu0 %v2786
    %3043 = vmatpush1.msra.mxu0 %v2785
    %3044 = vmatprep.subr.mxu0 %v2778
    %3045 = vmatpush1.msra.mxu0 %v2777
    %3046 = vmatprep.subr.mxu0 %v2770
    %3047 = vmatpush1.msra.mxu0 %v2769
    %3048 = vmatprep.subr.mxu0 %v2762
    %3049 = vmatpush1.msra.mxu0 %v2761
    %3050 = vmatprep.subr.mxu0 %v2754
    %3051 = vmatpush1.msra.mxu0 %v2753
    %3052 = vmatprep.subr.mxu0 %v3002
    %3053 = vmatpush2.msra.mxu0 %v3001
    %3054 = vmatprep.subr.mxu0 %v2994
    %3055 = vmatpush2.msra.mxu0 %v2993
    %3056 = vmatprep.subr.mxu0 %v2986
    %3057 = vmatpush2.msra.mxu0 %v2985
    %3058 = vmatprep.subr.mxu0 %v2978
    %3059 = vmatpush2.msra.mxu0 %v2977
    %3060 = vmatprep.subr.mxu0 %v2970
    %3061 = vmatpush2.msra.mxu0 %v2969
    %3062 = vmatprep.subr.mxu0 %v2962
    %3063 = vmatpush2.msra.mxu0 %v2961
    %3064 = vmatprep.subr.mxu0 %v2954
    %3065 = vmatpush2.msra.mxu0 %v2953
    %3066 = vmatprep.subr.mxu0 %v2946
    %3067 = vmatpush2.msra.mxu0 %v2945
    %3068 = vmatprep.subr.mxu0 %v2938
    %3069 = vmatpush2.msra.mxu0 %v2937
    %3070 = vmatprep.subr.mxu0 %v2930
    %3071 = vmatpush2.msra.mxu0 %v2929
    %3072 = vmatprep.subr.mxu0 %v2922
    %3073 = vmatpush2.msra.mxu0 %v2921
    %3074 = vmatprep.subr.mxu0 %v2914
    %3075 = vmatpush2.msra.mxu0 %v2913
    %3076 = vmatprep.subr.mxu0 %v2906
    %3077 = vmatpush2.msra.mxu0 %v2905
    %3078 = vmatprep.subr.mxu0 %v2898
    %3079 = vmatpush2.msra.mxu0 %v2897
    %3080 = vmatprep.subr.mxu0 %v2890
    %3081 = vmatpush2.msra.mxu0 %v2889
    %3082 = vmatprep.subr.mxu0 %v2882
    %3083 = vmatpush2.msra.mxu0 %v2881
    %3084 = vmatprep.mubr.f32.mxu0 %v3017
    %3085 = vmatmul.mubr.f32.gmra.mxu0 %v3016
    %v3086 = vpop.f32.mrf.mxu0
    %v3087 = vadd.f32 0.0, %v3086
    %v3088 = vpop.f32.mrf.mxu0
    %v3089 = vadd.f32 0.0, %v3088
    %3090 = vdwg.mxu0
    %3091 = vmatprep.subr.mxu0 %v2876
    %3092 = vmatpush1.msra.mxu0 %v2875
    %3093 = vmatprep.subr.mxu0 %v2868
    %3094 = vmatpush1.msra.mxu0 %v2867
    %3095 = vmatprep.subr.mxu0 %v2860
    %3096 = vmatpush1.msra.mxu0 %v2859
    %3097 = vmatprep.subr.mxu0 %v2852
    %3098 = vmatpush1.msra.mxu0 %v2851
    %3099 = vmatprep.subr.mxu0 %v2844
    %3100 = vmatpush1.msra.mxu0 %v2843
    %3101 = vmatprep.subr.mxu0 %v2836
    %3102 = vmatpush1.msra.mxu0 %v2835
    %3103 = vmatprep.subr.mxu0 %v2828
    %3104 = vmatpush1.msra.mxu0 %v2827
    %3105 = vmatprep.subr.mxu0 %v2820
    %3106 = vmatpush1.msra.mxu0 %v2819
    %3107 = vmatprep.subr.mxu0 %v2812
    %3108 = vmatpush1.msra.mxu0 %v2811
    %3109 = vmatprep.subr.mxu0 %v2804
    %3110 = vmatpush1.msra.mxu0 %v2803
    %3111 = vmatprep.subr.mxu0 %v2796
    %3112 = vmatpush1.msra.mxu0 %v2795
    %3113 = vmatprep.subr.mxu0 %v2788
    %3114 = vmatpush1.msra.mxu0 %v2787
    %3115 = vmatprep.subr.mxu0 %v2780
    %3116 = vmatpush1.msra.mxu0 %v2779
    %3117 = vmatprep.subr.mxu0 %v2772
    %3118 = vmatpush1.msra.mxu0 %v2771
    %3119 = vmatprep.subr.mxu0 %v2764
    %3120 = vmatpush1.msra.mxu0 %v2763
    %3121 = vmatprep.subr.mxu0 %v2756
    %3122 = vmatpush1.msra.mxu0 %v2755
    %3123 = vmatprep.subr.mxu0 %v3004
    %3124 = vmatpush2.msra.mxu0 %v3003
    %3125 = vmatprep.subr.mxu0 %v2996
    %3126 = vmatpush2.msra.mxu0 %v2995
    %3127 = vmatprep.subr.mxu0 %v2988
    %3128 = vmatpush2.msra.mxu0 %v2987
    %3129 = vmatprep.subr.mxu0 %v2980
    %3130 = vmatpush2.msra.mxu0 %v2979
    %3131 = vmatprep.subr.mxu0 %v2972
    %3132 = vmatpush2.msra.mxu0 %v2971
    %3133 = vmatprep.subr.mxu0 %v2964
    %3134 = vmatpush2.msra.mxu0 %v2963
    %3135 = vmatprep.subr.mxu0 %v2956
    %3136 = vmatpush2.msra.mxu0 %v2955
    %3137 = vmatprep.subr.mxu0 %v2948
    %3138 = vmatpush2.msra.mxu0 %v2947
    %3139 = vmatprep.subr.mxu0 %v2940
    %3140 = vmatpush2.msra.mxu0 %v2939
    %3141 = vmatprep.subr.mxu0 %v2932
    %3142 = vmatpush2.msra.mxu0 %v2931
    %3143 = vmatprep.subr.mxu0 %v2924
    %3144 = vmatpush2.msra.mxu0 %v2923
    %3145 = vmatprep.subr.mxu0 %v2916
    %3146 = vmatpush2.msra.mxu0 %v2915
    %3147 = vmatprep.subr.mxu0 %v2908
    %3148 = vmatpush2.msra.mxu0 %v2907
    %3149 = vmatprep.subr.mxu0 %v2900
    %3150 = vmatpush2.msra.mxu0 %v2899
    %3151 = vmatprep.subr.mxu0 %v2892
    %3152 = vmatpush2.msra.mxu0 %v2891
    %3153 = vmatprep.subr.mxu0 %v2884
    %3154 = vmatpush2.msra.mxu0 %v2883
    %3155 = vmatprep.mubr.f32.mxu0 %v3017
    %3156 = vmatmul.mubr.f32.gmra.mxu0 %v3016
    %v3157 = vpop.f32.mrf.mxu0
    %v3158 = vadd.f32 0.0, %v3157
    %v3159 = vpop.f32.mrf.mxu0
    %v3160 = vadd.f32 0.0, %v3159
    %3161 = vdwg.mxu0
    %3162 = vmatprep.subr.mxu0 %v2878
    %3163 = vmatpush1.msra.mxu0 %v2877
    %3164 = vmatprep.subr.mxu0 %v2870
    %3165 = vmatpush1.msra.mxu0 %v2869
    %3166 = vmatprep.subr.mxu0 %v2862
    %3167 = vmatpush1.msra.mxu0 %v2861
    %3168 = vmatprep.subr.mxu0 %v2854
    %3169 = vmatpush1.msra.mxu0 %v2853
    %3170 = vmatprep.subr.mxu0 %v2846
    %3171 = vmatpush1.msra.mxu0 %v2845
    %3172 = vmatprep.subr.mxu0 %v2838
    %3173 = vmatpush1.msra.mxu0 %v2837
    %3174 = vmatprep.subr.mxu0 %v2830
    %3175 = vmatpush1.msra.mxu0 %v2829
    %3176 = vmatprep.subr.mxu0 %v2822
    %3177 = vmatpush1.msra.mxu0 %v2821
    %3178 = vmatprep.subr.mxu0 %v2814
    %3179 = vmatpush1.msra.mxu0 %v2813
    %3180 = vmatprep.subr.mxu0 %v2806
    %3181 = vmatpush1.msra.mxu0 %v2805
    %3182 = vmatprep.subr.mxu0 %v2798
    %3183 = vmatpush1.msra.mxu0 %v2797
    %3184 = vmatprep.subr.mxu0 %v2790
    %3185 = vmatpush1.msra.mxu0 %v2789
    %3186 = vmatprep.subr.mxu0 %v2782
    %3187 = vmatpush1.msra.mxu0 %v2781
    %3188 = vmatprep.subr.mxu0 %v2774
    %3189 = vmatpush1.msra.mxu0 %v2773
    %3190 = vmatprep.subr.mxu0 %v2766
    %3191 = vmatpush1.msra.mxu0 %v2765
    %3192 = vmatprep.subr.mxu0 %v2758
    %3193 = vmatpush1.msra.mxu0 %v2757
    %3194 = vmatprep.subr.mxu0 %v3006
    %3195 = vmatpush2.msra.mxu0 %v3005
    %3196 = vmatprep.subr.mxu0 %v2998
    %3197 = vmatpush2.msra.mxu0 %v2997
    %3198 = vmatprep.subr.mxu0 %v2990
    %3199 = vmatpush2.msra.mxu0 %v2989
    %3200 = vmatprep.subr.mxu0 %v2982
    %3201 = vmatpush2.msra.mxu0 %v2981
    %3202 = vmatprep.subr.mxu0 %v2974
    %3203 = vmatpush2.msra.mxu0 %v2973
    %3204 = vmatprep.subr.mxu0 %v2966
    %3205 = vmatpush2.msra.mxu0 %v2965
    %3206 = vmatprep.subr.mxu0 %v2958
    %3207 = vmatpush2.msra.mxu0 %v2957
    %3208 = vmatprep.subr.mxu0 %v2950
    %3209 = vmatpush2.msra.mxu0 %v2949
    %3210 = vmatprep.subr.mxu0 %v2942
    %3211 = vmatpush2.msra.mxu0 %v2941
    %3212 = vmatprep.subr.mxu0 %v2934
    %3213 = vmatpush2.msra.mxu0 %v2933
    %3214 = vmatprep.subr.mxu0 %v2926
    %3215 = vmatpush2.msra.mxu0 %v2925
    %3216 = vmatprep.subr.mxu0 %v2918
    %3217 = vmatpush2.msra.mxu0 %v2917
    %3218 = vmatprep.subr.mxu0 %v2910
    %3219 = vmatpush2.msra.mxu0 %v2909
    %3220 = vmatprep.subr.mxu0 %v2902
    %3221 = vmatpush2.msra.mxu0 %v2901
    %3222 = vmatprep.subr.mxu0 %v2894
    %3223 = vmatpush2.msra.mxu0 %v2893
    %3224 = vmatprep.subr.mxu0 %v2886
    %3225 = vmatpush2.msra.mxu0 %v2885
    %3226 = vmatprep.mubr.f32.mxu0 %v3017
    %3227 = vmatmul.mubr.f32.gmra.mxu0 %v3016
    %v3228 = vpop.f32.mrf.mxu0
    %v3229 = vadd.f32 0.0, %v3228
    %v3230 = vpop.f32.mrf.mxu0
    %v3231 = vadd.f32 0.0, %v3230
    %3232 = vdwg.mxu0
    %3233 = vmatprep.subr.mxu0 %v2880
    %3234 = vmatpush1.msra.mxu0 %v2879
    %3235 = vmatprep.subr.mxu0 %v2872
    %3236 = vmatpush1.msra.mxu0 %v2871
    %3237 = vmatprep.subr.mxu0 %v2864
    %3238 = vmatpush1.msra.mxu0 %v2863
    %3239 = vmatprep.subr.mxu0 %v2856
    %3240 = vmatpush1.msra.mxu0 %v2855
    %3241 = vmatprep.subr.mxu0 %v2848
    %3242 = vmatpush1.msra.mxu0 %v2847
    %3243 = vmatprep.subr.mxu0 %v2840
    %3244 = vmatpush1.msra.mxu0 %v2839
    %3245 = vmatprep.subr.mxu0 %v2832
    %3246 = vmatpush1.msra.mxu0 %v2831
    %3247 = vmatprep.subr.mxu0 %v2824
    %3248 = vmatpush1.msra.mxu0 %v2823
    %3249 = vmatprep.subr.mxu0 %v2816
    %3250 = vmatpush1.msra.mxu0 %v2815
    %3251 = vmatprep.subr.mxu0 %v2808
    %3252 = vmatpush1.msra.mxu0 %v2807
    %3253 = vmatprep.subr.mxu0 %v2800
    %3254 = vmatpush1.msra.mxu0 %v2799
    %3255 = vmatprep.subr.mxu0 %v2792
    %3256 = vmatpush1.msra.mxu0 %v2791
    %3257 = vmatprep.subr.mxu0 %v2784
    %3258 = vmatpush1.msra.mxu0 %v2783
    %3259 = vmatprep.subr.mxu0 %v2776
    %3260 = vmatpush1.msra.mxu0 %v2775
    %3261 = vmatprep.subr.mxu0 %v2768
    %3262 = vmatpush1.msra.mxu0 %v2767
    %3263 = vmatprep.subr.mxu0 %v2760
    %3264 = vmatpush1.msra.mxu0 %v2759
    %3265 = vmatprep.subr.mxu0 %v3008
    %3266 = vmatpush2.msra.mxu0 %v3007
    %3267 = vmatprep.subr.mxu0 %v3000
    %3268 = vmatpush2.msra.mxu0 %v2999
    %3269 = vmatprep.subr.mxu0 %v2992
    %3270 = vmatpush2.msra.mxu0 %v2991
    %3271 = vmatprep.subr.mxu0 %v2984
    %3272 = vmatpush2.msra.mxu0 %v2983
    %3273 = vmatprep.subr.mxu0 %v2976
    %3274 = vmatpush2.msra.mxu0 %v2975
    %3275 = vmatprep.subr.mxu0 %v2968
    %3276 = vmatpush2.msra.mxu0 %v2967
    %3277 = vmatprep.subr.mxu0 %v2960
    %3278 = vmatpush2.msra.mxu0 %v2959
    %3279 = vmatprep.subr.mxu0 %v2952
    %3280 = vmatpush2.msra.mxu0 %v2951
    %3281 = vmatprep.subr.mxu0 %v2944
    %3282 = vmatpush2.msra.mxu0 %v2943
    %3283 = vmatprep.subr.mxu0 %v2936
    %3284 = vmatpush2.msra.mxu0 %v2935
    %3285 = vmatprep.subr.mxu0 %v2928
    %3286 = vmatpush2.msra.mxu0 %v2927
    %3287 = vmatprep.subr.mxu0 %v2920
    %3288 = vmatpush2.msra.mxu0 %v2919
    %3289 = vmatprep.subr.mxu0 %v2912
    %3290 = vmatpush2.msra.mxu0 %v2911
    %3291 = vmatprep.subr.mxu0 %v2904
    %3292 = vmatpush2.msra.mxu0 %v2903
    %3293 = vmatprep.subr.mxu0 %v2896
    %3294 = vmatpush2.msra.mxu0 %v2895
    %3295 = vmatprep.subr.mxu0 %v2888
    %3296 = vmatpush2.msra.mxu0 %v2887
    %3297 = vmatprep.mubr.f32.mxu0 %v3017
    %3298 = vmatmul.mubr.f32.gmra.mxu0 %v3016
    %v3299 = vpop.f32.mrf.mxu0
    %v3300 = vadd.f32 0.0, %v3299
    %v3301 = vpop.f32.mrf.mxu0
    %v3302 = vadd.f32 0.0, %v3301
    %3303 = vdwg.mxu0
    %v3304 = vadd.f32 %v2616, %v3087
    %v3305 = vadd.f32 %v2617, %v3089
    %v3306 = vadd.f32 %v2618, %v3158
    %v3307 = vadd.f32 %v2619, %v3160
    %v3308 = vadd.f32 %v2620, %v3229
    %v3309 = vadd.f32 %v2621, %v3231
    %v3310 = vadd.f32 %v2622, %v3300
    %v3311 = vadd.f32 %v2623, %v3302
    %v3312 = vld [vmem:[%s35] sm:$0xff]
    %v3314 = vlaneseq
    %v3315 = vshrl.u32 %v3314, 7
    %v3316 = vsub.s32 0, %v3315
    %v3317 = vrot.slane %v3312, %v3316
    %v3318 = vlaneseq
    %v3319 = vshrl.u32 %v3318, 7
    %v3320 = vsub.s32 1, %v3319
    %v3321 = vrot.slane %v3312, %v3320
    %v3322 = vlaneseq
    %v3323 = vshrl.u32 %v3322, 7
    %v3324 = vsub.s32 2, %v3323
    %v3325 = vrot.slane %v3312, %v3324
    %v3326 = vlaneseq
    %v3327 = vshrl.u32 %v3326, 7
    %v3328 = vsub.s32 3, %v3327
    %v3329 = vrot.slane %v3312, %v3328
    %v3330 = vlaneseq
    %v3331 = vshrl.u32 %v3330, 7
    %v3332 = vsub.s32 4, %v3331
    %v3333 = vrot.slane %v3312, %v3332
    %v3334 = vlaneseq
    %v3335 = vshrl.u32 %v3334, 7
    %v3336 = vsub.s32 5, %v3335
    %v3337 = vrot.slane %v3312, %v3336
    %v3338 = vlaneseq
    %v3339 = vshrl.u32 %v3338, 7
    %v3340 = vsub.s32 6, %v3339
    %v3341 = vrot.slane %v3312, %v3340
    %v3342 = vlaneseq
    %v3343 = vshrl.u32 %v3342, 7
    %v3344 = vsub.s32 7, %v3343
    %v3345 = vrot.slane %v3312, %v3344
    %v3354 = vadd.f32 %v3304, %v3317
    %v3355 = vadd.f32 %v3305, %v3321
    %v3356 = vadd.f32 %v3306, %v3325
    %v3357 = vadd.f32 %v3307, %v3329
    %v3358 = vadd.f32 %v3308, %v3333
    %v3359 = vadd.f32 %v3309, %v3337
    %v3360 = vadd.f32 %v3310, %v3341
    %v3361 = vadd.f32 %v3311, %v3345
    %v3362 = vxor.u32 %v3354, 2147483648
    %v3363 = vxor.u32 %v3355, 2147483648
    %v3364 = vmul.f32 %v3362, 1.442695
    %v3365 = vpow.pop %v3364
    %v3366 = vmul.f32 %v3363, 1.442695
    %v3367 = vpow.pop %v3366
    %v3368 = vadd.f32 %v3365, 1.0
    %v3369 = vadd.f32 %v3367, 1.0
    %v3370 = vrcp.pop %v3368
    %v3371 = vmul.f32 1.0, %v3370
    %v3372 = vrcp.pop %v3369
    %v3373 = vmul.f32 1.0, %v3372
    %v3374 = vxor.u32 %v3356, 2147483648
    %v3375 = vxor.u32 %v3357, 2147483648
    %v3376 = vmul.f32 %v3374, 1.442695
    %v3377 = vpow.pop %v3376
    %v3378 = vmul.f32 %v3375, 1.442695
    %v3379 = vpow.pop %v3378
    %v3380 = vadd.f32 %v3377, 1.0
    %v3381 = vadd.f32 %v3379, 1.0
    %v3382 = vrcp.pop %v3380
    %v3383 = vmul.f32 1.0, %v3382
    %v3384 = vrcp.pop %v3381
    %v3385 = vmul.f32 1.0, %v3384
    %v3386 = vtanh.pop %v3358
    %v3387 = vtanh.pop %v3359
    %v3388 = vxor.u32 %v3360, 2147483648
    %v3389 = vxor.u32 %v3361, 2147483648
    %v3390 = vmul.f32 %v3388, 1.442695
    %v3391 = vpow.pop %v3390
    %v3392 = vmul.f32 %v3389, 1.442695
    %v3393 = vpow.pop %v3392
    %v3394 = vadd.f32 %v3391, 1.0
    %v3395 = vadd.f32 %v3393, 1.0
    %v3396 = vrcp.pop %v3394
    %v3397 = vmul.f32 1.0, %v3396
    %v3398 = vrcp.pop %v3395
    %v3399 = vmul.f32 1.0, %v3398
    %v3400 = vld [vmem:[%s7] sm:$0xf]
    %v3403 = vunpack.c.l.s4 1983009808
    %v3404 = vunpack.c.0.s8 %v3403
    %v3405 = vlaneseq
    %v3406 = vshrl.u32 %v3405, 7
    %v3407 = vsub.s32 %v3404, %v3406
    %v3408 = vrot.slane %v3400, %v3407
    %v3409 = vcombine.high %v3408, %v3408
    %v3412 = vmul.f32 %v3383, %v3408
    %v3413 = vmul.f32 %v3385, %v3409
    %v3414 = vmul.f32 %v3371, %v3386
    %v3415 = vmul.f32 %v3373, %v3387
    %v3416 = vadd.f32 %v3412, %v3414
    %v3417 = vadd.f32 %v3413, %v3415
    %v3418 = vtanh.pop %v3416
    %v3419 = vtanh.pop %v3417
    %v3420 = vmul.f32 %v3397, %v3418
    %v3421 = vmul.f32 %v3399, %v3419
    %v3422 = vld [vmem:[%s45] sm:$0xff]
    %v3423 = vld [vmem:[%s45 + $0x8] sm:$0xff]
    %v3424 = vld [vmem:[%s45 + $0x10] sm:$0xff]
    %v3425 = vld [vmem:[%s45 + $0x18] sm:$0xff]
    %v3426 = vld [vmem:[%s45 + $0x20] sm:$0xff]
    %v3427 = vld [vmem:[%s45 + $0x28] sm:$0xff]
    %v3428 = vld [vmem:[%s45 + $0x30] sm:$0xff]
    %v3429 = vld [vmem:[%s45 + $0x38] sm:$0xff]
    %v3430 = vld [vmem:[%s45 + $0x40] sm:$0xff]
    %v3431 = vld [vmem:[%s45 + $0x48] sm:$0xff]
    %v3432 = vld [vmem:[%s45 + $0x50] sm:$0xff]
    %v3433 = vld [vmem:[%s45 + $0x58] sm:$0xff]
    %v3434 = vld [vmem:[%s45 + $0x60] sm:$0xff]
    %v3435 = vld [vmem:[%s45 + $0x68] sm:$0xff]
    %v3436 = vld [vmem:[%s45 + $0x70] sm:$0xff]
    %v3437 = vld [vmem:[%s45 + $0x78] sm:$0xff]
    %v3438 = vld [vmem:[%s45 + $0x80] sm:$0xff]
    %v3439 = vld [vmem:[%s45 + $0x88] sm:$0xff]
    %v3440 = vld [vmem:[%s45 + $0x90] sm:$0xff]
    %v3441 = vld [vmem:[%s45 + $0x98] sm:$0xff]
    %v3442 = vld [vmem:[%s45 + $0xa0] sm:$0xff]
    %v3443 = vld [vmem:[%s45 + $0xa8] sm:$0xff]
    %v3444 = vld [vmem:[%s45 + $0xb0] sm:$0xff]
    %v3445 = vld [vmem:[%s45 + $0xb8] sm:$0xff]
    %v3446 = vld [vmem:[%s45 + $0xc0] sm:$0xff]
    %v3447 = vld [vmem:[%s45 + $0xc8] sm:$0xff]
    %v3448 = vld [vmem:[%s45 + $0xd0] sm:$0xff]
    %v3449 = vld [vmem:[%s45 + $0xd8] sm:$0xff]
    %v3450 = vld [vmem:[%s45 + $0xe0] sm:$0xff]
    %v3451 = vld [vmem:[%s45 + $0xe8] sm:$0xff]
    %v3452 = vld [vmem:[%s45 + $0xf0] sm:$0xff]
    %v3453 = vld [vmem:[%s45 + $0xf8] sm:$0xff]
    %v3454 = vld [vmem:[%s45 + $0x100] sm:$0xff]
    %v3455 = vld [vmem:[%s45 + $0x108] sm:$0xff]
    %v3456 = vld [vmem:[%s45 + $0x110] sm:$0xff]
    %v3457 = vld [vmem:[%s45 + $0x118] sm:$0xff]
    %v3458 = vld [vmem:[%s45 + $0x120] sm:$0xff]
    %v3459 = vld [vmem:[%s45 + $0x128] sm:$0xff]
    %v3460 = vld [vmem:[%s45 + $0x130] sm:$0xff]
    %v3461 = vld [vmem:[%s45 + $0x138] sm:$0xff]
    %v3462 = vld [vmem:[%s45 + $0x140] sm:$0xff]
    %v3463 = vld [vmem:[%s45 + $0x148] sm:$0xff]
    %v3464 = vld [vmem:[%s45 + $0x150] sm:$0xff]
    %v3465 = vld [vmem:[%s45 + $0x158] sm:$0xff]
    %v3466 = vld [vmem:[%s45 + $0x160] sm:$0xff]
    %v3467 = vld [vmem:[%s45 + $0x168] sm:$0xff]
    %v3468 = vld [vmem:[%s45 + $0x170] sm:$0xff]
    %v3469 = vld [vmem:[%s45 + $0x178] sm:$0xff]
    %v3470 = vld [vmem:[%s45 + $0x180] sm:$0xff]
    %v3471 = vld [vmem:[%s45 + $0x188] sm:$0xff]
    %v3472 = vld [vmem:[%s45 + $0x190] sm:$0xff]
    %v3473 = vld [vmem:[%s45 + $0x198] sm:$0xff]
    %v3474 = vld [vmem:[%s45 + $0x1a0] sm:$0xff]
    %v3475 = vld [vmem:[%s45 + $0x1a8] sm:$0xff]
    %v3476 = vld [vmem:[%s45 + $0x1b0] sm:$0xff]
    %v3477 = vld [vmem:[%s45 + $0x1b8] sm:$0xff]
    %v3478 = vld [vmem:[%s45 + $0x1c0] sm:$0xff]
    %v3479 = vld [vmem:[%s45 + $0x1c8] sm:$0xff]
    %v3480 = vld [vmem:[%s45 + $0x1d0] sm:$0xff]
    %v3481 = vld [vmem:[%s45 + $0x1d8] sm:$0xff]
    %v3482 = vld [vmem:[%s45 + $0x1e0] sm:$0xff]
    %v3483 = vld [vmem:[%s45 + $0x1e8] sm:$0xff]
    %v3484 = vld [vmem:[%s45 + $0x1f0] sm:$0xff]
    %v3485 = vld [vmem:[%s45 + $0x1f8] sm:$0xff]
    %v3486 = vunpack.c.l.bf16 %v3422
    %v3487 = vunpack.c.h.bf16 %v3422
    %v3488 = vunpack.c.l.bf16 %v3423
    %v3489 = vunpack.c.h.bf16 %v3423
    %v3490 = vunpack.c.l.bf16 %v3424
    %v3491 = vunpack.c.h.bf16 %v3424
    %v3492 = vunpack.c.l.bf16 %v3425
    %v3493 = vunpack.c.h.bf16 %v3425
    %v3494 = vunpack.c.l.bf16 %v3426
    %v3495 = vunpack.c.h.bf16 %v3426
    %v3496 = vunpack.c.l.bf16 %v3427
    %v3497 = vunpack.c.h.bf16 %v3427
    %v3498 = vunpack.c.l.bf16 %v3428
    %v3499 = vunpack.c.h.bf16 %v3428
    %v3500 = vunpack.c.l.bf16 %v3429
    %v3501 = vunpack.c.h.bf16 %v3429
    %v3502 = vunpack.c.l.bf16 %v3430
    %v3503 = vunpack.c.h.bf16 %v3430
    %v3504 = vunpack.c.l.bf16 %v3431
    %v3505 = vunpack.c.h.bf16 %v3431
    %v3506 = vunpack.c.l.bf16 %v3432
    %v3507 = vunpack.c.h.bf16 %v3432
    %v3508 = vunpack.c.l.bf16 %v3433
    %v3509 = vunpack.c.h.bf16 %v3433
    %v3510 = vunpack.c.l.bf16 %v3434
    %v3511 = vunpack.c.h.bf16 %v3434
    %v3512 = vunpack.c.l.bf16 %v3435
    %v3513 = vunpack.c.h.bf16 %v3435
    %v3514 = vunpack.c.l.bf16 %v3436
    %v3515 = vunpack.c.h.bf16 %v3436
    %v3516 = vunpack.c.l.bf16 %v3437
    %v3517 = vunpack.c.h.bf16 %v3437
    %v3518 = vunpack.c.l.bf16 %v3438
    %v3519 = vunpack.c.h.bf16 %v3438
    %v3520 = vunpack.c.l.bf16 %v3439
    %v3521 = vunpack.c.h.bf16 %v3439
    %v3522 = vunpack.c.l.bf16 %v3440
    %v3523 = vunpack.c.h.bf16 %v3440
    %v3524 = vunpack.c.l.bf16 %v3441
    %v3525 = vunpack.c.h.bf16 %v3441
    %v3526 = vunpack.c.l.bf16 %v3442
    %v3527 = vunpack.c.h.bf16 %v3442
    %v3528 = vunpack.c.l.bf16 %v3443
    %v3529 = vunpack.c.h.bf16 %v3443
    %v3530 = vunpack.c.l.bf16 %v3444
    %v3531 = vunpack.c.h.bf16 %v3444
    %v3532 = vunpack.c.l.bf16 %v3445
    %v3533 = vunpack.c.h.bf16 %v3445
    %v3534 = vunpack.c.l.bf16 %v3446
    %v3535 = vunpack.c.h.bf16 %v3446
    %v3536 = vunpack.c.l.bf16 %v3447
    %v3537 = vunpack.c.h.bf16 %v3447
    %v3538 = vunpack.c.l.bf16 %v3448
    %v3539 = vunpack.c.h.bf16 %v3448
    %v3540 = vunpack.c.l.bf16 %v3449
    %v3541 = vunpack.c.h.bf16 %v3449
    %v3542 = vunpack.c.l.bf16 %v3450
    %v3543 = vunpack.c.h.bf16 %v3450
    %v3544 = vunpack.c.l.bf16 %v3451
    %v3545 = vunpack.c.h.bf16 %v3451
    %v3546 = vunpack.c.l.bf16 %v3452
    %v3547 = vunpack.c.h.bf16 %v3452
    %v3548 = vunpack.c.l.bf16 %v3453
    %v3549 = vunpack.c.h.bf16 %v3453
    %v3550 = vunpack.c.l.bf16 %v3454
    %v3551 = vunpack.c.h.bf16 %v3454
    %v3552 = vunpack.c.l.bf16 %v3455
    %v3553 = vunpack.c.h.bf16 %v3455
    %v3554 = vunpack.c.l.bf16 %v3456
    %v3555 = vunpack.c.h.bf16 %v3456
    %v3556 = vunpack.c.l.bf16 %v3457
    %v3557 = vunpack.c.h.bf16 %v3457
    %v3558 = vunpack.c.l.bf16 %v3458
    %v3559 = vunpack.c.h.bf16 %v3458
    %v3560 = vunpack.c.l.bf16 %v3459
    %v3561 = vunpack.c.h.bf16 %v3459
    %v3562 = vunpack.c.l.bf16 %v3460
    %v3563 = vunpack.c.h.bf16 %v3460
    %v3564 = vunpack.c.l.bf16 %v3461
    %v3565 = vunpack.c.h.bf16 %v3461
    %v3566 = vunpack.c.l.bf16 %v3462
    %v3567 = vunpack.c.h.bf16 %v3462
    %v3568 = vunpack.c.l.bf16 %v3463
    %v3569 = vunpack.c.h.bf16 %v3463
    %v3570 = vunpack.c.l.bf16 %v3464
    %v3571 = vunpack.c.h.bf16 %v3464
    %v3572 = vunpack.c.l.bf16 %v3465
    %v3573 = vunpack.c.h.bf16 %v3465
    %v3574 = vunpack.c.l.bf16 %v3466
    %v3575 = vunpack.c.h.bf16 %v3466
    %v3576 = vunpack.c.l.bf16 %v3467
    %v3577 = vunpack.c.h.bf16 %v3467
    %v3578 = vunpack.c.l.bf16 %v3468
    %v3579 = vunpack.c.h.bf16 %v3468
    %v3580 = vunpack.c.l.bf16 %v3469
    %v3581 = vunpack.c.h.bf16 %v3469
    %v3582 = vunpack.c.l.bf16 %v3470
    %v3583 = vunpack.c.h.bf16 %v3470
    %v3584 = vunpack.c.l.bf16 %v3471
    %v3585 = vunpack.c.h.bf16 %v3471
    %v3586 = vunpack.c.l.bf16 %v3472
    %v3587 = vunpack.c.h.bf16 %v3472
    %v3588 = vunpack.c.l.bf16 %v3473
    %v3589 = vunpack.c.h.bf16 %v3473
    %v3590 = vunpack.c.l.bf16 %v3474
    %v3591 = vunpack.c.h.bf16 %v3474
    %v3592 = vunpack.c.l.bf16 %v3475
    %v3593 = vunpack.c.h.bf16 %v3475
    %v3594 = vunpack.c.l.bf16 %v3476
    %v3595 = vunpack.c.h.bf16 %v3476
    %v3596 = vunpack.c.l.bf16 %v3477
    %v3597 = vunpack.c.h.bf16 %v3477
    %v3598 = vunpack.c.l.bf16 %v3478
    %v3599 = vunpack.c.h.bf16 %v3478
    %v3600 = vunpack.c.l.bf16 %v3479
    %v3601 = vunpack.c.h.bf16 %v3479
    %v3602 = vunpack.c.l.bf16 %v3480
    %v3603 = vunpack.c.h.bf16 %v3480
    %v3604 = vunpack.c.l.bf16 %v3481
    %v3605 = vunpack.c.h.bf16 %v3481
    %v3606 = vunpack.c.l.bf16 %v3482
    %v3607 = vunpack.c.h.bf16 %v3482
    %v3608 = vunpack.c.l.bf16 %v3483
    %v3609 = vunpack.c.h.bf16 %v3483
    %v3610 = vunpack.c.l.bf16 %v3484
    %v3611 = vunpack.c.h.bf16 %v3484
    %v3612 = vunpack.c.l.bf16 %v3485
    %v3613 = vunpack.c.h.bf16 %v3485
    %v3614 = vld [vmem:[%s47] sm:$0xff]
    %v3615 = vld [vmem:[%s47 + $0x8] sm:$0xff]
    %v3616 = vld [vmem:[%s47 + $0x10] sm:$0xff]
    %v3617 = vld [vmem:[%s47 + $0x18] sm:$0xff]
    %v3618 = vld [vmem:[%s47 + $0x20] sm:$0xff]
    %v3619 = vld [vmem:[%s47 + $0x28] sm:$0xff]
    %v3620 = vld [vmem:[%s47 + $0x30] sm:$0xff]
    %v3621 = vld [vmem:[%s47 + $0x38] sm:$0xff]
    %v3622 = vld [vmem:[%s47 + $0x40] sm:$0xff]
    %v3623 = vld [vmem:[%s47 + $0x48] sm:$0xff]
    %v3624 = vld [vmem:[%s47 + $0x50] sm:$0xff]
    %v3625 = vld [vmem:[%s47 + $0x58] sm:$0xff]
    %v3626 = vld [vmem:[%s47 + $0x60] sm:$0xff]
    %v3627 = vld [vmem:[%s47 + $0x68] sm:$0xff]
    %v3628 = vld [vmem:[%s47 + $0x70] sm:$0xff]
    %v3629 = vld [vmem:[%s47 + $0x78] sm:$0xff]
    %v3630 = vld [vmem:[%s47 + $0x80] sm:$0xff]
    %v3631 = vld [vmem:[%s47 + $0x88] sm:$0xff]
    %v3632 = vld [vmem:[%s47 + $0x90] sm:$0xff]
    %v3633 = vld [vmem:[%s47 + $0x98] sm:$0xff]
    %v3634 = vld [vmem:[%s47 + $0xa0] sm:$0xff]
    %v3635 = vld [vmem:[%s47 + $0xa8] sm:$0xff]
    %v3636 = vld [vmem:[%s47 + $0xb0] sm:$0xff]
    %v3637 = vld [vmem:[%s47 + $0xb8] sm:$0xff]
    %v3638 = vld [vmem:[%s47 + $0xc0] sm:$0xff]
    %v3639 = vld [vmem:[%s47 + $0xc8] sm:$0xff]
    %v3640 = vld [vmem:[%s47 + $0xd0] sm:$0xff]
    %v3641 = vld [vmem:[%s47 + $0xd8] sm:$0xff]
    %v3642 = vld [vmem:[%s47 + $0xe0] sm:$0xff]
    %v3643 = vld [vmem:[%s47 + $0xe8] sm:$0xff]
    %v3644 = vld [vmem:[%s47 + $0xf0] sm:$0xff]
    %v3645 = vld [vmem:[%s47 + $0xf8] sm:$0xff]
    %v3646 = vld [vmem:[%s47 + $0x100] sm:$0xff]
    %v3647 = vld [vmem:[%s47 + $0x108] sm:$0xff]
    %v3648 = vld [vmem:[%s47 + $0x110] sm:$0xff]
    %v3649 = vld [vmem:[%s47 + $0x118] sm:$0xff]
    %v3650 = vld [vmem:[%s47 + $0x120] sm:$0xff]
    %v3651 = vld [vmem:[%s47 + $0x128] sm:$0xff]
    %v3652 = vld [vmem:[%s47 + $0x130] sm:$0xff]
    %v3653 = vld [vmem:[%s47 + $0x138] sm:$0xff]
    %v3654 = vld [vmem:[%s47 + $0x140] sm:$0xff]
    %v3655 = vld [vmem:[%s47 + $0x148] sm:$0xff]
    %v3656 = vld [vmem:[%s47 + $0x150] sm:$0xff]
    %v3657 = vld [vmem:[%s47 + $0x158] sm:$0xff]
    %v3658 = vld [vmem:[%s47 + $0x160] sm:$0xff]
    %v3659 = vld [vmem:[%s47 + $0x168] sm:$0xff]
    %v3660 = vld [vmem:[%s47 + $0x170] sm:$0xff]
    %v3661 = vld [vmem:[%s47 + $0x178] sm:$0xff]
    %v3662 = vld [vmem:[%s47 + $0x180] sm:$0xff]
    %v3663 = vld [vmem:[%s47 + $0x188] sm:$0xff]
    %v3664 = vld [vmem:[%s47 + $0x190] sm:$0xff]
    %v3665 = vld [vmem:[%s47 + $0x198] sm:$0xff]
    %v3666 = vld [vmem:[%s47 + $0x1a0] sm:$0xff]
    %v3667 = vld [vmem:[%s47 + $0x1a8] sm:$0xff]
    %v3668 = vld [vmem:[%s47 + $0x1b0] sm:$0xff]
    %v3669 = vld [vmem:[%s47 + $0x1b8] sm:$0xff]
    %v3670 = vld [vmem:[%s47 + $0x1c0] sm:$0xff]
    %v3671 = vld [vmem:[%s47 + $0x1c8] sm:$0xff]
    %v3672 = vld [vmem:[%s47 + $0x1d0] sm:$0xff]
    %v3673 = vld [vmem:[%s47 + $0x1d8] sm:$0xff]
    %v3674 = vld [vmem:[%s47 + $0x1e0] sm:$0xff]
    %v3675 = vld [vmem:[%s47 + $0x1e8] sm:$0xff]
    %v3676 = vld [vmem:[%s47 + $0x1f0] sm:$0xff]
    %v3677 = vld [vmem:[%s47 + $0x1f8] sm:$0xff]
    %v3678 = vunpack.c.l.bf16 %v3614
    %v3679 = vunpack.c.h.bf16 %v3614
    %v3680 = vunpack.c.l.bf16 %v3615
    %v3681 = vunpack.c.h.bf16 %v3615
    %v3682 = vunpack.c.l.bf16 %v3616
    %v3683 = vunpack.c.h.bf16 %v3616
    %v3684 = vunpack.c.l.bf16 %v3617
    %v3685 = vunpack.c.h.bf16 %v3617
    %v3686 = vunpack.c.l.bf16 %v3618
    %v3687 = vunpack.c.h.bf16 %v3618
    %v3688 = vunpack.c.l.bf16 %v3619
    %v3689 = vunpack.c.h.bf16 %v3619
    %v3690 = vunpack.c.l.bf16 %v3620
    %v3691 = vunpack.c.h.bf16 %v3620
    %v3692 = vunpack.c.l.bf16 %v3621
    %v3693 = vunpack.c.h.bf16 %v3621
    %v3694 = vunpack.c.l.bf16 %v3622
    %v3695 = vunpack.c.h.bf16 %v3622
    %v3696 = vunpack.c.l.bf16 %v3623
    %v3697 = vunpack.c.h.bf16 %v3623
    %v3698 = vunpack.c.l.bf16 %v3624
    %v3699 = vunpack.c.h.bf16 %v3624
    %v3700 = vunpack.c.l.bf16 %v3625
    %v3701 = vunpack.c.h.bf16 %v3625
    %v3702 = vunpack.c.l.bf16 %v3626
    %v3703 = vunpack.c.h.bf16 %v3626
    %v3704 = vunpack.c.l.bf16 %v3627
    %v3705 = vunpack.c.h.bf16 %v3627
    %v3706 = vunpack.c.l.bf16 %v3628
    %v3707 = vunpack.c.h.bf16 %v3628
    %v3708 = vunpack.c.l.bf16 %v3629
    %v3709 = vunpack.c.h.bf16 %v3629
    %v3710 = vunpack.c.l.bf16 %v3630
    %v3711 = vunpack.c.h.bf16 %v3630
    %v3712 = vunpack.c.l.bf16 %v3631
    %v3713 = vunpack.c.h.bf16 %v3631
    %v3714 = vunpack.c.l.bf16 %v3632
    %v3715 = vunpack.c.h.bf16 %v3632
    %v3716 = vunpack.c.l.bf16 %v3633
    %v3717 = vunpack.c.h.bf16 %v3633
    %v3718 = vunpack.c.l.bf16 %v3634
    %v3719 = vunpack.c.h.bf16 %v3634
    %v3720 = vunpack.c.l.bf16 %v3635
    %v3721 = vunpack.c.h.bf16 %v3635
    %v3722 = vunpack.c.l.bf16 %v3636
    %v3723 = vunpack.c.h.bf16 %v3636
    %v3724 = vunpack.c.l.bf16 %v3637
    %v3725 = vunpack.c.h.bf16 %v3637
    %v3726 = vunpack.c.l.bf16 %v3638
    %v3727 = vunpack.c.h.bf16 %v3638
    %v3728 = vunpack.c.l.bf16 %v3639
    %v3729 = vunpack.c.h.bf16 %v3639
    %v3730 = vunpack.c.l.bf16 %v3640
    %v3731 = vunpack.c.h.bf16 %v3640
    %v3732 = vunpack.c.l.bf16 %v3641
    %v3733 = vunpack.c.h.bf16 %v3641
    %v3734 = vunpack.c.l.bf16 %v3642
    %v3735 = vunpack.c.h.bf16 %v3642
    %v3736 = vunpack.c.l.bf16 %v3643
    %v3737 = vunpack.c.h.bf16 %v3643
    %v3738 = vunpack.c.l.bf16 %v3644
    %v3739 = vunpack.c.h.bf16 %v3644
    %v3740 = vunpack.c.l.bf16 %v3645
    %v3741 = vunpack.c.h.bf16 %v3645
    %v3742 = vunpack.c.l.bf16 %v3646
    %v3743 = vunpack.c.h.bf16 %v3646
    %v3744 = vunpack.c.l.bf16 %v3647
    %v3745 = vunpack.c.h.bf16 %v3647
    %v3746 = vunpack.c.l.bf16 %v3648
    %v3747 = vunpack.c.h.bf16 %v3648
    %v3748 = vunpack.c.l.bf16 %v3649
    %v3749 = vunpack.c.h.bf16 %v3649
    %v3750 = vunpack.c.l.bf16 %v3650
    %v3751 = vunpack.c.h.bf16 %v3650
    %v3752 = vunpack.c.l.bf16 %v3651
    %v3753 = vunpack.c.h.bf16 %v3651
    %v3754 = vunpack.c.l.bf16 %v3652
    %v3755 = vunpack.c.h.bf16 %v3652
    %v3756 = vunpack.c.l.bf16 %v3653
    %v3757 = vunpack.c.h.bf16 %v3653
    %v3758 = vunpack.c.l.bf16 %v3654
    %v3759 = vunpack.c.h.bf16 %v3654
    %v3760 = vunpack.c.l.bf16 %v3655
    %v3761 = vunpack.c.h.bf16 %v3655
    %v3762 = vunpack.c.l.bf16 %v3656
    %v3763 = vunpack.c.h.bf16 %v3656
    %v3764 = vunpack.c.l.bf16 %v3657
    %v3765 = vunpack.c.h.bf16 %v3657
    %v3766 = vunpack.c.l.bf16 %v3658
    %v3767 = vunpack.c.h.bf16 %v3658
    %v3768 = vunpack.c.l.bf16 %v3659
    %v3769 = vunpack.c.h.bf16 %v3659
    %v3770 = vunpack.c.l.bf16 %v3660
    %v3771 = vunpack.c.h.bf16 %v3660
    %v3772 = vunpack.c.l.bf16 %v3661
    %v3773 = vunpack.c.h.bf16 %v3661
    %v3774 = vunpack.c.l.bf16 %v3662
    %v3775 = vunpack.c.h.bf16 %v3662
    %v3776 = vunpack.c.l.bf16 %v3663
    %v3777 = vunpack.c.h.bf16 %v3663
    %v3778 = vunpack.c.l.bf16 %v3664
    %v3779 = vunpack.c.h.bf16 %v3664
    %v3780 = vunpack.c.l.bf16 %v3665
    %v3781 = vunpack.c.h.bf16 %v3665
    %v3782 = vunpack.c.l.bf16 %v3666
    %v3783 = vunpack.c.h.bf16 %v3666
    %v3784 = vunpack.c.l.bf16 %v3667
    %v3785 = vunpack.c.h.bf16 %v3667
    %v3786 = vunpack.c.l.bf16 %v3668
    %v3787 = vunpack.c.h.bf16 %v3668
    %v3788 = vunpack.c.l.bf16 %v3669
    %v3789 = vunpack.c.h.bf16 %v3669
    %v3790 = vunpack.c.l.bf16 %v3670
    %v3791 = vunpack.c.h.bf16 %v3670
    %v3792 = vunpack.c.l.bf16 %v3671
    %v3793 = vunpack.c.h.bf16 %v3671
    %v3794 = vunpack.c.l.bf16 %v3672
    %v3795 = vunpack.c.h.bf16 %v3672
    %v3796 = vunpack.c.l.bf16 %v3673
    %v3797 = vunpack.c.h.bf16 %v3673
    %v3798 = vunpack.c.l.bf16 %v3674
    %v3799 = vunpack.c.h.bf16 %v3674
    %v3800 = vunpack.c.l.bf16 %v3675
    %v3801 = vunpack.c.h.bf16 %v3675
    %v3802 = vunpack.c.l.bf16 %v3676
    %v3803 = vunpack.c.h.bf16 %v3676
    %v3804 = vunpack.c.l.bf16 %v3677
    %v3805 = vunpack.c.h.bf16 %v3677
    %3806 = vmatprep.subr.mxu0 %v3739
    %3807 = vmatpush1.msra.mxu0 %v3738
    %3808 = vmatprep.subr.mxu0 %v3735
    %3809 = vmatpush1.msra.mxu0 %v3734
    %3810 = vmatprep.subr.mxu0 %v3731
    %3811 = vmatpush1.msra.mxu0 %v3730
    %3812 = vmatprep.subr.mxu0 %v3727
    %3813 = vmatpush1.msra.mxu0 %v3726
    %3814 = vmatprep.subr.mxu0 %v3723
    %3815 = vmatpush1.msra.mxu0 %v3722
    %3816 = vmatprep.subr.mxu0 %v3719
    %3817 = vmatpush1.msra.mxu0 %v3718
    %3818 = vmatprep.subr.mxu0 %v3715
    %3819 = vmatpush1.msra.mxu0 %v3714
    %3820 = vmatprep.subr.mxu0 %v3711
    %3821 = vmatpush1.msra.mxu0 %v3710
    %3822 = vmatprep.subr.mxu0 %v3707
    %3823 = vmatpush1.msra.mxu0 %v3706
    %3824 = vmatprep.subr.mxu0 %v3703
    %3825 = vmatpush1.msra.mxu0 %v3702
    %3826 = vmatprep.subr.mxu0 %v3699
    %3827 = vmatpush1.msra.mxu0 %v3698
    %3828 = vmatprep.subr.mxu0 %v3695
    %3829 = vmatpush1.msra.mxu0 %v3694
    %3830 = vmatprep.subr.mxu0 %v3691
    %3831 = vmatpush1.msra.mxu0 %v3690
    %3832 = vmatprep.subr.mxu0 %v3687
    %3833 = vmatpush1.msra.mxu0 %v3686
    %3834 = vmatprep.subr.mxu0 %v3683
    %3835 = vmatpush1.msra.mxu0 %v3682
    %3836 = vmatprep.subr.mxu0 %v3679
    %3837 = vmatpush1.msra.mxu0 %v3678
    %3838 = vmatprep.subr.mxu0 %v3803
    %3839 = vmatpush2.msra.mxu0 %v3802
    %3840 = vmatprep.subr.mxu0 %v3799
    %3841 = vmatpush2.msra.mxu0 %v3798
    %3842 = vmatprep.subr.mxu0 %v3795
    %3843 = vmatpush2.msra.mxu0 %v3794
    %3844 = vmatprep.subr.mxu0 %v3791
    %3845 = vmatpush2.msra.mxu0 %v3790
    %3846 = vmatprep.subr.mxu0 %v3787
    %3847 = vmatpush2.msra.mxu0 %v3786
    %3848 = vmatprep.subr.mxu0 %v3783
    %3849 = vmatpush2.msra.mxu0 %v3782
    %3850 = vmatprep.subr.mxu0 %v3779
    %3851 = vmatpush2.msra.mxu0 %v3778
    %3852 = vmatprep.subr.mxu0 %v3775
    %3853 = vmatpush2.msra.mxu0 %v3774
    %3854 = vmatprep.subr.mxu0 %v3771
    %3855 = vmatpush2.msra.mxu0 %v3770
    %3856 = vmatprep.subr.mxu0 %v3767
    %3857 = vmatpush2.msra.mxu0 %v3766
    %3858 = vmatprep.subr.mxu0 %v3763
    %3859 = vmatpush2.msra.mxu0 %v3762
    %3860 = vmatprep.subr.mxu0 %v3759
    %3861 = vmatpush2.msra.mxu0 %v3758
    %3862 = vmatprep.subr.mxu0 %v3755
    %3863 = vmatpush2.msra.mxu0 %v3754
    %3864 = vmatprep.subr.mxu0 %v3751
    %3865 = vmatpush2.msra.mxu0 %v3750
    %3866 = vmatprep.subr.mxu0 %v3747
    %3867 = vmatpush2.msra.mxu0 %v3746
    %3868 = vmatprep.subr.mxu0 %v3743
    %3869 = vmatpush2.msra.mxu0 %v3742
    %3870 = vmatprep.mubr.f32.mxu0 %v3421
    %3871 = vmatmul.mubr.f32.gmra.mxu0 %v3420
    %v3872 = vpop.f32.mrf.mxu0
    %v3873 = vadd.f32 0.0, %v3872
    %v3874 = vpop.f32.mrf.mxu0
    %v3875 = vadd.f32 0.0, %v3874
    %3876 = vdwg.mxu0
    %3877 = vmatprep.subr.mxu0 %v3741
    %3878 = vmatpush1.msra.mxu0 %v3740
    %3879 = vmatprep.subr.mxu0 %v3737
    %3880 = vmatpush1.msra.mxu0 %v3736
    %3881 = vmatprep.subr.mxu0 %v3733
    %3882 = vmatpush1.msra.mxu0 %v3732
    %3883 = vmatprep.subr.mxu0 %v3729
    %3884 = vmatpush1.msra.mxu0 %v3728
    %3885 = vmatprep.subr.mxu0 %v3725
    %3886 = vmatpush1.msra.mxu0 %v3724
    %3887 = vmatprep.subr.mxu0 %v3721
    %3888 = vmatpush1.msra.mxu0 %v3720
    %3889 = vmatprep.subr.mxu0 %v3717
    %3890 = vmatpush1.msra.mxu0 %v3716
    %3891 = vmatprep.subr.mxu0 %v3713
    %3892 = vmatpush1.msra.mxu0 %v3712
    %3893 = vmatprep.subr.mxu0 %v3709
    %3894 = vmatpush1.msra.mxu0 %v3708
    %3895 = vmatprep.subr.mxu0 %v3705
    %3896 = vmatpush1.msra.mxu0 %v3704
    %3897 = vmatprep.subr.mxu0 %v3701
    %3898 = vmatpush1.msra.mxu0 %v3700
    %3899 = vmatprep.subr.mxu0 %v3697
    %3900 = vmatpush1.msra.mxu0 %v3696
    %3901 = vmatprep.subr.mxu0 %v3693
    %3902 = vmatpush1.msra.mxu0 %v3692
    %3903 = vmatprep.subr.mxu0 %v3689
    %3904 = vmatpush1.msra.mxu0 %v3688
    %3905 = vmatprep.subr.mxu0 %v3685
    %3906 = vmatpush1.msra.mxu0 %v3684
    %3907 = vmatprep.subr.mxu0 %v3681
    %3908 = vmatpush1.msra.mxu0 %v3680
    %3909 = vmatprep.subr.mxu0 %v3805
    %3910 = vmatpush2.msra.mxu0 %v3804
    %3911 = vmatprep.subr.mxu0 %v3801
    %3912 = vmatpush2.msra.mxu0 %v3800
    %3913 = vmatprep.subr.mxu0 %v3797
    %3914 = vmatpush2.msra.mxu0 %v3796
    %3915 = vmatprep.subr.mxu0 %v3793
    %3916 = vmatpush2.msra.mxu0 %v3792
    %3917 = vmatprep.subr.mxu0 %v3789
    %3918 = vmatpush2.msra.mxu0 %v3788
    %3919 = vmatprep.subr.mxu0 %v3785
    %3920 = vmatpush2.msra.mxu0 %v3784
    %3921 = vmatprep.subr.mxu0 %v3781
    %3922 = vmatpush2.msra.mxu0 %v3780
    %3923 = vmatprep.subr.mxu0 %v3777
    %3924 = vmatpush2.msra.mxu0 %v3776
    %3925 = vmatprep.subr.mxu0 %v3773
    %3926 = vmatpush2.msra.mxu0 %v3772
    %3927 = vmatprep.subr.mxu0 %v3769
    %3928 = vmatpush2.msra.mxu0 %v3768
    %3929 = vmatprep.subr.mxu0 %v3765
    %3930 = vmatpush2.msra.mxu0 %v3764
    %3931 = vmatprep.subr.mxu0 %v3761
    %3932 = vmatpush2.msra.mxu0 %v3760
    %3933 = vmatprep.subr.mxu0 %v3757
    %3934 = vmatpush2.msra.mxu0 %v3756
    %3935 = vmatprep.subr.mxu0 %v3753
    %3936 = vmatpush2.msra.mxu0 %v3752
    %3937 = vmatprep.subr.mxu0 %v3749
    %3938 = vmatpush2.msra.mxu0 %v3748
    %3939 = vmatprep.subr.mxu0 %v3745
    %3940 = vmatpush2.msra.mxu0 %v3744
    %3941 = vmatprep.mubr.f32.mxu0 %v3421
    %3942 = vmatmul.mubr.f32.gmra.mxu0 %v3420
    %v3943 = vpop.f32.mrf.mxu0
    %v3944 = vadd.f32 0.0, %v3943
    %v3945 = vpop.f32.mrf.mxu0
    %v3946 = vadd.f32 0.0, %v3945
    %3947 = vdwg.mxu0
    %3948 = vmatprep.subr.mxu0 %v3547
    %3949 = vmatpush1.msra.mxu0 %v3546
    %3950 = vmatprep.subr.mxu0 %v3543
    %3951 = vmatpush1.msra.mxu0 %v3542
    %3952 = vmatprep.subr.mxu0 %v3539
    %3953 = vmatpush1.msra.mxu0 %v3538
    %3954 = vmatprep.subr.mxu0 %v3535
    %3955 = vmatpush1.msra.mxu0 %v3534
    %3956 = vmatprep.subr.mxu0 %v3531
    %3957 = vmatpush1.msra.mxu0 %v3530
    %3958 = vmatprep.subr.mxu0 %v3527
    %3959 = vmatpush1.msra.mxu0 %v3526
    %3960 = vmatprep.subr.mxu0 %v3523
    %3961 = vmatpush1.msra.mxu0 %v3522
    %3962 = vmatprep.subr.mxu0 %v3519
    %3963 = vmatpush1.msra.mxu0 %v3518
    %3964 = vmatprep.subr.mxu0 %v3515
    %3965 = vmatpush1.msra.mxu0 %v3514
    %3966 = vmatprep.subr.mxu0 %v3511
    %3967 = vmatpush1.msra.mxu0 %v3510
    %3968 = vmatprep.subr.mxu0 %v3507
    %3969 = vmatpush1.msra.mxu0 %v3506
    %3970 = vmatprep.subr.mxu0 %v3503
    %3971 = vmatpush1.msra.mxu0 %v3502
    %3972 = vmatprep.subr.mxu0 %v3499
    %3973 = vmatpush1.msra.mxu0 %v3498
    %3974 = vmatprep.subr.mxu0 %v3495
    %3975 = vmatpush1.msra.mxu0 %v3494
    %3976 = vmatprep.subr.mxu0 %v3491
    %3977 = vmatpush1.msra.mxu0 %v3490
    %3978 = vmatprep.subr.mxu0 %v3487
    %3979 = vmatpush1.msra.mxu0 %v3486
    %3980 = vmatprep.subr.mxu0 %v3611
    %3981 = vmatpush2.msra.mxu0 %v3610
    %3982 = vmatprep.subr.mxu0 %v3607
    %3983 = vmatpush2.msra.mxu0 %v3606
    %3984 = vmatprep.subr.mxu0 %v3603
    %3985 = vmatpush2.msra.mxu0 %v3602
    %3986 = vmatprep.subr.mxu0 %v3599
    %3987 = vmatpush2.msra.mxu0 %v3598
    %3988 = vmatprep.subr.mxu0 %v3595
    %3989 = vmatpush2.msra.mxu0 %v3594
    %3990 = vmatprep.subr.mxu0 %v3591
    %3991 = vmatpush2.msra.mxu0 %v3590
    %3992 = vmatprep.subr.mxu0 %v3587
    %3993 = vmatpush2.msra.mxu0 %v3586
    %3994 = vmatprep.subr.mxu0 %v3583
    %3995 = vmatpush2.msra.mxu0 %v3582
    %3996 = vmatprep.subr.mxu0 %v3579
    %3997 = vmatpush2.msra.mxu0 %v3578
    %3998 = vmatprep.subr.mxu0 %v3575
    %3999 = vmatpush2.msra.mxu0 %v3574
    %4000 = vmatprep.subr.mxu0 %v3571
    %4001 = vmatpush2.msra.mxu0 %v3570
    %4002 = vmatprep.subr.mxu0 %v3567
    %4003 = vmatpush2.msra.mxu0 %v3566
    %4004 = vmatprep.subr.mxu0 %v3563
    %4005 = vmatpush2.msra.mxu0 %v3562
    %4006 = vmatprep.subr.mxu0 %v3559
    %4007 = vmatpush2.msra.mxu0 %v3558
    %4008 = vmatprep.subr.mxu0 %v3555
    %4009 = vmatpush2.msra.mxu0 %v3554
    %4010 = vmatprep.subr.mxu0 %v3551
    %4011 = vmatpush2.msra.mxu0 %v3550
    %4012 = vmatprep.mubr.f32.mxu0 %v1237
    %4013 = vmatmul.mubr.f32.gmra.mxu0 %v1236
    %v4014 = vpop.f32.mrf.mxu0
    %v4015 = vadd.f32 %v3873, %v4014
    %v4016 = vpop.f32.mrf.mxu0
    %v4017 = vadd.f32 %v3875, %v4016
    %4018 = vdwg.mxu0
    %4019 = vmatprep.subr.mxu0 %v3549
    %4020 = vmatpush1.msra.mxu0 %v3548
    %4021 = vmatprep.subr.mxu0 %v3545
    %4022 = vmatpush1.msra.mxu0 %v3544
    %4023 = vmatprep.subr.mxu0 %v3541
    %4024 = vmatpush1.msra.mxu0 %v3540
    %4025 = vmatprep.subr.mxu0 %v3537
    %4026 = vmatpush1.msra.mxu0 %v3536
    %4027 = vmatprep.subr.mxu0 %v3533
    %4028 = vmatpush1.msra.mxu0 %v3532
    %4029 = vmatprep.subr.mxu0 %v3529
    %4030 = vmatpush1.msra.mxu0 %v3528
    %4031 = vmatprep.subr.mxu0 %v3525
    %4032 = vmatpush1.msra.mxu0 %v3524
    %4033 = vmatprep.subr.mxu0 %v3521
    %4034 = vmatpush1.msra.mxu0 %v3520
    %4035 = vmatprep.subr.mxu0 %v3517
    %4036 = vmatpush1.msra.mxu0 %v3516
    %4037 = vmatprep.subr.mxu0 %v3513
    %4038 = vmatpush1.msra.mxu0 %v3512
    %4039 = vmatprep.subr.mxu0 %v3509
    %4040 = vmatpush1.msra.mxu0 %v3508
    %4041 = vmatprep.subr.mxu0 %v3505
    %4042 = vmatpush1.msra.mxu0 %v3504
    %4043 = vmatprep.subr.mxu0 %v3501
    %4044 = vmatpush1.msra.mxu0 %v3500
    %4045 = vmatprep.subr.mxu0 %v3497
    %4046 = vmatpush1.msra.mxu0 %v3496
    %4047 = vmatprep.subr.mxu0 %v3493
    %4048 = vmatpush1.msra.mxu0 %v3492
    %4049 = vmatprep.subr.mxu0 %v3489
    %4050 = vmatpush1.msra.mxu0 %v3488
    %4051 = vmatprep.subr.mxu0 %v3613
    %4052 = vmatpush2.msra.mxu0 %v3612
    %4053 = vmatprep.subr.mxu0 %v3609
    %4054 = vmatpush2.msra.mxu0 %v3608
    %4055 = vmatprep.subr.mxu0 %v3605
    %4056 = vmatpush2.msra.mxu0 %v3604
    %4057 = vmatprep.subr.mxu0 %v3601
    %4058 = vmatpush2.msra.mxu0 %v3600
    %4059 = vmatprep.subr.mxu0 %v3597
    %4060 = vmatpush2.msra.mxu0 %v3596
    %4061 = vmatprep.subr.mxu0 %v3593
    %4062 = vmatpush2.msra.mxu0 %v3592
    %4063 = vmatprep.subr.mxu0 %v3589
    %4064 = vmatpush2.msra.mxu0 %v3588
    %4065 = vmatprep.subr.mxu0 %v3585
    %4066 = vmatpush2.msra.mxu0 %v3584
    %4067 = vmatprep.subr.mxu0 %v3581
    %4068 = vmatpush2.msra.mxu0 %v3580
    %4069 = vmatprep.subr.mxu0 %v3577
    %4070 = vmatpush2.msra.mxu0 %v3576
    %4071 = vmatprep.subr.mxu0 %v3573
    %4072 = vmatpush2.msra.mxu0 %v3572
    %4073 = vmatprep.subr.mxu0 %v3569
    %4074 = vmatpush2.msra.mxu0 %v3568
    %4075 = vmatprep.subr.mxu0 %v3565
    %4076 = vmatpush2.msra.mxu0 %v3564
    %4077 = vmatprep.subr.mxu0 %v3561
    %4078 = vmatpush2.msra.mxu0 %v3560
    %4079 = vmatprep.subr.mxu0 %v3557
    %4080 = vmatpush2.msra.mxu0 %v3556
    %4081 = vmatprep.subr.mxu0 %v3553
    %4082 = vmatpush2.msra.mxu0 %v3552
    %4083 = vmatprep.mubr.f32.mxu0 %v1237
    %4084 = vmatmul.mubr.f32.gmra.mxu0 %v1236
    %v4085 = vpop.f32.mrf.mxu0
    %v4086 = vadd.f32 %v3944, %v4085
    %v4087 = vpop.f32.mrf.mxu0
    %v4088 = vadd.f32 %v3946, %v4087
    %4089 = vdwg.mxu0
    %v4090 = vld [vmem:[%s49] sm:$0xf]
    %v4092 = vlaneseq
    %v4093 = vshrl.u32 %v4092, 7
    %v4094 = vsub.s32 0, %v4093
    %v4095 = vrot.slane %v4090, %v4094
    %v4096 = vlaneseq
    %v4097 = vshrl.u32 %v4096, 7
    %v4098 = vsub.s32 1, %v4097
    %v4099 = vrot.slane %v4090, %v4098
    %v4100 = vlaneseq
    %v4101 = vshrl.u32 %v4100, 7
    %v4102 = vsub.s32 2, %v4101
    %v4103 = vrot.slane %v4090, %v4102
    %v4104 = vlaneseq
    %v4105 = vshrl.u32 %v4104, 7
    %v4106 = vsub.s32 3, %v4105
    %v4107 = vrot.slane %v4090, %v4106
    %v4112 = vadd.f32 %v4015, %v4095
    %v4113 = vadd.f32 %v4017, %v4099
    %v4114 = vadd.f32 %v4086, %v4103
    %v4115 = vadd.f32 %v4088, %v4107
    %v4116 = vmax.f32 %v4112, 0.0
    %v4117 = vmax.f32 %v4113, 0.0
    %v4118 = vmax.f32 %v4114, 0.0
    %v4119 = vmax.f32 %v4115, 0.0
    %v4120 = vld [vmem:[%s37] sm:$0xff]
    %v4121 = vld [vmem:[%s37 + $0x8] sm:$0xff]
    %v4122 = vld [vmem:[%s37 + $0x10] sm:$0xff]
    %v4123 = vld [vmem:[%s37 + $0x18] sm:$0xff]
    %v4124 = vld [vmem:[%s37 + $0x20] sm:$0xff]
    %v4125 = vld [vmem:[%s37 + $0x28] sm:$0xff]
    %v4126 = vld [vmem:[%s37 + $0x30] sm:$0xff]
    %v4127 = vld [vmem:[%s37 + $0x38] sm:$0xff]
    %v4128 = vld [vmem:[%s37 + $0x40] sm:$0xff]
    %v4129 = vld [vmem:[%s37 + $0x48] sm:$0xff]
    %v4130 = vld [vmem:[%s37 + $0x50] sm:$0xff]
    %v4131 = vld [vmem:[%s37 + $0x58] sm:$0xff]
    %v4132 = vld [vmem:[%s37 + $0x60] sm:$0xff]
    %v4133 = vld [vmem:[%s37 + $0x68] sm:$0xff]
    %v4134 = vld [vmem:[%s37 + $0x70] sm:$0xff]
    %v4135 = vld [vmem:[%s37 + $0x78] sm:$0xff]
    %v4136 = vld [vmem:[%s37 + $0x80] sm:$0xff]
    %v4137 = vld [vmem:[%s37 + $0x88] sm:$0xff]
    %v4138 = vld [vmem:[%s37 + $0x90] sm:$0xff]
    %v4139 = vld [vmem:[%s37 + $0x98] sm:$0xff]
    %v4140 = vld [vmem:[%s37 + $0xa0] sm:$0xff]
    %v4141 = vld [vmem:[%s37 + $0xa8] sm:$0xff]
    %v4142 = vld [vmem:[%s37 + $0xb0] sm:$0xff]
    %v4143 = vld [vmem:[%s37 + $0xb8] sm:$0xff]
    %v4144 = vld [vmem:[%s37 + $0xc0] sm:$0xff]
    %v4145 = vld [vmem:[%s37 + $0xc8] sm:$0xff]
    %v4146 = vld [vmem:[%s37 + $0xd0] sm:$0xff]
    %v4147 = vld [vmem:[%s37 + $0xd8] sm:$0xff]
    %v4148 = vld [vmem:[%s37 + $0xe0] sm:$0xff]
    %v4149 = vld [vmem:[%s37 + $0xe8] sm:$0xff]
    %v4150 = vld [vmem:[%s37 + $0xf0] sm:$0xff]
    %v4151 = vld [vmem:[%s37 + $0xf8] sm:$0xff]
    %v4152 = vunpack.c.l.bf16 %v4120
    %v4153 = vunpack.c.h.bf16 %v4120
    %v4154 = vunpack.c.l.bf16 %v4121
    %v4155 = vunpack.c.h.bf16 %v4121
    %v4156 = vunpack.c.l.bf16 %v4122
    %v4157 = vunpack.c.h.bf16 %v4122
    %v4158 = vunpack.c.l.bf16 %v4123
    %v4159 = vunpack.c.h.bf16 %v4123
    %v4160 = vunpack.c.l.bf16 %v4124
    %v4161 = vunpack.c.h.bf16 %v4124
    %v4162 = vunpack.c.l.bf16 %v4125
    %v4163 = vunpack.c.h.bf16 %v4125
    %v4164 = vunpack.c.l.bf16 %v4126
    %v4165 = vunpack.c.h.bf16 %v4126
    %v4166 = vunpack.c.l.bf16 %v4127
    %v4167 = vunpack.c.h.bf16 %v4127
    %v4168 = vunpack.c.l.bf16 %v4128
    %v4169 = vunpack.c.h.bf16 %v4128
    %v4170 = vunpack.c.l.bf16 %v4129
    %v4171 = vunpack.c.h.bf16 %v4129
    %v4172 = vunpack.c.l.bf16 %v4130
    %v4173 = vunpack.c.h.bf16 %v4130
    %v4174 = vunpack.c.l.bf16 %v4131
    %v4175 = vunpack.c.h.bf16 %v4131
    %v4176 = vunpack.c.l.bf16 %v4132
    %v4177 = vunpack.c.h.bf16 %v4132
    %v4178 = vunpack.c.l.bf16 %v4133
    %v4179 = vunpack.c.h.bf16 %v4133
    %v4180 = vunpack.c.l.bf16 %v4134
    %v4181 = vunpack.c.h.bf16 %v4134
    %v4182 = vunpack.c.l.bf16 %v4135
    %v4183 = vunpack.c.h.bf16 %v4135
    %v4184 = vunpack.c.l.bf16 %v4136
    %v4185 = vunpack.c.h.bf16 %v4136
    %v4186 = vunpack.c.l.bf16 %v4137
    %v4187 = vunpack.c.h.bf16 %v4137
    %v4188 = vunpack.c.l.bf16 %v4138
    %v4189 = vunpack.c.h.bf16 %v4138
    %v4190 = vunpack.c.l.bf16 %v4139
    %v4191 = vunpack.c.h.bf16 %v4139
    %v4192 = vunpack.c.l.bf16 %v4140
    %v4193 = vunpack.c.h.bf16 %v4140
    %v4194 = vunpack.c.l.bf16 %v4141
    %v4195 = vunpack.c.h.bf16 %v4141
    %v4196 = vunpack.c.l.bf16 %v4142
    %v4197 = vunpack.c.h.bf16 %v4142
    %v4198 = vunpack.c.l.bf16 %v4143
    %v4199 = vunpack.c.h.bf16 %v4143
    %v4200 = vunpack.c.l.bf16 %v4144
    %v4201 = vunpack.c.h.bf16 %v4144
    %v4202 = vunpack.c.l.bf16 %v4145
    %v4203 = vunpack.c.h.bf16 %v4145
    %v4204 = vunpack.c.l.bf16 %v4146
    %v4205 = vunpack.c.h.bf16 %v4146
    %v4206 = vunpack.c.l.bf16 %v4147
    %v4207 = vunpack.c.h.bf16 %v4147
    %v4208 = vunpack.c.l.bf16 %v4148
    %v4209 = vunpack.c.h.bf16 %v4148
    %v4210 = vunpack.c.l.bf16 %v4149
    %v4211 = vunpack.c.h.bf16 %v4149
    %v4212 = vunpack.c.l.bf16 %v4150
    %v4213 = vunpack.c.h.bf16 %v4150
    %v4214 = vunpack.c.l.bf16 %v4151
    %v4215 = vunpack.c.h.bf16 %v4151
    %v4216 = vld [vmem:[%s39] sm:$0x3]
    %v4218 = vlaneseq
    %v4219 = vshrl.u32 %v4218, 7
    %v4220 = vsub.s32 0, %v4219
    %v4221 = vrot.slane %v4216, %v4220
    %v4222 = vlaneseq
    %v4223 = vshrl.u32 %v4222, 7
    %v4224 = vsub.s32 1, %v4223
    %v4225 = vrot.slane %v4216, %v4224
    %4228 = vmatprep.subr.mxu0 %v4183
    %4229 = vmatpush1.msra.mxu0 %v4182
    %4230 = vmatprep.subr.mxu0 %v4181
    %4231 = vmatpush1.msra.mxu0 %v4180
    %4232 = vmatprep.subr.mxu0 %v4179
    %4233 = vmatpush1.msra.mxu0 %v4178
    %4234 = vmatprep.subr.mxu0 %v4177
    %4235 = vmatpush1.msra.mxu0 %v4176
    %4236 = vmatprep.subr.mxu0 %v4175
    %4237 = vmatpush1.msra.mxu0 %v4174
    %4238 = vmatprep.subr.mxu0 %v4173
    %4239 = vmatpush1.msra.mxu0 %v4172
    %4240 = vmatprep.subr.mxu0 %v4171
    %4241 = vmatpush1.msra.mxu0 %v4170
    %4242 = vmatprep.subr.mxu0 %v4169
    %4243 = vmatpush1.msra.mxu0 %v4168
    %4244 = vmatprep.subr.mxu0 %v4167
    %4245 = vmatpush1.msra.mxu0 %v4166
    %4246 = vmatprep.subr.mxu0 %v4165
    %4247 = vmatpush1.msra.mxu0 %v4164
    %4248 = vmatprep.subr.mxu0 %v4163
    %4249 = vmatpush1.msra.mxu0 %v4162
    %4250 = vmatprep.subr.mxu0 %v4161
    %4251 = vmatpush1.msra.mxu0 %v4160
    %4252 = vmatprep.subr.mxu0 %v4159
    %4253 = vmatpush1.msra.mxu0 %v4158
    %4254 = vmatprep.subr.mxu0 %v4157
    %4255 = vmatpush1.msra.mxu0 %v4156
    %4256 = vmatprep.subr.mxu0 %v4155
    %4257 = vmatpush1.msra.mxu0 %v4154
    %4258 = vmatprep.subr.mxu0 %v4153
    %4259 = vmatpush1.msra.mxu0 %v4152
    %4260 = vmatprep.subr.mxu0 %v4215
    %4261 = vmatpush2.msra.mxu0 %v4214
    %4262 = vmatprep.subr.mxu0 %v4213
    %4263 = vmatpush2.msra.mxu0 %v4212
    %4264 = vmatprep.subr.mxu0 %v4211
    %4265 = vmatpush2.msra.mxu0 %v4210
    %4266 = vmatprep.subr.mxu0 %v4209
    %4267 = vmatpush2.msra.mxu0 %v4208
    %4268 = vmatprep.subr.mxu0 %v4207
    %4269 = vmatpush2.msra.mxu0 %v4206
    %4270 = vmatprep.subr.mxu0 %v4205
    %4271 = vmatpush2.msra.mxu0 %v4204
    %4272 = vmatprep.subr.mxu0 %v4203
    %4273 = vmatpush2.msra.mxu0 %v4202
    %4274 = vmatprep.subr.mxu0 %v4201
    %4275 = vmatpush2.msra.mxu0 %v4200
    %4276 = vmatprep.subr.mxu0 %v4199
    %4277 = vmatpush2.msra.mxu0 %v4198
    %4278 = vmatprep.subr.mxu0 %v4197
    %4279 = vmatpush2.msra.mxu0 %v4196
    %4280 = vmatprep.subr.mxu0 %v4195
    %4281 = vmatpush2.msra.mxu0 %v4194
    %4282 = vmatprep.subr.mxu0 %v4193
    %4283 = vmatpush2.msra.mxu0 %v4192
    %4284 = vmatprep.subr.mxu0 %v4191
    %4285 = vmatpush2.msra.mxu0 %v4190
    %4286 = vmatprep.subr.mxu0 %v4189
    %4287 = vmatpush2.msra.mxu0 %v4188
    %4288 = vmatprep.subr.mxu0 %v4187
    %4289 = vmatpush2.msra.mxu0 %v4186
    %4290 = vmatprep.subr.mxu0 %v4185
    %4291 = vmatpush2.msra.mxu0 %v4184
    %4292 = vmatprep.mubr.f32.mxu0 %v885
    %4293 = vmatmul.mubr.f32.gmra.mxu0 %v884
    %v4294 = vpop.f32.mrf.mxu0
    %v4295 = vadd.f32 %v4221, %v4294
    %v4296 = vpop.f32.mrf.mxu0
    %v4297 = vadd.f32 %v4225, %v4296
    %4298 = vdwg.mxu0
    %v4299 = vmax.f32 %v4295, 0.0
    %v4300 = vmax.f32 %v4297, 0.0
    %v4301 = vld [vmem:[%s41] sm:$0xff]
    %v4302 = vld [vmem:[%s41 + $0x8] sm:$0xff]
    %v4303 = vld [vmem:[%s41 + $0x10] sm:$0xff]
    %v4304 = vld [vmem:[%s41 + $0x18] sm:$0xff]
    %v4305 = vld [vmem:[%s41 + $0x20] sm:$0xff]
    %v4306 = vld [vmem:[%s41 + $0x28] sm:$0xff]
    %v4307 = vld [vmem:[%s41 + $0x30] sm:$0xff]
    %v4308 = vld [vmem:[%s41 + $0x38] sm:$0xff]
    %v4309 = vld [vmem:[%s41 + $0x40] sm:$0xff]
    %v4310 = vld [vmem:[%s41 + $0x48] sm:$0xff]
    %v4311 = vld [vmem:[%s41 + $0x50] sm:$0xff]
    %v4312 = vld [vmem:[%s41 + $0x58] sm:$0xff]
    %v4313 = vld [vmem:[%s41 + $0x60] sm:$0xff]
    %v4314 = vld [vmem:[%s41 + $0x68] sm:$0xff]
    %v4315 = vld [vmem:[%s41 + $0x70] sm:$0xff]
    %v4316 = vld [vmem:[%s41 + $0x78] sm:$0xff]
    %v4317 = vld [vmem:[%s41 + $0x80] sm:$0xff]
    %v4318 = vld [vmem:[%s41 + $0x88] sm:$0xff]
    %v4319 = vld [vmem:[%s41 + $0x90] sm:$0xff]
    %v4320 = vld [vmem:[%s41 + $0x98] sm:$0xff]
    %v4321 = vld [vmem:[%s41 + $0xa0] sm:$0xff]
    %v4322 = vld [vmem:[%s41 + $0xa8] sm:$0xff]
    %v4323 = vld [vmem:[%s41 + $0xb0] sm:$0xff]
    %v4324 = vld [vmem:[%s41 + $0xb8] sm:$0xff]
    %v4325 = vld [vmem:[%s41 + $0xc0] sm:$0xff]
    %v4326 = vld [vmem:[%s41 + $0xc8] sm:$0xff]
    %v4327 = vld [vmem:[%s41 + $0xd0] sm:$0xff]
    %v4328 = vld [vmem:[%s41 + $0xd8] sm:$0xff]
    %v4329 = vld [vmem:[%s41 + $0xe0] sm:$0xff]
    %v4330 = vld [vmem:[%s41 + $0xe8] sm:$0xff]
    %v4331 = vld [vmem:[%s41 + $0xf0] sm:$0xff]
    %v4332 = vld [vmem:[%s41 + $0xf8] sm:$0xff]
    %v4333 = vunpack.c.l.bf16 %v4301
    %v4334 = vunpack.c.h.bf16 %v4301
    %v4335 = vunpack.c.l.bf16 %v4302
    %v4336 = vunpack.c.h.bf16 %v4302
    %v4337 = vunpack.c.l.bf16 %v4303
    %v4338 = vunpack.c.h.bf16 %v4303
    %v4339 = vunpack.c.l.bf16 %v4304
    %v4340 = vunpack.c.h.bf16 %v4304
    %v4341 = vunpack.c.l.bf16 %v4305
    %v4342 = vunpack.c.h.bf16 %v4305
    %v4343 = vunpack.c.l.bf16 %v4306
    %v4344 = vunpack.c.h.bf16 %v4306
    %v4345 = vunpack.c.l.bf16 %v4307
    %v4346 = vunpack.c.h.bf16 %v4307
    %v4347 = vunpack.c.l.bf16 %v4308
    %v4348 = vunpack.c.h.bf16 %v4308
    %v4349 = vunpack.c.l.bf16 %v4309
    %v4350 = vunpack.c.h.bf16 %v4309
    %v4351 = vunpack.c.l.bf16 %v4310
    %v4352 = vunpack.c.h.bf16 %v4310
    %v4353 = vunpack.c.l.bf16 %v4311
    %v4354 = vunpack.c.h.bf16 %v4311
    %v4355 = vunpack.c.l.bf16 %v4312
    %v4356 = vunpack.c.h.bf16 %v4312
    %v4357 = vunpack.c.l.bf16 %v4313
    %v4358 = vunpack.c.h.bf16 %v4313
    %v4359 = vunpack.c.l.bf16 %v4314
    %v4360 = vunpack.c.h.bf16 %v4314
    %v4361 = vunpack.c.l.bf16 %v4315
    %v4362 = vunpack.c.h.bf16 %v4315
    %v4363 = vunpack.c.l.bf16 %v4316
    %v4364 = vunpack.c.h.bf16 %v4316
    %v4365 = vunpack.c.l.bf16 %v4317
    %v4366 = vunpack.c.h.bf16 %v4317
    %v4367 = vunpack.c.l.bf16 %v4318
    %v4368 = vunpack.c.h.bf16 %v4318
    %v4369 = vunpack.c.l.bf16 %v4319
    %v4370 = vunpack.c.h.bf16 %v4319
    %v4371 = vunpack.c.l.bf16 %v4320
    %v4372 = vunpack.c.h.bf16 %v4320
    %v4373 = vunpack.c.l.bf16 %v4321
    %v4374 = vunpack.c.h.bf16 %v4321
    %v4375 = vunpack.c.l.bf16 %v4322
    %v4376 = vunpack.c.h.bf16 %v4322
    %v4377 = vunpack.c.l.bf16 %v4323
    %v4378 = vunpack.c.h.bf16 %v4323
    %v4379 = vunpack.c.l.bf16 %v4324
    %v4380 = vunpack.c.h.bf16 %v4324
    %v4381 = vunpack.c.l.bf16 %v4325
    %v4382 = vunpack.c.h.bf16 %v4325
    %v4383 = vunpack.c.l.bf16 %v4326
    %v4384 = vunpack.c.h.bf16 %v4326
    %v4385 = vunpack.c.l.bf16 %v4327
    %v4386 = vunpack.c.h.bf16 %v4327
    %v4387 = vunpack.c.l.bf16 %v4328
    %v4388 = vunpack.c.h.bf16 %v4328
    %v4389 = vunpack.c.l.bf16 %v4329
    %v4390 = vunpack.c.h.bf16 %v4329
    %v4391 = vunpack.c.l.bf16 %v4330
    %v4392 = vunpack.c.h.bf16 %v4330
    %v4393 = vunpack.c.l.bf16 %v4331
    %v4394 = vunpack.c.h.bf16 %v4331
    %v4395 = vunpack.c.l.bf16 %v4332
    %v4396 = vunpack.c.h.bf16 %v4332
    %v4397 = vld [vmem:[%s43] sm:$0x3]
    %v4399 = vlaneseq
    %v4400 = vshrl.u32 %v4399, 7
    %v4401 = vsub.s32 0, %v4400
    %v4402 = vrot.slane %v4397, %v4401
    %v4403 = vlaneseq
    %v4404 = vshrl.u32 %v4403, 7
    %v4405 = vsub.s32 1, %v4404
    %v4406 = vrot.slane %v4397, %v4405
    %4409 = vmatprep.subr.mxu0 %v4364
    %4410 = vmatpush1.msra.mxu0 %v4363
    %4411 = vmatprep.subr.mxu0 %v4362
    %4412 = vmatpush1.msra.mxu0 %v4361
    %4413 = vmatprep.subr.mxu0 %v4360
    %4414 = vmatpush1.msra.mxu0 %v4359
    %4415 = vmatprep.subr.mxu0 %v4358
    %4416 = vmatpush1.msra.mxu0 %v4357
    %4417 = vmatprep.subr.mxu0 %v4356
    %4418 = vmatpush1.msra.mxu0 %v4355
    %4419 = vmatprep.subr.mxu0 %v4354
    %4420 = vmatpush1.msra.mxu0 %v4353
    %4421 = vmatprep.subr.mxu0 %v4352
    %4422 = vmatpush1.msra.mxu0 %v4351
    %4423 = vmatprep.subr.mxu0 %v4350
    %4424 = vmatpush1.msra.mxu0 %v4349
    %4425 = vmatprep.subr.mxu0 %v4348
    %4426 = vmatpush1.msra.mxu0 %v4347
    %4427 = vmatprep.subr.mxu0 %v4346
    %4428 = vmatpush1.msra.mxu0 %v4345
    %4429 = vmatprep.subr.mxu0 %v4344
    %4430 = vmatpush1.msra.mxu0 %v4343
    %4431 = vmatprep.subr.mxu0 %v4342
    %4432 = vmatpush1.msra.mxu0 %v4341
    %4433 = vmatprep.subr.mxu0 %v4340
    %4434 = vmatpush1.msra.mxu0 %v4339
    %4435 = vmatprep.subr.mxu0 %v4338
    %4436 = vmatpush1.msra.mxu0 %v4337
    %4437 = vmatprep.subr.mxu0 %v4336
    %4438 = vmatpush1.msra.mxu0 %v4335
    %4439 = vmatprep.subr.mxu0 %v4334
    %4440 = vmatpush1.msra.mxu0 %v4333
    %4441 = vmatprep.subr.mxu0 %v4396
    %4442 = vmatpush2.msra.mxu0 %v4395
    %4443 = vmatprep.subr.mxu0 %v4394
    %4444 = vmatpush2.msra.mxu0 %v4393
    %4445 = vmatprep.subr.mxu0 %v4392
    %4446 = vmatpush2.msra.mxu0 %v4391
    %4447 = vmatprep.subr.mxu0 %v4390
    %4448 = vmatpush2.msra.mxu0 %v4389
    %4449 = vmatprep.subr.mxu0 %v4388
    %4450 = vmatpush2.msra.mxu0 %v4387
    %4451 = vmatprep.subr.mxu0 %v4386
    %4452 = vmatpush2.msra.mxu0 %v4385
    %4453 = vmatprep.subr.mxu0 %v4384
    %4454 = vmatpush2.msra.mxu0 %v4383
    %4455 = vmatprep.subr.mxu0 %v4382
    %4456 = vmatpush2.msra.mxu0 %v4381
    %4457 = vmatprep.subr.mxu0 %v4380
    %4458 = vmatpush2.msra.mxu0 %v4379
    %4459 = vmatprep.subr.mxu0 %v4378
    %4460 = vmatpush2.msra.mxu0 %v4377
    %4461 = vmatprep.subr.mxu0 %v4376
    %4462 = vmatpush2.msra.mxu0 %v4375
    %4463 = vmatprep.subr.mxu0 %v4374
    %4464 = vmatpush2.msra.mxu0 %v4373
    %4465 = vmatprep.subr.mxu0 %v4372
    %4466 = vmatpush2.msra.mxu0 %v4371
    %4467 = vmatprep.subr.mxu0 %v4370
    %4468 = vmatpush2.msra.mxu0 %v4369
    %4469 = vmatprep.subr.mxu0 %v4368
    %4470 = vmatpush2.msra.mxu0 %v4367
    %4471 = vmatprep.subr.mxu0 %v4366
    %4472 = vmatpush2.msra.mxu0 %v4365
    %4473 = vmatprep.mubr.f32.mxu0 %v4117
    %4474 = vmatmul.mubr.f32.gmra.mxu0 %v4116
    %v4475 = vpop.f32.mrf.mxu0
    %v4476 = vadd.f32 %v4402, %v4475
    %v4477 = vpop.f32.mrf.mxu0
    %v4478 = vadd.f32 %v4406, %v4477
    %4479 = vdwg.mxu0
    %v4480 = vmax.f32 %v4476, 0.0
    %v4481 = vmax.f32 %v4478, 0.0
    %v4482 = vadd.f32 %v4299, %v4480
    %v4483 = vadd.f32 %v4300, %v4481
    %v4484 = vtanh.pop %v4482
    %v4485 = vtanh.pop %v4483
    %v4486 = vmul.f32 %v4484, %v4118
    %v4487 = vmul.f32 %v4485, %v4119
    %v4488 = vld [vmem:[%s51] sm:$0xff]
    %v4489 = vld [vmem:[%s51 + $0x8] sm:$0xff]
    %v4490 = vld [vmem:[%s51 + $0x10] sm:$0xff]
    %v4491 = vld [vmem:[%s51 + $0x18] sm:$0xff]
    %v4492 = vld [vmem:[%s51 + $0x20] sm:$0xff]
    %v4493 = vld [vmem:[%s51 + $0x28] sm:$0xff]
    %v4494 = vld [vmem:[%s51 + $0x30] sm:$0xff]
    %v4495 = vld [vmem:[%s51 + $0x38] sm:$0xff]
    %v4496 = vld [vmem:[%s51 + $0x40] sm:$0xff]
    %v4497 = vld [vmem:[%s51 + $0x48] sm:$0xff]
    %v4498 = vld [vmem:[%s51 + $0x50] sm:$0xff]
    %v4499 = vld [vmem:[%s51 + $0x58] sm:$0xff]
    %v4500 = vld [vmem:[%s51 + $0x60] sm:$0xff]
    %v4501 = vld [vmem:[%s51 + $0x68] sm:$0xff]
    %v4502 = vld [vmem:[%s51 + $0x70] sm:$0xff]
    %v4503 = vld [vmem:[%s51 + $0x78] sm:$0xff]
    %v4504 = vld [vmem:[%s51 + $0x80] sm:$0xff]
    %v4505 = vld [vmem:[%s51 + $0x88] sm:$0xff]
    %v4506 = vld [vmem:[%s51 + $0x90] sm:$0xff]
    %v4507 = vld [vmem:[%s51 + $0x98] sm:$0xff]
    %v4508 = vld [vmem:[%s51 + $0xa0] sm:$0xff]
    %v4509 = vld [vmem:[%s51 + $0xa8] sm:$0xff]
    %v4510 = vld [vmem:[%s51 + $0xb0] sm:$0xff]
    %v4511 = vld [vmem:[%s51 + $0xb8] sm:$0xff]
    %v4512 = vld [vmem:[%s51 + $0xc0] sm:$0xff]
    %v4513 = vld [vmem:[%s51 + $0xc8] sm:$0xff]
    %v4514 = vld [vmem:[%s51 + $0xd0] sm:$0xff]
    %v4515 = vld [vmem:[%s51 + $0xd8] sm:$0xff]
    %v4516 = vld [vmem:[%s51 + $0xe0] sm:$0xff]
    %v4517 = vld [vmem:[%s51 + $0xe8] sm:$0xff]
    %v4518 = vld [vmem:[%s51 + $0xf0] sm:$0xff]
    %v4519 = vld [vmem:[%s51 + $0xf8] sm:$0xff]
    %v4520 = vunpack.c.l.bf16 %v4488
    %v4521 = vunpack.c.h.bf16 %v4488
    %v4522 = vunpack.c.l.bf16 %v4489
    %v4523 = vunpack.c.h.bf16 %v4489
    %v4524 = vunpack.c.l.bf16 %v4490
    %v4525 = vunpack.c.h.bf16 %v4490
    %v4526 = vunpack.c.l.bf16 %v4491
    %v4527 = vunpack.c.h.bf16 %v4491
    %v4528 = vunpack.c.l.bf16 %v4492
    %v4529 = vunpack.c.h.bf16 %v4492
    %v4530 = vunpack.c.l.bf16 %v4493
    %v4531 = vunpack.c.h.bf16 %v4493
    %v4532 = vunpack.c.l.bf16 %v4494
    %v4533 = vunpack.c.h.bf16 %v4494
    %v4534 = vunpack.c.l.bf16 %v4495
    %v4535 = vunpack.c.h.bf16 %v4495
    %v4536 = vunpack.c.l.bf16 %v4496
    %v4537 = vunpack.c.h.bf16 %v4496
    %v4538 = vunpack.c.l.bf16 %v4497
    %v4539 = vunpack.c.h.bf16 %v4497
    %v4540 = vunpack.c.l.bf16 %v4498
    %v4541 = vunpack.c.h.bf16 %v4498
    %v4542 = vunpack.c.l.bf16 %v4499
    %v4543 = vunpack.c.h.bf16 %v4499
    %v4544 = vunpack.c.l.bf16 %v4500
    %v4545 = vunpack.c.h.bf16 %v4500
    %v4546 = vunpack.c.l.bf16 %v4501
    %v4547 = vunpack.c.h.bf16 %v4501
    %v4548 = vunpack.c.l.bf16 %v4502
    %v4549 = vunpack.c.h.bf16 %v4502
    %v4550 = vunpack.c.l.bf16 %v4503
    %v4551 = vunpack.c.h.bf16 %v4503
    %v4552 = vunpack.c.l.bf16 %v4504
    %v4553 = vunpack.c.h.bf16 %v4504
    %v4554 = vunpack.c.l.bf16 %v4505
    %v4555 = vunpack.c.h.bf16 %v4505
    %v4556 = vunpack.c.l.bf16 %v4506
    %v4557 = vunpack.c.h.bf16 %v4506
    %v4558 = vunpack.c.l.bf16 %v4507
    %v4559 = vunpack.c.h.bf16 %v4507
    %v4560 = vunpack.c.l.bf16 %v4508
    %v4561 = vunpack.c.h.bf16 %v4508
    %v4562 = vunpack.c.l.bf16 %v4509
    %v4563 = vunpack.c.h.bf16 %v4509
    %v4564 = vunpack.c.l.bf16 %v4510
    %v4565 = vunpack.c.h.bf16 %v4510
    %v4566 = vunpack.c.l.bf16 %v4511
    %v4567 = vunpack.c.h.bf16 %v4511
    %v4568 = vunpack.c.l.bf16 %v4512
    %v4569 = vunpack.c.h.bf16 %v4512
    %v4570 = vunpack.c.l.bf16 %v4513
    %v4571 = vunpack.c.h.bf16 %v4513
    %v4572 = vunpack.c.l.bf16 %v4514
    %v4573 = vunpack.c.h.bf16 %v4514
    %v4574 = vunpack.c.l.bf16 %v4515
    %v4575 = vunpack.c.h.bf16 %v4515
    %v4576 = vunpack.c.l.bf16 %v4516
    %v4577 = vunpack.c.h.bf16 %v4516
    %v4578 = vunpack.c.l.bf16 %v4517
    %v4579 = vunpack.c.h.bf16 %v4517
    %v4580 = vunpack.c.l.bf16 %v4518
    %v4581 = vunpack.c.h.bf16 %v4518
    %v4582 = vunpack.c.l.bf16 %v4519
    %v4583 = vunpack.c.h.bf16 %v4519
    %v4584 = vld [vmem:[%s53] sm:$0xff]
    %v4585 = vld [vmem:[%s53 + $0x8] sm:$0xff]
    %v4586 = vld [vmem:[%s53 + $0x10] sm:$0xff]
    %v4587 = vld [vmem:[%s53 + $0x18] sm:$0xff]
    %v4588 = vld [vmem:[%s53 + $0x20] sm:$0xff]
    %v4589 = vld [vmem:[%s53 + $0x28] sm:$0xff]
    %v4590 = vld [vmem:[%s53 + $0x30] sm:$0xff]
    %v4591 = vld [vmem:[%s53 + $0x38] sm:$0xff]
    %v4592 = vld [vmem:[%s53 + $0x40] sm:$0xff]
    %v4593 = vld [vmem:[%s53 + $0x48] sm:$0xff]
    %v4594 = vld [vmem:[%s53 + $0x50] sm:$0xff]
    %v4595 = vld [vmem:[%s53 + $0x58] sm:$0xff]
    %v4596 = vld [vmem:[%s53 + $0x60] sm:$0xff]
    %v4597 = vld [vmem:[%s53 + $0x68] sm:$0xff]
    %v4598 = vld [vmem:[%s53 + $0x70] sm:$0xff]
    %v4599 = vld [vmem:[%s53 + $0x78] sm:$0xff]
    %v4600 = vld [vmem:[%s53 + $0x80] sm:$0xff]
    %v4601 = vld [vmem:[%s53 + $0x88] sm:$0xff]
    %v4602 = vld [vmem:[%s53 + $0x90] sm:$0xff]
    %v4603 = vld [vmem:[%s53 + $0x98] sm:$0xff]
    %v4604 = vld [vmem:[%s53 + $0xa0] sm:$0xff]
    %v4605 = vld [vmem:[%s53 + $0xa8] sm:$0xff]
    %v4606 = vld [vmem:[%s53 + $0xb0] sm:$0xff]
    %v4607 = vld [vmem:[%s53 + $0xb8] sm:$0xff]
    %v4608 = vld [vmem:[%s53 + $0xc0] sm:$0xff]
    %v4609 = vld [vmem:[%s53 + $0xc8] sm:$0xff]
    %v4610 = vld [vmem:[%s53 + $0xd0] sm:$0xff]
    %v4611 = vld [vmem:[%s53 + $0xd8] sm:$0xff]
    %v4612 = vld [vmem:[%s53 + $0xe0] sm:$0xff]
    %v4613 = vld [vmem:[%s53 + $0xe8] sm:$0xff]
    %v4614 = vld [vmem:[%s53 + $0xf0] sm:$0xff]
    %v4615 = vld [vmem:[%s53 + $0xf8] sm:$0xff]
    %v4616 = vunpack.c.l.bf16 %v4584
    %v4617 = vunpack.c.h.bf16 %v4584
    %v4618 = vunpack.c.l.bf16 %v4585
    %v4619 = vunpack.c.h.bf16 %v4585
    %v4620 = vunpack.c.l.bf16 %v4586
    %v4621 = vunpack.c.h.bf16 %v4586
    %v4622 = vunpack.c.l.bf16 %v4587
    %v4623 = vunpack.c.h.bf16 %v4587
    %v4624 = vunpack.c.l.bf16 %v4588
    %v4625 = vunpack.c.h.bf16 %v4588
    %v4626 = vunpack.c.l.bf16 %v4589
    %v4627 = vunpack.c.h.bf16 %v4589
    %v4628 = vunpack.c.l.bf16 %v4590
    %v4629 = vunpack.c.h.bf16 %v4590
    %v4630 = vunpack.c.l.bf16 %v4591
    %v4631 = vunpack.c.h.bf16 %v4591
    %v4632 = vunpack.c.l.bf16 %v4592
    %v4633 = vunpack.c.h.bf16 %v4592
    %v4634 = vunpack.c.l.bf16 %v4593
    %v4635 = vunpack.c.h.bf16 %v4593
    %v4636 = vunpack.c.l.bf16 %v4594
    %v4637 = vunpack.c.h.bf16 %v4594
    %v4638 = vunpack.c.l.bf16 %v4595
    %v4639 = vunpack.c.h.bf16 %v4595
    %v4640 = vunpack.c.l.bf16 %v4596
    %v4641 = vunpack.c.h.bf16 %v4596
    %v4642 = vunpack.c.l.bf16 %v4597
    %v4643 = vunpack.c.h.bf16 %v4597
    %v4644 = vunpack.c.l.bf16 %v4598
    %v4645 = vunpack.c.h.bf16 %v4598
    %v4646 = vunpack.c.l.bf16 %v4599
    %v4647 = vunpack.c.h.bf16 %v4599
    %v4648 = vunpack.c.l.bf16 %v4600
    %v4649 = vunpack.c.h.bf16 %v4600
    %v4650 = vunpack.c.l.bf16 %v4601
    %v4651 = vunpack.c.h.bf16 %v4601
    %v4652 = vunpack.c.l.bf16 %v4602
    %v4653 = vunpack.c.h.bf16 %v4602
    %v4654 = vunpack.c.l.bf16 %v4603
    %v4655 = vunpack.c.h.bf16 %v4603
    %v4656 = vunpack.c.l.bf16 %v4604
    %v4657 = vunpack.c.h.bf16 %v4604
    %v4658 = vunpack.c.l.bf16 %v4605
    %v4659 = vunpack.c.h.bf16 %v4605
    %v4660 = vunpack.c.l.bf16 %v4606
    %v4661 = vunpack.c.h.bf16 %v4606
    %v4662 = vunpack.c.l.bf16 %v4607
    %v4663 = vunpack.c.h.bf16 %v4607
    %v4664 = vunpack.c.l.bf16 %v4608
    %v4665 = vunpack.c.h.bf16 %v4608
    %v4666 = vunpack.c.l.bf16 %v4609
    %v4667 = vunpack.c.h.bf16 %v4609
    %v4668 = vunpack.c.l.bf16 %v4610
    %v4669 = vunpack.c.h.bf16 %v4610
    %v4670 = vunpack.c.l.bf16 %v4611
    %v4671 = vunpack.c.h.bf16 %v4611
    %v4672 = vunpack.c.l.bf16 %v4612
    %v4673 = vunpack.c.h.bf16 %v4612
    %v4674 = vunpack.c.l.bf16 %v4613
    %v4675 = vunpack.c.h.bf16 %v4613
    %v4676 = vunpack.c.l.bf16 %v4614
    %v4677 = vunpack.c.h.bf16 %v4614
    %v4678 = vunpack.c.l.bf16 %v4615
    %v4679 = vunpack.c.h.bf16 %v4615
    %4680 = vmatprep.subr.mxu0 %v4647
    %4681 = vmatpush1.msra.mxu0 %v4646
    %4682 = vmatprep.subr.mxu0 %v4645
    %4683 = vmatpush1.msra.mxu0 %v4644
    %4684 = vmatprep.subr.mxu0 %v4643
    %4685 = vmatpush1.msra.mxu0 %v4642
    %4686 = vmatprep.subr.mxu0 %v4641
    %4687 = vmatpush1.msra.mxu0 %v4640
    %4688 = vmatprep.subr.mxu0 %v4639
    %4689 = vmatpush1.msra.mxu0 %v4638
    %4690 = vmatprep.subr.mxu0 %v4637
    %4691 = vmatpush1.msra.mxu0 %v4636
    %4692 = vmatprep.subr.mxu0 %v4635
    %4693 = vmatpush1.msra.mxu0 %v4634
    %4694 = vmatprep.subr.mxu0 %v4633
    %4695 = vmatpush1.msra.mxu0 %v4632
    %4696 = vmatprep.subr.mxu0 %v4631
    %4697 = vmatpush1.msra.mxu0 %v4630
    %4698 = vmatprep.subr.mxu0 %v4629
    %4699 = vmatpush1.msra.mxu0 %v4628
    %4700 = vmatprep.subr.mxu0 %v4627
    %4701 = vmatpush1.msra.mxu0 %v4626
    %4702 = vmatprep.subr.mxu0 %v4625
    %4703 = vmatpush1.msra.mxu0 %v4624
    %4704 = vmatprep.subr.mxu0 %v4623
    %4705 = vmatpush1.msra.mxu0 %v4622
    %4706 = vmatprep.subr.mxu0 %v4621
    %4707 = vmatpush1.msra.mxu0 %v4620
    %4708 = vmatprep.subr.mxu0 %v4619
    %4709 = vmatpush1.msra.mxu0 %v4618
    %4710 = vmatprep.subr.mxu0 %v4617
    %4711 = vmatpush1.msra.mxu0 %v4616
    %4712 = vmatprep.subr.mxu0 %v4679
    %4713 = vmatpush2.msra.mxu0 %v4678
    %4714 = vmatprep.subr.mxu0 %v4677
    %4715 = vmatpush2.msra.mxu0 %v4676
    %4716 = vmatprep.subr.mxu0 %v4675
    %4717 = vmatpush2.msra.mxu0 %v4674
    %4718 = vmatprep.subr.mxu0 %v4673
    %4719 = vmatpush2.msra.mxu0 %v4672
    %4720 = vmatprep.subr.mxu0 %v4671
    %4721 = vmatpush2.msra.mxu0 %v4670
    %4722 = vmatprep.subr.mxu0 %v4669
    %4723 = vmatpush2.msra.mxu0 %v4668
    %4724 = vmatprep.subr.mxu0 %v4667
    %4725 = vmatpush2.msra.mxu0 %v4666
    %4726 = vmatprep.subr.mxu0 %v4665
    %4727 = vmatpush2.msra.mxu0 %v4664
    %4728 = vmatprep.subr.mxu0 %v4663
    %4729 = vmatpush2.msra.mxu0 %v4662
    %4730 = vmatprep.subr.mxu0 %v4661
    %4731 = vmatpush2.msra.mxu0 %v4660
    %4732 = vmatprep.subr.mxu0 %v4659
    %4733 = vmatpush2.msra.mxu0 %v4658
    %4734 = vmatprep.subr.mxu0 %v4657
    %4735 = vmatpush2.msra.mxu0 %v4656
    %4736 = vmatprep.subr.mxu0 %v4655
    %4737 = vmatpush2.msra.mxu0 %v4654
    %4738 = vmatprep.subr.mxu0 %v4653
    %4739 = vmatpush2.msra.mxu0 %v4652
    %4740 = vmatprep.subr.mxu0 %v4651
    %4741 = vmatpush2.msra.mxu0 %v4650
    %4742 = vmatprep.subr.mxu0 %v4649
    %4743 = vmatpush2.msra.mxu0 %v4648
    %4744 = vmatprep.mubr.f32.mxu0 %v3421
    %4745 = vmatmul.mubr.f32.gmra.mxu0 %v3420
    %v4746 = vpop.f32.mrf.mxu0
    %v4747 = vadd.f32 0.0, %v4746
    %v4748 = vpop.f32.mrf.mxu0
    %v4749 = vadd.f32 0.0, %v4748
    %4750 = vdwg.mxu0
    %4751 = vmatprep.subr.mxu0 %v4551
    %4752 = vmatpush1.msra.mxu0 %v4550
    %4753 = vmatprep.subr.mxu0 %v4549
    %4754 = vmatpush1.msra.mxu0 %v4548
    %4755 = vmatprep.subr.mxu0 %v4547
    %4756 = vmatpush1.msra.mxu0 %v4546
    %4757 = vmatprep.subr.mxu0 %v4545
    %4758 = vmatpush1.msra.mxu0 %v4544
    %4759 = vmatprep.subr.mxu0 %v4543
    %4760 = vmatpush1.msra.mxu0 %v4542
    %4761 = vmatprep.subr.mxu0 %v4541
    %4762 = vmatpush1.msra.mxu0 %v4540
    %4763 = vmatprep.subr.mxu0 %v4539
    %4764 = vmatpush1.msra.mxu0 %v4538
    %4765 = vmatprep.subr.mxu0 %v4537
    %4766 = vmatpush1.msra.mxu0 %v4536
    %4767 = vmatprep.subr.mxu0 %v4535
    %4768 = vmatpush1.msra.mxu0 %v4534
    %4769 = vmatprep.subr.mxu0 %v4533
    %4770 = vmatpush1.msra.mxu0 %v4532
    %4771 = vmatprep.subr.mxu0 %v4531
    %4772 = vmatpush1.msra.mxu0 %v4530
    %4773 = vmatprep.subr.mxu0 %v4529
    %4774 = vmatpush1.msra.mxu0 %v4528
    %4775 = vmatprep.subr.mxu0 %v4527
    %4776 = vmatpush1.msra.mxu0 %v4526
    %4777 = vmatprep.subr.mxu0 %v4525
    %4778 = vmatpush1.msra.mxu0 %v4524
    %4779 = vmatprep.subr.mxu0 %v4523
    %4780 = vmatpush1.msra.mxu0 %v4522
    %4781 = vmatprep.subr.mxu0 %v4521
    %4782 = vmatpush1.msra.mxu0 %v4520
    %4783 = vmatprep.subr.mxu0 %v4583
    %4784 = vmatpush2.msra.mxu0 %v4582
    %4785 = vmatprep.subr.mxu0 %v4581
    %4786 = vmatpush2.msra.mxu0 %v4580
    %4787 = vmatprep.subr.mxu0 %v4579
    %4788 = vmatpush2.msra.mxu0 %v4578
    %4789 = vmatprep.subr.mxu0 %v4577
    %4790 = vmatpush2.msra.mxu0 %v4576
    %4791 = vmatprep.subr.mxu0 %v4575
    %4792 = vmatpush2.msra.mxu0 %v4574
    %4793 = vmatprep.subr.mxu0 %v4573
    %4794 = vmatpush2.msra.mxu0 %v4572
    %4795 = vmatprep.subr.mxu0 %v4571
    %4796 = vmatpush2.msra.mxu0 %v4570
    %4797 = vmatprep.subr.mxu0 %v4569
    %4798 = vmatpush2.msra.mxu0 %v4568
    %4799 = vmatprep.subr.mxu0 %v4567
    %4800 = vmatpush2.msra.mxu0 %v4566
    %4801 = vmatprep.subr.mxu0 %v4565
    %4802 = vmatpush2.msra.mxu0 %v4564
    %4803 = vmatprep.subr.mxu0 %v4563
    %4804 = vmatpush2.msra.mxu0 %v4562
    %4805 = vmatprep.subr.mxu0 %v4561
    %4806 = vmatpush2.msra.mxu0 %v4560
    %4807 = vmatprep.subr.mxu0 %v4559
    %4808 = vmatpush2.msra.mxu0 %v4558
    %4809 = vmatprep.subr.mxu0 %v4557
    %4810 = vmatpush2.msra.mxu0 %v4556
    %4811 = vmatprep.subr.mxu0 %v4555
    %4812 = vmatpush2.msra.mxu0 %v4554
    %4813 = vmatprep.subr.mxu0 %v4553
    %4814 = vmatpush2.msra.mxu0 %v4552
    %4815 = vmatprep.mubr.f32.mxu0 %v4487
    %4816 = vmatmul.mubr.f32.gmra.mxu0 %v4486
    %v4817 = vpop.f32.mrf.mxu0
    %v4818 = vadd.f32 %v4747, %v4817
    %v4819 = vpop.f32.mrf.mxu0
    %v4820 = vadd.f32 %v4749, %v4819
    %4821 = vdwg.mxu0
    %v4822 = vld [vmem:[%s55] sm:$0x3]
    %v4824 = vlaneseq
    %v4825 = vshrl.u32 %v4824, 7
    %v4826 = vsub.s32 0, %v4825
    %v4827 = vrot.slane %v4822, %v4826
    %v4828 = vlaneseq
    %v4829 = vshrl.u32 %v4828, 7
    %v4830 = vsub.s32 1, %v4829
    %v4831 = vrot.slane %v4822, %v4830
    %v4834 = vadd.f32 %v4818, %v4827
    %v4835 = vadd.f32 %v4820, %v4831
    %v4836 = vmax.f32 %v4834, 0.0
    %v4837 = vmax.f32 %v4835, 0.0
    %v4838 = vld [vmem:[%s57] sm:$0xf]
    %v4839 = vld [vmem:[%s57 + $0x4] sm:$0xf]
    %v4840 = vld [vmem:[%s57 + $0x8] sm:$0xf]
    %v4841 = vld [vmem:[%s57 + $0xc] sm:$0xf]
    %v4842 = vld [vmem:[%s57 + $0x10] sm:$0xf]
    %v4843 = vld [vmem:[%s57 + $0x14] sm:$0xf]
    %v4844 = vld [vmem:[%s57 + $0x18] sm:$0xf]
    %v4845 = vld [vmem:[%s57 + $0x1c] sm:$0xf]
    %v4846 = vld [vmem:[%s57 + $0x20] sm:$0xf]
    %v4847 = vld [vmem:[%s57 + $0x24] sm:$0xf]
    %v4848 = vld [vmem:[%s57 + $0x28] sm:$0xf]
    %v4849 = vld [vmem:[%s57 + $0x2c] sm:$0xf]
    %v4850 = vld [vmem:[%s57 + $0x30] sm:$0xf]
    %v4851 = vld [vmem:[%s57 + $0x34] sm:$0xf]
    %v4852 = vld [vmem:[%s57 + $0x38] sm:$0xf]
    %v4853 = vld [vmem:[%s57 + $0x3c] sm:$0xf]
    %v4854 = vld [vmem:[%s57 + $0x40] sm:$0xf]
    %v4855 = vld [vmem:[%s57 + $0x44] sm:$0xf]
    %v4856 = vld [vmem:[%s57 + $0x48] sm:$0xf]
    %v4857 = vld [vmem:[%s57 + $0x4c] sm:$0xf]
    %v4858 = vld [vmem:[%s57 + $0x50] sm:$0xf]
    %v4859 = vld [vmem:[%s57 + $0x54] sm:$0xf]
    %v4860 = vld [vmem:[%s57 + $0x58] sm:$0xf]
    %v4861 = vld [vmem:[%s57 + $0x5c] sm:$0xf]
    %v4862 = vld [vmem:[%s57 + $0x60] sm:$0xf]
    %v4863 = vld [vmem:[%s57 + $0x64] sm:$0xf]
    %v4864 = vld [vmem:[%s57 + $0x68] sm:$0xf]
    %v4865 = vld [vmem:[%s57 + $0x6c] sm:$0xf]
    %v4866 = vld [vmem:[%s57 + $0x70] sm:$0xf]
    %v4867 = vld [vmem:[%s57 + $0x74] sm:$0xf]
    %v4868 = vld [vmem:[%s57 + $0x78] sm:$0xf]
    %v4869 = vld [vmem:[%s57 + $0x7c] sm:$0xf]
    %v4870 = vunpack.c.l.bf16 %v4838
    %v4871 = vunpack.c.l.bf16 %v4839
    %v4872 = vunpack.c.l.bf16 %v4840
    %v4873 = vunpack.c.l.bf16 %v4841
    %v4874 = vunpack.c.l.bf16 %v4842
    %v4875 = vunpack.c.l.bf16 %v4843
    %v4876 = vunpack.c.l.bf16 %v4844
    %v4877 = vunpack.c.l.bf16 %v4845
    %v4878 = vunpack.c.l.bf16 %v4846
    %v4879 = vunpack.c.l.bf16 %v4847
    %v4880 = vunpack.c.l.bf16 %v4848
    %v4881 = vunpack.c.l.bf16 %v4849
    %v4882 = vunpack.c.l.bf16 %v4850
    %v4883 = vunpack.c.l.bf16 %v4851
    %v4884 = vunpack.c.l.bf16 %v4852
    %v4885 = vunpack.c.l.bf16 %v4853
    %v4886 = vunpack.c.l.bf16 %v4854
    %v4887 = vunpack.c.l.bf16 %v4855
    %v4888 = vunpack.c.l.bf16 %v4856
    %v4889 = vunpack.c.l.bf16 %v4857
    %v4890 = vunpack.c.l.bf16 %v4858
    %v4891 = vunpack.c.l.bf16 %v4859
    %v4892 = vunpack.c.l.bf16 %v4860
    %v4893 = vunpack.c.l.bf16 %v4861
    %v4894 = vunpack.c.l.bf16 %v4862
    %v4895 = vunpack.c.l.bf16 %v4863
    %v4896 = vunpack.c.l.bf16 %v4864
    %v4897 = vunpack.c.l.bf16 %v4865
    %v4898 = vunpack.c.l.bf16 %v4866
    %v4899 = vunpack.c.l.bf16 %v4867
    %v4900 = vunpack.c.l.bf16 %v4868
    %v4901 = vunpack.c.l.bf16 %v4869
    %v4902 = vld [vmem:[%s59] sm:$0x1]
    %v4904 = vlaneseq
    %v4905 = vshrl.u32 %v4904, 7
    %v4906 = vsub.s32 0, %v4905
    %v4907 = vrot.slane %v4902, %v4906
    %4909 = vmatprep.subr.mxu0 0.0
    %4910 = vmatpush1.msra.mxu0 %v4885
    %4911 = vmatprep.subr.mxu0 0.0
    %4912 = vmatpush1.msra.mxu0 %v4884
    %4913 = vmatprep.subr.mxu0 0.0
    %4914 = vmatpush1.msra.mxu0 %v4883
    %4915 = vmatprep.subr.mxu0 0.0
    %4916 = vmatpush1.msra.mxu0 %v4882
    %4917 = vmatprep.subr.mxu0 0.0
    %4918 = vmatpush1.msra.mxu0 %v4881
    %4919 = vmatprep.subr.mxu0 0.0
    %4920 = vmatpush1.msra.mxu0 %v4880
    %4921 = vmatprep.subr.mxu0 0.0
    %4922 = vmatpush1.msra.mxu0 %v4879
    %4923 = vmatprep.subr.mxu0 0.0
    %4924 = vmatpush1.msra.mxu0 %v4878
    %4925 = vmatprep.subr.mxu0 0.0
    %4926 = vmatpush1.msra.mxu0 %v4877
    %4927 = vmatprep.subr.mxu0 0.0
    %4928 = vmatpush1.msra.mxu0 %v4876
    %4929 = vmatprep.subr.mxu0 0.0
    %4930 = vmatpush1.msra.mxu0 %v4875
    %4931 = vmatprep.subr.mxu0 0.0
    %4932 = vmatpush1.msra.mxu0 %v4874
    %4933 = vmatprep.subr.mxu0 0.0
    %4934 = vmatpush1.msra.mxu0 %v4873
    %4935 = vmatprep.subr.mxu0 0.0
    %4936 = vmatpush1.msra.mxu0 %v4872
    %4937 = vmatprep.subr.mxu0 0.0
    %4938 = vmatpush1.msra.mxu0 %v4871
    %4939 = vmatprep.subr.mxu0 0.0
    %4940 = vmatpush1.msra.mxu0 %v4870
    %4941 = vmatprep.subr.mxu0 0.0
    %4942 = vmatpush2.msra.mxu0 %v4901
    %4943 = vmatprep.subr.mxu0 0.0
    %4944 = vmatpush2.msra.mxu0 %v4900
    %4945 = vmatprep.subr.mxu0 0.0
    %4946 = vmatpush2.msra.mxu0 %v4899
    %4947 = vmatprep.subr.mxu0 0.0
    %4948 = vmatpush2.msra.mxu0 %v4898
    %4949 = vmatprep.subr.mxu0 0.0
    %4950 = vmatpush2.msra.mxu0 %v4897
    %4951 = vmatprep.subr.mxu0 0.0
    %4952 = vmatpush2.msra.mxu0 %v4896
    %4953 = vmatprep.subr.mxu0 0.0
    %4954 = vmatpush2.msra.mxu0 %v4895
    %4955 = vmatprep.subr.mxu0 0.0
    %4956 = vmatpush2.msra.mxu0 %v4894
    %4957 = vmatprep.subr.mxu0 0.0
    %4958 = vmatpush2.msra.mxu0 %v4893
    %4959 = vmatprep.subr.mxu0 0.0
    %4960 = vmatpush2.msra.mxu0 %v4892
    %4961 = vmatprep.subr.mxu0 0.0
    %4962 = vmatpush2.msra.mxu0 %v4891
    %4963 = vmatprep.subr.mxu0 0.0
    %4964 = vmatpush2.msra.mxu0 %v4890
    %4965 = vmatprep.subr.mxu0 0.0
    %4966 = vmatpush2.msra.mxu0 %v4889
    %4967 = vmatprep.subr.mxu0 0.0
    %4968 = vmatpush2.msra.mxu0 %v4888
    %4969 = vmatprep.subr.mxu0 0.0
    %4970 = vmatpush2.msra.mxu0 %v4887
    %4971 = vmatprep.subr.mxu0 0.0
    %4972 = vmatpush2.msra.mxu0 %v4886
    %4973 = vmatprep.mubr.f32.mxu0 %v4837
    %4974 = vmatmul.mubr.f32.gmra.mxu0 %v4836
    %v4975 = vpop.f32.mrf.mxu0
    %v4976 = vadd.f32 %v4907, %v4975
    %v4977 = vpop.f32.mrf.mxu0
    %4978 = vdwg.mxu0
    %v4979 = vmax.f32 %v4976, 0.0
    %v4980 = vld [vmem:[%s61] sm:$0xf]
    %v4981 = vld [vmem:[%s61 + $0x4] sm:$0xf]
    %v4982 = vld [vmem:[%s61 + $0x8] sm:$0xf]
    %v4983 = vld [vmem:[%s61 + $0xc] sm:$0xf]
    %v4984 = vld [vmem:[%s61 + $0x10] sm:$0xf]
    %v4985 = vld [vmem:[%s61 + $0x14] sm:$0xf]
    %v4986 = vld [vmem:[%s61 + $0x18] sm:$0xf]
    %v4987 = vld [vmem:[%s61 + $0x1c] sm:$0xf]
    %v4988 = vld [vmem:[%s61 + $0x20] sm:$0xf]
    %v4989 = vld [vmem:[%s61 + $0x24] sm:$0xf]
    %v4990 = vld [vmem:[%s61 + $0x28] sm:$0xf]
    %v4991 = vld [vmem:[%s61 + $0x2c] sm:$0xf]
    %v4992 = vld [vmem:[%s61 + $0x30] sm:$0xf]
    %v4993 = vld [vmem:[%s61 + $0x34] sm:$0xf]
    %v4994 = vld [vmem:[%s61 + $0x38] sm:$0xf]
    %v4995 = vld [vmem:[%s61 + $0x3c] sm:$0xf]
    %v4996 = vunpack.c.l.bf16 %v4980
    %v4997 = vunpack.c.l.bf16 %v4981
    %v4998 = vunpack.c.l.bf16 %v4982
    %v4999 = vunpack.c.l.bf16 %v4983
    %v5000 = vunpack.c.l.bf16 %v4984
    %v5001 = vunpack.c.l.bf16 %v4985
    %v5002 = vunpack.c.l.bf16 %v4986
    %v5003 = vunpack.c.l.bf16 %v4987
    %v5004 = vunpack.c.l.bf16 %v4988
    %v5005 = vunpack.c.l.bf16 %v4989
    %v5006 = vunpack.c.l.bf16 %v4990
    %v5007 = vunpack.c.l.bf16 %v4991
    %v5008 = vunpack.c.l.bf16 %v4992
    %v5009 = vunpack.c.l.bf16 %v4993
    %v5010 = vunpack.c.l.bf16 %v4994
    %v5011 = vunpack.c.l.bf16 %v4995
    %v5012 = vld [vmem:[#allocation3] sm:$0x1]
    %v5014 = vlaneseq
    %v5015 = vshrl.u32 %v5014, 7
    %v5016 = vsub.s32 0, %v5015
    %v5017 = vrot.slane %v5012, %v5016
    %5019 = vmatprep.subr.mxu0 0.0
    %5020 = vmatpush1.msra.mxu0 %v5011
    %5021 = vmatprep.subr.mxu0 0.0
    %5022 = vmatpush1.msra.mxu0 %v5010
    %5023 = vmatprep.subr.mxu0 0.0
    %5024 = vmatpush1.msra.mxu0 %v5009
    %5025 = vmatprep.subr.mxu0 0.0
    %5026 = vmatpush1.msra.mxu0 %v5008
    %5027 = vmatprep.subr.mxu0 0.0
    %5028 = vmatpush1.msra.mxu0 %v5007
    %5029 = vmatprep.subr.mxu0 0.0
    %5030 = vmatpush1.msra.mxu0 %v5006
    %5031 = vmatprep.subr.mxu0 0.0
    %5032 = vmatpush1.msra.mxu0 %v5005
    %5033 = vmatprep.subr.mxu0 0.0
    %5034 = vmatpush1.msra.mxu0 %v5004
    %5035 = vmatprep.subr.mxu0 0.0
    %5036 = vmatpush1.msra.mxu0 %v5003
    %5037 = vmatprep.subr.mxu0 0.0
    %5038 = vmatpush1.msra.mxu0 %v5002
    %5039 = vmatprep.subr.mxu0 0.0
    %5040 = vmatpush1.msra.mxu0 %v5001
    %5041 = vmatprep.subr.mxu0 0.0
    %5042 = vmatpush1.msra.mxu0 %v5000
    %5043 = vmatprep.subr.mxu0 0.0
    %5044 = vmatpush1.msra.mxu0 %v4999
    %5045 = vmatprep.subr.mxu0 0.0
    %5046 = vmatpush1.msra.mxu0 %v4998
    %5047 = vmatprep.subr.mxu0 0.0
    %5048 = vmatpush1.msra.mxu0 %v4997
    %5049 = vmatprep.subr.mxu0 0.0
    %5050 = vmatpush1.msra.mxu0 %v4996
    %5051 = vmatprep.subr.mxu0 0.0
    %5052 = vmatpush2.msra.mxu0 0.0
    %5053 = vmatprep.subr.mxu0 0.0
    %5054 = vmatpush2.msra.mxu0 0.0
    %5055 = vmatprep.subr.mxu0 0.0
    %5056 = vmatpush2.msra.mxu0 0.0
    %5057 = vmatprep.subr.mxu0 0.0
    %5058 = vmatpush2.msra.mxu0 0.0
    %5059 = vmatprep.subr.mxu0 0.0
    %5060 = vmatpush2.msra.mxu0 0.0
    %5061 = vmatprep.subr.mxu0 0.0
    %5062 = vmatpush2.msra.mxu0 0.0
    %5063 = vmatprep.subr.mxu0 0.0
    %5064 = vmatpush2.msra.mxu0 0.0
    %5065 = vmatprep.subr.mxu0 0.0
    %5066 = vmatpush2.msra.mxu0 0.0
    %5067 = vmatprep.subr.mxu0 0.0
    %5068 = vmatpush2.msra.mxu0 0.0
    %5069 = vmatprep.subr.mxu0 0.0
    %5070 = vmatpush2.msra.mxu0 0.0
    %5071 = vmatprep.subr.mxu0 0.0
    %5072 = vmatpush2.msra.mxu0 0.0
    %5073 = vmatprep.subr.mxu0 0.0
    %5074 = vmatpush2.msra.mxu0 0.0
    %5075 = vmatprep.subr.mxu0 0.0
    %5076 = vmatpush2.msra.mxu0 0.0
    %5077 = vmatprep.subr.mxu0 0.0
    %5078 = vmatpush2.msra.mxu0 0.0
    %5079 = vmatprep.subr.mxu0 0.0
    %5080 = vmatpush2.msra.mxu0 0.0
    %5081 = vmatprep.subr.mxu0 0.0
    %5082 = vmatpush2.msra.mxu0 0.0
    %5083 = vmatprep.mubr.f32.mxu0 0.0
    %5084 = vmatmul.mubr.f32.gmra.mxu0 %v4979
    %v5085 = vpop.f32.mrf.mxu0
    %v5086 = vadd.f32 %v5017, %v5085
    %v5087 = vpop.f32.mrf.mxu0
    %5088 = vdwg.mxu0
    %v5089 = vmax.f32 %v5086, 0.0
    %v5090 = vld [vmem:[%s69] sm:$0xf]
    %v5091 = vld [vmem:[%s69 + $0x4] sm:$0xf]
    %v5092 = vld [vmem:[%s69 + $0x8] sm:$0xf]
    %v5093 = vld [vmem:[%s69 + $0xc] sm:$0xf]
    %v5094 = vld [vmem:[%s69 + $0x10] sm:$0xf]
    %v5095 = vld [vmem:[%s69 + $0x14] sm:$0xf]
    %v5096 = vld [vmem:[%s69 + $0x18] sm:$0xf]
    %v5097 = vld [vmem:[%s69 + $0x1c] sm:$0xf]
    %v5098 = vld [vmem:[%s69 + $0x20] sm:$0xf]
    %v5099 = vld [vmem:[%s69 + $0x24] sm:$0xf]
    %v5100 = vld [vmem:[%s69 + $0x28] sm:$0xf]
    %v5101 = vld [vmem:[%s69 + $0x2c] sm:$0xf]
    %v5102 = vld [vmem:[%s69 + $0x30] sm:$0xf]
    %v5103 = vld [vmem:[%s69 + $0x34] sm:$0xf]
    %v5104 = vld [vmem:[%s69 + $0x38] sm:$0xf]
    %v5105 = vld [vmem:[%s69 + $0x3c] sm:$0xf]
    %v5106 = vld [vmem:[%s69 + $0x40] sm:$0xf]
    %v5107 = vld [vmem:[%s69 + $0x44] sm:$0xf]
    %v5108 = vld [vmem:[%s69 + $0x48] sm:$0xf]
    %v5109 = vld [vmem:[%s69 + $0x4c] sm:$0xf]
    %v5110 = vld [vmem:[%s69 + $0x50] sm:$0xf]
    %v5111 = vld [vmem:[%s69 + $0x54] sm:$0xf]
    %v5112 = vld [vmem:[%s69 + $0x58] sm:$0xf]
    %v5113 = vld [vmem:[%s69 + $0x5c] sm:$0xf]
    %v5114 = vld [vmem:[%s69 + $0x60] sm:$0xf]
    %v5115 = vld [vmem:[%s69 + $0x64] sm:$0xf]
    %v5116 = vld [vmem:[%s69 + $0x68] sm:$0xf]
    %v5117 = vld [vmem:[%s69 + $0x6c] sm:$0xf]
    %v5118 = vld [vmem:[%s69 + $0x70] sm:$0xf]
    %v5119 = vld [vmem:[%s69 + $0x74] sm:$0xf]
    %v5120 = vld [vmem:[%s69 + $0x78] sm:$0xf]
    %v5121 = vld [vmem:[%s69 + $0x7c] sm:$0xf]
    %v5122 = vunpack.c.l.bf16 %v5090
    %v5123 = vunpack.c.l.bf16 %v5091
    %v5124 = vunpack.c.l.bf16 %v5092
    %v5125 = vunpack.c.l.bf16 %v5093
    %v5126 = vunpack.c.l.bf16 %v5094
    %v5127 = vunpack.c.l.bf16 %v5095
    %v5128 = vunpack.c.l.bf16 %v5096
    %v5129 = vunpack.c.l.bf16 %v5097
    %v5130 = vunpack.c.l.bf16 %v5098
    %v5131 = vunpack.c.l.bf16 %v5099
    %v5132 = vunpack.c.l.bf16 %v5100
    %v5133 = vunpack.c.l.bf16 %v5101
    %v5134 = vunpack.c.l.bf16 %v5102
    %v5135 = vunpack.c.l.bf16 %v5103
    %v5136 = vunpack.c.l.bf16 %v5104
    %v5137 = vunpack.c.l.bf16 %v5105
    %v5138 = vunpack.c.l.bf16 %v5106
    %v5139 = vunpack.c.l.bf16 %v5107
    %v5140 = vunpack.c.l.bf16 %v5108
    %v5141 = vunpack.c.l.bf16 %v5109
    %v5142 = vunpack.c.l.bf16 %v5110
    %v5143 = vunpack.c.l.bf16 %v5111
    %v5144 = vunpack.c.l.bf16 %v5112
    %v5145 = vunpack.c.l.bf16 %v5113
    %v5146 = vunpack.c.l.bf16 %v5114
    %v5147 = vunpack.c.l.bf16 %v5115
    %v5148 = vunpack.c.l.bf16 %v5116
    %v5149 = vunpack.c.l.bf16 %v5117
    %v5150 = vunpack.c.l.bf16 %v5118
    %v5151 = vunpack.c.l.bf16 %v5119
    %v5152 = vunpack.c.l.bf16 %v5120
    %v5153 = vunpack.c.l.bf16 %v5121
    %v5154 = vld [vmem:[#allocation8] sm:$0x1]
    %v5156 = vlaneseq
    %v5157 = vshrl.u32 %v5156, 7
    %v5158 = vsub.s32 0, %v5157
    %v5159 = vrot.slane %v5154, %v5158
    %5161 = vmatprep.subr.mxu0 0.0
    %5162 = vmatpush1.msra.mxu0 %v5137
    %5163 = vmatprep.subr.mxu0 0.0
    %5164 = vmatpush1.msra.mxu0 %v5136
    %5165 = vmatprep.subr.mxu0 0.0
    %5166 = vmatpush1.msra.mxu0 %v5135
    %5167 = vmatprep.subr.mxu0 0.0
    %5168 = vmatpush1.msra.mxu0 %v5134
    %5169 = vmatprep.subr.mxu0 0.0
    %5170 = vmatpush1.msra.mxu0 %v5133
    %5171 = vmatprep.subr.mxu0 0.0
    %5172 = vmatpush1.msra.mxu0 %v5132
    %5173 = vmatprep.subr.mxu0 0.0
    %5174 = vmatpush1.msra.mxu0 %v5131
    %5175 = vmatprep.subr.mxu0 0.0
    %5176 = vmatpush1.msra.mxu0 %v5130
    %5177 = vmatprep.subr.mxu0 0.0
    %5178 = vmatpush1.msra.mxu0 %v5129
    %5179 = vmatprep.subr.mxu0 0.0
    %5180 = vmatpush1.msra.mxu0 %v5128
    %5181 = vmatprep.subr.mxu0 0.0
    %5182 = vmatpush1.msra.mxu0 %v5127
    %5183 = vmatprep.subr.mxu0 0.0
    %5184 = vmatpush1.msra.mxu0 %v5126
    %5185 = vmatprep.subr.mxu0 0.0
    %5186 = vmatpush1.msra.mxu0 %v5125
    %5187 = vmatprep.subr.mxu0 0.0
    %5188 = vmatpush1.msra.mxu0 %v5124
    %5189 = vmatprep.subr.mxu0 0.0
    %5190 = vmatpush1.msra.mxu0 %v5123
    %5191 = vmatprep.subr.mxu0 0.0
    %5192 = vmatpush1.msra.mxu0 %v5122
    %5193 = vmatprep.subr.mxu0 0.0
    %5194 = vmatpush2.msra.mxu0 %v5153
    %5195 = vmatprep.subr.mxu0 0.0
    %5196 = vmatpush2.msra.mxu0 %v5152
    %5197 = vmatprep.subr.mxu0 0.0
    %5198 = vmatpush2.msra.mxu0 %v5151
    %5199 = vmatprep.subr.mxu0 0.0
    %5200 = vmatpush2.msra.mxu0 %v5150
    %5201 = vmatprep.subr.mxu0 0.0
    %5202 = vmatpush2.msra.mxu0 %v5149
    %5203 = vmatprep.subr.mxu0 0.0
    %5204 = vmatpush2.msra.mxu0 %v5148
    %5205 = vmatprep.subr.mxu0 0.0
    %5206 = vmatpush2.msra.mxu0 %v5147
    %5207 = vmatprep.subr.mxu0 0.0
    %5208 = vmatpush2.msra.mxu0 %v5146
    %5209 = vmatprep.subr.mxu0 0.0
    %5210 = vmatpush2.msra.mxu0 %v5145
    %5211 = vmatprep.subr.mxu0 0.0
    %5212 = vmatpush2.msra.mxu0 %v5144
    %5213 = vmatprep.subr.mxu0 0.0
    %5214 = vmatpush2.msra.mxu0 %v5143
    %5215 = vmatprep.subr.mxu0 0.0
    %5216 = vmatpush2.msra.mxu0 %v5142
    %5217 = vmatprep.subr.mxu0 0.0
    %5218 = vmatpush2.msra.mxu0 %v5141
    %5219 = vmatprep.subr.mxu0 0.0
    %5220 = vmatpush2.msra.mxu0 %v5140
    %5221 = vmatprep.subr.mxu0 0.0
    %5222 = vmatpush2.msra.mxu0 %v5139
    %5223 = vmatprep.subr.mxu0 0.0
    %5224 = vmatpush2.msra.mxu0 %v5138
    %5225 = vmatprep.mubr.f32.mxu0 %v4837
    %5226 = vmatmul.mubr.f32.gmra.mxu0 %v4836
    %v5227 = vpop.f32.mrf.mxu0
    %v5228 = vadd.f32 %v5159, %v5227
    %v5229 = vpop.f32.mrf.mxu0
    %5230 = vdwg.mxu0
    %v5231 = vmax.f32 %v5228, 0.0
    %v5232 = vld [vmem:[%s73] sm:$0xf]
    %v5233 = vld [vmem:[%s73 + $0x4] sm:$0xf]
    %v5234 = vld [vmem:[%s73 + $0x8] sm:$0xf]
    %v5235 = vld [vmem:[%s73 + $0xc] sm:$0xf]
    %v5236 = vld [vmem:[%s73 + $0x10] sm:$0xf]
    %v5237 = vld [vmem:[%s73 + $0x14] sm:$0xf]
    %v5238 = vld [vmem:[%s73 + $0x18] sm:$0xf]
    %v5239 = vld [vmem:[%s73 + $0x1c] sm:$0xf]
    %v5240 = vunpack.c.l.bf16 %v5232
    %v5241 = vunpack.c.l.bf16 %v5233
    %v5242 = vunpack.c.l.bf16 %v5234
    %v5243 = vunpack.c.l.bf16 %v5235
    %v5244 = vunpack.c.l.bf16 %v5236
    %v5245 = vunpack.c.l.bf16 %v5237
    %v5246 = vunpack.c.l.bf16 %v5238
    %v5247 = vunpack.c.l.bf16 %v5239
    %v5248 = vld [vmem:[#allocation9] sm:$0x1]
    %v5250 = vlaneseq
    %v5251 = vshrl.u32 %v5250, 7
    %v5252 = vsub.s32 0, %v5251
    %v5253 = vrot.slane %v5248, %v5252
    %v5256 = vsel %vm487, %v5231, 0
    %5258 = vmatprep.subr.mxu0 0.0
    %5259 = vmatpush1.msra.mxu0 0.0
    %5260 = vmatprep.subr.mxu0 0.0
    %5261 = vmatpush1.msra.mxu0 0.0
    %5262 = vmatprep.subr.mxu0 0.0
    %5263 = vmatpush1.msra.mxu0 0.0
    %5264 = vmatprep.subr.mxu0 0.0
    %5265 = vmatpush1.msra.mxu0 0.0
    %5266 = vmatprep.subr.mxu0 0.0
    %5267 = vmatpush1.msra.mxu0 0.0
    %5268 = vmatprep.subr.mxu0 0.0
    %5269 = vmatpush1.msra.mxu0 0.0
    %5270 = vmatprep.subr.mxu0 0.0
    %5271 = vmatpush1.msra.mxu0 0.0
    %5272 = vmatprep.subr.mxu0 0.0
    %5273 = vmatpush1.msra.mxu0 0.0
    %5274 = vmatprep.subr.mxu0 0.0
    %5275 = vmatpush1.msra.mxu0 %v5247
    %5276 = vmatprep.subr.mxu0 0.0
    %5277 = vmatpush1.msra.mxu0 %v5246
    %5278 = vmatprep.subr.mxu0 0.0
    %5279 = vmatpush1.msra.mxu0 %v5245
    %5280 = vmatprep.subr.mxu0 0.0
    %5281 = vmatpush1.msra.mxu0 %v5244
    %5282 = vmatprep.subr.mxu0 0.0
    %5283 = vmatpush1.msra.mxu0 %v5243
    %5284 = vmatprep.subr.mxu0 0.0
    %5285 = vmatpush1.msra.mxu0 %v5242
    %5286 = vmatprep.subr.mxu0 0.0
    %5287 = vmatpush1.msra.mxu0 %v5241
    %5288 = vmatprep.subr.mxu0 0.0
    %5289 = vmatpush1.msra.mxu0 %v5240
    %5290 = vmatprep.subr.mxu0 0.0
    %5291 = vmatpush2.msra.mxu0 0.0
    %5292 = vmatprep.subr.mxu0 0.0
    %5293 = vmatpush2.msra.mxu0 0.0
    %5294 = vmatprep.subr.mxu0 0.0
    %5295 = vmatpush2.msra.mxu0 0.0
    %5296 = vmatprep.subr.mxu0 0.0
    %5297 = vmatpush2.msra.mxu0 0.0
    %5298 = vmatprep.subr.mxu0 0.0
    %5299 = vmatpush2.msra.mxu0 0.0
    %5300 = vmatprep.subr.mxu0 0.0
    %5301 = vmatpush2.msra.mxu0 0.0
    %5302 = vmatprep.subr.mxu0 0.0
    %5303 = vmatpush2.msra.mxu0 0.0
    %5304 = vmatprep.subr.mxu0 0.0
    %5305 = vmatpush2.msra.mxu0 0.0
    %5306 = vmatprep.subr.mxu0 0.0
    %5307 = vmatpush2.msra.mxu0 0.0
    %5308 = vmatprep.subr.mxu0 0.0
    %5309 = vmatpush2.msra.mxu0 0.0
    %5310 = vmatprep.subr.mxu0 0.0
    %5311 = vmatpush2.msra.mxu0 0.0
    %5312 = vmatprep.subr.mxu0 0.0
    %5313 = vmatpush2.msra.mxu0 0.0
    %5314 = vmatprep.subr.mxu0 0.0
    %5315 = vmatpush2.msra.mxu0 0.0
    %5316 = vmatprep.subr.mxu0 0.0
    %5317 = vmatpush2.msra.mxu0 0.0
    %5318 = vmatprep.subr.mxu0 0.0
    %5319 = vmatpush2.msra.mxu0 0.0
    %5320 = vmatprep.subr.mxu0 0.0
    %5321 = vmatpush2.msra.mxu0 0.0
    %5322 = vmatprep.mubr.f32.mxu0 0.0
    %5323 = vmatmul.mubr.f32.gmra.mxu0 %v5256
    %v5324 = vpop.f32.mrf.mxu0
    %v5325 = vadd.f32 %v5253, %v5324
    %v5326 = vpop.f32.mrf.mxu0
    %5327 = vdwg.mxu0
    %v5328 = vmax.f32 %v5325, 0.0
    %v5329 = vld [vmem:[%s77] sm:$0xf]
    %v5330 = vld [vmem:[%s77 + $0x4] sm:$0xf]
    %v5331 = vld [vmem:[%s77 + $0x8] sm:$0xf]
    %v5332 = vld [vmem:[%s77 + $0xc] sm:$0xf]
    %v5333 = vunpack.c.l.bf16 %v5329
    %v5334 = vunpack.c.l.bf16 %v5330
    %v5335 = vunpack.c.l.bf16 %v5331
    %v5336 = vunpack.c.l.bf16 %v5332
    %v5337 = vld [vmem:[#allocation2] sm:$0x1]
    %v5339 = vlaneseq
    %v5340 = vshrl.u32 %v5339, 7
    %v5341 = vsub.s32 0, %v5340
    %v5342 = vrot.slane %v5337, %v5341
    %vm5344 = vcmask 261120
    %v5346 = vsel %vm5344, %v5328, 0
    %5348 = vmatprep.subr.mxu0 0.0
    %5349 = vmatpush1.msra.mxu0 0.0
    %5350 = vmatprep.subr.mxu0 0.0
    %5351 = vmatpush1.msra.mxu0 0.0
    %5352 = vmatprep.subr.mxu0 0.0
    %5353 = vmatpush1.msra.mxu0 0.0
    %5354 = vmatprep.subr.mxu0 0.0
    %5355 = vmatpush1.msra.mxu0 0.0
    %5356 = vmatprep.subr.mxu0 0.0
    %5357 = vmatpush1.msra.mxu0 0.0
    %5358 = vmatprep.subr.mxu0 0.0
    %5359 = vmatpush1.msra.mxu0 0.0
    %5360 = vmatprep.subr.mxu0 0.0
    %5361 = vmatpush1.msra.mxu0 0.0
    %5362 = vmatprep.subr.mxu0 0.0
    %5363 = vmatpush1.msra.mxu0 0.0
    %5364 = vmatprep.subr.mxu0 0.0
    %5365 = vmatpush1.msra.mxu0 0.0
    %5366 = vmatprep.subr.mxu0 0.0
    %5367 = vmatpush1.msra.mxu0 0.0
    %5368 = vmatprep.subr.mxu0 0.0
    %5369 = vmatpush1.msra.mxu0 0.0
    %5370 = vmatprep.subr.mxu0 0.0
    %5371 = vmatpush1.msra.mxu0 0.0
    %5372 = vmatprep.subr.mxu0 0.0
    %5373 = vmatpush1.msra.mxu0 %v5336
    %5374 = vmatprep.subr.mxu0 0.0
    %5375 = vmatpush1.msra.mxu0 %v5335
    %5376 = vmatprep.subr.mxu0 0.0
    %5377 = vmatpush1.msra.mxu0 %v5334
    %5378 = vmatprep.subr.mxu0 0.0
    %5379 = vmatpush1.msra.mxu0 %v5333
    %5380 = vmatprep.subr.mxu0 0.0
    %5381 = vmatpush2.msra.mxu0 0.0
    %5382 = vmatprep.subr.mxu0 0.0
    %5383 = vmatpush2.msra.mxu0 0.0
    %5384 = vmatprep.subr.mxu0 0.0
    %5385 = vmatpush2.msra.mxu0 0.0
    %5386 = vmatprep.subr.mxu0 0.0
    %5387 = vmatpush2.msra.mxu0 0.0
    %5388 = vmatprep.subr.mxu0 0.0
    %5389 = vmatpush2.msra.mxu0 0.0
    %5390 = vmatprep.subr.mxu0 0.0
    %5391 = vmatpush2.msra.mxu0 0.0
    %5392 = vmatprep.subr.mxu0 0.0
    %5393 = vmatpush2.msra.mxu0 0.0
    %5394 = vmatprep.subr.mxu0 0.0
    %5395 = vmatpush2.msra.mxu0 0.0
    %5396 = vmatprep.subr.mxu0 0.0
    %5397 = vmatpush2.msra.mxu0 0.0
    %5398 = vmatprep.subr.mxu0 0.0
    %5399 = vmatpush2.msra.mxu0 0.0
    %5400 = vmatprep.subr.mxu0 0.0
    %5401 = vmatpush2.msra.mxu0 0.0
    %5402 = vmatprep.subr.mxu0 0.0
    %5403 = vmatpush2.msra.mxu0 0.0
    %5404 = vmatprep.subr.mxu0 0.0
    %5405 = vmatpush2.msra.mxu0 0.0
    %5406 = vmatprep.subr.mxu0 0.0
    %5407 = vmatpush2.msra.mxu0 0.0
    %5408 = vmatprep.subr.mxu0 0.0
    %5409 = vmatpush2.msra.mxu0 0.0
    %5410 = vmatprep.subr.mxu0 0.0
    %5411 = vmatpush2.msra.mxu0 0.0
    %5412 = vmatprep.mubr.f32.mxu0 0.0
    %5413 = vmatmul.mubr.f32.gmra.mxu0 %v5346
    %v5414 = vpop.f32.mrf.mxu0
    %v5415 = vadd.f32 %v5342, %v5414
    %v5416 = vpop.f32.mrf.mxu0
    %5417 = vdwg.mxu0
    %vm5418 = vcmask 1024
    %5419 = vst.msk [vmem:[%s83] sm:$0x3] %vm5418, %v5415
    %v5420 = vld [vmem:[%s65] sm:$0xf]
    %v5421 = vld [vmem:[%s65 + $0x4] sm:$0xf]
    %v5422 = vld [vmem:[%s65 + $0x8] sm:$0xf]
    %v5423 = vld [vmem:[%s65 + $0xc] sm:$0xf]
    %v5424 = vld [vmem:[%s65 + $0x10] sm:$0xf]
    %v5425 = vld [vmem:[%s65 + $0x14] sm:$0xf]
    %v5426 = vld [vmem:[%s65 + $0x18] sm:$0xf]
    %v5427 = vld [vmem:[%s65 + $0x1c] sm:$0xf]
    %v5428 = vunpack.c.l.bf16 %v5420
    %v5429 = vunpack.c.l.bf16 %v5421
    %v5430 = vunpack.c.l.bf16 %v5422
    %v5431 = vunpack.c.l.bf16 %v5423
    %v5432 = vunpack.c.l.bf16 %v5424
    %v5433 = vunpack.c.l.bf16 %v5425
    %v5434 = vunpack.c.l.bf16 %v5426
    %v5435 = vunpack.c.l.bf16 %v5427
    %v5436 = vld [vmem:[#allocation6] sm:$0x1]
    %v5438 = vlaneseq
    %v5439 = vshrl.u32 %v5438, 7
    %v5440 = vsub.s32 0, %v5439
    %v5441 = vrot.slane %v5436, %v5440
    %v5444 = vsel %vm487, %v5089, 0
    %5446 = vmatprep.subr.mxu0 0.0
    %5447 = vmatpush1.msra.mxu0 0.0
    %5448 = vmatprep.subr.mxu0 0.0
    %5449 = vmatpush1.msra.mxu0 0.0
    %5450 = vmatprep.subr.mxu0 0.0
    %5451 = vmatpush1.msra.mxu0 0.0
    %5452 = vmatprep.subr.mxu0 0.0
    %5453 = vmatpush1.msra.mxu0 0.0
    %5454 = vmatprep.subr.mxu0 0.0
    %5455 = vmatpush1.msra.mxu0 0.0
    %5456 = vmatprep.subr.mxu0 0.0
    %5457 = vmatpush1.msra.mxu0 0.0
    %5458 = vmatprep.subr.mxu0 0.0
    %5459 = vmatpush1.msra.mxu0 0.0
    %5460 = vmatprep.subr.mxu0 0.0
    %5461 = vmatpush1.msra.mxu0 0.0
    %5462 = vmatprep.subr.mxu0 0.0
    %5463 = vmatpush1.msra.mxu0 %v5435
    %5464 = vmatprep.subr.mxu0 0.0
    %5465 = vmatpush1.msra.mxu0 %v5434
    %5466 = vmatprep.subr.mxu0 0.0
    %5467 = vmatpush1.msra.mxu0 %v5433
    %5468 = vmatprep.subr.mxu0 0.0
    %5469 = vmatpush1.msra.mxu0 %v5432
    %5470 = vmatprep.subr.mxu0 0.0
    %5471 = vmatpush1.msra.mxu0 %v5431
    %5472 = vmatprep.subr.mxu0 0.0
    %5473 = vmatpush1.msra.mxu0 %v5430
    %5474 = vmatprep.subr.mxu0 0.0
    %5475 = vmatpush1.msra.mxu0 %v5429
    %5476 = vmatprep.subr.mxu0 0.0
    %5477 = vmatpush1.msra.mxu0 %v5428
    %5478 = vmatprep.subr.mxu0 0.0
    %5479 = vmatpush2.msra.mxu0 0.0
    %5480 = vmatprep.subr.mxu0 0.0
    %5481 = vmatpush2.msra.mxu0 0.0
    %5482 = vmatprep.subr.mxu0 0.0
    %5483 = vmatpush2.msra.mxu0 0.0
    %5484 = vmatprep.subr.mxu0 0.0
    %5485 = vmatpush2.msra.mxu0 0.0
    %5486 = vmatprep.subr.mxu0 0.0
    %5487 = vmatpush2.msra.mxu0 0.0
    %5488 = vmatprep.subr.mxu0 0.0
    %5489 = vmatpush2.msra.mxu0 0.0
    %5490 = vmatprep.subr.mxu0 0.0
    %5491 = vmatpush2.msra.mxu0 0.0
    %5492 = vmatprep.subr.mxu0 0.0
    %5493 = vmatpush2.msra.mxu0 0.0
    %5494 = vmatprep.subr.mxu0 0.0
    %5495 = vmatpush2.msra.mxu0 0.0
    %5496 = vmatprep.subr.mxu0 0.0
    %5497 = vmatpush2.msra.mxu0 0.0
    %5498 = vmatprep.subr.mxu0 0.0
    %5499 = vmatpush2.msra.mxu0 0.0
    %5500 = vmatprep.subr.mxu0 0.0
    %5501 = vmatpush2.msra.mxu0 0.0
    %5502 = vmatprep.subr.mxu0 0.0
    %5503 = vmatpush2.msra.mxu0 0.0
    %5504 = vmatprep.subr.mxu0 0.0
    %5505 = vmatpush2.msra.mxu0 0.0
    %5506 = vmatprep.subr.mxu0 0.0
    %5507 = vmatpush2.msra.mxu0 0.0
    %5508 = vmatprep.subr.mxu0 0.0
    %5509 = vmatpush2.msra.mxu0 0.0
    %5510 = vmatprep.mubr.f32.mxu0 0.0
    %5511 = vmatmul.mubr.f32.gmra.mxu0 %v5444
    %v5512 = vpop.f32.mrf.mxu0
    %v5513 = vadd.f32 %v5441, %v5512
    %v5514 = vpop.f32.mrf.mxu0
    %5515 = vdwg.mxu0
    %vm5516 = vcmask 17408
    %5517 = vst.msk [vmem:[#allocation12] sm:$0x3] %vm5516, %v5513
    %v5520 = vcombine.low %v3420, %v3421
    %v5522 = vunpack.c.l.s4 1983009808
    %v5523 = vunpack.c.0.s8 %v5522
    %v5524 = vlaneseq
    %v5525 = vshrl.u32 %v5524, 7
    %v5526 = vsub.s32 %v5523, %v5525
    %v5527 = vrot.slane %v5520, %v5526
    %5529 = vst [vmem:[#allocation14] sm:$0xf] %v5527
    %v5532 = vcombine.low %v3416, %v3417
    %v5534 = vunpack.c.l.s4 1983009808
    %v5535 = vunpack.c.0.s8 %v5534
    %v5536 = vlaneseq
    %v5537 = vshrl.u32 %v5536, 7
    %v5538 = vsub.s32 %v5535, %v5537
    %v5539 = vrot.slane %v5532, %v5538
    %5541 = vst [vmem:[#allocation15] sm:$0xf] %v5539
    // Predicated region
    $region178: #{gdan_forward.9} parent=1 // pred_check
      _
    $region179: #{gdan_forward.9} parent=1 // pred_check_branch
      %5543 = sbr.rel (0) target = $region181
    $region180: #{gdan_forward.9} parent=1 // pred_region
      %s5545 = ssub.s32 32, 32
      %5546 = vsyncadd [#allocation5], %s5545
      %s5548 = sshll.u32 [#allocation11], 4
      %s5549 = int_to_ptr.vmem [resolvable:$true] %s5548
      %5551 = dma.vmem_to_hbm [thread:$0]  %s5549, 32, %s81, [#allocation5]
    $region181: #{gdan_forward.9} parent=1 // pred_fallthru
      _
    // Predicated region
    $region182: #{gdan_forward.9} parent=1 // pred_check
      _
    $region183: #{gdan_forward.9} parent=1 // pred_check_branch
      %5553 = sbr.rel (0) target = $region185
    $region184: #{gdan_forward.9} parent=1 // pred_region
      _
    $region185: #{gdan_forward.9} parent=1 // pred_fallthru
      _
    // Predicated region
    $region186: #{gdan_forward.9} parent=1 // pred_check
      _
    $region187: #{gdan_forward.9} parent=1 // pred_check_branch
      %5555 = sbr.rel (0) target = $region189
    $region188: #{gdan_forward.9} parent=1 // pred_region
      %s5557 = ssub.s32 32, 32
      %5558 = vsyncadd [#allocation13], %s5557
      %s5560 = sshll.u32 [#allocation12], 4
      %s5561 = int_to_ptr.vmem [resolvable:$true] %s5560
      %5563 = dma.vmem_to_hbm [thread:$0]  %s5561, 32, %s85, [#allocation13]
    $region189: #{gdan_forward.9} parent=1 // pred_fallthru
      _
    // Predicated region
    $region190: #{gdan_forward.9} parent=1 // pred_check
      _
    $region191: #{gdan_forward.9} parent=1 // pred_check_branch
      %5565 = sbr.rel (0) target = $region193
    $region192: #{gdan_forward.9} parent=1 // pred_region
      %s5567 = ssub.s32 64, 64
      %5568 = vsyncadd [#allocation13], %s5567
      %s5570 = sshll.u32 [#allocation14], 4
      %s5571 = int_to_ptr.vmem [resolvable:$true] %s5570
      %5573 = dma.vmem_to_hbm [thread:$0]  %s5571, 64, %s87, [#allocation13]
    $region193: #{gdan_forward.9} parent=1 // pred_fallthru
      _
    // Predicated region
    $region194: #{gdan_forward.9} parent=1 // pred_check
      _
    $region195: #{gdan_forward.9} parent=1 // pred_check_branch
      %5575 = sbr.rel (0) target = $region197
    $region196: #{gdan_forward.9} parent=1 // pred_region
      %s5577 = ssub.s32 64, 64
      %5578 = vsyncadd [#allocation16], %s5577
      %s5580 = sshll.u32 [#allocation15], 4
      %s5581 = int_to_ptr.vmem [resolvable:$true] %s5580
      %5583 = dma.vmem_to_hbm [thread:$0]  %s5581, 64, %s89, [#allocation16]
    $region197: #{gdan_forward.9} parent=1 // pred_fallthru
      _
    // Predicated region
    $region198: #{gdan_forward.9} parent=1 // pred_check
      _
    $region199: #{gdan_forward.9} parent=1 // pred_check_branch
      %5585 = sbr.rel (0) target = $region201
    $region200: #{gdan_forward.9} parent=1 // pred_region
      %5586 = dma.done [#allocation5], 32
    $region201: #{gdan_forward.9} parent=1 // pred_fallthru
      _
    // Predicated region
    $region202: #{gdan_forward.9} parent=1 // pred_check
      _
    $region203: #{gdan_forward.9} parent=1 // pred_check_branch
      %5588 = sbr.rel (0) target = $region205
    $region204: #{gdan_forward.9} parent=1 // pred_region
      _
    $region205: #{gdan_forward.9} parent=1 // pred_fallthru
      _
    // Predicated region
    $region206: #{gdan_forward.9} parent=1 // pred_check
      _
    $region207: #{gdan_forward.9} parent=1 // pred_check_branch
      %5590 = sbr.rel (0) target = $region209
    $region208: #{gdan_forward.9} parent=1 // pred_region
      %5591 = dma.done [#allocation13], 32
    $region209: #{gdan_forward.9} parent=1 // pred_fallthru
      _
    // Predicated region
    $region210: #{gdan_forward.9} parent=1 // pred_check
      _
    $region211: #{gdan_forward.9} parent=1 // pred_check_branch
      %5593 = sbr.rel (0) target = $region213
    $region212: #{gdan_forward.9} parent=1 // pred_region
      %5594 = dma.done [#allocation13], 64
    $region213: #{gdan_forward.9} parent=1 // pred_fallthru
      _
    // Predicated region
    $region214: #{gdan_forward.9} parent=1 // pred_check
      _
    $region215: #{gdan_forward.9} parent=1 // pred_check_branch
      %5596 = sbr.rel (0) target = $region217
    $region216: #{gdan_forward.9} parent=1 // pred_region
      %5597 = dma.done [#allocation16], 64
    $region217: #{gdan_forward.9} parent=1 // pred_fallthru
      _
    %5598 = vsyncpa [#allocation4], 1
    %5599 = vsyncpa [#allocation7], 1
    %5600 = vsyncpa [#allocation10], 1
    %5601 = vsyncpa [#allocation5], 1
    %5602 = vsyncpa [#allocation13], 1
    %5603 = vsyncpa [#allocation16], 1

</llo_original>
